<compile_context>
chip_gen: v7x
topology: tpu7x:2x2x1
jax: 0.10.0
libtpu: 0.0.40
codegen_flags: <defaults>
</compile_context>

<pallas_src>
import numpy as np

import jax
import jax.numpy as jnp
from jax.experimental import pallas as pl
from jax.experimental.pallas import tpu as pltpu


_WIDTH = 12
_C1 = _WIDTH * 8          # 96 output channels of conv0

# (Hin, Win, Hup, Wup, kernel, pad) for each conv layer (spatial sizes before/after the
# nearest upsample that precedes it).
_LAYERS = (
    (1, 1, 2, 2, 2, 1),      # Conv2d(512,  96, k=2, pad=1)  -> 3x3
    (3, 3, 4, 4, 3, 1),      # Conv2d( 96, 256, k=3, pad=1)  -> 4x4
    (4, 4, 8, 8, 3, 1),      # Conv2d(256, 256, k=3, pad=1)  -> 8x8
    (8, 8, 14, 14, 3, 1),    # Conv2d(256, 256, k=3, pad=1)  -> 14x14
)


# ---------------------------------------------------------------------------
# Host-side (one-time) preprocessing
# ---------------------------------------------------------------------------
def _nearest_idx(out_size, in_size):
    # PyTorch nn.Upsample(mode='nearest'): src = floor(dst * in / out)
    return (np.arange(out_size) * in_size) // out_size


def _selection_matrices(hin, win, hup, wup, k, pad):
    """0/1 matrices folding nearest-upsample + zero-pad + conv tap shift.

    S[t, p, q] == 1 iff conv-output position p (row-major over the Ho x Wo grid), tap
    t = di*k + dj, reads pre-upsample input pixel q (row-major over Hin x Win).  Taps
    landing in the zero padding get an all-zero row (contribute 0)."""
    rows = _nearest_idx(hup, hin)
    cols = _nearest_idx(wup, win)
    ho = hup + 2 * pad - k + 1
    wo = wup + 2 * pad - k + 1
    s = np.zeros((k * k, ho * wo, hin * win), np.float32)
    for di in range(k):
        for dj in range(k):
            t = di * k + dj
            for oy in range(ho):
                for ox in range(wo):
                    yu, xu = oy + di - pad, ox + dj - pad
                    if 0 <= yu < hup and 0 <= xu < wup:
                        s[t, oy * wo + ox, rows[yu] * win + cols[xu]] = 1.0
    return s


def _cat_selector(layer):
    """Taps packed along K:  S_cat[p, t*Q + q] = S_t[p, q]  -> one gather GEMM."""
    s = _selection_matrices(*layer)                       # (T, P, Q)
    t, p, q = s.shape
    return np.ascontiguousarray(np.transpose(s, (1, 0, 2)).reshape(p, t * q))


def init_params(key, width=12):
    """Random parameters in (kh, kw, Cin, Cout) layout.
    NOTE: real PyTorch checkpoints are (Cout, Cin, kh, kw) and MUST be permuted to
    (kh, kw, Cin, Cout) before prepare_params, or results will be silently wrong."""
    nfms = width
    shapes = [
        (2, 2, 512, nfms * 8),   # Conv2d(512, 96, k=2, pad=1)
        (3, 3, nfms * 8, 256),   # Conv2d(96, 256, k=3, pad=1)
        (3, 3, 256, 256),        # Conv2d(256, 256, k=3, pad=1)
        (3, 3, 256, 256),        # Conv2d(256, 256, k=3, pad=1)
    ]
    params = []
    for s in shapes:
        key, wk, bk = jax.random.split(key, 3)
        fan_in = s[0] * s[1] * s[2]
        w = jax.random.normal(wk, s, jnp.float32) / jnp.sqrt(jnp.float32(fan_in))
        b = jax.random.normal(bk, (s[3],), jnp.float32) * 0.01
        params.append((w, b))
    return params


def prepare_params(params):
    """One-time prep (hoisted out of the forward path): weights reshaped to
    (taps, Cin, Cout) bf16 (no zero channel padding), biases as (1, Cout) f32 rows,
    conv0 tap-validity masks, and tap-concatenated upsample+pad+im2col selectors."""
    (w0, b0), (w1, b1), (w2, b2), (w3, b3) = params
    bf16, f32 = jnp.bfloat16, jnp.float32

    # conv0: 9 output positions x 4 taps validity mask (the 1x1 latent is replicated).
    m0 = jnp.asarray(_selection_matrices(*_LAYERS[0])[:, :, 0].T, f32)   # (9, 4)

    s1 = jnp.asarray(_selection_matrices(*_LAYERS[1]), bf16)     # (9, 16, 9) per-tap
    s2 = jnp.asarray(_cat_selector(_LAYERS[2]), bf16)            # (64, 144)  fused taps
    s3 = jnp.asarray(_cat_selector(_LAYERS[3]), bf16)            # (196, 576) fused taps

    w0p = w0.reshape(4, 512, _C1).astype(bf16)
    b0p = b0.reshape(1, _C1).astype(f32)
    w1p = w1.reshape(9, _C1, 256).astype(bf16)
    b1p = b1.reshape(1, 256).astype(f32)
    w2p = w2.reshape(9, 256, 256).astype(bf16)
    b2p = b2.reshape(1, 256).astype(f32)
    w3p = w3.reshape(9, 256, 256).astype(bf16)
    b3p = b3.reshape(1, 256).astype(f32)

    return (m0, s1, s2, s3, w0p, b0p, w1p, b1p, w2p, b2p, w3p, b3p)


# ---------------------------------------------------------------------------
# Fused Pallas kernel: whole decoder forward for one batch sample
# ---------------------------------------------------------------------------
def _generator_kernel(x_ref, m0_ref, s1_ref, s2_ref, s3_ref,
                      w0_ref, b0_ref, w1_ref, b1_ref,
                      w2_ref, b2_ref, w3_ref, b3_ref,
                      o_ref, h2_ref, h3_ref):
    f32, bf16 = jnp.float32, jnp.bfloat16

    def leaky(v):                                    # LeakyReLU(0.2): one VPU max
        return jnp.maximum(v, 0.2 * v)

    # ---- conv0: 1x1 latent -> up 2x2 -> k=2 pad=1 -> 3x3, 96 ch ----------------------
    # Upsampling a 1x1 input only replicates the latent, so each tap contributes
    # (latent @ W0_t) gated by a 0/1 validity column: 4 tiny GEMMs + VPU masked adds.
    x = x_ref[0].astype(bf16)                        # (1, 512)
    m0 = m0_ref[...]                                 # (9, 4)
    acc0 = None
    for t in range(4):
        y_t = jnp.dot(x, w0_ref[t], preferred_element_type=f32)       # (1, 96)
        c = m0[:, t:t + 1] * y_t                                       # (9, 96)
        acc0 = c if acc0 is None else acc0 + c
    act = leaky(acc0 + b0_ref[...]).astype(bf16)     # (9, 96)

    # ---- conv1: 3x3 -> up 4x4 -> k=3 pad=1 -> 4x4, 256 ch ----------------------------
    # Reassociated per-tap form acc += S_t @ (act @ W_t).  Tiny layer (Q=9, P=16);
    # Q=9 is sublane-unaligned so the stacked-scratch trick is not used here.
    acc = None
    for t in range(9):
        h_t = jnp.dot(act, w1_ref[t], preferred_element_type=f32)             # (9, 256)
        g = jnp.dot(s1_ref[t], h_t.astype(bf16), preferred_element_type=f32)  # (16, 256)
        acc = g if acc is None else acc + g
    act = leaky(acc + b1_ref[...]).astype(bf16)      # (16, 256)

    # ---- conv2 / conv3: fused-tap implicit GEMM --------------------------------------
    # 9 per-tap GEMMs h_t = act @ W_t written to a tile-aligned (9*Q, 256) bf16 stack,
    # then ONE big gather GEMM out = S_cat @ H (K = 9*Q), so the f32 accumulator is
    # produced in a single uninterrupted MXU pass and the bias/activation epilogue runs
    # exactly once per layer.
    def conv_fused(s_ref, w_ref, b_ref, act_in, h_ref, q):
        for t in range(9):                                         # static unroll
            h_t = jnp.dot(act_in, w_ref[t], preferred_element_type=f32)
            h_ref[pl.ds(t * q, q), :] = h_t.astype(bf16)           # tile-aligned store
        acc = jnp.dot(s_ref[...], h_ref[...], preferred_element_type=f32)
        return acc + b_ref[...]

    act = leaky(conv_fused(s2_ref, w2_ref, b2_ref, act, h2_ref, 16)).astype(bf16)  # (64,256)
    o_ref[0] = jnp.tanh(conv_fused(s3_ref, w3_ref, b3_ref, act, h3_ref, 64))       # (196,256)


def generator_forward(x, prep):
    """x: (B, 512) latent (PyTorch view(-1, 512, 1, 1)); returns NCHW (B, 256, 14, 14)."""
    B = x.shape[0]
    x3 = x.reshape(B, 1, 512).astype(jnp.float32)
    m0, s1, s2, s3, w0, b0, w1, b1, w2, b2, w3, b3 = prep

    # Advisory cost estimate (per sample, reassociated/fused formulation).
    conv0_f = 2 * 4 * 512 * _C1
    conv1_f = 2 * (9 * 9 * _C1 * 256 + 9 * 16 * 9 * 256)
    conv2_f = 2 * (9 * 16 * 256 * 256 + 64 * 144 * 256)
    conv3_f = 2 * (9 * 64 * 256 * 256 + 196 * 576 * 256)
    bytes_acc = (x3.size * x3.dtype.itemsize + B * 196 * 256 * 4
                 + sum(int(a.size) * a.dtype.itemsize for a in prep))
    cost = pl.CostEstimate(flops=B * (conv0_f + conv1_f + conv2_f + conv3_f),
                           transcendentals=B * 196 * 256,
                           bytes_accessed=int(bytes_acc))

    out = pl.pallas_call(
        _generator_kernel,
        out_shape=jax.ShapeDtypeStruct((B, 196, 256), jnp.float32),
        grid=(B,),
        in_specs=[
            pl.BlockSpec((1, 1, 512), lambda b: (b, 0, 0)),     # latent (per sample)
            pl.BlockSpec(m0.shape, lambda b: (0, 0)),           # conv0 tap-validity masks
            pl.BlockSpec(s1.shape, lambda b: (0, 0, 0)),        # conv1 per-tap selectors
            pl.BlockSpec(s2.shape, lambda b: (0, 0)),           # conv2 fused selector
            pl.BlockSpec(s3.shape, lambda b: (0, 0)),           # conv3 fused selector
            pl.BlockSpec(w0.shape, lambda b: (0, 0, 0)),        # weights (bf16) / biases (f32)
            pl.BlockSpec(b0.shape, lambda b: (0, 0)),
            pl.BlockSpec(w1.shape, lambda b: (0, 0, 0)),
            pl.BlockSpec(b1.shape, lambda b: (0, 0)),
            pl.BlockSpec(w2.shape, lambda b: (0, 0, 0)),
            pl.BlockSpec(b2.shape, lambda b: (0, 0)),
            pl.BlockSpec(w3.shape, lambda b: (0, 0, 0)),
            pl.BlockSpec(b3.shape, lambda b: (0, 0)),
        ],
        out_specs=pl.BlockSpec((1, 196, 256), lambda b: (b, 0, 0)),   # lane-dense NHWC-flat
        scratch_shapes=[pltpu.VMEM((9 * 16, 256), jnp.bfloat16),      # conv2 tap stack
                        pltpu.VMEM((9 * 64, 256), jnp.bfloat16)],     # conv3 tap stack
        compiler_params=pltpu.CompilerParams(
            dimension_semantics=("parallel",),          # 2 samples -> 2 TCs on v7x
            vmem_limit_bytes=32 * 1024 * 1024),         # explicit so scaling fails loudly
        cost_estimate=cost,
    )(x3, m0, s1, s2, s3, w0, b0, w1, b1, w2, b2, w3, b3)

    h = out.reshape(B, 14, 14, 256)                  # NHWC
    return jnp.transpose(h, (0, 3, 1, 2))            # NCHW, matching the PyTorch module


# ---------------------------------------------------------------------------
# Independent pure-JAX f32 reference (for correctness cross-check only)
# ---------------------------------------------------------------------------
def _reference_forward(x, params):
    B = x.shape[0]
    h = x.reshape(B, 1, 1, 512)                      # NHWC
    up_sizes = [(2, 2), (4, 4), (8, 8), (14, 14)]
    for li, ((w, b), (oh, ow)) in enumerate(zip(params, up_sizes)):
        H, W = h.shape[1], h.shape[2]
        rows = (jnp.arange(oh) * H) // oh
        cols = (jnp.arange(ow) * W) // ow
        h = h[:, rows][:, :, cols]                   # nearest upsample
        h = jax.lax.conv_general_dilated(
            h, w, window_strides=(1, 1), padding=[(1, 1), (1, 1)],
            dimension_numbers=("NHWC", "HWIO", "NHWC"),
            preferred_element_type=jnp.float32) + b
        h = jnp.tanh(h) if li == 3 else jnp.where(h >= 0.0, h, 0.2 * h)
    return jnp.transpose(h, (0, 3, 1, 2))            # NCHW


if __name__ == "__main__":
    key = jax.random.PRNGKey(0)
    pkey, xkey = jax.random.split(key)
    params = init_params(pkey, width=_WIDTH)
    prep = prepare_params(params)                    # one-time weight/selector prep

    batch = 2
    x = jax.random.normal(xkey, (batch, 512), jnp.float32)   # viewed as (B, 512, 1, 1)

    fwd = jax.jit(generator_forward)
    out = jax.block_until_ready(fwd(x, prep))

    assert out.shape == (batch, 256, 14, 14), out.shape
    assert bool(jnp.all(jnp.isfinite(out)))
    assert bool(jnp.all(jnp.abs(out) <= 1.0))        # tanh output range

    # Cross-check the fused bf16 kernel against an independent f32 XLA reference.
    ref = _reference_forward(x, params)
    max_err = float(jnp.max(jnp.abs(out - ref)))
    assert max_err < 0.1, f"max |kernel - reference| = {max_err}"

    print("KERNEL_OK")
</pallas_src>

<mosaic_0001>
module attributes {stable_mosaic.version = 11 : i64} {
  func.func @_generator_kernel(%arg0: i32, %arg1: memref<1x1x512xf32, #tpu.memory_space<vmem>>, %arg2: memref<9x4xf32, #tpu.memory_space<vmem>>, %arg3: memref<9x16x9xbf16, #tpu.memory_space<vmem>>, %arg4: memref<64x144xbf16, #tpu.memory_space<vmem>>, %arg5: memref<196x576xbf16, #tpu.memory_space<vmem>>, %arg6: memref<4x512x96xbf16, #tpu.memory_space<vmem>>, %arg7: memref<1x96xf32, #tpu.memory_space<vmem>>, %arg8: memref<9x96x256xbf16, #tpu.memory_space<vmem>>, %arg9: memref<1x256xf32, #tpu.memory_space<vmem>>, %arg10: memref<9x256x256xbf16, #tpu.memory_space<vmem>>, %arg11: memref<1x256xf32, #tpu.memory_space<vmem>>, %arg12: memref<9x256x256xbf16, #tpu.memory_space<vmem>>, %arg13: memref<1x256xf32, #tpu.memory_space<vmem>>, %arg14: memref<1x196x256xf32, #tpu.memory_space<vmem>>, %arg15: memref<144x256xbf16, #tpu.memory_space<vmem>>, %arg16: memref<576x256xbf16, #tpu.memory_space<vmem>>) attributes {dimension_semantics = [#tpu.dimension_semantics<parallel>], iteration_bounds = array<i64: 2>, scalar_prefetch = 0 : i64, scratch_operands = 2 : i64, tpu.core_type = #tpu.core_type<tc>, window_params = [{transform_indices = @transform_0, window_bounds = array<i64: 1, 1, 512>}, {pipeline_mode = #tpu.pipeline_mode<synchronous>, transform_indices = @transform_1, window_bounds = array<i64: 9, 4>}, {pipeline_mode = #tpu.pipeline_mode<synchronous>, transform_indices = @transform_2, window_bounds = array<i64: 9, 16, 9>}, {pipeline_mode = #tpu.pipeline_mode<synchronous>, transform_indices = @transform_3, window_bounds = array<i64: 64, 144>}, {pipeline_mode = #tpu.pipeline_mode<synchronous>, transform_indices = @transform_4, window_bounds = array<i64: 196, 576>}, {pipeline_mode = #tpu.pipeline_mode<synchronous>, transform_indices = @transform_5, window_bounds = array<i64: 4, 512, 96>}, {pipeline_mode = #tpu.pipeline_mode<synchronous>, transform_indices = @transform_6, window_bounds = array<i64: 1, 96>}, {pipeline_mode = #tpu.pipeline_mode<synchronous>, transform_indices = @transform_7, window_bounds = array<i64: 9, 96, 256>}, {pipeline_mode = #tpu.pipeline_mode<synchronous>, transform_indices = @transform_8, window_bounds = array<i64: 1, 256>}, {pipeline_mode = #tpu.pipeline_mode<synchronous>, transform_indices = @transform_9, window_bounds = array<i64: 9, 256, 256>}, {pipeline_mode = #tpu.pipeline_mode<synchronous>, transform_indices = @transform_10, window_bounds = array<i64: 1, 256>}, {pipeline_mode = #tpu.pipeline_mode<synchronous>, transform_indices = @transform_11, window_bounds = array<i64: 9, 256, 256>}, {pipeline_mode = #tpu.pipeline_mode<synchronous>, transform_indices = @transform_12, window_bounds = array<i64: 1, 256>}, {transform_indices = @transform_13, window_bounds = array<i64: 1, 196, 256>}]} {
    %c0 = arith.constant 0 : index
    %c0_0 = arith.constant 0 : index
    %c0_1 = arith.constant 0 : index
    %0 = vector.load %arg1[%c0, %c0_0, %c0_1] : memref<1x1x512xf32, #tpu.memory_space<vmem>>, vector<1x1x512xf32>
    %1 = vector.shape_cast %0 : vector<1x1x512xf32> to vector<1x512xf32>
    %2 = arith.truncf %1 : vector<1x512xf32> to vector<1x512xbf16>
    %c0_2 = arith.constant 0 : index
    %c0_3 = arith.constant 0 : index
    %3 = vector.load %arg2[%c0_2, %c0_3] : memref<9x4xf32, #tpu.memory_space<vmem>>, vector<9x4xf32>
    %c0_4 = arith.constant 0 : index
    %c0_5 = arith.constant 0 : index
    %c0_6 = arith.constant 0 : index
    %4 = vector.load %arg6[%c0_4, %c0_5, %c0_6] : memref<4x512x96xbf16, #tpu.memory_space<vmem>>, vector<1x512x96xbf16>
    %5 = vector.shape_cast %4 : vector<1x512x96xbf16> to vector<512x96xbf16>
    %cst = arith.constant dense<0.000000e+00> : vector<1x96xf32>
    %6 = tpu.matmul %2, %5, %cst {dimension_numbers = #tpu.dot_dimension_numbers<[1], [0], [0], [1], [0, 0, 1, 1], [], []>} : vector<1x512xbf16>, vector<512x96xbf16>, vector<1x96xf32> -> vector<1x96xf32>
    %7 = vector.extract_strided_slice %3 {offsets = [0, 0], sizes = [9, 1], strides = [1, 1]} : vector<9x4xf32> to vector<9x1xf32>
    %8 = vector.broadcast %7 : vector<9x1xf32> to vector<9x96xf32>
    %9 = vector.broadcast %6 : vector<1x96xf32> to vector<9x96xf32>
    %10 = arith.mulf %8, %9 : vector<9x96xf32>
    %c1 = arith.constant 1 : index
    %c0_7 = arith.constant 0 : index
    %c0_8 = arith.constant 0 : index
    %11 = vector.load %arg6[%c1, %c0_7, %c0_8] : memref<4x512x96xbf16, #tpu.memory_space<vmem>>, vector<1x512x96xbf16>
    %12 = vector.shape_cast %11 : vector<1x512x96xbf16> to vector<512x96xbf16>
    %cst_9 = arith.constant dense<0.000000e+00> : vector<1x96xf32>
    %13 = tpu.matmul %2, %12, %cst_9 {dimension_numbers = #tpu.dot_dimension_numbers<[1], [0], [0], [1], [0, 0, 1, 1], [], []>} : vector<1x512xbf16>, vector<512x96xbf16>, vector<1x96xf32> -> vector<1x96xf32>
    %14 = vector.extract_strided_slice %3 {offsets = [0, 1], sizes = [9, 1], strides = [1, 1]} : vector<9x4xf32> to vector<9x1xf32>
    %15 = vector.broadcast %14 : vector<9x1xf32> to vector<9x96xf32>
    %16 = vector.broadcast %13 : vector<1x96xf32> to vector<9x96xf32>
    %17 = arith.mulf %15, %16 : vector<9x96xf32>
    %18 = arith.addf %10, %17 : vector<9x96xf32>
    %c2 = arith.constant 2 : index
    %c0_10 = arith.constant 0 : index
    %c0_11 = arith.constant 0 : index
    %19 = vector.load %arg6[%c2, %c0_10, %c0_11] : memref<4x512x96xbf16, #tpu.memory_space<vmem>>, vector<1x512x96xbf16>
    %20 = vector.shape_cast %19 : vector<1x512x96xbf16> to vector<512x96xbf16>
    %cst_12 = arith.constant dense<0.000000e+00> : vector<1x96xf32>
    %21 = tpu.matmul %2, %20, %cst_12 {dimension_numbers = #tpu.dot_dimension_numbers<[1], [0], [0], [1], [0, 0, 1, 1], [], []>} : vector<1x512xbf16>, vector<512x96xbf16>, vector<1x96xf32> -> vector<1x96xf32>
    %22 = vector.extract_strided_slice %3 {offsets = [0, 2], sizes = [9, 1], strides = [1, 1]} : vector<9x4xf32> to vector<9x1xf32>
    %23 = vector.broadcast %22 : vector<9x1xf32> to vector<9x96xf32>
    %24 = vector.broadcast %21 : vector<1x96xf32> to vector<9x96xf32>
    %25 = arith.mulf %23, %24 : vector<9x96xf32>
    %26 = arith.addf %18, %25 : vector<9x96xf32>
    %c3 = arith.constant 3 : index
    %c0_13 = arith.constant 0 : index
    %c0_14 = arith.constant 0 : index
    %27 = vector.load %arg6[%c3, %c0_13, %c0_14] : memref<4x512x96xbf16, #tpu.memory_space<vmem>>, vector<1x512x96xbf16>
    %28 = vector.shape_cast %27 : vector<1x512x96xbf16> to vector<512x96xbf16>
    %cst_15 = arith.constant dense<0.000000e+00> : vector<1x96xf32>
    %29 = tpu.matmul %2, %28, %cst_15 {dimension_numbers = #tpu.dot_dimension_numbers<[1], [0], [0], [1], [0, 0, 1, 1], [], []>} : vector<1x512xbf16>, vector<512x96xbf16>, vector<1x96xf32> -> vector<1x96xf32>
    %30 = vector.extract_strided_slice %3 {offsets = [0, 3], sizes = [9, 1], strides = [1, 1]} : vector<9x4xf32> to vector<9x1xf32>
    %31 = vector.broadcast %30 : vector<9x1xf32> to vector<9x96xf32>
    %32 = vector.broadcast %29 : vector<1x96xf32> to vector<9x96xf32>
    %33 = arith.mulf %31, %32 : vector<9x96xf32>
    %34 = arith.addf %26, %33 : vector<9x96xf32>
    %c0_16 = arith.constant 0 : index
    %c0_17 = arith.constant 0 : index
    %35 = vector.load %arg7[%c0_16, %c0_17] : memref<1x96xf32, #tpu.memory_space<vmem>>, vector<1x96xf32>
    %36 = vector.broadcast %35 : vector<1x96xf32> to vector<9x96xf32>
    %37 = arith.addf %34, %36 : vector<9x96xf32>
    %cst_18 = arith.constant 2.000000e-01 : f32
    %38 = vector.broadcast %cst_18 : f32 to vector<9x96xf32>
    %39 = arith.mulf %38, %37 : vector<9x96xf32>
    %40 = arith.maximumf %37, %39 : vector<9x96xf32>
    %41 = arith.truncf %40 : vector<9x96xf32> to vector<9x96xbf16>
    %c0_19 = arith.constant 0 : index
    %c0_20 = arith.constant 0 : index
    %c0_21 = arith.constant 0 : index
    %42 = vector.load %arg8[%c0_19, %c0_20, %c0_21] : memref<9x96x256xbf16, #tpu.memory_space<vmem>>, vector<1x96x256xbf16>
    %43 = vector.shape_cast %42 : vector<1x96x256xbf16> to vector<96x256xbf16>
    %cst_22 = arith.constant dense<0.000000e+00> : vector<9x256xf32>
    %44 = tpu.matmul %41, %43, %cst_22 {dimension_numbers = #tpu.dot_dimension_numbers<[1], [0], [0], [1], [0, 0, 1, 1], [], []>} : vector<9x96xbf16>, vector<96x256xbf16>, vector<9x256xf32> -> vector<9x256xf32>
    %c0_23 = arith.constant 0 : index
    %c0_24 = arith.constant 0 : index
    %c0_25 = arith.constant 0 : index
    %45 = vector.load %arg3[%c0_23, %c0_24, %c0_25] : memref<9x16x9xbf16, #tpu.memory_space<vmem>>, vector<1x16x9xbf16>
    %46 = vector.shape_cast %45 : vector<1x16x9xbf16> to vector<16x9xbf16>
    %47 = arith.truncf %44 : vector<9x256xf32> to vector<9x256xbf16>
    %cst_26 = arith.constant dense<0.000000e+00> : vector<16x256xf32>
    %48 = tpu.matmul %46, %47, %cst_26 {dimension_numbers = #tpu.dot_dimension_numbers<[1], [0], [0], [1], [0, 0, 1, 1], [], []>} : vector<16x9xbf16>, vector<9x256xbf16>, vector<16x256xf32> -> vector<16x256xf32>
    %c1_27 = arith.constant 1 : index
    %c0_28 = arith.constant 0 : index
    %c0_29 = arith.constant 0 : index
    %49 = vector.load %arg8[%c1_27, %c0_28, %c0_29] : memref<9x96x256xbf16, #tpu.memory_space<vmem>>, vector<1x96x256xbf16>
    %50 = vector.shape_cast %49 : vector<1x96x256xbf16> to vector<96x256xbf16>
    %cst_30 = arith.constant dense<0.000000e+00> : vector<9x256xf32>
    %51 = tpu.matmul %41, %50, %cst_30 {dimension_numbers = #tpu.dot_dimension_numbers<[1], [0], [0], [1], [0, 0, 1, 1], [], []>} : vector<9x96xbf16>, vector<96x256xbf16>, vector<9x256xf32> -> vector<9x256xf32>
    %c1_31 = arith.constant 1 : index
    %c0_32 = arith.constant 0 : index
    %c0_33 = arith.constant 0 : index
    %52 = vector.load %arg3[%c1_31, %c0_32, %c0_33] : memref<9x16x9xbf16, #tpu.memory_space<vmem>>, vector<1x16x9xbf16>
    %53 = vector.shape_cast %52 : vector<1x16x9xbf16> to vector<16x9xbf16>
    %54 = arith.truncf %51 : vector<9x256xf32> to vector<9x256xbf16>
    %cst_34 = arith.constant dense<0.000000e+00> : vector<16x256xf32>
    %55 = tpu.matmul %53, %54, %cst_34 {dimension_numbers = #tpu.dot_dimension_numbers<[1], [0], [0], [1], [0, 0, 1, 1], [], []>} : vector<16x9xbf16>, vector<9x256xbf16>, vector<16x256xf32> -> vector<16x256xf32>
    %56 = arith.addf %48, %55 : vector<16x256xf32>
    %c2_35 = arith.constant 2 : index
    %c0_36 = arith.constant 0 : index
    %c0_37 = arith.constant 0 : index
    %57 = vector.load %arg8[%c2_35, %c0_36, %c0_37] : memref<9x96x256xbf16, #tpu.memory_space<vmem>>, vector<1x96x256xbf16>
    %58 = vector.shape_cast %57 : vector<1x96x256xbf16> to vector<96x256xbf16>
    %cst_38 = arith.constant dense<0.000000e+00> : vector<9x256xf32>
    %59 = tpu.matmul %41, %58, %cst_38 {dimension_numbers = #tpu.dot_dimension_numbers<[1], [0], [0], [1], [0, 0, 1, 1], [], []>} : vector<9x96xbf16>, vector<96x256xbf16>, vector<9x256xf32> -> vector<9x256xf32>
    %c2_39 = arith.constant 2 : index
    %c0_40 = arith.constant 0 : index
    %c0_41 = arith.constant 0 : index
    %60 = vector.load %arg3[%c2_39, %c0_40, %c0_41] : memref<9x16x9xbf16, #tpu.memory_space<vmem>>, vector<1x16x9xbf16>
    %61 = vector.shape_cast %60 : vector<1x16x9xbf16> to vector<16x9xbf16>
    %62 = arith.truncf %59 : vector<9x256xf32> to vector<9x256xbf16>
    %cst_42 = arith.constant dense<0.000000e+00> : vector<16x256xf32>
    %63 = tpu.matmul %61, %62, %cst_42 {dimension_numbers = #tpu.dot_dimension_numbers<[1], [0], [0], [1], [0, 0, 1, 1], [], []>} : vector<16x9xbf16>, vector<9x256xbf16>, vector<16x256xf32> -> vector<16x256xf32>
    %64 = arith.addf %56, %63 : vector<16x256xf32>
    %c3_43 = arith.constant 3 : index
    %c0_44 = arith.constant 0 : index
    %c0_45 = arith.constant 0 : index
    %65 = vector.load %arg8[%c3_43, %c0_44, %c0_45] : memref<9x96x256xbf16, #tpu.memory_space<vmem>>, vector<1x96x256xbf16>
    %66 = vector.shape_cast %65 : vector<1x96x256xbf16> to vector<96x256xbf16>
    %cst_46 = arith.constant dense<0.000000e+00> : vector<9x256xf32>
    %67 = tpu.matmul %41, %66, %cst_46 {dimension_numbers = #tpu.dot_dimension_numbers<[1], [0], [0], [1], [0, 0, 1, 1], [], []>} : vector<9x96xbf16>, vector<96x256xbf16>, vector<9x256xf32> -> vector<9x256xf32>
    %c3_47 = arith.constant 3 : index
    %c0_48 = arith.constant 0 : index
    %c0_49 = arith.constant 0 : index
    %68 = vector.load %arg3[%c3_47, %c0_48, %c0_49] : memref<9x16x9xbf16, #tpu.memory_space<vmem>>, vector<1x16x9xbf16>
    %69 = vector.shape_cast %68 : vector<1x16x9xbf16> to vector<16x9xbf16>
    %70 = arith.truncf %67 : vector<9x256xf32> to vector<9x256xbf16>
    %cst_50 = arith.constant dense<0.000000e+00> : vector<16x256xf32>
    %71 = tpu.matmul %69, %70, %cst_50 {dimension_numbers = #tpu.dot_dimension_numbers<[1], [0], [0], [1], [0, 0, 1, 1], [], []>} : vector<16x9xbf16>, vector<9x256xbf16>, vector<16x256xf32> -> vector<16x256xf32>
    %72 = arith.addf %64, %71 : vector<16x256xf32>
    %c4 = arith.constant 4 : index
    %c0_51 = arith.constant 0 : index
    %c0_52 = arith.constant 0 : index
    %73 = vector.load %arg8[%c4, %c0_51, %c0_52] : memref<9x96x256xbf16, #tpu.memory_space<vmem>>, vector<1x96x256xbf16>
    %74 = vector.shape_cast %73 : vector<1x96x256xbf16> to vector<96x256xbf16>
    %cst_53 = arith.constant dense<0.000000e+00> : vector<9x256xf32>
    %75 = tpu.matmul %41, %74, %cst_53 {dimension_numbers = #tpu.dot_dimension_numbers<[1], [0], [0], [1], [0, 0, 1, 1], [], []>} : vector<9x96xbf16>, vector<96x256xbf16>, vector<9x256xf32> -> vector<9x256xf32>
    %c4_54 = arith.constant 4 : index
    %c0_55 = arith.constant 0 : index
    %c0_56 = arith.constant 0 : index
    %76 = vector.load %arg3[%c4_54, %c0_55, %c0_56] : memref<9x16x9xbf16, #tpu.memory_space<vmem>>, vector<1x16x9xbf16>
    %77 = vector.shape_cast %76 : vector<1x16x9xbf16> to vector<16x9xbf16>
    %78 = arith.truncf %75 : vector<9x256xf32> to vector<9x256xbf16>
    %cst_57 = arith.constant dense<0.000000e+00> : vector<16x256xf32>
    %79 = tpu.matmul %77, %78, %cst_57 {dimension_numbers = #tpu.dot_dimension_numbers<[1], [0], [0], [1], [0, 0, 1, 1], [], []>} : vector<16x9xbf16>, vector<9x256xbf16>, vector<16x256xf32> -> vector<16x256xf32>
    %80 = arith.addf %72, %79 : vector<16x256xf32>
    %c5 = arith.constant 5 : index
    %c0_58 = arith.constant 0 : index
    %c0_59 = arith.constant 0 : index
    %81 = vector.load %arg8[%c5, %c0_58, %c0_59] : memref<9x96x256xbf16, #tpu.memory_space<vmem>>, vector<1x96x256xbf16>
    %82 = vector.shape_cast %81 : vector<1x96x256xbf16> to vector<96x256xbf16>
    %cst_60 = arith.constant dense<0.000000e+00> : vector<9x256xf32>
    %83 = tpu.matmul %41, %82, %cst_60 {dimension_numbers = #tpu.dot_dimension_numbers<[1], [0], [0], [1], [0, 0, 1, 1], [], []>} : vector<9x96xbf16>, vector<96x256xbf16>, vector<9x256xf32> -> vector<9x256xf32>
    %c5_61 = arith.constant 5 : index
    %c0_62 = arith.constant 0 : index
    %c0_63 = arith.constant 0 : index
    %84 = vector.load %arg3[%c5_61, %c0_62, %c0_63] : memref<9x16x9xbf16, #tpu.memory_space<vmem>>, vector<1x16x9xbf16>
    %85 = vector.shape_cast %84 : vector<1x16x9xbf16> to vector<16x9xbf16>
    %86 = arith.truncf %83 : vector<9x256xf32> to vector<9x256xbf16>
    %cst_64 = arith.constant dense<0.000000e+00> : vector<16x256xf32>
    %87 = tpu.matmul %85, %86, %cst_64 {dimension_numbers = #tpu.dot_dimension_numbers<[1], [0], [0], [1], [0, 0, 1, 1], [], []>} : vector<16x9xbf16>, vector<9x256xbf16>, vector<16x256xf32> -> vector<16x256xf32>
    %88 = arith.addf %80, %87 : vector<16x256xf32>
    %c6 = arith.constant 6 : index
    %c0_65 = arith.constant 0 : index
    %c0_66 = arith.constant 0 : index
    %89 = vector.load %arg8[%c6, %c0_65, %c0_66] : memref<9x96x256xbf16, #tpu.memory_space<vmem>>, vector<1x96x256xbf16>
    %90 = vector.shape_cast %89 : vector<1x96x256xbf16> to vector<96x256xbf16>
    %cst_67 = arith.constant dense<0.000000e+00> : vector<9x256xf32>
    %91 = tpu.matmul %41, %90, %cst_67 {dimension_numbers = #tpu.dot_dimension_numbers<[1], [0], [0], [1], [0, 0, 1, 1], [], []>} : vector<9x96xbf16>, vector<96x256xbf16>, vector<9x256xf32> -> vector<9x256xf32>
    %c6_68 = arith.constant 6 : index
    %c0_69 = arith.constant 0 : index
    %c0_70 = arith.constant 0 : index
    %92 = vector.load %arg3[%c6_68, %c0_69, %c0_70] : memref<9x16x9xbf16, #tpu.memory_space<vmem>>, vector<1x16x9xbf16>
    %93 = vector.shape_cast %92 : vector<1x16x9xbf16> to vector<16x9xbf16>
    %94 = arith.truncf %91 : vector<9x256xf32> to vector<9x256xbf16>
    %cst_71 = arith.constant dense<0.000000e+00> : vector<16x256xf32>
    %95 = tpu.matmul %93, %94, %cst_71 {dimension_numbers = #tpu.dot_dimension_numbers<[1], [0], [0], [1], [0, 0, 1, 1], [], []>} : vector<16x9xbf16>, vector<9x256xbf16>, vector<16x256xf32> -> vector<16x256xf32>
    %96 = arith.addf %88, %95 : vector<16x256xf32>
    %c7 = arith.constant 7 : index
    %c0_72 = arith.constant 0 : index
    %c0_73 = arith.constant 0 : index
    %97 = vector.load %arg8[%c7, %c0_72, %c0_73] : memref<9x96x256xbf16, #tpu.memory_space<vmem>>, vector<1x96x256xbf16>
    %98 = vector.shape_cast %97 : vector<1x96x256xbf16> to vector<96x256xbf16>
    %cst_74 = arith.constant dense<0.000000e+00> : vector<9x256xf32>
    %99 = tpu.matmul %41, %98, %cst_74 {dimension_numbers = #tpu.dot_dimension_numbers<[1], [0], [0], [1], [0, 0, 1, 1], [], []>} : vector<9x96xbf16>, vector<96x256xbf16>, vector<9x256xf32> -> vector<9x256xf32>
    %c7_75 = arith.constant 7 : index
    %c0_76 = arith.constant 0 : index
    %c0_77 = arith.constant 0 : index
    %100 = vector.load %arg3[%c7_75, %c0_76, %c0_77] : memref<9x16x9xbf16, #tpu.memory_space<vmem>>, vector<1x16x9xbf16>
    %101 = vector.shape_cast %100 : vector<1x16x9xbf16> to vector<16x9xbf16>
    %102 = arith.truncf %99 : vector<9x256xf32> to vector<9x256xbf16>
    %cst_78 = arith.constant dense<0.000000e+00> : vector<16x256xf32>
    %103 = tpu.matmul %101, %102, %cst_78 {dimension_numbers = #tpu.dot_dimension_numbers<[1], [0], [0], [1], [0, 0, 1, 1], [], []>} : vector<16x9xbf16>, vector<9x256xbf16>, vector<16x256xf32> -> vector<16x256xf32>
    %104 = arith.addf %96, %103 : vector<16x256xf32>
    %c8 = arith.constant 8 : index
    %c0_79 = arith.constant 0 : index
    %c0_80 = arith.constant 0 : index
    %105 = vector.load %arg8[%c8, %c0_79, %c0_80] : memref<9x96x256xbf16, #tpu.memory_space<vmem>>, vector<1x96x256xbf16>
    %106 = vector.shape_cast %105 : vector<1x96x256xbf16> to vector<96x256xbf16>
    %cst_81 = arith.constant dense<0.000000e+00> : vector<9x256xf32>
    %107 = tpu.matmul %41, %106, %cst_81 {dimension_numbers = #tpu.dot_dimension_numbers<[1], [0], [0], [1], [0, 0, 1, 1], [], []>} : vector<9x96xbf16>, vector<96x256xbf16>, vector<9x256xf32> -> vector<9x256xf32>
    %c8_82 = arith.constant 8 : index
    %c0_83 = arith.constant 0 : index
    %c0_84 = arith.constant 0 : index
    %108 = vector.load %arg3[%c8_82, %c0_83, %c0_84] : memref<9x16x9xbf16, #tpu.memory_space<vmem>>, vector<1x16x9xbf16>
    %109 = vector.shape_cast %108 : vector<1x16x9xbf16> to vector<16x9xbf16>
    %110 = arith.truncf %107 : vector<9x256xf32> to vector<9x256xbf16>
    %cst_85 = arith.constant dense<0.000000e+00> : vector<16x256xf32>
    %111 = tpu.matmul %109, %110, %cst_85 {dimension_numbers = #tpu.dot_dimension_numbers<[1], [0], [0], [1], [0, 0, 1, 1], [], []>} : vector<16x9xbf16>, vector<9x256xbf16>, vector<16x256xf32> -> vector<16x256xf32>
    %112 = arith.addf %104, %111 : vector<16x256xf32>
    %c0_86 = arith.constant 0 : index
    %c0_87 = arith.constant 0 : index
    %113 = vector.load %arg9[%c0_86, %c0_87] : memref<1x256xf32, #tpu.memory_space<vmem>>, vector<1x256xf32>
    %114 = vector.broadcast %113 : vector<1x256xf32> to vector<16x256xf32>
    %115 = arith.addf %112, %114 : vector<16x256xf32>
    %cst_88 = arith.constant 2.000000e-01 : f32
    %116 = vector.broadcast %cst_88 : f32 to vector<16x256xf32>
    %117 = arith.mulf %116, %115 : vector<16x256xf32>
    %118 = arith.maximumf %115, %117 : vector<16x256xf32>
    %119 = arith.truncf %118 : vector<16x256xf32> to vector<16x256xbf16>
    %c0_89 = arith.constant 0 : index
    %c0_90 = arith.constant 0 : index
    %c0_91 = arith.constant 0 : index
    %120 = vector.load %arg10[%c0_89, %c0_90, %c0_91] : memref<9x256x256xbf16, #tpu.memory_space<vmem>>, vector<1x256x256xbf16>
    %121 = vector.shape_cast %120 : vector<1x256x256xbf16> to vector<256x256xbf16>
    %cst_92 = arith.constant dense<0.000000e+00> : vector<16x256xf32>
    %122 = tpu.matmul %119, %121, %cst_92 {dimension_numbers = #tpu.dot_dimension_numbers<[1], [0], [0], [1], [0, 0, 1, 1], [], []>} : vector<16x256xbf16>, vector<256x256xbf16>, vector<16x256xf32> -> vector<16x256xf32>
    %123 = arith.truncf %122 : vector<16x256xf32> to vector<16x256xbf16>
    %c0_93 = arith.constant 0 : index
    %c0_94 = arith.constant 0 : index
    %124 = vector.load %arg15[%c0_93, %c0_94] : memref<144x256xbf16, #tpu.memory_space<vmem>>, vector<16x256xbf16>
    tpu.vector_store %arg15[%c0_93, %c0_94], %123 {strides = array<i32>} : memref<144x256xbf16, #tpu.memory_space<vmem>>, vector<16x256xbf16>,
    %c1_95 = arith.constant 1 : index
    %c0_96 = arith.constant 0 : index
    %c0_97 = arith.constant 0 : index
    %125 = vector.load %arg10[%c1_95, %c0_96, %c0_97] : memref<9x256x256xbf16, #tpu.memory_space<vmem>>, vector<1x256x256xbf16>
    %126 = vector.shape_cast %125 : vector<1x256x256xbf16> to vector<256x256xbf16>
    %cst_98 = arith.constant dense<0.000000e+00> : vector<16x256xf32>
    %127 = tpu.matmul %119, %126, %cst_98 {dimension_numbers = #tpu.dot_dimension_numbers<[1], [0], [0], [1], [0, 0, 1, 1], [], []>} : vector<16x256xbf16>, vector<256x256xbf16>, vector<16x256xf32> -> vector<16x256xf32>
    %128 = arith.truncf %127 : vector<16x256xf32> to vector<16x256xbf16>
    %c16 = arith.constant 16 : index
    %c0_99 = arith.constant 0 : index
    %129 = vector.load %arg15[%c16, %c0_99] : memref<144x256xbf16, #tpu.memory_space<vmem>>, vector<16x256xbf16>
    tpu.vector_store %arg15[%c16, %c0_99], %128 {strides = array<i32>} : memref<144x256xbf16, #tpu.memory_space<vmem>>, vector<16x256xbf16>,
    %c2_100 = arith.constant 2 : index
    %c0_101 = arith.constant 0 : index
    %c0_102 = arith.constant 0 : index
    %130 = vector.load %arg10[%c2_100, %c0_101, %c0_102] : memref<9x256x256xbf16, #tpu.memory_space<vmem>>, vector<1x256x256xbf16>
    %131 = vector.shape_cast %130 : vector<1x256x256xbf16> to vector<256x256xbf16>
    %cst_103 = arith.constant dense<0.000000e+00> : vector<16x256xf32>
    %132 = tpu.matmul %119, %131, %cst_103 {dimension_numbers = #tpu.dot_dimension_numbers<[1], [0], [0], [1], [0, 0, 1, 1], [], []>} : vector<16x256xbf16>, vector<256x256xbf16>, vector<16x256xf32> -> vector<16x256xf32>
    %133 = arith.truncf %132 : vector<16x256xf32> to vector<16x256xbf16>
    %c32 = arith.constant 32 : index
    %c0_104 = arith.constant 0 : index
    %134 = vector.load %arg15[%c32, %c0_104] : memref<144x256xbf16, #tpu.memory_space<vmem>>, vector<16x256xbf16>
    tpu.vector_store %arg15[%c32, %c0_104], %133 {strides = array<i32>} : memref<144x256xbf16, #tpu.memory_space<vmem>>, vector<16x256xbf16>,
    %c3_105 = arith.constant 3 : index
    %c0_106 = arith.constant 0 : index
    %c0_107 = arith.constant 0 : index
    %135 = vector.load %arg10[%c3_105, %c0_106, %c0_107] : memref<9x256x256xbf16, #tpu.memory_space<vmem>>, vector<1x256x256xbf16>
    %136 = vector.shape_cast %135 : vector<1x256x256xbf16> to vector<256x256xbf16>
    %cst_108 = arith.constant dense<0.000000e+00> : vector<16x256xf32>
    %137 = tpu.matmul %119, %136, %cst_108 {dimension_numbers = #tpu.dot_dimension_numbers<[1], [0], [0], [1], [0, 0, 1, 1], [], []>} : vector<16x256xbf16>, vector<256x256xbf16>, vector<16x256xf32> -> vector<16x256xf32>
    %138 = arith.truncf %137 : vector<16x256xf32> to vector<16x256xbf16>
    %c48 = arith.constant 48 : index
    %c0_109 = arith.constant 0 : index
    %139 = vector.load %arg15[%c48, %c0_109] : memref<144x256xbf16, #tpu.memory_space<vmem>>, vector<16x256xbf16>
    tpu.vector_store %arg15[%c48, %c0_109], %138 {strides = array<i32>} : memref<144x256xbf16, #tpu.memory_space<vmem>>, vector<16x256xbf16>,
    %c4_110 = arith.constant 4 : index
    %c0_111 = arith.constant 0 : index
    %c0_112 = arith.constant 0 : index
    %140 = vector.load %arg10[%c4_110, %c0_111, %c0_112] : memref<9x256x256xbf16, #tpu.memory_space<vmem>>, vector<1x256x256xbf16>
    %141 = vector.shape_cast %140 : vector<1x256x256xbf16> to vector<256x256xbf16>
    %cst_113 = arith.constant dense<0.000000e+00> : vector<16x256xf32>
    %142 = tpu.matmul %119, %141, %cst_113 {dimension_numbers = #tpu.dot_dimension_numbers<[1], [0], [0], [1], [0, 0, 1, 1], [], []>} : vector<16x256xbf16>, vector<256x256xbf16>, vector<16x256xf32> -> vector<16x256xf32>
    %143 = arith.truncf %142 : vector<16x256xf32> to vector<16x256xbf16>
    %c64 = arith.constant 64 : index
    %c0_114 = arith.constant 0 : index
    %144 = vector.load %arg15[%c64, %c0_114] : memref<144x256xbf16, #tpu.memory_space<vmem>>, vector<16x256xbf16>
    tpu.vector_store %arg15[%c64, %c0_114], %143 {strides = array<i32>} : memref<144x256xbf16, #tpu.memory_space<vmem>>, vector<16x256xbf16>,
    %c5_115 = arith.constant 5 : index
    %c0_116 = arith.constant 0 : index
    %c0_117 = arith.constant 0 : index
    %145 = vector.load %arg10[%c5_115, %c0_116, %c0_117] : memref<9x256x256xbf16, #tpu.memory_space<vmem>>, vector<1x256x256xbf16>
    %146 = vector.shape_cast %145 : vector<1x256x256xbf16> to vector<256x256xbf16>
    %cst_118 = arith.constant dense<0.000000e+00> : vector<16x256xf32>
    %147 = tpu.matmul %119, %146, %cst_118 {dimension_numbers = #tpu.dot_dimension_numbers<[1], [0], [0], [1], [0, 0, 1, 1], [], []>} : vector<16x256xbf16>, vector<256x256xbf16>, vector<16x256xf32> -> vector<16x256xf32>
    %148 = arith.truncf %147 : vector<16x256xf32> to vector<16x256xbf16>
    %c80 = arith.constant 80 : index
    %c0_119 = arith.constant 0 : index
    %149 = vector.load %arg15[%c80, %c0_119] : memref<144x256xbf16, #tpu.memory_space<vmem>>, vector<16x256xbf16>
    tpu.vector_store %arg15[%c80, %c0_119], %148 {strides = array<i32>} : memref<144x256xbf16, #tpu.memory_space<vmem>>, vector<16x256xbf16>,
    %c6_120 = arith.constant 6 : index
    %c0_121 = arith.constant 0 : index
    %c0_122 = arith.constant 0 : index
    %150 = vector.load %arg10[%c6_120, %c0_121, %c0_122] : memref<9x256x256xbf16, #tpu.memory_space<vmem>>, vector<1x256x256xbf16>
    %151 = vector.shape_cast %150 : vector<1x256x256xbf16> to vector<256x256xbf16>
    %cst_123 = arith.constant dense<0.000000e+00> : vector<16x256xf32>
    %152 = tpu.matmul %119, %151, %cst_123 {dimension_numbers = #tpu.dot_dimension_numbers<[1], [0], [0], [1], [0, 0, 1, 1], [], []>} : vector<16x256xbf16>, vector<256x256xbf16>, vector<16x256xf32> -> vector<16x256xf32>
    %153 = arith.truncf %152 : vector<16x256xf32> to vector<16x256xbf16>
    %c96 = arith.constant 96 : index
    %c0_124 = arith.constant 0 : index
    %154 = vector.load %arg15[%c96, %c0_124] : memref<144x256xbf16, #tpu.memory_space<vmem>>, vector<16x256xbf16>
    tpu.vector_store %arg15[%c96, %c0_124], %153 {strides = array<i32>} : memref<144x256xbf16, #tpu.memory_space<vmem>>, vector<16x256xbf16>,
    %c7_125 = arith.constant 7 : index
    %c0_126 = arith.constant 0 : index
    %c0_127 = arith.constant 0 : index
    %155 = vector.load %arg10[%c7_125, %c0_126, %c0_127] : memref<9x256x256xbf16, #tpu.memory_space<vmem>>, vector<1x256x256xbf16>
    %156 = vector.shape_cast %155 : vector<1x256x256xbf16> to vector<256x256xbf16>
    %cst_128 = arith.constant dense<0.000000e+00> : vector<16x256xf32>
    %157 = tpu.matmul %119, %156, %cst_128 {dimension_numbers = #tpu.dot_dimension_numbers<[1], [0], [0], [1], [0, 0, 1, 1], [], []>} : vector<16x256xbf16>, vector<256x256xbf16>, vector<16x256xf32> -> vector<16x256xf32>
    %158 = arith.truncf %157 : vector<16x256xf32> to vector<16x256xbf16>
    %c112 = arith.constant 112 : index
    %c0_129 = arith.constant 0 : index
    %159 = vector.load %arg15[%c112, %c0_129] : memref<144x256xbf16, #tpu.memory_space<vmem>>, vector<16x256xbf16>
    tpu.vector_store %arg15[%c112, %c0_129], %158 {strides = array<i32>} : memref<144x256xbf16, #tpu.memory_space<vmem>>, vector<16x256xbf16>,
    %c8_130 = arith.constant 8 : index
    %c0_131 = arith.constant 0 : index
    %c0_132 = arith.constant 0 : index
    %160 = vector.load %arg10[%c8_130, %c0_131, %c0_132] : memref<9x256x256xbf16, #tpu.memory_space<vmem>>, vector<1x256x256xbf16>
    %161 = vector.shape_cast %160 : vector<1x256x256xbf16> to vector<256x256xbf16>
    %cst_133 = arith.constant dense<0.000000e+00> : vector<16x256xf32>
    %162 = tpu.matmul %119, %161, %cst_133 {dimension_numbers = #tpu.dot_dimension_numbers<[1], [0], [0], [1], [0, 0, 1, 1], [], []>} : vector<16x256xbf16>, vector<256x256xbf16>, vector<16x256xf32> -> vector<16x256xf32>
    %163 = arith.truncf %162 : vector<16x256xf32> to vector<16x256xbf16>
    %c128 = arith.constant 128 : index
    %c0_134 = arith.constant 0 : index
    %164 = vector.load %arg15[%c128, %c0_134] : memref<144x256xbf16, #tpu.memory_space<vmem>>, vector<16x256xbf16>
    tpu.vector_store %arg15[%c128, %c0_134], %163 {strides = array<i32>} : memref<144x256xbf16, #tpu.memory_space<vmem>>, vector<16x256xbf16>,
    %c0_135 = arith.constant 0 : index
    %c0_136 = arith.constant 0 : index
    %165 = vector.load %arg4[%c0_135, %c0_136] : memref<64x144xbf16, #tpu.memory_space<vmem>>, vector<64x144xbf16>
    %c0_137 = arith.constant 0 : index
    %c0_138 = arith.constant 0 : index
    %166 = vector.load %arg15[%c0_137, %c0_138] : memref<144x256xbf16, #tpu.memory_space<vmem>>, vector<144x256xbf16>
    %cst_139 = arith.constant dense<0.000000e+00> : vector<64x256xf32>
    %167 = tpu.matmul %165, %166, %cst_139 {dimension_numbers = #tpu.dot_dimension_numbers<[1], [0], [0], [1], [0, 0, 1, 1], [], []>} : vector<64x144xbf16>, vector<144x256xbf16>, vector<64x256xf32> -> vector<64x256xf32>
    %c0_140 = arith.constant 0 : index
    %c0_141 = arith.constant 0 : index
    %168 = vector.load %arg11[%c0_140, %c0_141] : memref<1x256xf32, #tpu.memory_space<vmem>>, vector<1x256xf32>
    %169 = vector.broadcast %168 : vector<1x256xf32> to vector<64x256xf32>
    %170 = arith.addf %167, %169 : vector<64x256xf32>
    %cst_142 = arith.constant 2.000000e-01 : f32
    %171 = vector.broadcast %cst_142 : f32 to vector<64x256xf32>
    %172 = arith.mulf %171, %170 : vector<64x256xf32>
    %173 = arith.maximumf %170, %172 : vector<64x256xf32>
    %174 = arith.truncf %173 : vector<64x256xf32> to vector<64x256xbf16>
    %c0_143 = arith.constant 0 : index
    %c0_144 = arith.constant 0 : index
    %c0_145 = arith.constant 0 : index
    %175 = vector.load %arg12[%c0_143, %c0_144, %c0_145] : memref<9x256x256xbf16, #tpu.memory_space<vmem>>, vector<1x256x256xbf16>
    %176 = vector.shape_cast %175 : vector<1x256x256xbf16> to vector<256x256xbf16>
    %cst_146 = arith.constant dense<0.000000e+00> : vector<64x256xf32>
    %177 = tpu.matmul %174, %176, %cst_146 {dimension_numbers = #tpu.dot_dimension_numbers<[1], [0], [0], [1], [0, 0, 1, 1], [], []>} : vector<64x256xbf16>, vector<256x256xbf16>, vector<64x256xf32> -> vector<64x256xf32>
    %178 = arith.truncf %177 : vector<64x256xf32> to vector<64x256xbf16>
    %c0_147 = arith.constant 0 : index
    %c0_148 = arith.constant 0 : index
    %179 = vector.load %arg16[%c0_147, %c0_148] : memref<576x256xbf16, #tpu.memory_space<vmem>>, vector<64x256xbf16>
    tpu.vector_store %arg16[%c0_147, %c0_148], %178 {strides = array<i32>} : memref<576x256xbf16, #tpu.memory_space<vmem>>, vector<64x256xbf16>,
    %c1_149 = arith.constant 1 : index
    %c0_150 = arith.constant 0 : index
    %c0_151 = arith.constant 0 : index
    %180 = vector.load %arg12[%c1_149, %c0_150, %c0_151] : memref<9x256x256xbf16, #tpu.memory_space<vmem>>, vector<1x256x256xbf16>
    %181 = vector.shape_cast %180 : vector<1x256x256xbf16> to vector<256x256xbf16>
    %cst_152 = arith.constant dense<0.000000e+00> : vector<64x256xf32>
    %182 = tpu.matmul %174, %181, %cst_152 {dimension_numbers = #tpu.dot_dimension_numbers<[1], [0], [0], [1], [0, 0, 1, 1], [], []>} : vector<64x256xbf16>, vector<256x256xbf16>, vector<64x256xf32> -> vector<64x256xf32>
    %183 = arith.truncf %182 : vector<64x256xf32> to vector<64x256xbf16>
    %c64_153 = arith.constant 64 : index
    %c0_154 = arith.constant 0 : index
    %184 = vector.load %arg16[%c64_153, %c0_154] : memref<576x256xbf16, #tpu.memory_space<vmem>>, vector<64x256xbf16>
    tpu.vector_store %arg16[%c64_153, %c0_154], %183 {strides = array<i32>} : memref<576x256xbf16, #tpu.memory_space<vmem>>, vector<64x256xbf16>,
    %c2_155 = arith.constant 2 : index
    %c0_156 = arith.constant 0 : index
    %c0_157 = arith.constant 0 : index
    %185 = vector.load %arg12[%c2_155, %c0_156, %c0_157] : memref<9x256x256xbf16, #tpu.memory_space<vmem>>, vector<1x256x256xbf16>
    %186 = vector.shape_cast %185 : vector<1x256x256xbf16> to vector<256x256xbf16>
    %cst_158 = arith.constant dense<0.000000e+00> : vector<64x256xf32>
    %187 = tpu.matmul %174, %186, %cst_158 {dimension_numbers = #tpu.dot_dimension_numbers<[1], [0], [0], [1], [0, 0, 1, 1], [], []>} : vector<64x256xbf16>, vector<256x256xbf16>, vector<64x256xf32> -> vector<64x256xf32>
    %188 = arith.truncf %187 : vector<64x256xf32> to vector<64x256xbf16>
    %c128_159 = arith.constant 128 : index
    %c0_160 = arith.constant 0 : index
    %189 = vector.load %arg16[%c128_159, %c0_160] : memref<576x256xbf16, #tpu.memory_space<vmem>>, vector<64x256xbf16>
    tpu.vector_store %arg16[%c128_159, %c0_160], %188 {strides = array<i32>} : memref<576x256xbf16, #tpu.memory_space<vmem>>, vector<64x256xbf16>,
    %c3_161 = arith.constant 3 : index
    %c0_162 = arith.constant 0 : index
    %c0_163 = arith.constant 0 : index
    %190 = vector.load %arg12[%c3_161, %c0_162, %c0_163] : memref<9x256x256xbf16, #tpu.memory_space<vmem>>, vector<1x256x256xbf16>
    %191 = vector.shape_cast %190 : vector<1x256x256xbf16> to vector<256x256xbf16>
    %cst_164 = arith.constant dense<0.000000e+00> : vector<64x256xf32>
    %192 = tpu.matmul %174, %191, %cst_164 {dimension_numbers = #tpu.dot_dimension_numbers<[1], [0], [0], [1], [0, 0, 1, 1], [], []>} : vector<64x256xbf16>, vector<256x256xbf16>, vector<64x256xf32> -> vector<64x256xf32>
    %193 = arith.truncf %192 : vector<64x256xf32> to vector<64x256xbf16>
    %c192 = arith.constant 192 : index
    %c0_165 = arith.constant 0 : index
    %194 = vector.load %arg16[%c192, %c0_165] : memref<576x256xbf16, #tpu.memory_space<vmem>>, vector<64x256xbf16>
    tpu.vector_store %arg16[%c192, %c0_165], %193 {strides = array<i32>} : memref<576x256xbf16, #tpu.memory_space<vmem>>, vector<64x256xbf16>,
    %c4_166 = arith.constant 4 : index
    %c0_167 = arith.constant 0 : index
    %c0_168 = arith.constant 0 : index
    %195 = vector.load %arg12[%c4_166, %c0_167, %c0_168] : memref<9x256x256xbf16, #tpu.memory_space<vmem>>, vector<1x256x256xbf16>
    %196 = vector.shape_cast %195 : vector<1x256x256xbf16> to vector<256x256xbf16>
    %cst_169 = arith.constant dense<0.000000e+00> : vector<64x256xf32>
    %197 = tpu.matmul %174, %196, %cst_169 {dimension_numbers = #tpu.dot_dimension_numbers<[1], [0], [0], [1], [0, 0, 1, 1], [], []>} : vector<64x256xbf16>, vector<256x256xbf16>, vector<64x256xf32> -> vector<64x256xf32>
    %198 = arith.truncf %197 : vector<64x256xf32> to vector<64x256xbf16>
    %c256 = arith.constant 256 : index
    %c0_170 = arith.constant 0 : index
    %199 = vector.load %arg16[%c256, %c0_170] : memref<576x256xbf16, #tpu.memory_space<vmem>>, vector<64x256xbf16>
    tpu.vector_store %arg16[%c256, %c0_170], %198 {strides = array<i32>} : memref<576x256xbf16, #tpu.memory_space<vmem>>, vector<64x256xbf16>,
    %c5_171 = arith.constant 5 : index
    %c0_172 = arith.constant 0 : index
    %c0_173 = arith.constant 0 : index
    %200 = vector.load %arg12[%c5_171, %c0_172, %c0_173] : memref<9x256x256xbf16, #tpu.memory_space<vmem>>, vector<1x256x256xbf16>
    %201 = vector.shape_cast %200 : vector<1x256x256xbf16> to vector<256x256xbf16>
    %cst_174 = arith.constant dense<0.000000e+00> : vector<64x256xf32>
    %202 = tpu.matmul %174, %201, %cst_174 {dimension_numbers = #tpu.dot_dimension_numbers<[1], [0], [0], [1], [0, 0, 1, 1], [], []>} : vector<64x256xbf16>, vector<256x256xbf16>, vector<64x256xf32> -> vector<64x256xf32>
    %203 = arith.truncf %202 : vector<64x256xf32> to vector<64x256xbf16>
    %c320 = arith.constant 320 : index
    %c0_175 = arith.constant 0 : index
    %204 = vector.load %arg16[%c320, %c0_175] : memref<576x256xbf16, #tpu.memory_space<vmem>>, vector<64x256xbf16>
    tpu.vector_store %arg16[%c320, %c0_175], %203 {strides = array<i32>} : memref<576x256xbf16, #tpu.memory_space<vmem>>, vector<64x256xbf16>,
    %c6_176 = arith.constant 6 : index
    %c0_177 = arith.constant 0 : index
    %c0_178 = arith.constant 0 : index
    %205 = vector.load %arg12[%c6_176, %c0_177, %c0_178] : memref<9x256x256xbf16, #tpu.memory_space<vmem>>, vector<1x256x256xbf16>
    %206 = vector.shape_cast %205 : vector<1x256x256xbf16> to vector<256x256xbf16>
    %cst_179 = arith.constant dense<0.000000e+00> : vector<64x256xf32>
    %207 = tpu.matmul %174, %206, %cst_179 {dimension_numbers = #tpu.dot_dimension_numbers<[1], [0], [0], [1], [0, 0, 1, 1], [], []>} : vector<64x256xbf16>, vector<256x256xbf16>, vector<64x256xf32> -> vector<64x256xf32>
    %208 = arith.truncf %207 : vector<64x256xf32> to vector<64x256xbf16>
    %c384 = arith.constant 384 : index
    %c0_180 = arith.constant 0 : index
    %209 = vector.load %arg16[%c384, %c0_180] : memref<576x256xbf16, #tpu.memory_space<vmem>>, vector<64x256xbf16>
    tpu.vector_store %arg16[%c384, %c0_180], %208 {strides = array<i32>} : memref<576x256xbf16, #tpu.memory_space<vmem>>, vector<64x256xbf16>,
    %c7_181 = arith.constant 7 : index
    %c0_182 = arith.constant 0 : index
    %c0_183 = arith.constant 0 : index
    %210 = vector.load %arg12[%c7_181, %c0_182, %c0_183] : memref<9x256x256xbf16, #tpu.memory_space<vmem>>, vector<1x256x256xbf16>
    %211 = vector.shape_cast %210 : vector<1x256x256xbf16> to vector<256x256xbf16>
    %cst_184 = arith.constant dense<0.000000e+00> : vector<64x256xf32>
    %212 = tpu.matmul %174, %211, %cst_184 {dimension_numbers = #tpu.dot_dimension_numbers<[1], [0], [0], [1], [0, 0, 1, 1], [], []>} : vector<64x256xbf16>, vector<256x256xbf16>, vector<64x256xf32> -> vector<64x256xf32>
    %213 = arith.truncf %212 : vector<64x256xf32> to vector<64x256xbf16>
    %c448 = arith.constant 448 : index
    %c0_185 = arith.constant 0 : index
    %214 = vector.load %arg16[%c448, %c0_185] : memref<576x256xbf16, #tpu.memory_space<vmem>>, vector<64x256xbf16>
    tpu.vector_store %arg16[%c448, %c0_185], %213 {strides = array<i32>} : memref<576x256xbf16, #tpu.memory_space<vmem>>, vector<64x256xbf16>,
    %c8_186 = arith.constant 8 : index
    %c0_187 = arith.constant 0 : index
    %c0_188 = arith.constant 0 : index
    %215 = vector.load %arg12[%c8_186, %c0_187, %c0_188] : memref<9x256x256xbf16, #tpu.memory_space<vmem>>, vector<1x256x256xbf16>
    %216 = vector.shape_cast %215 : vector<1x256x256xbf16> to vector<256x256xbf16>
    %cst_189 = arith.constant dense<0.000000e+00> : vector<64x256xf32>
    %217 = tpu.matmul %174, %216, %cst_189 {dimension_numbers = #tpu.dot_dimension_numbers<[1], [0], [0], [1], [0, 0, 1, 1], [], []>} : vector<64x256xbf16>, vector<256x256xbf16>, vector<64x256xf32> -> vector<64x256xf32>
    %218 = arith.truncf %217 : vector<64x256xf32> to vector<64x256xbf16>
    %c512 = arith.constant 512 : index
    %c0_190 = arith.constant 0 : index
    %219 = vector.load %arg16[%c512, %c0_190] : memref<576x256xbf16, #tpu.memory_space<vmem>>, vector<64x256xbf16>
    tpu.vector_store %arg16[%c512, %c0_190], %218 {strides = array<i32>} : memref<576x256xbf16, #tpu.memory_space<vmem>>, vector<64x256xbf16>,
    %c0_191 = arith.constant 0 : index
    %c0_192 = arith.constant 0 : index
    %220 = vector.load %arg5[%c0_191, %c0_192] : memref<196x576xbf16, #tpu.memory_space<vmem>>, vector<196x576xbf16>
    %c0_193 = arith.constant 0 : index
    %c0_194 = arith.constant 0 : index
    %221 = vector.load %arg16[%c0_193, %c0_194] : memref<576x256xbf16, #tpu.memory_space<vmem>>, vector<576x256xbf16>
    %cst_195 = arith.constant dense<0.000000e+00> : vector<196x256xf32>
    %222 = tpu.matmul %220, %221, %cst_195 {dimension_numbers = #tpu.dot_dimension_numbers<[1], [0], [0], [1], [0, 0, 1, 1], [], []>} : vector<196x576xbf16>, vector<576x256xbf16>, vector<196x256xf32> -> vector<196x256xf32>
    %c0_196 = arith.constant 0 : index
    %c0_197 = arith.constant 0 : index
    %223 = vector.load %arg13[%c0_196, %c0_197] : memref<1x256xf32, #tpu.memory_space<vmem>>, vector<1x256xf32>
    %224 = vector.broadcast %223 : vector<1x256xf32> to vector<196x256xf32>
    %225 = arith.addf %222, %224 : vector<196x256xf32>
    %226 = math.tanh %225 : vector<196x256xf32>
    %c0_198 = arith.constant 0 : index
    %c0_199 = arith.constant 0 : index
    %c0_200 = arith.constant 0 : index
    %227 = vector.load %arg14[%c0_198, %c0_199, %c0_200] : memref<1x196x256xf32, #tpu.memory_space<vmem>>, vector<1x196x256xf32>
    %228 = vector.shape_cast %227 : vector<1x196x256xf32> to vector<196x256xf32>
    %229 = vector.shape_cast %226 : vector<196x256xf32> to vector<1x196x256xf32>
    tpu.vector_store %arg14[%c0_198, %c0_199, %c0_200], %229 {strides = array<i32>} : memref<1x196x256xf32, #tpu.memory_space<vmem>>, vector<1x196x256xf32>,
    return
  }
  func.func @transform_0(%arg0: i32) -> (i32, i32, i32) {
    %c0_i32 = arith.constant 0 : i32
    %c0_i32_0 = arith.constant 0 : i32
    %c0_i32_1 = arith.constant 0 : i32
    return %arg0, %c0_i32, %c0_i32_0 : i32, i32, i32
  }
  func.func @transform_1(%arg0: i32) -> (i32, i32) {
    %c0_i32 = arith.constant 0 : i32
    %c0_i32_0 = arith.constant 0 : i32
    %c0_i32_1 = arith.constant 0 : i32
    return %c0_i32, %c0_i32_0 : i32, i32
  }
  func.func @transform_2(%arg0: i32) -> (i32, i32, i32) {
    %c0_i32 = arith.constant 0 : i32
    %c0_i32_0 = arith.constant 0 : i32
    %c0_i32_1 = arith.constant 0 : i32
    %c0_i32_2 = arith.constant 0 : i32
    return %c0_i32, %c0_i32_0, %c0_i32_1 : i32, i32, i32
  }
  func.func @transform_3(%arg0: i32) -> (i32, i32) {
    %c0_i32 = arith.constant 0 : i32
    %c0_i32_0 = arith.constant 0 : i32
    %c0_i32_1 = arith.constant 0 : i32
    return %c0_i32, %c0_i32_0 : i32, i32
  }
  func.func @transform_4(%arg0: i32) -> (i32, i32) {
    %c0_i32 = arith.constant 0 : i32
    %c0_i32_0 = arith.constant 0 : i32
    %c0_i32_1 = arith.constant 0 : i32
    return %c0_i32, %c0_i32_0 : i32, i32
  }
  func.func @transform_5(%arg0: i32) -> (i32, i32, i32) {
    %c0_i32 = arith.constant 0 : i32
    %c0_i32_0 = arith.constant 0 : i32
    %c0_i32_1 = arith.constant 0 : i32
    %c0_i32_2 = arith.constant 0 : i32
    return %c0_i32, %c0_i32_0, %c0_i32_1 : i32, i32, i32
  }
  func.func @transform_6(%arg0: i32) -> (i32, i32) {
    %c0_i32 = arith.constant 0 : i32
    %c0_i32_0 = arith.constant 0 : i32
    %c0_i32_1 = arith.constant 0 : i32
    return %c0_i32, %c0_i32_0 : i32, i32
  }
  func.func @transform_7(%arg0: i32) -> (i32, i32, i32) {
    %c0_i32 = arith.constant 0 : i32
    %c0_i32_0 = arith.constant 0 : i32
    %c0_i32_1 = arith.constant 0 : i32
    %c0_i32_2 = arith.constant 0 : i32
    return %c0_i32, %c0_i32_0, %c0_i32_1 : i32, i32, i32
  }
  func.func @transform_8(%arg0: i32) -> (i32, i32) {
    %c0_i32 = arith.constant 0 : i32
    %c0_i32_0 = arith.constant 0 : i32
    %c0_i32_1 = arith.constant 0 : i32
    return %c0_i32, %c0_i32_0 : i32, i32
  }
  func.func @transform_9(%arg0: i32) -> (i32, i32, i32) {
    %c0_i32 = arith.constant 0 : i32
    %c0_i32_0 = arith.constant 0 : i32
    %c0_i32_1 = arith.constant 0 : i32
    %c0_i32_2 = arith.constant 0 : i32
    return %c0_i32, %c0_i32_0, %c0_i32_1 : i32, i32, i32
  }
  func.func @transform_10(%arg0: i32) -> (i32, i32) {
    %c0_i32 = arith.constant 0 : i32
    %c0_i32_0 = arith.constant 0 : i32
    %c0_i32_1 = arith.constant 0 : i32
    return %c0_i32, %c0_i32_0 : i32, i32
  }
  func.func @transform_11(%arg0: i32) -> (i32, i32, i32) {
    %c0_i32 = arith.constant 0 : i32
    %c0_i32_0 = arith.constant 0 : i32
    %c0_i32_1 = arith.constant 0 : i32
    %c0_i32_2 = arith.constant 0 : i32
    return %c0_i32, %c0_i32_0, %c0_i32_1 : i32, i32, i32
  }
  func.func @transform_12(%arg0: i32) -> (i32, i32) {
    %c0_i32 = arith.constant 0 : i32
    %c0_i32_0 = arith.constant 0 : i32
    %c0_i32_1 = arith.constant 0 : i32
    return %c0_i32, %c0_i32_0 : i32, i32
  }
  func.func @transform_13(%arg0: i32) -> (i32, i32, i32) {
    %c0_i32 = arith.constant 0 : i32
    %c0_i32_0 = arith.constant 0 : i32
    %c0_i32_1 = arith.constant 0 : i32
    return %arg0, %c0_i32, %c0_i32_0 : i32, i32, i32
  }
}

</mosaic_0001>

<llo_original>
// kernel: generator_forward.1
$region0: #{generator_forward.1}
  #allocation0 [shape = 'u32[]', space=smem, size = 0x4, offset = 0x4, fixed_abs, tag = 'smem constant byte address 0x4 - core index']
  #allocation1 [shape = 'u32[144,128]{1,0:T(1,128)}', space=vmem, size = 0x12000, scoped, tag = 'internal scratch']
  #allocation2 [shape = 'bf16[144,256]{1,0:T(16,128)(2,1)}', space=vmem, size = 0x12000, scoped, tag = 'scratch operand']
  #allocation3 [shape = 'bf16[576,256]{1,0:T(16,128)(2,1)}', space=vmem, size = 0x48000, scoped, tag = 'scratch operand']
  %s0 = inlined_call_operand.vmem [shape: f32[2,1,512], index: 0, kind: input, shape index: {}]
  %s1 = inlined_call_operand.vmem [shape: f32[9,4], index: 1, kind: input, shape index: {}]
  %s2 = inlined_call_operand.hbm [shape: bf16[9,16,9], index: 2, kind: input, shape index: {}]
  %s3 = inlined_call_operand.hbm [shape: bf16[64,144], index: 3, kind: input, shape index: {}]
  %s4 = inlined_call_operand.hbm [shape: bf16[196,576], index: 4, kind: input, shape index: {}]
  %s5 = inlined_call_operand.vmem [shape: bf16[4,512,96], index: 5, kind: input, shape index: {}]
  %s6 = inlined_call_operand.hbm [shape: f32[1,96], index: 6, kind: input, shape index: {}]
  %s7 = inlined_call_operand.vmem [shape: bf16[9,96,256], index: 7, kind: input, shape index: {}]
  %s8 = inlined_call_operand.hbm [shape: f32[1,256], index: 8, kind: input, shape index: {}]
  %s9 = inlined_call_operand.hbm [shape: bf16[9,256,256], index: 9, kind: input, shape index: {}]
  %s10 = inlined_call_operand.hbm [shape: f32[1,256], index: 10, kind: input, shape index: {}]
  %s11 = inlined_call_operand.hbm [shape: bf16[9,256,256], index: 11, kind: input, shape index: {}]
  %s12 = inlined_call_operand.hbm [shape: f32[1,256], index: 12, kind: input, shape index: {}]
  %s13 = inlined_call_operand.vmem [shape: f32[2,196,256], index: 13, kind: output, shape index: {}]
  %s14 = sld [smem:[#allocation0]]
  $region121: #{generator_forward.1} parent=0
    _
  %s16 = ssub.s32 1, %s14
  %s17 = scalar_select 0, %s16, %s14
  $region1: #{generator_forward.1} parent=0
    #allocation4 [shape = 'u8[36864]{0}', space=vmem, size = 0x9000, scoped, tag = 'input window, operand 2, single buffered']
    #allocation5 [shape = 's32[2]{0}', space=sflag, size = 0x8, scoped, tag = 'scoped memory for generator_forward.1']
    #allocation6 [shape = 'u8[32768]{0}', space=vmem, size = 0x8000, scoped, tag = 'input window, operand 3, single buffered']
    #allocation7 [shape = 's32[1]{0}', space=sflag, size = 0x4, scoped, tag = 'scoped memory for generator_forward.1']
    #allocation8 [shape = 'u8[256000]{0}', space=vmem, size = 0x3e800, scoped, tag = 'input window, operand 4, single buffered']
    #allocation9 [shape = 'u8[512]{0}', space=vmem, size = 0x400, scoped, tag = 'input window, operand 6, single buffered']
    #allocation10 [shape = 's32[1]{0}', space=sflag, size = 0x4, scoped, tag = 'scoped memory for generator_forward.1']
    #allocation11 [shape = 'u8[1024]{0}', space=vmem, size = 0x400, scoped, tag = 'input window, operand 8, single buffered']
    #allocation12 [shape = 'u8[1179648]{0}', space=vmem, size = 0x120000, scoped, tag = 'input window, operand 9, single buffered']
    #allocation13 [shape = 's32[1]{0}', space=sflag, size = 0x4, scoped, tag = 'scoped memory for generator_forward.1']
    #allocation14 [shape = 'u8[1024]{0}', space=vmem, size = 0x400, scoped, tag = 'input window, operand 10, single buffered']
    #allocation15 [shape = 'u8[1179648]{0}', space=vmem, size = 0x120000, scoped, tag = 'input window, operand 11, single buffered']
    #allocation16 [shape = 's32[1]{0}', space=sflag, size = 0x4, scoped, tag = 'scoped memory for generator_forward.1']
    #allocation17 [shape = 'u8[1024]{0}', space=vmem, size = 0x400, scoped, tag = 'input window, operand 12, single buffered']
    %18 = vsyncpa [#allocation5], 0
    %19 = vsyncpa [#allocation7], 0
    %20 = vsyncpa [#allocation10], 0
    %21 = vsyncpa [#allocation13], 0
    %22 = vsyncpa [#allocation16], 0
    loop: start=0, step=1, limit=4
    $region2: #{generator_forward.1} parent=1 // loop_pre_header
      _
    $region3: #{generator_forward.1} parent=1 // loop_header
      %s24 = sphi 0, %s28
      %p25 = scmp.ge.s32.totalorder %s24, 4
      %s34 = sphi 0, %s36
      %s37 = sphi 0, %s34
      %s38 = sphi 0, %s37
      %s54 = sphi 0, %s38
      %s58 = sphi 0, %s58
      %s60 = sphi 0, %s58
      %s61 = sphi 0, %s60
      %s75 = sphi 0, %s61
      %s79 = sphi 0, %s79
      %s81 = sphi 0, %s79
      %s82 = sphi 0, %s81
      %s96 = sphi 0, %s82
      %s100 = sphi 0, %s100
      %s102 = sphi 0, %s100
      %s103 = sphi 0, %s102
      %s117 = sphi 0, %s103
      %s121 = sphi 0, %s121
      %s123 = sphi 0, %s121
      %s124 = sphi 0, %s123
      %s138 = sphi 0, %s124
      %s142 = sphi 0, %s142
      %s144 = sphi 0, %s142
      %s145 = sphi 0, %s144
      %s159 = sphi 0, %s145
      %s163 = sphi 0, %s163
      %s165 = sphi 0, %s163
      %s166 = sphi 0, %s165
      %s180 = sphi 0, %s166
      %s184 = sphi 0, %s184
      %s186 = sphi 0, %s184
      %s187 = sphi 0, %s186
      %s201 = sphi 0, %s187
      %s205 = sphi 0, %s205
      %s207 = sphi 0, %s205
      %s208 = sphi 0, %s207
      %s222 = sphi 0, %s208
      %s226 = sphi 0, %s226
      %s228 = sphi 0, %s226
      %s229 = sphi 0, %s228
      %s243 = sphi 0, %s229
      %s247 = sphi 0, %s247
      %s249 = sphi 0, %s247
      %s250 = sphi 0, %s249
      %s264 = sphi 0, %s250
      %s268 = sphi 0, %s268
      %s270 = sphi 0, %s268
      %s271 = sphi 0, %s270
      %s285 = sphi 0, %s271
      %s289 = sphi 0, %s289
      %s291 = sphi 0, %s289
      %s292 = sphi 0, %s291
      %s306 = sphi 0, %s292
      %s312 = sphi 0, %s314
      %s315 = sphi 0, %s312
      %s316 = sphi 0, %s315
      %s332 = sphi 0, %s316
    $region4: #{generator_forward.1} parent=1 // loop_header_branch
      %27 = sbr.rel (%p25) target = $region8
    $region5: #{generator_forward.1} parent=1 // loop_body
      %s29 = ssub.s32 %s24, 1
      %s30 = ssub.s32 %s24, 2
      %s31 = sadd.s32 %s24, 1
      %s32 = ssub.s32 %s24, %s31
      %p33 = scmp.eq.s32.totalorder %s32, 0
      %s35 = sadd.s32 %s34, 1
      %s36 = scalar_select %p33, %s34, %s35
      %p39 = pneg %p33
      %p40 = scmp.eq.s32.totalorder %s24, 1
      %p41 = por %p39, %p40
      %p42 = scmp.ne.s32.totalorder %s34, %s37
      %p43 = scmp.eq.s32.totalorder %s24, 0
      %p44 = por %p42, %p43
      %p45 = scmp.ne.s32.totalorder %s34, %s37
      %p46 = scmp.eq.s32.totalorder %s29, 1
      %p47 = por %p45, %p46
      %p48 = scmp.ne.s32.totalorder %s37, %s38
      %p49 = scmp.eq.s32.totalorder %s29, 0
      %p50 = por %p48, %p49
      %p51 = scmp.ne.s32.totalorder %s37, %s38
      %p52 = scmp.eq.s32.totalorder %s30, 1
      %p53 = por %p51, %p52
      %p55 = scmp.ne.s32.totalorder %s38, %s54
      %p56 = scmp.eq.s32.totalorder %s30, 0
      %p57 = por %p55, %p56
      %s59 = sadd.s32 %s58, 1
      %p62 = scmp.eq.s32.totalorder %s24, 1
      %p63 = scmp.ne.s32.totalorder %s58, %s60
      %p64 = scmp.eq.s32.totalorder %s24, 0
      %p65 = por %p63, %p64
      %p66 = scmp.ne.s32.totalorder %s58, %s60
      %p67 = scmp.eq.s32.totalorder %s29, 1
      %p68 = por %p66, %p67
      %p69 = scmp.ne.s32.totalorder %s60, %s61
      %p70 = scmp.eq.s32.totalorder %s29, 0
      %p71 = por %p69, %p70
      %p72 = scmp.ne.s32.totalorder %s60, %s61
      %p73 = scmp.eq.s32.totalorder %s30, 1
      %p74 = por %p72, %p73
      %p76 = scmp.ne.s32.totalorder %s61, %s75
      %p77 = scmp.eq.s32.totalorder %s30, 0
      %p78 = por %p76, %p77
      %s80 = sadd.s32 %s79, 1
      %p83 = scmp.eq.s32.totalorder %s24, 1
      %p84 = scmp.ne.s32.totalorder %s79, %s81
      %p85 = scmp.eq.s32.totalorder %s24, 0
      %p86 = por %p84, %p85
      %p87 = scmp.ne.s32.totalorder %s79, %s81
      %p88 = scmp.eq.s32.totalorder %s29, 1
      %p89 = por %p87, %p88
      %p90 = scmp.ne.s32.totalorder %s81, %s82
      %p91 = scmp.eq.s32.totalorder %s29, 0
      %p92 = por %p90, %p91
      %p93 = scmp.ne.s32.totalorder %s81, %s82
      %p94 = scmp.eq.s32.totalorder %s30, 1
      %p95 = por %p93, %p94
      %p97 = scmp.ne.s32.totalorder %s82, %s96
      %p98 = scmp.eq.s32.totalorder %s30, 0
      %p99 = por %p97, %p98
      %s101 = sadd.s32 %s100, 1
      %p104 = scmp.eq.s32.totalorder %s24, 1
      %p105 = scmp.ne.s32.totalorder %s100, %s102
      %p106 = scmp.eq.s32.totalorder %s24, 0
      %p107 = por %p105, %p106
      %p108 = scmp.ne.s32.totalorder %s100, %s102
      %p109 = scmp.eq.s32.totalorder %s29, 1
      %p110 = por %p108, %p109
      %p111 = scmp.ne.s32.totalorder %s102, %s103
      %p112 = scmp.eq.s32.totalorder %s29, 0
      %p113 = por %p111, %p112
      %p114 = scmp.ne.s32.totalorder %s102, %s103
      %p115 = scmp.eq.s32.totalorder %s30, 1
      %p116 = por %p114, %p115
      %p118 = scmp.ne.s32.totalorder %s103, %s117
      %p119 = scmp.eq.s32.totalorder %s30, 0
      %p120 = por %p118, %p119
      %s122 = sadd.s32 %s121, 1
      %p125 = scmp.eq.s32.totalorder %s24, 1
      %p126 = scmp.ne.s32.totalorder %s121, %s123
      %p127 = scmp.eq.s32.totalorder %s24, 0
      %p128 = por %p126, %p127
      %p129 = scmp.ne.s32.totalorder %s121, %s123
      %p130 = scmp.eq.s32.totalorder %s29, 1
      %p131 = por %p129, %p130
      %p132 = scmp.ne.s32.totalorder %s123, %s124
      %p133 = scmp.eq.s32.totalorder %s29, 0
      %p134 = por %p132, %p133
      %p135 = scmp.ne.s32.totalorder %s123, %s124
      %p136 = scmp.eq.s32.totalorder %s30, 1
      %p137 = por %p135, %p136
      %p139 = scmp.ne.s32.totalorder %s124, %s138
      %p140 = scmp.eq.s32.totalorder %s30, 0
      %p141 = por %p139, %p140
      %s143 = sadd.s32 %s142, 1
      %p146 = scmp.eq.s32.totalorder %s24, 1
      %p147 = scmp.ne.s32.totalorder %s142, %s144
      %p148 = scmp.eq.s32.totalorder %s24, 0
      %p149 = por %p147, %p148
      %p150 = scmp.ne.s32.totalorder %s142, %s144
      %p151 = scmp.eq.s32.totalorder %s29, 1
      %p152 = por %p150, %p151
      %p153 = scmp.ne.s32.totalorder %s144, %s145
      %p154 = scmp.eq.s32.totalorder %s29, 0
      %p155 = por %p153, %p154
      %p156 = scmp.ne.s32.totalorder %s144, %s145
      %p157 = scmp.eq.s32.totalorder %s30, 1
      %p158 = por %p156, %p157
      %p160 = scmp.ne.s32.totalorder %s145, %s159
      %p161 = scmp.eq.s32.totalorder %s30, 0
      %p162 = por %p160, %p161
      %s164 = sadd.s32 %s163, 1
      %p167 = scmp.eq.s32.totalorder %s24, 1
      %p168 = scmp.ne.s32.totalorder %s163, %s165
      %p169 = scmp.eq.s32.totalorder %s24, 0
      %p170 = por %p168, %p169
      %p171 = scmp.ne.s32.totalorder %s163, %s165
      %p172 = scmp.eq.s32.totalorder %s29, 1
      %p173 = por %p171, %p172
      %p174 = scmp.ne.s32.totalorder %s165, %s166
      %p175 = scmp.eq.s32.totalorder %s29, 0
      %p176 = por %p174, %p175
      %p177 = scmp.ne.s32.totalorder %s165, %s166
      %p178 = scmp.eq.s32.totalorder %s30, 1
      %p179 = por %p177, %p178
      %p181 = scmp.ne.s32.totalorder %s166, %s180
      %p182 = scmp.eq.s32.totalorder %s30, 0
      %p183 = por %p181, %p182
      %s185 = sadd.s32 %s184, 1
      %p188 = scmp.eq.s32.totalorder %s24, 1
      %p189 = scmp.ne.s32.totalorder %s184, %s186
      %p190 = scmp.eq.s32.totalorder %s24, 0
      %p191 = por %p189, %p190
      %p192 = scmp.ne.s32.totalorder %s184, %s186
      %p193 = scmp.eq.s32.totalorder %s29, 1
      %p194 = por %p192, %p193
      %p195 = scmp.ne.s32.totalorder %s186, %s187
      %p196 = scmp.eq.s32.totalorder %s29, 0
      %p197 = por %p195, %p196
      %p198 = scmp.ne.s32.totalorder %s186, %s187
      %p199 = scmp.eq.s32.totalorder %s30, 1
      %p200 = por %p198, %p199
      %p202 = scmp.ne.s32.totalorder %s187, %s201
      %p203 = scmp.eq.s32.totalorder %s30, 0
      %p204 = por %p202, %p203
      %s206 = sadd.s32 %s205, 1
      %p209 = scmp.eq.s32.totalorder %s24, 1
      %p210 = scmp.ne.s32.totalorder %s205, %s207
      %p211 = scmp.eq.s32.totalorder %s24, 0
      %p212 = por %p210, %p211
      %p213 = scmp.ne.s32.totalorder %s205, %s207
      %p214 = scmp.eq.s32.totalorder %s29, 1
      %p215 = por %p213, %p214
      %p216 = scmp.ne.s32.totalorder %s207, %s208
      %p217 = scmp.eq.s32.totalorder %s29, 0
      %p218 = por %p216, %p217
      %p219 = scmp.ne.s32.totalorder %s207, %s208
      %p220 = scmp.eq.s32.totalorder %s30, 1
      %p221 = por %p219, %p220
      %p223 = scmp.ne.s32.totalorder %s208, %s222
      %p224 = scmp.eq.s32.totalorder %s30, 0
      %p225 = por %p223, %p224
      %s227 = sadd.s32 %s226, 1
      %p230 = scmp.eq.s32.totalorder %s24, 1
      %p231 = scmp.ne.s32.totalorder %s226, %s228
      %p232 = scmp.eq.s32.totalorder %s24, 0
      %p233 = por %p231, %p232
      %p234 = scmp.ne.s32.totalorder %s226, %s228
      %p235 = scmp.eq.s32.totalorder %s29, 1
      %p236 = por %p234, %p235
      %p237 = scmp.ne.s32.totalorder %s228, %s229
      %p238 = scmp.eq.s32.totalorder %s29, 0
      %p239 = por %p237, %p238
      %p240 = scmp.ne.s32.totalorder %s228, %s229
      %p241 = scmp.eq.s32.totalorder %s30, 1
      %p242 = por %p240, %p241
      %p244 = scmp.ne.s32.totalorder %s229, %s243
      %p245 = scmp.eq.s32.totalorder %s30, 0
      %p246 = por %p244, %p245
      %s248 = sadd.s32 %s247, 1
      %p251 = scmp.eq.s32.totalorder %s24, 1
      %p252 = scmp.ne.s32.totalorder %s247, %s249
      %p253 = scmp.eq.s32.totalorder %s24, 0
      %p254 = por %p252, %p253
      %p255 = scmp.ne.s32.totalorder %s247, %s249
      %p256 = scmp.eq.s32.totalorder %s29, 1
      %p257 = por %p255, %p256
      %p258 = scmp.ne.s32.totalorder %s249, %s250
      %p259 = scmp.eq.s32.totalorder %s29, 0
      %p260 = por %p258, %p259
      %p261 = scmp.ne.s32.totalorder %s249, %s250
      %p262 = scmp.eq.s32.totalorder %s30, 1
      %p263 = por %p261, %p262
      %p265 = scmp.ne.s32.totalorder %s250, %s264
      %p266 = scmp.eq.s32.totalorder %s30, 0
      %p267 = por %p265, %p266
      %s269 = sadd.s32 %s268, 1
      %p272 = scmp.eq.s32.totalorder %s24, 1
      %p273 = scmp.ne.s32.totalorder %s268, %s270
      %p274 = scmp.eq.s32.totalorder %s24, 0
      %p275 = por %p273, %p274
      %p276 = scmp.ne.s32.totalorder %s268, %s270
      %p277 = scmp.eq.s32.totalorder %s29, 1
      %p278 = por %p276, %p277
      %p279 = scmp.ne.s32.totalorder %s270, %s271
      %p280 = scmp.eq.s32.totalorder %s29, 0
      %p281 = por %p279, %p280
      %p282 = scmp.ne.s32.totalorder %s270, %s271
      %p283 = scmp.eq.s32.totalorder %s30, 1
      %p284 = por %p282, %p283
      %p286 = scmp.ne.s32.totalorder %s271, %s285
      %p287 = scmp.eq.s32.totalorder %s30, 0
      %p288 = por %p286, %p287
      %s290 = sadd.s32 %s289, 1
      %p293 = scmp.eq.s32.totalorder %s24, 1
      %p294 = scmp.ne.s32.totalorder %s289, %s291
      %p295 = scmp.eq.s32.totalorder %s24, 0
      %p296 = por %p294, %p295
      %p297 = scmp.ne.s32.totalorder %s289, %s291
      %p298 = scmp.eq.s32.totalorder %s29, 1
      %p299 = por %p297, %p298
      %p300 = scmp.ne.s32.totalorder %s291, %s292
      %p301 = scmp.eq.s32.totalorder %s29, 0
      %p302 = por %p300, %p301
      %p303 = scmp.ne.s32.totalorder %s291, %s292
      %p304 = scmp.eq.s32.totalorder %s30, 1
      %p305 = por %p303, %p304
      %p307 = scmp.ne.s32.totalorder %s292, %s306
      %p308 = scmp.eq.s32.totalorder %s30, 0
      %p309 = por %p307, %p308
      %s310 = ssub.s32 %s24, %s31
      %p311 = scmp.eq.s32.totalorder %s310, 0
      %s313 = sadd.s32 %s312, 1
      %s314 = scalar_select %p311, %s312, %s313
      %p317 = pneg %p311
      %p318 = scmp.eq.s32.totalorder %s24, 1
      %p319 = por %p317, %p318
      %p320 = scmp.ne.s32.totalorder %s312, %s315
      %p321 = scmp.eq.s32.totalorder %s24, 0
      %p322 = por %p320, %p321
      %p323 = scmp.ne.s32.totalorder %s312, %s315
      %p324 = scmp.eq.s32.totalorder %s29, 1
      %p325 = por %p323, %p324
      %p326 = scmp.ne.s32.totalorder %s315, %s316
      %p327 = scmp.eq.s32.totalorder %s29, 0
      %p328 = por %p326, %p327
      %p329 = scmp.ne.s32.totalorder %s315, %s316
      %p330 = scmp.eq.s32.totalorder %s30, 1
      %p331 = por %p329, %p330
      %p333 = scmp.ne.s32.totalorder %s316, %s332
      %p334 = scmp.eq.s32.totalorder %s30, 0
      %p335 = por %p333, %p334
      %p336 = scmp.le.s32.totalorder 1, %s24
      %p337 = scmp.lt.s32.totalorder %s24, 3
      %p338 = pnand %p336, %p337
      %p339 = pneg %p338
      // Predicated region
      $region9: #{generator_forward.1} parent=5 // pred_check
        _
      $region10: #{generator_forward.1} parent=5 // pred_check_branch
        %341 = sbr.rel (%p338) target = $region12
      $region11: #{generator_forward.1} parent=5 // pred_region
        %s342 = ssub.s32 %s24, 1
        // Predicated region
        $region13: #{generator_forward.1} parent=11 // pred_check
          %p343 = pneg %p71
        $region14: #{generator_forward.1} parent=11 // pred_check_branch
          %345 = sbr.rel (%p343) target = $region16
        $region15: #{generator_forward.1} parent=11 // pred_region
          _
        $region16: #{generator_forward.1} parent=11 // pred_fallthru
          _
        // Predicated region
        $region17: #{generator_forward.1} parent=11 // pred_check
          %p346 = pneg %p92
        $region18: #{generator_forward.1} parent=11 // pred_check_branch
          %348 = sbr.rel (%p346) target = $region20
        $region19: #{generator_forward.1} parent=11 // pred_region
          %s350 = ssub.s32 1152, 1152
          %351 = vsyncadd [#allocation5], %s350
          %s352 = sshll.u32 [#allocation4], 4
          %s353 = int_to_ptr.vmem [resolvable:$true] %s352
          %358 = dma.hbm_to_vmem [thread:$0]  %s2, 1152, %s353, [#allocation5], 64, 64, 4
        $region20: #{generator_forward.1} parent=11 // pred_fallthru
          _
        // Predicated region
        $region21: #{generator_forward.1} parent=11 // pred_check
          %p359 = pneg %p113
        $region22: #{generator_forward.1} parent=11 // pred_check_branch
          %361 = sbr.rel (%p359) target = $region24
        $region23: #{generator_forward.1} parent=11 // pred_region
          %s363 = ssub.s32 1024, 1024
          %364 = vsyncadd [#allocation7], %s363
          %s365 = sshll.u32 [#allocation6], 4
          %s366 = int_to_ptr.vmem [resolvable:$true] %s365
          %371 = dma.hbm_to_vmem [thread:$0]  %s3, 1024, %s366, [#allocation7], 128, 128, 8
        $region24: #{generator_forward.1} parent=11 // pred_fallthru
          _
        // Predicated region
        $region25: #{generator_forward.1} parent=11 // pred_check
          %p372 = pneg %p134
        $region26: #{generator_forward.1} parent=11 // pred_check_branch
          %374 = sbr.rel (%p372) target = $region28
        $region27: #{generator_forward.1} parent=11 // pred_region
          %s376 = ssub.s32 8000, 8000
          %377 = vsyncadd [#allocation7], %s376
          %s378 = sshll.u32 [#allocation8], 4
          %s379 = int_to_ptr.vmem [resolvable:$true] %s378
          %384 = dma.hbm_to_vmem [thread:$0]  %s4, 8000, %s379, [#allocation7], 320, 320, 20
        $region28: #{generator_forward.1} parent=11 // pred_fallthru
          _
        // Predicated region
        $region29: #{generator_forward.1} parent=11 // pred_check
          %p385 = pneg %p155
        $region30: #{generator_forward.1} parent=11 // pred_check_branch
          %387 = sbr.rel (%p385) target = $region32
        $region31: #{generator_forward.1} parent=11 // pred_region
          _
        $region32: #{generator_forward.1} parent=11 // pred_fallthru
          _
        // Predicated region
        $region33: #{generator_forward.1} parent=11 // pred_check
          %p388 = pneg %p176
        $region34: #{generator_forward.1} parent=11 // pred_check_branch
          %390 = sbr.rel (%p388) target = $region36
        $region35: #{generator_forward.1} parent=11 // pred_region
          %s392 = ssub.s32 16, 16
          %393 = vsyncadd [#allocation10], %s392
          %s395 = sshll.u32 [#allocation9], 4
          %s396 = int_to_ptr.vmem [resolvable:$true] %s395
          %398 = dma.hbm_to_vmem [thread:$0]  %s6, 16, %s396, [#allocation10]
        $region36: #{generator_forward.1} parent=11 // pred_fallthru
          _
        // Predicated region
        $region37: #{generator_forward.1} parent=11 // pred_check
          %p399 = pneg %p197
        $region38: #{generator_forward.1} parent=11 // pred_check_branch
          %401 = sbr.rel (%p399) target = $region40
        $region39: #{generator_forward.1} parent=11 // pred_region
          _
        $region40: #{generator_forward.1} parent=11 // pred_fallthru
          _
        // Predicated region
        $region41: #{generator_forward.1} parent=11 // pred_check
          %p402 = pneg %p218
        $region42: #{generator_forward.1} parent=11 // pred_check_branch
          %404 = sbr.rel (%p402) target = $region44
        $region43: #{generator_forward.1} parent=11 // pred_region
          %s406 = ssub.s32 32, 32
          %407 = vsyncadd [#allocation10], %s406
          %s409 = sshll.u32 [#allocation11], 4
          %s410 = int_to_ptr.vmem [resolvable:$true] %s409
          %412 = dma.hbm_to_vmem [thread:$0]  %s8, 32, %s410, [#allocation10]
        $region44: #{generator_forward.1} parent=11 // pred_fallthru
          _
        // Predicated region
        $region45: #{generator_forward.1} parent=11 // pred_check
          %p413 = pneg %p239
        $region46: #{generator_forward.1} parent=11 // pred_check_branch
          %415 = sbr.rel (%p413) target = $region48
        $region47: #{generator_forward.1} parent=11 // pred_region
          %s417 = ssub.s32 36864, 36864
          %418 = vsyncadd [#allocation13], %s417
          %s419 = sshll.u32 [#allocation12], 4
          %s420 = int_to_ptr.vmem [resolvable:$true] %s419
          %425 = dma.hbm_to_vmem [thread:$0]  %s9, 36864, %s420, [#allocation13], 128, 128, 8
        $region48: #{generator_forward.1} parent=11 // pred_fallthru
          _
        // Predicated region
        $region49: #{generator_forward.1} parent=11 // pred_check
          %p426 = pneg %p260
        $region50: #{generator_forward.1} parent=11 // pred_check_branch
          %428 = sbr.rel (%p426) target = $region52
        $region51: #{generator_forward.1} parent=11 // pred_region
          %s430 = ssub.s32 32, 32
          %431 = vsyncadd [#allocation13], %s430
          %s433 = sshll.u32 [#allocation14], 4
          %s434 = int_to_ptr.vmem [resolvable:$true] %s433
          %436 = dma.hbm_to_vmem [thread:$0]  %s10, 32, %s434, [#allocation13]
        $region52: #{generator_forward.1} parent=11 // pred_fallthru
          _
        // Predicated region
        $region53: #{generator_forward.1} parent=11 // pred_check
          %p437 = pneg %p281
        $region54: #{generator_forward.1} parent=11 // pred_check_branch
          %439 = sbr.rel (%p437) target = $region56
        $region55: #{generator_forward.1} parent=11 // pred_region
          %s441 = ssub.s32 36864, 36864
          %442 = vsyncadd [#allocation16], %s441
          %s443 = sshll.u32 [#allocation15], 4
          %s444 = int_to_ptr.vmem [resolvable:$true] %s443
          %449 = dma.hbm_to_vmem [thread:$0]  %s11, 36864, %s444, [#allocation16], 128, 128, 8
        $region56: #{generator_forward.1} parent=11 // pred_fallthru
          _
        // Predicated region
        $region57: #{generator_forward.1} parent=11 // pred_check
          %p450 = pneg %p302
        $region58: #{generator_forward.1} parent=11 // pred_check_branch
          %452 = sbr.rel (%p450) target = $region60
        $region59: #{generator_forward.1} parent=11 // pred_region
          %s454 = ssub.s32 32, 32
          %455 = vsyncadd [#allocation16], %s454
          %s457 = sshll.u32 [#allocation17], 4
          %s458 = int_to_ptr.vmem [resolvable:$true] %s457
          %460 = dma.hbm_to_vmem [thread:$0]  %s12, 32, %s458, [#allocation16]
        $region60: #{generator_forward.1} parent=11 // pred_fallthru
          _
      $region12: #{generator_forward.1} parent=5 // pred_fallthru
        _
      %p461 = scmp.lt.s32.totalorder %s24, 2
      // Predicated region
      $region61: #{generator_forward.1} parent=5 // pred_check
        %p462 = pneg %p461
      $region62: #{generator_forward.1} parent=5 // pred_check_branch
        %464 = sbr.rel (%p462) target = $region64
      $region63: #{generator_forward.1} parent=5 // pred_region
        // Predicated region
        $region65: #{generator_forward.1} parent=63 // pred_check
          %p465 = pneg %p44
        $region66: #{generator_forward.1} parent=63 // pred_check_branch
          %467 = sbr.rel (%p465) target = $region68
        $region67: #{generator_forward.1} parent=63 // pred_region
          %p468 = scmp.lt.s32.totalorder %s24, 1
          %s469 = scalar_select %p468, %s24, 1
          %s470 = smul.addr %s469, 4
          %s471 = scalar_lea.vmem %s0, %s470
        $region68: #{generator_forward.1} parent=63 // pred_fallthru
          _
      $region64: #{generator_forward.1} parent=5 // pred_fallthru
        _
      %p472 = scmp.le.s32.totalorder 1, %s24
      %p473 = scmp.lt.s32.totalorder %s24, 3
      %p474 = pnand %p472, %p473
      %p475 = pneg %p474
      // Predicated region
      $region69: #{generator_forward.1} parent=5 // pred_check
        _
      $region70: #{generator_forward.1} parent=5 // pred_check_branch
        %477 = sbr.rel (%p474) target = $region72
      $region71: #{generator_forward.1} parent=5 // pred_region
        %s478 = ssub.s32 %s24, 1
        // Predicated region
        $region73: #{generator_forward.1} parent=71 // pred_check
          %p479 = pneg %p92
        $region74: #{generator_forward.1} parent=71 // pred_check_branch
          %481 = sbr.rel (%p479) target = $region76
        $region75: #{generator_forward.1} parent=71 // pred_region
          %482 = dma.done [#allocation5], 1152
        $region76: #{generator_forward.1} parent=71 // pred_fallthru
          _
        // Predicated region
        $region77: #{generator_forward.1} parent=71 // pred_check
          %p483 = pneg %p113
        $region78: #{generator_forward.1} parent=71 // pred_check_branch
          %485 = sbr.rel (%p483) target = $region80
        $region79: #{generator_forward.1} parent=71 // pred_region
          %486 = dma.done [#allocation7], 1024
        $region80: #{generator_forward.1} parent=71 // pred_fallthru
          _
        // Predicated region
        $region81: #{generator_forward.1} parent=71 // pred_check
          %p487 = pneg %p134
        $region82: #{generator_forward.1} parent=71 // pred_check_branch
          %489 = sbr.rel (%p487) target = $region84
        $region83: #{generator_forward.1} parent=71 // pred_region
          %490 = dma.done [#allocation7], 8000
        $region84: #{generator_forward.1} parent=71 // pred_fallthru
          _
        // Predicated region
        $region85: #{generator_forward.1} parent=71 // pred_check
          %p491 = pneg %p176
        $region86: #{generator_forward.1} parent=71 // pred_check_branch
          %493 = sbr.rel (%p491) target = $region88
        $region87: #{generator_forward.1} parent=71 // pred_region
          %494 = dma.done [#allocation10], 16
        $region88: #{generator_forward.1} parent=71 // pred_fallthru
          _
        // Predicated region
        $region89: #{generator_forward.1} parent=71 // pred_check
          %p495 = pneg %p218
        $region90: #{generator_forward.1} parent=71 // pred_check_branch
          %497 = sbr.rel (%p495) target = $region92
        $region91: #{generator_forward.1} parent=71 // pred_region
          %498 = dma.done [#allocation10], 32
        $region92: #{generator_forward.1} parent=71 // pred_fallthru
          _
        // Predicated region
        $region93: #{generator_forward.1} parent=71 // pred_check
          %p499 = pneg %p239
        $region94: #{generator_forward.1} parent=71 // pred_check_branch
          %501 = sbr.rel (%p499) target = $region96
        $region95: #{generator_forward.1} parent=71 // pred_region
          %502 = dma.done [#allocation13], 36864
        $region96: #{generator_forward.1} parent=71 // pred_fallthru
          _
        // Predicated region
        $region97: #{generator_forward.1} parent=71 // pred_check
          %p503 = pneg %p260
        $region98: #{generator_forward.1} parent=71 // pred_check_branch
          %505 = sbr.rel (%p503) target = $region100
        $region99: #{generator_forward.1} parent=71 // pred_region
          %506 = dma.done [#allocation13], 32
        $region100: #{generator_forward.1} parent=71 // pred_fallthru
          _
        // Predicated region
        $region101: #{generator_forward.1} parent=71 // pred_check
          %p507 = pneg %p281
        $region102: #{generator_forward.1} parent=71 // pred_check_branch
          %509 = sbr.rel (%p507) target = $region104
        $region103: #{generator_forward.1} parent=71 // pred_region
          %510 = dma.done [#allocation16], 36864
        $region104: #{generator_forward.1} parent=71 // pred_fallthru
          _
        // Predicated region
        $region105: #{generator_forward.1} parent=71 // pred_check
          %p511 = pneg %p302
        $region106: #{generator_forward.1} parent=71 // pred_check_branch
          %513 = sbr.rel (%p511) target = $region108
        $region107: #{generator_forward.1} parent=71 // pred_region
          %514 = dma.done [#allocation16], 32
        $region108: #{generator_forward.1} parent=71 // pred_fallthru
          _
        %p515 = scmp.lt.s32.totalorder %s29, 1
        %s516 = scalar_select %p515, %s29, 1
        %s517 = smul.addr %s516, 4
        %s518 = scalar_lea.vmem %s0, %s517
        %p519 = pneg %p50
        %p520 = pneg %p47
        %p521 = pneg %p71
        %p522 = pneg %p68
        %p523 = pneg %p92
        %p524 = pneg %p89
        %p525 = pneg %p113
        %p526 = pneg %p110
        %p527 = pneg %p134
        %p528 = pneg %p131
        %p529 = pneg %p155
        %p530 = pneg %p152
        %p531 = pneg %p176
        %p532 = pneg %p173
        %p533 = pneg %p197
        %p534 = pneg %p194
        %p535 = pneg %p218
        %p536 = pneg %p215
        %p537 = pneg %p239
        %p538 = pneg %p236
        %p539 = pneg %p260
        %p540 = pneg %p257
        %p541 = pneg %p281
        %p542 = pneg %p278
        %p543 = pneg %p302
        %p544 = pneg %p299
        %p545 = pneg %p328
        %p546 = pneg %p325
        %p547 = scmp.lt.s32.totalorder %s29, 1
        %s548 = scalar_select %p547, %s29, 1
        %s549 = smul.addr %s548, 50
        %s550 = smul.addr %s549, 8
        %s551 = scalar_lea.vmem %s13, %s550
        %p552 = scmp.lt.s32.totalorder %s29, 1
        %s553 = scalar_select %p552, %s29, 1
        %s554 = smul.addr %s553, 4
        %s555 = scalar_lea.vmem %s0, %s554
        %p556 = scmp.lt.s32.totalorder %s29, 1
        %s557 = scalar_select %p556, %s29, 1
        %s558 = smul.addr %s557, 50
        %s559 = smul.addr %s558, 8
        %s560 = scalar_lea.vmem %s13, %s559
        %v562 = vld [vmem:[%s555] sm:$0xf]
        %v564 = vlaneseq
        %v565 = vshrl.u32 %v564, 7
        %v566 = vsub.s32 0, %v565
        %v567 = vrot.slane %v562, %v566
        %v568 = vlaneseq
        %v569 = vshrl.u32 %v568, 7
        %v570 = vsub.s32 1, %v569
        %v571 = vrot.slane %v562, %v570
        %v572 = vlaneseq
        %v573 = vshrl.u32 %v572, 7
        %v574 = vsub.s32 2, %v573
        %v575 = vrot.slane %v562, %v574
        %v576 = vlaneseq
        %v577 = vshrl.u32 %v576, 7
        %v578 = vsub.s32 3, %v577
        %v579 = vrot.slane %v562, %v578
        %v584 = vpack.c.bf16 %v567, %v567
        %v585 = vpack.c.bf16 %v571, %v571
        %v586 = vpack.c.bf16 %v575, %v575
        %v587 = vpack.c.bf16 %v579, %v579
        %v588 = vld [vmem:[%s1] sm:$0xff]
        %v589 = vld [vmem:[%s1 + $0x8] sm:$0x1]
        %v590 = vld [vmem:[%s5] sm:$0xf]
        %v591 = vld [vmem:[%s5 + $0x4] sm:$0xf]
        %v592 = vld [vmem:[%s5 + $0x8] sm:$0xf]
        %v593 = vld [vmem:[%s5 + $0xc] sm:$0xf]
        %v594 = vld [vmem:[%s5 + $0x10] sm:$0xf]
        %v595 = vld [vmem:[%s5 + $0x14] sm:$0xf]
        %v596 = vld [vmem:[%s5 + $0x18] sm:$0xf]
        %v597 = vld [vmem:[%s5 + $0x1c] sm:$0xf]
        %v598 = vld [vmem:[%s5 + $0x20] sm:$0xf]
        %v599 = vld [vmem:[%s5 + $0x24] sm:$0xf]
        %v600 = vld [vmem:[%s5 + $0x28] sm:$0xf]
        %v601 = vld [vmem:[%s5 + $0x2c] sm:$0xf]
        %v602 = vld [vmem:[%s5 + $0x30] sm:$0xf]
        %v603 = vld [vmem:[%s5 + $0x34] sm:$0xf]
        %v604 = vld [vmem:[%s5 + $0x38] sm:$0xf]
        %v605 = vld [vmem:[%s5 + $0x3c] sm:$0xf]
        %v606 = vld [vmem:[%s5 + $0x40] sm:$0xf]
        %v607 = vld [vmem:[%s5 + $0x44] sm:$0xf]
        %v608 = vld [vmem:[%s5 + $0x48] sm:$0xf]
        %v609 = vld [vmem:[%s5 + $0x4c] sm:$0xf]
        %v610 = vld [vmem:[%s5 + $0x50] sm:$0xf]
        %v611 = vld [vmem:[%s5 + $0x54] sm:$0xf]
        %v612 = vld [vmem:[%s5 + $0x58] sm:$0xf]
        %v613 = vld [vmem:[%s5 + $0x5c] sm:$0xf]
        %v614 = vld [vmem:[%s5 + $0x60] sm:$0xf]
        %v615 = vld [vmem:[%s5 + $0x64] sm:$0xf]
        %v616 = vld [vmem:[%s5 + $0x68] sm:$0xf]
        %v617 = vld [vmem:[%s5 + $0x6c] sm:$0xf]
        %v618 = vld [vmem:[%s5 + $0x70] sm:$0xf]
        %v619 = vld [vmem:[%s5 + $0x74] sm:$0xf]
        %v620 = vld [vmem:[%s5 + $0x78] sm:$0xf]
        %v621 = vld [vmem:[%s5 + $0x7c] sm:$0xf]
        %v622 = vld [vmem:[%s5 + $0x80] sm:$0xf]
        %v623 = vld [vmem:[%s5 + $0x84] sm:$0xf]
        %v624 = vld [vmem:[%s5 + $0x88] sm:$0xf]
        %v625 = vld [vmem:[%s5 + $0x8c] sm:$0xf]
        %v626 = vld [vmem:[%s5 + $0x90] sm:$0xf]
        %v627 = vld [vmem:[%s5 + $0x94] sm:$0xf]
        %v628 = vld [vmem:[%s5 + $0x98] sm:$0xf]
        %v629 = vld [vmem:[%s5 + $0x9c] sm:$0xf]
        %v630 = vld [vmem:[%s5 + $0xa0] sm:$0xf]
        %v631 = vld [vmem:[%s5 + $0xa4] sm:$0xf]
        %v632 = vld [vmem:[%s5 + $0xa8] sm:$0xf]
        %v633 = vld [vmem:[%s5 + $0xac] sm:$0xf]
        %v634 = vld [vmem:[%s5 + $0xb0] sm:$0xf]
        %v635 = vld [vmem:[%s5 + $0xb4] sm:$0xf]
        %v636 = vld [vmem:[%s5 + $0xb8] sm:$0xf]
        %v637 = vld [vmem:[%s5 + $0xbc] sm:$0xf]
        %v638 = vld [vmem:[%s5 + $0xc0] sm:$0xf]
        %v639 = vld [vmem:[%s5 + $0xc4] sm:$0xf]
        %v640 = vld [vmem:[%s5 + $0xc8] sm:$0xf]
        %v641 = vld [vmem:[%s5 + $0xcc] sm:$0xf]
        %v642 = vld [vmem:[%s5 + $0xd0] sm:$0xf]
        %v643 = vld [vmem:[%s5 + $0xd4] sm:$0xf]
        %v644 = vld [vmem:[%s5 + $0xd8] sm:$0xf]
        %v645 = vld [vmem:[%s5 + $0xdc] sm:$0xf]
        %v646 = vld [vmem:[%s5 + $0xe0] sm:$0xf]
        %v647 = vld [vmem:[%s5 + $0xe4] sm:$0xf]
        %v648 = vld [vmem:[%s5 + $0xe8] sm:$0xf]
        %v649 = vld [vmem:[%s5 + $0xec] sm:$0xf]
        %v650 = vld [vmem:[%s5 + $0xf0] sm:$0xf]
        %v651 = vld [vmem:[%s5 + $0xf4] sm:$0xf]
        %v652 = vld [vmem:[%s5 + $0xf8] sm:$0xf]
        %v653 = vld [vmem:[%s5 + $0xfc] sm:$0xf]
        %v718 = vunpack.c.l.b16 %v590
        %v719 = vunpack.c.l.b16 %v591
        %v720 = vunpack.c.l.b16 %v592
        %v721 = vunpack.c.l.b16 %v593
        %v722 = vunpack.c.l.b16 %v594
        %v723 = vunpack.c.l.b16 %v595
        %v724 = vunpack.c.l.b16 %v596
        %v725 = vunpack.c.l.b16 %v597
        %v726 = vunpack.c.l.b16 %v598
        %v727 = vunpack.c.l.b16 %v599
        %v728 = vunpack.c.l.b16 %v600
        %v729 = vunpack.c.l.b16 %v601
        %v730 = vunpack.c.l.b16 %v602
        %v731 = vunpack.c.l.b16 %v603
        %v732 = vunpack.c.l.b16 %v604
        %v733 = vunpack.c.l.b16 %v605
        %v734 = vunpack.c.l.b16 %v606
        %v735 = vunpack.c.l.b16 %v607
        %v736 = vunpack.c.l.b16 %v608
        %v737 = vunpack.c.l.b16 %v609
        %v738 = vunpack.c.l.b16 %v610
        %v739 = vunpack.c.l.b16 %v611
        %v740 = vunpack.c.l.b16 %v612
        %v741 = vunpack.c.l.b16 %v613
        %v742 = vunpack.c.l.b16 %v614
        %v743 = vunpack.c.l.b16 %v615
        %v744 = vunpack.c.l.b16 %v616
        %v745 = vunpack.c.l.b16 %v617
        %v746 = vunpack.c.l.b16 %v618
        %v747 = vunpack.c.l.b16 %v619
        %v748 = vunpack.c.l.b16 %v620
        %v749 = vunpack.c.l.b16 %v621
        %v750 = vunpack.c.l.b16 %v622
        %v751 = vunpack.c.l.b16 %v623
        %v752 = vunpack.c.l.b16 %v624
        %v753 = vunpack.c.l.b16 %v625
        %v754 = vunpack.c.l.b16 %v626
        %v755 = vunpack.c.l.b16 %v627
        %v756 = vunpack.c.l.b16 %v628
        %v757 = vunpack.c.l.b16 %v629
        %v758 = vunpack.c.l.b16 %v630
        %v759 = vunpack.c.l.b16 %v631
        %v760 = vunpack.c.l.b16 %v632
        %v761 = vunpack.c.l.b16 %v633
        %v762 = vunpack.c.l.b16 %v634
        %v763 = vunpack.c.l.b16 %v635
        %v764 = vunpack.c.l.b16 %v636
        %v765 = vunpack.c.l.b16 %v637
        %v766 = vunpack.c.l.b16 %v638
        %v767 = vunpack.c.l.b16 %v639
        %v768 = vunpack.c.l.b16 %v640
        %v769 = vunpack.c.l.b16 %v641
        %v770 = vunpack.c.l.b16 %v642
        %v771 = vunpack.c.l.b16 %v643
        %v772 = vunpack.c.l.b16 %v644
        %v773 = vunpack.c.l.b16 %v645
        %v774 = vunpack.c.l.b16 %v646
        %v775 = vunpack.c.l.b16 %v647
        %v776 = vunpack.c.l.b16 %v648
        %v777 = vunpack.c.l.b16 %v649
        %v778 = vunpack.c.l.b16 %v650
        %v779 = vunpack.c.l.b16 %v651
        %v780 = vunpack.c.l.b16 %v652
        %v781 = vunpack.c.l.b16 %v653
        %v782 = vpack.c.b16 %v719, %v718
        %v783 = vpack.c.b16 %v721, %v720
        %v784 = vpack.c.b16 %v723, %v722
        %v785 = vpack.c.b16 %v725, %v724
        %v786 = vpack.c.b16 %v727, %v726
        %v787 = vpack.c.b16 %v729, %v728
        %v788 = vpack.c.b16 %v731, %v730
        %v789 = vpack.c.b16 %v733, %v732
        %v790 = vpack.c.b16 %v735, %v734
        %v791 = vpack.c.b16 %v737, %v736
        %v792 = vpack.c.b16 %v739, %v738
        %v793 = vpack.c.b16 %v741, %v740
        %v794 = vpack.c.b16 %v743, %v742
        %v795 = vpack.c.b16 %v745, %v744
        %v796 = vpack.c.b16 %v747, %v746
        %v797 = vpack.c.b16 %v749, %v748
        %v798 = vpack.c.b16 %v751, %v750
        %v799 = vpack.c.b16 %v753, %v752
        %v800 = vpack.c.b16 %v755, %v754
        %v801 = vpack.c.b16 %v757, %v756
        %v802 = vpack.c.b16 %v759, %v758
        %v803 = vpack.c.b16 %v761, %v760
        %v804 = vpack.c.b16 %v763, %v762
        %v805 = vpack.c.b16 %v765, %v764
        %v806 = vpack.c.b16 %v767, %v766
        %v807 = vpack.c.b16 %v769, %v768
        %v808 = vpack.c.b16 %v771, %v770
        %v809 = vpack.c.b16 %v773, %v772
        %v810 = vpack.c.b16 %v775, %v774
        %v811 = vpack.c.b16 %v777, %v776
        %v812 = vpack.c.b16 %v779, %v778
        %v813 = vpack.c.b16 %v781, %v780
        %846 = vmatprep.subr.bf16.mxu0 0
        %847 = vmatpush1.bf16.msra.mxu0 %v782
        %848 = vmatprep.subr.bf16.mxu0 0
        %849 = vmatpush1.bf16.msra.mxu0 %v783
        %850 = vmatprep.subr.bf16.mxu0 0
        %851 = vmatpush1.bf16.msra.mxu0 %v784
        %852 = vmatprep.subr.bf16.mxu0 0
        %853 = vmatpush1.bf16.msra.mxu0 %v785
        %854 = vmatprep.subr.bf16.mxu0 0
        %855 = vmatpush1.bf16.msra.mxu0 %v786
        %856 = vmatprep.subr.bf16.mxu0 0
        %857 = vmatpush1.bf16.msra.mxu0 %v787
        %858 = vmatprep.subr.bf16.mxu0 0
        %859 = vmatpush1.bf16.msra.mxu0 %v788
        %860 = vmatprep.subr.bf16.mxu0 0
        %861 = vmatpush1.bf16.msra.mxu0 %v789
        %862 = vmatprep.subr.bf16.mxu0 0
        %863 = vmatpush1.bf16.msra.mxu0 %v790
        %864 = vmatprep.subr.bf16.mxu0 0
        %865 = vmatpush1.bf16.msra.mxu0 %v791
        %866 = vmatprep.subr.bf16.mxu0 0
        %867 = vmatpush1.bf16.msra.mxu0 %v792
        %868 = vmatprep.subr.bf16.mxu0 0
        %869 = vmatpush1.bf16.msra.mxu0 %v793
        %870 = vmatprep.subr.bf16.mxu0 0
        %871 = vmatpush1.bf16.msra.mxu0 %v794
        %872 = vmatprep.subr.bf16.mxu0 0
        %873 = vmatpush1.bf16.msra.mxu0 %v795
        %874 = vmatprep.subr.bf16.mxu0 0
        %875 = vmatpush1.bf16.msra.mxu0 %v796
        %876 = vmatprep.subr.bf16.mxu0 0
        %877 = vmatpush1.bf16.msra.mxu0 %v797
        %878 = vmatprep.mubr.bf16.mxu0 %v585
        %879 = vmatmul.mubr.bf16.gmra.mrb[0].mxu0 %v584
        %v880 = vpop.f32.mrb[0].mxu0
        %v881 = vadd.f32 0.0, %v880
        %v882 = vpop.f32.mrb[0].mxu0
        %v883 = vpop.f32.mrb[0].mxu0
        %v884 = vpop.f32.mrb[0].mxu0
        %885 = vdwg.mxu0
        %886 = vmatprep.subr.bf16.mxu0 0
        %887 = vmatpush1.bf16.msra.mxu0 %v798
        %888 = vmatprep.subr.bf16.mxu0 0
        %889 = vmatpush1.bf16.msra.mxu0 %v799
        %890 = vmatprep.subr.bf16.mxu0 0
        %891 = vmatpush1.bf16.msra.mxu0 %v800
        %892 = vmatprep.subr.bf16.mxu0 0
        %893 = vmatpush1.bf16.msra.mxu0 %v801
        %894 = vmatprep.subr.bf16.mxu0 0
        %895 = vmatpush1.bf16.msra.mxu0 %v802
        %896 = vmatprep.subr.bf16.mxu0 0
        %897 = vmatpush1.bf16.msra.mxu0 %v803
        %898 = vmatprep.subr.bf16.mxu0 0
        %899 = vmatpush1.bf16.msra.mxu0 %v804
        %900 = vmatprep.subr.bf16.mxu0 0
        %901 = vmatpush1.bf16.msra.mxu0 %v805
        %902 = vmatprep.subr.bf16.mxu0 0
        %903 = vmatpush1.bf16.msra.mxu0 %v806
        %904 = vmatprep.subr.bf16.mxu0 0
        %905 = vmatpush1.bf16.msra.mxu0 %v807
        %906 = vmatprep.subr.bf16.mxu0 0
        %907 = vmatpush1.bf16.msra.mxu0 %v808
        %908 = vmatprep.subr.bf16.mxu0 0
        %909 = vmatpush1.bf16.msra.mxu0 %v809
        %910 = vmatprep.subr.bf16.mxu0 0
        %911 = vmatpush1.bf16.msra.mxu0 %v810
        %912 = vmatprep.subr.bf16.mxu0 0
        %913 = vmatpush1.bf16.msra.mxu0 %v811
        %914 = vmatprep.subr.bf16.mxu0 0
        %915 = vmatpush1.bf16.msra.mxu0 %v812
        %916 = vmatprep.subr.bf16.mxu0 0
        %917 = vmatpush1.bf16.msra.mxu0 %v813
        %918 = vmatprep.mubr.bf16.mxu0 %v587
        %919 = vmatmul.mubr.bf16.gmra.mrb[0].mxu0 %v586
        %v920 = vpop.f32.mrb[0].mxu0
        %v921 = vadd.f32 %v881, %v920
        %v922 = vpop.f32.mrb[0].mxu0
        %v923 = vpop.f32.mrb[0].mxu0
        %v924 = vpop.f32.mrb[0].mxu0
        %925 = vdwg.mxu0
        %927 = vset.pattern.permute.xlu0 0
        %928 = vperm.xlu0 %927, %v588
        %v929 = vpop.permute.xlu0 %928
        %932 = vset.pattern.permute.xlu0 0
        %933 = vperm.xlu0 %932, %v589
        %v934 = vpop.permute.xlu0 %933
        %v936 = vlaneseq
        %v937 = vshrl.u32 %v936, 7
        %v938 = vsub.s32 0, %v937
        %v939 = vrot.slane %v921, %v938
        %v940 = vmul.f32 %v929, %v939
        %v941 = vmul.f32 %v934, %v939
        %s942 = scalar_lea.vmem %s5, 256
        %v943 = vld [vmem:[%s942] sm:$0xf]
        %v944 = vld [vmem:[%s942 + $0x4] sm:$0xf]
        %v945 = vld [vmem:[%s942 + $0x8] sm:$0xf]
        %v946 = vld [vmem:[%s942 + $0xc] sm:$0xf]
        %v947 = vld [vmem:[%s942 + $0x10] sm:$0xf]
        %v948 = vld [vmem:[%s942 + $0x14] sm:$0xf]
        %v949 = vld [vmem:[%s942 + $0x18] sm:$0xf]
        %v950 = vld [vmem:[%s942 + $0x1c] sm:$0xf]
        %v951 = vld [vmem:[%s942 + $0x20] sm:$0xf]
        %v952 = vld [vmem:[%s942 + $0x24] sm:$0xf]
        %v953 = vld [vmem:[%s942 + $0x28] sm:$0xf]
        %v954 = vld [vmem:[%s942 + $0x2c] sm:$0xf]
        %v955 = vld [vmem:[%s942 + $0x30] sm:$0xf]
        %v956 = vld [vmem:[%s942 + $0x34] sm:$0xf]
        %v957 = vld [vmem:[%s942 + $0x38] sm:$0xf]
        %v958 = vld [vmem:[%s942 + $0x3c] sm:$0xf]
        %v959 = vld [vmem:[%s942 + $0x40] sm:$0xf]
        %v960 = vld [vmem:[%s942 + $0x44] sm:$0xf]
        %v961 = vld [vmem:[%s942 + $0x48] sm:$0xf]
        %v962 = vld [vmem:[%s942 + $0x4c] sm:$0xf]
        %v963 = vld [vmem:[%s942 + $0x50] sm:$0xf]
        %v964 = vld [vmem:[%s942 + $0x54] sm:$0xf]
        %v965 = vld [vmem:[%s942 + $0x58] sm:$0xf]
        %v966 = vld [vmem:[%s942 + $0x5c] sm:$0xf]
        %v967 = vld [vmem:[%s942 + $0x60] sm:$0xf]
        %v968 = vld [vmem:[%s942 + $0x64] sm:$0xf]
        %v969 = vld [vmem:[%s942 + $0x68] sm:$0xf]
        %v970 = vld [vmem:[%s942 + $0x6c] sm:$0xf]
        %v971 = vld [vmem:[%s942 + $0x70] sm:$0xf]
        %v972 = vld [vmem:[%s942 + $0x74] sm:$0xf]
        %v973 = vld [vmem:[%s942 + $0x78] sm:$0xf]
        %v974 = vld [vmem:[%s942 + $0x7c] sm:$0xf]
        %v975 = vld [vmem:[%s942 + $0x80] sm:$0xf]
        %v976 = vld [vmem:[%s942 + $0x84] sm:$0xf]
        %v977 = vld [vmem:[%s942 + $0x88] sm:$0xf]
        %v978 = vld [vmem:[%s942 + $0x8c] sm:$0xf]
        %v979 = vld [vmem:[%s942 + $0x90] sm:$0xf]
        %v980 = vld [vmem:[%s942 + $0x94] sm:$0xf]
        %v981 = vld [vmem:[%s942 + $0x98] sm:$0xf]
        %v982 = vld [vmem:[%s942 + $0x9c] sm:$0xf]
        %v983 = vld [vmem:[%s942 + $0xa0] sm:$0xf]
        %v984 = vld [vmem:[%s942 + $0xa4] sm:$0xf]
        %v985 = vld [vmem:[%s942 + $0xa8] sm:$0xf]
        %v986 = vld [vmem:[%s942 + $0xac] sm:$0xf]
        %v987 = vld [vmem:[%s942 + $0xb0] sm:$0xf]
        %v988 = vld [vmem:[%s942 + $0xb4] sm:$0xf]
        %v989 = vld [vmem:[%s942 + $0xb8] sm:$0xf]
        %v990 = vld [vmem:[%s942 + $0xbc] sm:$0xf]
        %v991 = vld [vmem:[%s942 + $0xc0] sm:$0xf]
        %v992 = vld [vmem:[%s942 + $0xc4] sm:$0xf]
        %v993 = vld [vmem:[%s942 + $0xc8] sm:$0xf]
        %v994 = vld [vmem:[%s942 + $0xcc] sm:$0xf]
        %v995 = vld [vmem:[%s942 + $0xd0] sm:$0xf]
        %v996 = vld [vmem:[%s942 + $0xd4] sm:$0xf]
        %v997 = vld [vmem:[%s942 + $0xd8] sm:$0xf]
        %v998 = vld [vmem:[%s942 + $0xdc] sm:$0xf]
        %v999 = vld [vmem:[%s942 + $0xe0] sm:$0xf]
        %v1000 = vld [vmem:[%s942 + $0xe4] sm:$0xf]
        %v1001 = vld [vmem:[%s942 + $0xe8] sm:$0xf]
        %v1002 = vld [vmem:[%s942 + $0xec] sm:$0xf]
        %v1003 = vld [vmem:[%s942 + $0xf0] sm:$0xf]
        %v1004 = vld [vmem:[%s942 + $0xf4] sm:$0xf]
        %v1005 = vld [vmem:[%s942 + $0xf8] sm:$0xf]
        %v1006 = vld [vmem:[%s942 + $0xfc] sm:$0xf]
        %v1071 = vunpack.c.l.b16 %v943
        %v1072 = vunpack.c.l.b16 %v944
        %v1073 = vunpack.c.l.b16 %v945
        %v1074 = vunpack.c.l.b16 %v946
        %v1075 = vunpack.c.l.b16 %v947
        %v1076 = vunpack.c.l.b16 %v948
        %v1077 = vunpack.c.l.b16 %v949
        %v1078 = vunpack.c.l.b16 %v950
        %v1079 = vunpack.c.l.b16 %v951
        %v1080 = vunpack.c.l.b16 %v952
        %v1081 = vunpack.c.l.b16 %v953
        %v1082 = vunpack.c.l.b16 %v954
        %v1083 = vunpack.c.l.b16 %v955
        %v1084 = vunpack.c.l.b16 %v956
        %v1085 = vunpack.c.l.b16 %v957
        %v1086 = vunpack.c.l.b16 %v958
        %v1087 = vunpack.c.l.b16 %v959
        %v1088 = vunpack.c.l.b16 %v960
        %v1089 = vunpack.c.l.b16 %v961
        %v1090 = vunpack.c.l.b16 %v962
        %v1091 = vunpack.c.l.b16 %v963
        %v1092 = vunpack.c.l.b16 %v964
        %v1093 = vunpack.c.l.b16 %v965
        %v1094 = vunpack.c.l.b16 %v966
        %v1095 = vunpack.c.l.b16 %v967
        %v1096 = vunpack.c.l.b16 %v968
        %v1097 = vunpack.c.l.b16 %v969
        %v1098 = vunpack.c.l.b16 %v970
        %v1099 = vunpack.c.l.b16 %v971
        %v1100 = vunpack.c.l.b16 %v972
        %v1101 = vunpack.c.l.b16 %v973
        %v1102 = vunpack.c.l.b16 %v974
        %v1103 = vunpack.c.l.b16 %v975
        %v1104 = vunpack.c.l.b16 %v976
        %v1105 = vunpack.c.l.b16 %v977
        %v1106 = vunpack.c.l.b16 %v978
        %v1107 = vunpack.c.l.b16 %v979
        %v1108 = vunpack.c.l.b16 %v980
        %v1109 = vunpack.c.l.b16 %v981
        %v1110 = vunpack.c.l.b16 %v982
        %v1111 = vunpack.c.l.b16 %v983
        %v1112 = vunpack.c.l.b16 %v984
        %v1113 = vunpack.c.l.b16 %v985
        %v1114 = vunpack.c.l.b16 %v986
        %v1115 = vunpack.c.l.b16 %v987
        %v1116 = vunpack.c.l.b16 %v988
        %v1117 = vunpack.c.l.b16 %v989
        %v1118 = vunpack.c.l.b16 %v990
        %v1119 = vunpack.c.l.b16 %v991
        %v1120 = vunpack.c.l.b16 %v992
        %v1121 = vunpack.c.l.b16 %v993
        %v1122 = vunpack.c.l.b16 %v994
        %v1123 = vunpack.c.l.b16 %v995
        %v1124 = vunpack.c.l.b16 %v996
        %v1125 = vunpack.c.l.b16 %v997
        %v1126 = vunpack.c.l.b16 %v998
        %v1127 = vunpack.c.l.b16 %v999
        %v1128 = vunpack.c.l.b16 %v1000
        %v1129 = vunpack.c.l.b16 %v1001
        %v1130 = vunpack.c.l.b16 %v1002
        %v1131 = vunpack.c.l.b16 %v1003
        %v1132 = vunpack.c.l.b16 %v1004
        %v1133 = vunpack.c.l.b16 %v1005
        %v1134 = vunpack.c.l.b16 %v1006
        %v1135 = vpack.c.b16 %v1072, %v1071
        %v1136 = vpack.c.b16 %v1074, %v1073
        %v1137 = vpack.c.b16 %v1076, %v1075
        %v1138 = vpack.c.b16 %v1078, %v1077
        %v1139 = vpack.c.b16 %v1080, %v1079
        %v1140 = vpack.c.b16 %v1082, %v1081
        %v1141 = vpack.c.b16 %v1084, %v1083
        %v1142 = vpack.c.b16 %v1086, %v1085
        %v1143 = vpack.c.b16 %v1088, %v1087
        %v1144 = vpack.c.b16 %v1090, %v1089
        %v1145 = vpack.c.b16 %v1092, %v1091
        %v1146 = vpack.c.b16 %v1094, %v1093
        %v1147 = vpack.c.b16 %v1096, %v1095
        %v1148 = vpack.c.b16 %v1098, %v1097
        %v1149 = vpack.c.b16 %v1100, %v1099
        %v1150 = vpack.c.b16 %v1102, %v1101
        %v1151 = vpack.c.b16 %v1104, %v1103
        %v1152 = vpack.c.b16 %v1106, %v1105
        %v1153 = vpack.c.b16 %v1108, %v1107
        %v1154 = vpack.c.b16 %v1110, %v1109
        %v1155 = vpack.c.b16 %v1112, %v1111
        %v1156 = vpack.c.b16 %v1114, %v1113
        %v1157 = vpack.c.b16 %v1116, %v1115
        %v1158 = vpack.c.b16 %v1118, %v1117
        %v1159 = vpack.c.b16 %v1120, %v1119
        %v1160 = vpack.c.b16 %v1122, %v1121
        %v1161 = vpack.c.b16 %v1124, %v1123
        %v1162 = vpack.c.b16 %v1126, %v1125
        %v1163 = vpack.c.b16 %v1128, %v1127
        %v1164 = vpack.c.b16 %v1130, %v1129
        %v1165 = vpack.c.b16 %v1132, %v1131
        %v1166 = vpack.c.b16 %v1134, %v1133
        %1199 = vmatprep.subr.bf16.mxu0 0
        %1200 = vmatpush1.bf16.msra.mxu0 %v1135
        %1201 = vmatprep.subr.bf16.mxu0 0
        %1202 = vmatpush1.bf16.msra.mxu0 %v1136
        %1203 = vmatprep.subr.bf16.mxu0 0
        %1204 = vmatpush1.bf16.msra.mxu0 %v1137
        %1205 = vmatprep.subr.bf16.mxu0 0
        %1206 = vmatpush1.bf16.msra.mxu0 %v1138
        %1207 = vmatprep.subr.bf16.mxu0 0
        %1208 = vmatpush1.bf16.msra.mxu0 %v1139
        %1209 = vmatprep.subr.bf16.mxu0 0
        %1210 = vmatpush1.bf16.msra.mxu0 %v1140
        %1211 = vmatprep.subr.bf16.mxu0 0
        %1212 = vmatpush1.bf16.msra.mxu0 %v1141
        %1213 = vmatprep.subr.bf16.mxu0 0
        %1214 = vmatpush1.bf16.msra.mxu0 %v1142
        %1215 = vmatprep.subr.bf16.mxu0 0
        %1216 = vmatpush1.bf16.msra.mxu0 %v1143
        %1217 = vmatprep.subr.bf16.mxu0 0
        %1218 = vmatpush1.bf16.msra.mxu0 %v1144
        %1219 = vmatprep.subr.bf16.mxu0 0
        %1220 = vmatpush1.bf16.msra.mxu0 %v1145
        %1221 = vmatprep.subr.bf16.mxu0 0
        %1222 = vmatpush1.bf16.msra.mxu0 %v1146
        %1223 = vmatprep.subr.bf16.mxu0 0
        %1224 = vmatpush1.bf16.msra.mxu0 %v1147
        %1225 = vmatprep.subr.bf16.mxu0 0
        %1226 = vmatpush1.bf16.msra.mxu0 %v1148
        %1227 = vmatprep.subr.bf16.mxu0 0
        %1228 = vmatpush1.bf16.msra.mxu0 %v1149
        %1229 = vmatprep.subr.bf16.mxu0 0
        %1230 = vmatpush1.bf16.msra.mxu0 %v1150
        %1231 = vmatprep.mubr.bf16.mxu0 %v585
        %1232 = vmatmul.mubr.bf16.gmra.mrb[0].mxu0 %v584
        %v1233 = vpop.f32.mrb[0].mxu0
        %v1234 = vadd.f32 0.0, %v1233
        %v1235 = vpop.f32.mrb[0].mxu0
        %v1236 = vpop.f32.mrb[0].mxu0
        %v1237 = vpop.f32.mrb[0].mxu0
        %1238 = vdwg.mxu0
        %1239 = vmatprep.subr.bf16.mxu0 0
        %1240 = vmatpush1.bf16.msra.mxu0 %v1151
        %1241 = vmatprep.subr.bf16.mxu0 0
        %1242 = vmatpush1.bf16.msra.mxu0 %v1152
        %1243 = vmatprep.subr.bf16.mxu0 0
        %1244 = vmatpush1.bf16.msra.mxu0 %v1153
        %1245 = vmatprep.subr.bf16.mxu0 0
        %1246 = vmatpush1.bf16.msra.mxu0 %v1154
        %1247 = vmatprep.subr.bf16.mxu0 0
        %1248 = vmatpush1.bf16.msra.mxu0 %v1155
        %1249 = vmatprep.subr.bf16.mxu0 0
        %1250 = vmatpush1.bf16.msra.mxu0 %v1156
        %1251 = vmatprep.subr.bf16.mxu0 0
        %1252 = vmatpush1.bf16.msra.mxu0 %v1157
        %1253 = vmatprep.subr.bf16.mxu0 0
        %1254 = vmatpush1.bf16.msra.mxu0 %v1158
        %1255 = vmatprep.subr.bf16.mxu0 0
        %1256 = vmatpush1.bf16.msra.mxu0 %v1159
        %1257 = vmatprep.subr.bf16.mxu0 0
        %1258 = vmatpush1.bf16.msra.mxu0 %v1160
        %1259 = vmatprep.subr.bf16.mxu0 0
        %1260 = vmatpush1.bf16.msra.mxu0 %v1161
        %1261 = vmatprep.subr.bf16.mxu0 0
        %1262 = vmatpush1.bf16.msra.mxu0 %v1162
        %1263 = vmatprep.subr.bf16.mxu0 0
        %1264 = vmatpush1.bf16.msra.mxu0 %v1163
        %1265 = vmatprep.subr.bf16.mxu0 0
        %1266 = vmatpush1.bf16.msra.mxu0 %v1164
        %1267 = vmatprep.subr.bf16.mxu0 0
        %1268 = vmatpush1.bf16.msra.mxu0 %v1165
        %1269 = vmatprep.subr.bf16.mxu0 0
        %1270 = vmatpush1.bf16.msra.mxu0 %v1166
        %1271 = vmatprep.mubr.bf16.mxu0 %v587
        %1272 = vmatmul.mubr.bf16.gmra.mrb[0].mxu0 %v586
        %v1273 = vpop.f32.mrb[0].mxu0
        %v1274 = vadd.f32 %v1234, %v1273
        %v1275 = vpop.f32.mrb[0].mxu0
        %v1276 = vpop.f32.mrb[0].mxu0
        %v1277 = vpop.f32.mrb[0].mxu0
        %1278 = vdwg.mxu0
        %1279 = vset.pattern.permute.xlu0 1
        %1280 = vperm.xlu0 %1279, %v588
        %v1281 = vpop.permute.xlu0 %1280
        %1283 = vset.pattern.permute.xlu0 1
        %1284 = vperm.xlu0 %1283, %v589
        %v1285 = vpop.permute.xlu0 %1284
        %v1287 = vlaneseq
        %v1288 = vshrl.u32 %v1287, 7
        %v1289 = vsub.s32 0, %v1288
        %v1290 = vrot.slane %v1274, %v1289
        %v1291 = vmul.f32 %v1281, %v1290
        %v1292 = vmul.f32 %v1285, %v1290
        %v1293 = vadd.f32 %v940, %v1291
        %v1294 = vadd.f32 %v941, %v1292
        %s1295 = scalar_lea.vmem %s5, 512
        %v1296 = vld [vmem:[%s1295] sm:$0xf]
        %v1297 = vld [vmem:[%s1295 + $0x4] sm:$0xf]
        %v1298 = vld [vmem:[%s1295 + $0x8] sm:$0xf]
        %v1299 = vld [vmem:[%s1295 + $0xc] sm:$0xf]
        %v1300 = vld [vmem:[%s1295 + $0x10] sm:$0xf]
        %v1301 = vld [vmem:[%s1295 + $0x14] sm:$0xf]
        %v1302 = vld [vmem:[%s1295 + $0x18] sm:$0xf]
        %v1303 = vld [vmem:[%s1295 + $0x1c] sm:$0xf]
        %v1304 = vld [vmem:[%s1295 + $0x20] sm:$0xf]
        %v1305 = vld [vmem:[%s1295 + $0x24] sm:$0xf]
        %v1306 = vld [vmem:[%s1295 + $0x28] sm:$0xf]
        %v1307 = vld [vmem:[%s1295 + $0x2c] sm:$0xf]
        %v1308 = vld [vmem:[%s1295 + $0x30] sm:$0xf]
        %v1309 = vld [vmem:[%s1295 + $0x34] sm:$0xf]
        %v1310 = vld [vmem:[%s1295 + $0x38] sm:$0xf]
        %v1311 = vld [vmem:[%s1295 + $0x3c] sm:$0xf]
        %v1312 = vld [vmem:[%s1295 + $0x40] sm:$0xf]
        %v1313 = vld [vmem:[%s1295 + $0x44] sm:$0xf]
        %v1314 = vld [vmem:[%s1295 + $0x48] sm:$0xf]
        %v1315 = vld [vmem:[%s1295 + $0x4c] sm:$0xf]
        %v1316 = vld [vmem:[%s1295 + $0x50] sm:$0xf]
        %v1317 = vld [vmem:[%s1295 + $0x54] sm:$0xf]
        %v1318 = vld [vmem:[%s1295 + $0x58] sm:$0xf]
        %v1319 = vld [vmem:[%s1295 + $0x5c] sm:$0xf]
        %v1320 = vld [vmem:[%s1295 + $0x60] sm:$0xf]
        %v1321 = vld [vmem:[%s1295 + $0x64] sm:$0xf]
        %v1322 = vld [vmem:[%s1295 + $0x68] sm:$0xf]
        %v1323 = vld [vmem:[%s1295 + $0x6c] sm:$0xf]
        %v1324 = vld [vmem:[%s1295 + $0x70] sm:$0xf]
        %v1325 = vld [vmem:[%s1295 + $0x74] sm:$0xf]
        %v1326 = vld [vmem:[%s1295 + $0x78] sm:$0xf]
        %v1327 = vld [vmem:[%s1295 + $0x7c] sm:$0xf]
        %v1328 = vld [vmem:[%s1295 + $0x80] sm:$0xf]
        %v1329 = vld [vmem:[%s1295 + $0x84] sm:$0xf]
        %v1330 = vld [vmem:[%s1295 + $0x88] sm:$0xf]
        %v1331 = vld [vmem:[%s1295 + $0x8c] sm:$0xf]
        %v1332 = vld [vmem:[%s1295 + $0x90] sm:$0xf]
        %v1333 = vld [vmem:[%s1295 + $0x94] sm:$0xf]
        %v1334 = vld [vmem:[%s1295 + $0x98] sm:$0xf]
        %v1335 = vld [vmem:[%s1295 + $0x9c] sm:$0xf]
        %v1336 = vld [vmem:[%s1295 + $0xa0] sm:$0xf]
        %v1337 = vld [vmem:[%s1295 + $0xa4] sm:$0xf]
        %v1338 = vld [vmem:[%s1295 + $0xa8] sm:$0xf]
        %v1339 = vld [vmem:[%s1295 + $0xac] sm:$0xf]
        %v1340 = vld [vmem:[%s1295 + $0xb0] sm:$0xf]
        %v1341 = vld [vmem:[%s1295 + $0xb4] sm:$0xf]
        %v1342 = vld [vmem:[%s1295 + $0xb8] sm:$0xf]
        %v1343 = vld [vmem:[%s1295 + $0xbc] sm:$0xf]
        %v1344 = vld [vmem:[%s1295 + $0xc0] sm:$0xf]
        %v1345 = vld [vmem:[%s1295 + $0xc4] sm:$0xf]
        %v1346 = vld [vmem:[%s1295 + $0xc8] sm:$0xf]
        %v1347 = vld [vmem:[%s1295 + $0xcc] sm:$0xf]
        %v1348 = vld [vmem:[%s1295 + $0xd0] sm:$0xf]
        %v1349 = vld [vmem:[%s1295 + $0xd4] sm:$0xf]
        %v1350 = vld [vmem:[%s1295 + $0xd8] sm:$0xf]
        %v1351 = vld [vmem:[%s1295 + $0xdc] sm:$0xf]
        %v1352 = vld [vmem:[%s1295 + $0xe0] sm:$0xf]
        %v1353 = vld [vmem:[%s1295 + $0xe4] sm:$0xf]
        %v1354 = vld [vmem:[%s1295 + $0xe8] sm:$0xf]
        %v1355 = vld [vmem:[%s1295 + $0xec] sm:$0xf]
        %v1356 = vld [vmem:[%s1295 + $0xf0] sm:$0xf]
        %v1357 = vld [vmem:[%s1295 + $0xf4] sm:$0xf]
        %v1358 = vld [vmem:[%s1295 + $0xf8] sm:$0xf]
        %v1359 = vld [vmem:[%s1295 + $0xfc] sm:$0xf]
        %v1424 = vunpack.c.l.b16 %v1296
        %v1425 = vunpack.c.l.b16 %v1297
        %v1426 = vunpack.c.l.b16 %v1298
        %v1427 = vunpack.c.l.b16 %v1299
        %v1428 = vunpack.c.l.b16 %v1300
        %v1429 = vunpack.c.l.b16 %v1301
        %v1430 = vunpack.c.l.b16 %v1302
        %v1431 = vunpack.c.l.b16 %v1303
        %v1432 = vunpack.c.l.b16 %v1304
        %v1433 = vunpack.c.l.b16 %v1305
        %v1434 = vunpack.c.l.b16 %v1306
        %v1435 = vunpack.c.l.b16 %v1307
        %v1436 = vunpack.c.l.b16 %v1308
        %v1437 = vunpack.c.l.b16 %v1309
        %v1438 = vunpack.c.l.b16 %v1310
        %v1439 = vunpack.c.l.b16 %v1311
        %v1440 = vunpack.c.l.b16 %v1312
        %v1441 = vunpack.c.l.b16 %v1313
        %v1442 = vunpack.c.l.b16 %v1314
        %v1443 = vunpack.c.l.b16 %v1315
        %v1444 = vunpack.c.l.b16 %v1316
        %v1445 = vunpack.c.l.b16 %v1317
        %v1446 = vunpack.c.l.b16 %v1318
        %v1447 = vunpack.c.l.b16 %v1319
        %v1448 = vunpack.c.l.b16 %v1320
        %v1449 = vunpack.c.l.b16 %v1321
        %v1450 = vunpack.c.l.b16 %v1322
        %v1451 = vunpack.c.l.b16 %v1323
        %v1452 = vunpack.c.l.b16 %v1324
        %v1453 = vunpack.c.l.b16 %v1325
        %v1454 = vunpack.c.l.b16 %v1326
        %v1455 = vunpack.c.l.b16 %v1327
        %v1456 = vunpack.c.l.b16 %v1328
        %v1457 = vunpack.c.l.b16 %v1329
        %v1458 = vunpack.c.l.b16 %v1330
        %v1459 = vunpack.c.l.b16 %v1331
        %v1460 = vunpack.c.l.b16 %v1332
        %v1461 = vunpack.c.l.b16 %v1333
        %v1462 = vunpack.c.l.b16 %v1334
        %v1463 = vunpack.c.l.b16 %v1335
        %v1464 = vunpack.c.l.b16 %v1336
        %v1465 = vunpack.c.l.b16 %v1337
        %v1466 = vunpack.c.l.b16 %v1338
        %v1467 = vunpack.c.l.b16 %v1339
        %v1468 = vunpack.c.l.b16 %v1340
        %v1469 = vunpack.c.l.b16 %v1341
        %v1470 = vunpack.c.l.b16 %v1342
        %v1471 = vunpack.c.l.b16 %v1343
        %v1472 = vunpack.c.l.b16 %v1344
        %v1473 = vunpack.c.l.b16 %v1345
        %v1474 = vunpack.c.l.b16 %v1346
        %v1475 = vunpack.c.l.b16 %v1347
        %v1476 = vunpack.c.l.b16 %v1348
        %v1477 = vunpack.c.l.b16 %v1349
        %v1478 = vunpack.c.l.b16 %v1350
        %v1479 = vunpack.c.l.b16 %v1351
        %v1480 = vunpack.c.l.b16 %v1352
        %v1481 = vunpack.c.l.b16 %v1353
        %v1482 = vunpack.c.l.b16 %v1354
        %v1483 = vunpack.c.l.b16 %v1355
        %v1484 = vunpack.c.l.b16 %v1356
        %v1485 = vunpack.c.l.b16 %v1357
        %v1486 = vunpack.c.l.b16 %v1358
        %v1487 = vunpack.c.l.b16 %v1359
        %v1488 = vpack.c.b16 %v1425, %v1424
        %v1489 = vpack.c.b16 %v1427, %v1426
        %v1490 = vpack.c.b16 %v1429, %v1428
        %v1491 = vpack.c.b16 %v1431, %v1430
        %v1492 = vpack.c.b16 %v1433, %v1432
        %v1493 = vpack.c.b16 %v1435, %v1434
        %v1494 = vpack.c.b16 %v1437, %v1436
        %v1495 = vpack.c.b16 %v1439, %v1438
        %v1496 = vpack.c.b16 %v1441, %v1440
        %v1497 = vpack.c.b16 %v1443, %v1442
        %v1498 = vpack.c.b16 %v1445, %v1444
        %v1499 = vpack.c.b16 %v1447, %v1446
        %v1500 = vpack.c.b16 %v1449, %v1448
        %v1501 = vpack.c.b16 %v1451, %v1450
        %v1502 = vpack.c.b16 %v1453, %v1452
        %v1503 = vpack.c.b16 %v1455, %v1454
        %v1504 = vpack.c.b16 %v1457, %v1456
        %v1505 = vpack.c.b16 %v1459, %v1458
        %v1506 = vpack.c.b16 %v1461, %v1460
        %v1507 = vpack.c.b16 %v1463, %v1462
        %v1508 = vpack.c.b16 %v1465, %v1464
        %v1509 = vpack.c.b16 %v1467, %v1466
        %v1510 = vpack.c.b16 %v1469, %v1468
        %v1511 = vpack.c.b16 %v1471, %v1470
        %v1512 = vpack.c.b16 %v1473, %v1472
        %v1513 = vpack.c.b16 %v1475, %v1474
        %v1514 = vpack.c.b16 %v1477, %v1476
        %v1515 = vpack.c.b16 %v1479, %v1478
        %v1516 = vpack.c.b16 %v1481, %v1480
        %v1517 = vpack.c.b16 %v1483, %v1482
        %v1518 = vpack.c.b16 %v1485, %v1484
        %v1519 = vpack.c.b16 %v1487, %v1486
        %1552 = vmatprep.subr.bf16.mxu0 0
        %1553 = vmatpush1.bf16.msra.mxu0 %v1488
        %1554 = vmatprep.subr.bf16.mxu0 0
        %1555 = vmatpush1.bf16.msra.mxu0 %v1489
        %1556 = vmatprep.subr.bf16.mxu0 0
        %1557 = vmatpush1.bf16.msra.mxu0 %v1490
        %1558 = vmatprep.subr.bf16.mxu0 0
        %1559 = vmatpush1.bf16.msra.mxu0 %v1491
        %1560 = vmatprep.subr.bf16.mxu0 0
        %1561 = vmatpush1.bf16.msra.mxu0 %v1492
        %1562 = vmatprep.subr.bf16.mxu0 0
        %1563 = vmatpush1.bf16.msra.mxu0 %v1493
        %1564 = vmatprep.subr.bf16.mxu0 0
        %1565 = vmatpush1.bf16.msra.mxu0 %v1494
        %1566 = vmatprep.subr.bf16.mxu0 0
        %1567 = vmatpush1.bf16.msra.mxu0 %v1495
        %1568 = vmatprep.subr.bf16.mxu0 0
        %1569 = vmatpush1.bf16.msra.mxu0 %v1496
        %1570 = vmatprep.subr.bf16.mxu0 0
        %1571 = vmatpush1.bf16.msra.mxu0 %v1497
        %1572 = vmatprep.subr.bf16.mxu0 0
        %1573 = vmatpush1.bf16.msra.mxu0 %v1498
        %1574 = vmatprep.subr.bf16.mxu0 0
        %1575 = vmatpush1.bf16.msra.mxu0 %v1499
        %1576 = vmatprep.subr.bf16.mxu0 0
        %1577 = vmatpush1.bf16.msra.mxu0 %v1500
        %1578 = vmatprep.subr.bf16.mxu0 0
        %1579 = vmatpush1.bf16.msra.mxu0 %v1501
        %1580 = vmatprep.subr.bf16.mxu0 0
        %1581 = vmatpush1.bf16.msra.mxu0 %v1502
        %1582 = vmatprep.subr.bf16.mxu0 0
        %1583 = vmatpush1.bf16.msra.mxu0 %v1503
        %1584 = vmatprep.mubr.bf16.mxu0 %v585
        %1585 = vmatmul.mubr.bf16.gmra.mrb[0].mxu0 %v584
        %v1586 = vpop.f32.mrb[0].mxu0
        %v1587 = vadd.f32 0.0, %v1586
        %v1588 = vpop.f32.mrb[0].mxu0
        %v1589 = vpop.f32.mrb[0].mxu0
        %v1590 = vpop.f32.mrb[0].mxu0
        %1591 = vdwg.mxu0
        %1592 = vmatprep.subr.bf16.mxu0 0
        %1593 = vmatpush1.bf16.msra.mxu0 %v1504
        %1594 = vmatprep.subr.bf16.mxu0 0
        %1595 = vmatpush1.bf16.msra.mxu0 %v1505
        %1596 = vmatprep.subr.bf16.mxu0 0
        %1597 = vmatpush1.bf16.msra.mxu0 %v1506
        %1598 = vmatprep.subr.bf16.mxu0 0
        %1599 = vmatpush1.bf16.msra.mxu0 %v1507
        %1600 = vmatprep.subr.bf16.mxu0 0
        %1601 = vmatpush1.bf16.msra.mxu0 %v1508
        %1602 = vmatprep.subr.bf16.mxu0 0
        %1603 = vmatpush1.bf16.msra.mxu0 %v1509
        %1604 = vmatprep.subr.bf16.mxu0 0
        %1605 = vmatpush1.bf16.msra.mxu0 %v1510
        %1606 = vmatprep.subr.bf16.mxu0 0
        %1607 = vmatpush1.bf16.msra.mxu0 %v1511
        %1608 = vmatprep.subr.bf16.mxu0 0
        %1609 = vmatpush1.bf16.msra.mxu0 %v1512
        %1610 = vmatprep.subr.bf16.mxu0 0
        %1611 = vmatpush1.bf16.msra.mxu0 %v1513
        %1612 = vmatprep.subr.bf16.mxu0 0
        %1613 = vmatpush1.bf16.msra.mxu0 %v1514
        %1614 = vmatprep.subr.bf16.mxu0 0
        %1615 = vmatpush1.bf16.msra.mxu0 %v1515
        %1616 = vmatprep.subr.bf16.mxu0 0
        %1617 = vmatpush1.bf16.msra.mxu0 %v1516
        %1618 = vmatprep.subr.bf16.mxu0 0
        %1619 = vmatpush1.bf16.msra.mxu0 %v1517
        %1620 = vmatprep.subr.bf16.mxu0 0
        %1621 = vmatpush1.bf16.msra.mxu0 %v1518
        %1622 = vmatprep.subr.bf16.mxu0 0
        %1623 = vmatpush1.bf16.msra.mxu0 %v1519
        %1624 = vmatprep.mubr.bf16.mxu0 %v587
        %1625 = vmatmul.mubr.bf16.gmra.mrb[0].mxu0 %v586
        %v1626 = vpop.f32.mrb[0].mxu0
        %v1627 = vadd.f32 %v1587, %v1626
        %v1628 = vpop.f32.mrb[0].mxu0
        %v1629 = vpop.f32.mrb[0].mxu0
        %v1630 = vpop.f32.mrb[0].mxu0
        %1631 = vdwg.mxu0
        %1632 = vset.pattern.permute.xlu0 2
        %1633 = vperm.xlu0 %1632, %v588
        %v1634 = vpop.permute.xlu0 %1633
        %1636 = vset.pattern.permute.xlu0 2
        %1637 = vperm.xlu0 %1636, %v589
        %v1638 = vpop.permute.xlu0 %1637
        %v1640 = vlaneseq
        %v1641 = vshrl.u32 %v1640, 7
        %v1642 = vsub.s32 0, %v1641
        %v1643 = vrot.slane %v1627, %v1642
        %v1644 = vmul.f32 %v1634, %v1643
        %v1645 = vmul.f32 %v1638, %v1643
        %v1646 = vadd.f32 %v1293, %v1644
        %v1647 = vadd.f32 %v1294, %v1645
        %s1648 = scalar_lea.vmem %s5, 768
        %v1649 = vld [vmem:[%s1648] sm:$0xf]
        %v1650 = vld [vmem:[%s1648 + $0x4] sm:$0xf]
        %v1651 = vld [vmem:[%s1648 + $0x8] sm:$0xf]
        %v1652 = vld [vmem:[%s1648 + $0xc] sm:$0xf]
        %v1653 = vld [vmem:[%s1648 + $0x10] sm:$0xf]
        %v1654 = vld [vmem:[%s1648 + $0x14] sm:$0xf]
        %v1655 = vld [vmem:[%s1648 + $0x18] sm:$0xf]
        %v1656 = vld [vmem:[%s1648 + $0x1c] sm:$0xf]
        %v1657 = vld [vmem:[%s1648 + $0x20] sm:$0xf]
        %v1658 = vld [vmem:[%s1648 + $0x24] sm:$0xf]
        %v1659 = vld [vmem:[%s1648 + $0x28] sm:$0xf]
        %v1660 = vld [vmem:[%s1648 + $0x2c] sm:$0xf]
        %v1661 = vld [vmem:[%s1648 + $0x30] sm:$0xf]
        %v1662 = vld [vmem:[%s1648 + $0x34] sm:$0xf]
        %v1663 = vld [vmem:[%s1648 + $0x38] sm:$0xf]
        %v1664 = vld [vmem:[%s1648 + $0x3c] sm:$0xf]
        %v1665 = vld [vmem:[%s1648 + $0x40] sm:$0xf]
        %v1666 = vld [vmem:[%s1648 + $0x44] sm:$0xf]
        %v1667 = vld [vmem:[%s1648 + $0x48] sm:$0xf]
        %v1668 = vld [vmem:[%s1648 + $0x4c] sm:$0xf]
        %v1669 = vld [vmem:[%s1648 + $0x50] sm:$0xf]
        %v1670 = vld [vmem:[%s1648 + $0x54] sm:$0xf]
        %v1671 = vld [vmem:[%s1648 + $0x58] sm:$0xf]
        %v1672 = vld [vmem:[%s1648 + $0x5c] sm:$0xf]
        %v1673 = vld [vmem:[%s1648 + $0x60] sm:$0xf]
        %v1674 = vld [vmem:[%s1648 + $0x64] sm:$0xf]
        %v1675 = vld [vmem:[%s1648 + $0x68] sm:$0xf]
        %v1676 = vld [vmem:[%s1648 + $0x6c] sm:$0xf]
        %v1677 = vld [vmem:[%s1648 + $0x70] sm:$0xf]
        %v1678 = vld [vmem:[%s1648 + $0x74] sm:$0xf]
        %v1679 = vld [vmem:[%s1648 + $0x78] sm:$0xf]
        %v1680 = vld [vmem:[%s1648 + $0x7c] sm:$0xf]
        %v1681 = vld [vmem:[%s1648 + $0x80] sm:$0xf]
        %v1682 = vld [vmem:[%s1648 + $0x84] sm:$0xf]
        %v1683 = vld [vmem:[%s1648 + $0x88] sm:$0xf]
        %v1684 = vld [vmem:[%s1648 + $0x8c] sm:$0xf]
        %v1685 = vld [vmem:[%s1648 + $0x90] sm:$0xf]
        %v1686 = vld [vmem:[%s1648 + $0x94] sm:$0xf]
        %v1687 = vld [vmem:[%s1648 + $0x98] sm:$0xf]
        %v1688 = vld [vmem:[%s1648 + $0x9c] sm:$0xf]
        %v1689 = vld [vmem:[%s1648 + $0xa0] sm:$0xf]
        %v1690 = vld [vmem:[%s1648 + $0xa4] sm:$0xf]
        %v1691 = vld [vmem:[%s1648 + $0xa8] sm:$0xf]
        %v1692 = vld [vmem:[%s1648 + $0xac] sm:$0xf]
        %v1693 = vld [vmem:[%s1648 + $0xb0] sm:$0xf]
        %v1694 = vld [vmem:[%s1648 + $0xb4] sm:$0xf]
        %v1695 = vld [vmem:[%s1648 + $0xb8] sm:$0xf]
        %v1696 = vld [vmem:[%s1648 + $0xbc] sm:$0xf]
        %v1697 = vld [vmem:[%s1648 + $0xc0] sm:$0xf]
        %v1698 = vld [vmem:[%s1648 + $0xc4] sm:$0xf]
        %v1699 = vld [vmem:[%s1648 + $0xc8] sm:$0xf]
        %v1700 = vld [vmem:[%s1648 + $0xcc] sm:$0xf]
        %v1701 = vld [vmem:[%s1648 + $0xd0] sm:$0xf]
        %v1702 = vld [vmem:[%s1648 + $0xd4] sm:$0xf]
        %v1703 = vld [vmem:[%s1648 + $0xd8] sm:$0xf]
        %v1704 = vld [vmem:[%s1648 + $0xdc] sm:$0xf]
        %v1705 = vld [vmem:[%s1648 + $0xe0] sm:$0xf]
        %v1706 = vld [vmem:[%s1648 + $0xe4] sm:$0xf]
        %v1707 = vld [vmem:[%s1648 + $0xe8] sm:$0xf]
        %v1708 = vld [vmem:[%s1648 + $0xec] sm:$0xf]
        %v1709 = vld [vmem:[%s1648 + $0xf0] sm:$0xf]
        %v1710 = vld [vmem:[%s1648 + $0xf4] sm:$0xf]
        %v1711 = vld [vmem:[%s1648 + $0xf8] sm:$0xf]
        %v1712 = vld [vmem:[%s1648 + $0xfc] sm:$0xf]
        %v1777 = vunpack.c.l.b16 %v1649
        %v1778 = vunpack.c.l.b16 %v1650
        %v1779 = vunpack.c.l.b16 %v1651
        %v1780 = vunpack.c.l.b16 %v1652
        %v1781 = vunpack.c.l.b16 %v1653
        %v1782 = vunpack.c.l.b16 %v1654
        %v1783 = vunpack.c.l.b16 %v1655
        %v1784 = vunpack.c.l.b16 %v1656
        %v1785 = vunpack.c.l.b16 %v1657
        %v1786 = vunpack.c.l.b16 %v1658
        %v1787 = vunpack.c.l.b16 %v1659
        %v1788 = vunpack.c.l.b16 %v1660
        %v1789 = vunpack.c.l.b16 %v1661
        %v1790 = vunpack.c.l.b16 %v1662
        %v1791 = vunpack.c.l.b16 %v1663
        %v1792 = vunpack.c.l.b16 %v1664
        %v1793 = vunpack.c.l.b16 %v1665
        %v1794 = vunpack.c.l.b16 %v1666
        %v1795 = vunpack.c.l.b16 %v1667
        %v1796 = vunpack.c.l.b16 %v1668
        %v1797 = vunpack.c.l.b16 %v1669
        %v1798 = vunpack.c.l.b16 %v1670
        %v1799 = vunpack.c.l.b16 %v1671
        %v1800 = vunpack.c.l.b16 %v1672
        %v1801 = vunpack.c.l.b16 %v1673
        %v1802 = vunpack.c.l.b16 %v1674
        %v1803 = vunpack.c.l.b16 %v1675
        %v1804 = vunpack.c.l.b16 %v1676
        %v1805 = vunpack.c.l.b16 %v1677
        %v1806 = vunpack.c.l.b16 %v1678
        %v1807 = vunpack.c.l.b16 %v1679
        %v1808 = vunpack.c.l.b16 %v1680
        %v1809 = vunpack.c.l.b16 %v1681
        %v1810 = vunpack.c.l.b16 %v1682
        %v1811 = vunpack.c.l.b16 %v1683
        %v1812 = vunpack.c.l.b16 %v1684
        %v1813 = vunpack.c.l.b16 %v1685
        %v1814 = vunpack.c.l.b16 %v1686
        %v1815 = vunpack.c.l.b16 %v1687
        %v1816 = vunpack.c.l.b16 %v1688
        %v1817 = vunpack.c.l.b16 %v1689
        %v1818 = vunpack.c.l.b16 %v1690
        %v1819 = vunpack.c.l.b16 %v1691
        %v1820 = vunpack.c.l.b16 %v1692
        %v1821 = vunpack.c.l.b16 %v1693
        %v1822 = vunpack.c.l.b16 %v1694
        %v1823 = vunpack.c.l.b16 %v1695
        %v1824 = vunpack.c.l.b16 %v1696
        %v1825 = vunpack.c.l.b16 %v1697
        %v1826 = vunpack.c.l.b16 %v1698
        %v1827 = vunpack.c.l.b16 %v1699
        %v1828 = vunpack.c.l.b16 %v1700
        %v1829 = vunpack.c.l.b16 %v1701
        %v1830 = vunpack.c.l.b16 %v1702
        %v1831 = vunpack.c.l.b16 %v1703
        %v1832 = vunpack.c.l.b16 %v1704
        %v1833 = vunpack.c.l.b16 %v1705
        %v1834 = vunpack.c.l.b16 %v1706
        %v1835 = vunpack.c.l.b16 %v1707
        %v1836 = vunpack.c.l.b16 %v1708
        %v1837 = vunpack.c.l.b16 %v1709
        %v1838 = vunpack.c.l.b16 %v1710
        %v1839 = vunpack.c.l.b16 %v1711
        %v1840 = vunpack.c.l.b16 %v1712
        %v1841 = vpack.c.b16 %v1778, %v1777
        %v1842 = vpack.c.b16 %v1780, %v1779
        %v1843 = vpack.c.b16 %v1782, %v1781
        %v1844 = vpack.c.b16 %v1784, %v1783
        %v1845 = vpack.c.b16 %v1786, %v1785
        %v1846 = vpack.c.b16 %v1788, %v1787
        %v1847 = vpack.c.b16 %v1790, %v1789
        %v1848 = vpack.c.b16 %v1792, %v1791
        %v1849 = vpack.c.b16 %v1794, %v1793
        %v1850 = vpack.c.b16 %v1796, %v1795
        %v1851 = vpack.c.b16 %v1798, %v1797
        %v1852 = vpack.c.b16 %v1800, %v1799
        %v1853 = vpack.c.b16 %v1802, %v1801
        %v1854 = vpack.c.b16 %v1804, %v1803
        %v1855 = vpack.c.b16 %v1806, %v1805
        %v1856 = vpack.c.b16 %v1808, %v1807
        %v1857 = vpack.c.b16 %v1810, %v1809
        %v1858 = vpack.c.b16 %v1812, %v1811
        %v1859 = vpack.c.b16 %v1814, %v1813
        %v1860 = vpack.c.b16 %v1816, %v1815
        %v1861 = vpack.c.b16 %v1818, %v1817
        %v1862 = vpack.c.b16 %v1820, %v1819
        %v1863 = vpack.c.b16 %v1822, %v1821
        %v1864 = vpack.c.b16 %v1824, %v1823
        %v1865 = vpack.c.b16 %v1826, %v1825
        %v1866 = vpack.c.b16 %v1828, %v1827
        %v1867 = vpack.c.b16 %v1830, %v1829
        %v1868 = vpack.c.b16 %v1832, %v1831
        %v1869 = vpack.c.b16 %v1834, %v1833
        %v1870 = vpack.c.b16 %v1836, %v1835
        %v1871 = vpack.c.b16 %v1838, %v1837
        %v1872 = vpack.c.b16 %v1840, %v1839
        %1905 = vmatprep.subr.bf16.mxu0 0
        %1906 = vmatpush1.bf16.msra.mxu0 %v1841
        %1907 = vmatprep.subr.bf16.mxu0 0
        %1908 = vmatpush1.bf16.msra.mxu0 %v1842
        %1909 = vmatprep.subr.bf16.mxu0 0
        %1910 = vmatpush1.bf16.msra.mxu0 %v1843
        %1911 = vmatprep.subr.bf16.mxu0 0
        %1912 = vmatpush1.bf16.msra.mxu0 %v1844
        %1913 = vmatprep.subr.bf16.mxu0 0
        %1914 = vmatpush1.bf16.msra.mxu0 %v1845
        %1915 = vmatprep.subr.bf16.mxu0 0
        %1916 = vmatpush1.bf16.msra.mxu0 %v1846
        %1917 = vmatprep.subr.bf16.mxu0 0
        %1918 = vmatpush1.bf16.msra.mxu0 %v1847
        %1919 = vmatprep.subr.bf16.mxu0 0
        %1920 = vmatpush1.bf16.msra.mxu0 %v1848
        %1921 = vmatprep.subr.bf16.mxu0 0
        %1922 = vmatpush1.bf16.msra.mxu0 %v1849
        %1923 = vmatprep.subr.bf16.mxu0 0
        %1924 = vmatpush1.bf16.msra.mxu0 %v1850
        %1925 = vmatprep.subr.bf16.mxu0 0
        %1926 = vmatpush1.bf16.msra.mxu0 %v1851
        %1927 = vmatprep.subr.bf16.mxu0 0
        %1928 = vmatpush1.bf16.msra.mxu0 %v1852
        %1929 = vmatprep.subr.bf16.mxu0 0
        %1930 = vmatpush1.bf16.msra.mxu0 %v1853
        %1931 = vmatprep.subr.bf16.mxu0 0
        %1932 = vmatpush1.bf16.msra.mxu0 %v1854
        %1933 = vmatprep.subr.bf16.mxu0 0
        %1934 = vmatpush1.bf16.msra.mxu0 %v1855
        %1935 = vmatprep.subr.bf16.mxu0 0
        %1936 = vmatpush1.bf16.msra.mxu0 %v1856
        %1937 = vmatprep.mubr.bf16.mxu0 %v585
        %1938 = vmatmul.mubr.bf16.gmra.mrb[0].mxu0 %v584
        %v1939 = vpop.f32.mrb[0].mxu0
        %v1940 = vadd.f32 0.0, %v1939
        %v1941 = vpop.f32.mrb[0].mxu0
        %v1942 = vpop.f32.mrb[0].mxu0
        %v1943 = vpop.f32.mrb[0].mxu0
        %1944 = vdwg.mxu0
        %1945 = vmatprep.subr.bf16.mxu0 0
        %1946 = vmatpush1.bf16.msra.mxu0 %v1857
        %1947 = vmatprep.subr.bf16.mxu0 0
        %1948 = vmatpush1.bf16.msra.mxu0 %v1858
        %1949 = vmatprep.subr.bf16.mxu0 0
        %1950 = vmatpush1.bf16.msra.mxu0 %v1859
        %1951 = vmatprep.subr.bf16.mxu0 0
        %1952 = vmatpush1.bf16.msra.mxu0 %v1860
        %1953 = vmatprep.subr.bf16.mxu0 0
        %1954 = vmatpush1.bf16.msra.mxu0 %v1861
        %1955 = vmatprep.subr.bf16.mxu0 0
        %1956 = vmatpush1.bf16.msra.mxu0 %v1862
        %1957 = vmatprep.subr.bf16.mxu0 0
        %1958 = vmatpush1.bf16.msra.mxu0 %v1863
        %1959 = vmatprep.subr.bf16.mxu0 0
        %1960 = vmatpush1.bf16.msra.mxu0 %v1864
        %1961 = vmatprep.subr.bf16.mxu0 0
        %1962 = vmatpush1.bf16.msra.mxu0 %v1865
        %1963 = vmatprep.subr.bf16.mxu0 0
        %1964 = vmatpush1.bf16.msra.mxu0 %v1866
        %1965 = vmatprep.subr.bf16.mxu0 0
        %1966 = vmatpush1.bf16.msra.mxu0 %v1867
        %1967 = vmatprep.subr.bf16.mxu0 0
        %1968 = vmatpush1.bf16.msra.mxu0 %v1868
        %1969 = vmatprep.subr.bf16.mxu0 0
        %1970 = vmatpush1.bf16.msra.mxu0 %v1869
        %1971 = vmatprep.subr.bf16.mxu0 0
        %1972 = vmatpush1.bf16.msra.mxu0 %v1870
        %1973 = vmatprep.subr.bf16.mxu0 0
        %1974 = vmatpush1.bf16.msra.mxu0 %v1871
        %1975 = vmatprep.subr.bf16.mxu0 0
        %1976 = vmatpush1.bf16.msra.mxu0 %v1872
        %1977 = vmatprep.mubr.bf16.mxu0 %v587
        %1978 = vmatmul.mubr.bf16.gmra.mrb[0].mxu0 %v586
        %v1979 = vpop.f32.mrb[0].mxu0
        %v1980 = vadd.f32 %v1940, %v1979
        %v1981 = vpop.f32.mrb[0].mxu0
        %v1982 = vpop.f32.mrb[0].mxu0
        %v1983 = vpop.f32.mrb[0].mxu0
        %1984 = vdwg.mxu0
        %1985 = vset.pattern.permute.xlu0 3
        %1986 = vperm.xlu0 %1985, %v588
        %v1987 = vpop.permute.xlu0 %1986
        %1989 = vset.pattern.permute.xlu0 3
        %1990 = vperm.xlu0 %1989, %v589
        %v1991 = vpop.permute.xlu0 %1990
        %v1993 = vlaneseq
        %v1994 = vshrl.u32 %v1993, 7
        %v1995 = vsub.s32 0, %v1994
        %v1996 = vrot.slane %v1980, %v1995
        %v1997 = vmul.f32 %v1987, %v1996
        %v1998 = vmul.f32 %v1991, %v1996
        %v1999 = vadd.f32 %v1646, %v1997
        %v2000 = vadd.f32 %v1647, %v1998
        %v2001 = vld [vmem:[#allocation9] sm:$0x1]
        %v2003 = vlaneseq
        %v2004 = vshrl.u32 %v2003, 7
        %v2005 = vsub.s32 0, %v2004
        %v2006 = vrot.slane %v2001, %v2005
        %v2008 = vadd.f32 %v1999, %v2006
        %v2009 = vadd.f32 %v2000, %v2006
        %v2010 = vmul.f32 %v2008, 0.2
        %v2011 = vmul.f32 %v2009, 0.2
        %v2012 = vmax.f32 %v2008, %v2010
        %v2013 = vmax.f32 %v2009, %v2011
        %v2014 = vpack.c.bf16 %v2013, %v2012
        %v2015 = vld [vmem:[%s7] sm:$0xff]
        %v2016 = vld [vmem:[%s7 + $0x8] sm:$0xff]
        %v2017 = vld [vmem:[%s7 + $0x10] sm:$0xff]
        %v2018 = vld [vmem:[%s7 + $0x18] sm:$0xff]
        %v2019 = vld [vmem:[%s7 + $0x20] sm:$0xff]
        %v2020 = vld [vmem:[%s7 + $0x28] sm:$0xff]
        %v2021 = vld [vmem:[%s7 + $0x30] sm:$0xff]
        %v2022 = vld [vmem:[%s7 + $0x38] sm:$0xff]
        %v2023 = vld [vmem:[%s7 + $0x40] sm:$0xff]
        %v2024 = vld [vmem:[%s7 + $0x48] sm:$0xff]
        %v2025 = vld [vmem:[%s7 + $0x50] sm:$0xff]
        %v2026 = vld [vmem:[%s7 + $0x58] sm:$0xff]
        %v2039 = vunpack.c.l.b16 %v2015
        %v2040 = vunpack.c.h.b16 %v2015
        %v2041 = vunpack.c.l.b16 %v2016
        %v2042 = vunpack.c.h.b16 %v2016
        %v2043 = vunpack.c.l.b16 %v2017
        %v2044 = vunpack.c.h.b16 %v2017
        %v2045 = vunpack.c.l.b16 %v2018
        %v2046 = vunpack.c.h.b16 %v2018
        %v2047 = vunpack.c.l.b16 %v2019
        %v2048 = vunpack.c.h.b16 %v2019
        %v2049 = vunpack.c.l.b16 %v2020
        %v2050 = vunpack.c.h.b16 %v2020
        %v2051 = vunpack.c.l.b16 %v2021
        %v2052 = vunpack.c.h.b16 %v2021
        %v2053 = vunpack.c.l.b16 %v2022
        %v2054 = vunpack.c.h.b16 %v2022
        %v2055 = vunpack.c.l.b16 %v2023
        %v2056 = vunpack.c.h.b16 %v2023
        %v2057 = vunpack.c.l.b16 %v2024
        %v2058 = vunpack.c.h.b16 %v2024
        %v2059 = vunpack.c.l.b16 %v2025
        %v2060 = vunpack.c.h.b16 %v2025
        %v2061 = vunpack.c.l.b16 %v2026
        %v2062 = vunpack.c.h.b16 %v2026
        %v2063 = vpack.c.b16 %v2041, %v2039
        %v2064 = vpack.c.b16 %v2042, %v2040
        %v2065 = vpack.c.b16 %v2045, %v2043
        %v2066 = vpack.c.b16 %v2046, %v2044
        %v2067 = vpack.c.b16 %v2049, %v2047
        %v2068 = vpack.c.b16 %v2050, %v2048
        %v2069 = vpack.c.b16 %v2053, %v2051
        %v2070 = vpack.c.b16 %v2054, %v2052
        %v2071 = vpack.c.b16 %v2057, %v2055
        %v2072 = vpack.c.b16 %v2058, %v2056
        %v2073 = vpack.c.b16 %v2061, %v2059
        %v2074 = vpack.c.b16 %v2062, %v2060
        %vm2087 = vcmask 785408
        %v2089 = vsel %vm2087, %v2014, 0
        %2091 = vmatprep.subr.bf16.mxu0 %v2064
        %2092 = vmatpush1.bf16.msra.mxu0 %v2063
        %2093 = vmatprep.subr.bf16.mxu0 %v2066
        %2094 = vmatpush1.bf16.msra.mxu0 %v2065
        %2095 = vmatprep.subr.bf16.mxu0 %v2068
        %2096 = vmatpush1.bf16.msra.mxu0 %v2067
        %2097 = vmatprep.subr.bf16.mxu0 %v2070
        %2098 = vmatpush1.bf16.msra.mxu0 %v2069
        %2099 = vmatprep.subr.bf16.mxu0 %v2072
        %2100 = vmatpush1.bf16.msra.mxu0 %v2071
        %2101 = vmatprep.subr.bf16.mxu0 %v2074
        %2102 = vmatpush1.bf16.msra.mxu0 %v2073
        %2103 = vmatprep.subr.bf16.mxu0 0
        %2104 = vmatpush1.bf16.msra.mxu0 0
        %2105 = vmatprep.subr.bf16.mxu0 0
        %2106 = vmatpush1.bf16.msra.mxu0 0
        %2107 = vmatprep.subr.bf16.mxu0 0
        %2108 = vmatpush1.bf16.msra.mxu0 0
        %2109 = vmatprep.subr.bf16.mxu0 0
        %2110 = vmatpush1.bf16.msra.mxu0 0
        %2111 = vmatprep.subr.bf16.mxu0 0
        %2112 = vmatpush1.bf16.msra.mxu0 0
        %2113 = vmatprep.subr.bf16.mxu0 0
        %2114 = vmatpush1.bf16.msra.mxu0 0
        %2115 = vmatprep.subr.bf16.mxu0 0
        %2116 = vmatpush1.bf16.msra.mxu0 0
        %2117 = vmatprep.subr.bf16.mxu0 0
        %2118 = vmatpush1.bf16.msra.mxu0 0
        %2119 = vmatprep.subr.bf16.mxu0 0
        %2120 = vmatpush1.bf16.msra.mxu0 0
        %2121 = vmatprep.subr.bf16.mxu0 0
        %2122 = vmatpush1.bf16.msra.mxu0 0
        %2123 = vmatprep.mubr.bf16.mxu0 0
        %2124 = vmatmul.mubr.bf16.gmra.mrb[0].mxu0 %v2089
        %v2125 = vpop.f32.mrb[0].mxu0
        %v2126 = vadd.f32 0.0, %v2125
        %v2127 = vpop.f32.mrb[0].mxu0
        %v2128 = vadd.f32 0.0, %v2127
        %v2129 = vpop.f32.mrb[0].mxu0
        %v2130 = vadd.f32 0.0, %v2129
        %v2131 = vpop.f32.mrb[0].mxu0
        %v2132 = vadd.f32 0.0, %v2131
        %2133 = vdwg.mxu0
        %v2134 = vld [vmem:[#allocation4] sm:$0xf]
        %v2135 = vld [vmem:[#allocation4 + $0x4] sm:$0xf]
        %v2136 = vpack.c.bf16 %v2130, %v2126
        %v2137 = vpack.c.bf16 %v2132, %v2128
        %s2138 = scalar_lea.vmem %s7, 96
        %v2139 = vld [vmem:[%s2138] sm:$0xff]
        %v2140 = vld [vmem:[%s2138 + $0x8] sm:$0xff]
        %v2141 = vld [vmem:[%s2138 + $0x10] sm:$0xff]
        %v2142 = vld [vmem:[%s2138 + $0x18] sm:$0xff]
        %v2143 = vld [vmem:[%s2138 + $0x20] sm:$0xff]
        %v2144 = vld [vmem:[%s2138 + $0x28] sm:$0xff]
        %v2145 = vld [vmem:[%s2138 + $0x30] sm:$0xff]
        %v2146 = vld [vmem:[%s2138 + $0x38] sm:$0xff]
        %v2147 = vld [vmem:[%s2138 + $0x40] sm:$0xff]
        %v2148 = vld [vmem:[%s2138 + $0x48] sm:$0xff]
        %v2149 = vld [vmem:[%s2138 + $0x50] sm:$0xff]
        %v2150 = vld [vmem:[%s2138 + $0x58] sm:$0xff]
        %v2163 = vunpack.c.l.b16 %v2139
        %v2164 = vunpack.c.h.b16 %v2139
        %v2165 = vunpack.c.l.b16 %v2140
        %v2166 = vunpack.c.h.b16 %v2140
        %v2167 = vunpack.c.l.b16 %v2141
        %v2168 = vunpack.c.h.b16 %v2141
        %v2169 = vunpack.c.l.b16 %v2142
        %v2170 = vunpack.c.h.b16 %v2142
        %v2171 = vunpack.c.l.b16 %v2143
        %v2172 = vunpack.c.h.b16 %v2143
        %v2173 = vunpack.c.l.b16 %v2144
        %v2174 = vunpack.c.h.b16 %v2144
        %v2175 = vunpack.c.l.b16 %v2145
        %v2176 = vunpack.c.h.b16 %v2145
        %v2177 = vunpack.c.l.b16 %v2146
        %v2178 = vunpack.c.h.b16 %v2146
        %v2179 = vunpack.c.l.b16 %v2147
        %v2180 = vunpack.c.h.b16 %v2147
        %v2181 = vunpack.c.l.b16 %v2148
        %v2182 = vunpack.c.h.b16 %v2148
        %v2183 = vunpack.c.l.b16 %v2149
        %v2184 = vunpack.c.h.b16 %v2149
        %v2185 = vunpack.c.l.b16 %v2150
        %v2186 = vunpack.c.h.b16 %v2150
        %v2187 = vpack.c.b16 %v2165, %v2163
        %v2188 = vpack.c.b16 %v2166, %v2164
        %v2189 = vpack.c.b16 %v2169, %v2167
        %v2190 = vpack.c.b16 %v2170, %v2168
        %v2191 = vpack.c.b16 %v2173, %v2171
        %v2192 = vpack.c.b16 %v2174, %v2172
        %v2193 = vpack.c.b16 %v2177, %v2175
        %v2194 = vpack.c.b16 %v2178, %v2176
        %v2195 = vpack.c.b16 %v2181, %v2179
        %v2196 = vpack.c.b16 %v2182, %v2180
        %v2197 = vpack.c.b16 %v2185, %v2183
        %v2198 = vpack.c.b16 %v2186, %v2184
        %2211 = vmatprep.subr.bf16.mxu0 %v2188
        %2212 = vmatpush1.bf16.msra.mxu0 %v2187
        %2213 = vmatprep.subr.bf16.mxu0 %v2190
        %2214 = vmatpush1.bf16.msra.mxu0 %v2189
        %2215 = vmatprep.subr.bf16.mxu0 %v2192
        %2216 = vmatpush1.bf16.msra.mxu0 %v2191
        %2217 = vmatprep.subr.bf16.mxu0 %v2194
        %2218 = vmatpush1.bf16.msra.mxu0 %v2193
        %2219 = vmatprep.subr.bf16.mxu0 %v2196
        %2220 = vmatpush1.bf16.msra.mxu0 %v2195
        %2221 = vmatprep.subr.bf16.mxu0 %v2198
        %2222 = vmatpush1.bf16.msra.mxu0 %v2197
        %2223 = vmatprep.subr.bf16.mxu0 0
        %2224 = vmatpush1.bf16.msra.mxu0 0
        %2225 = vmatprep.subr.bf16.mxu0 0
        %2226 = vmatpush1.bf16.msra.mxu0 0
        %2227 = vmatprep.subr.bf16.mxu0 0
        %2228 = vmatpush1.bf16.msra.mxu0 0
        %2229 = vmatprep.subr.bf16.mxu0 0
        %2230 = vmatpush1.bf16.msra.mxu0 0
        %2231 = vmatprep.subr.bf16.mxu0 0
        %2232 = vmatpush1.bf16.msra.mxu0 0
        %2233 = vmatprep.subr.bf16.mxu0 0
        %2234 = vmatpush1.bf16.msra.mxu0 0
        %2235 = vmatprep.subr.bf16.mxu0 0
        %2236 = vmatpush1.bf16.msra.mxu0 0
        %2237 = vmatprep.subr.bf16.mxu0 0
        %2238 = vmatpush1.bf16.msra.mxu0 0
        %2239 = vmatprep.subr.bf16.mxu0 0
        %2240 = vmatpush1.bf16.msra.mxu0 0
        %2241 = vmatprep.subr.bf16.mxu0 0
        %2242 = vmatpush1.bf16.msra.mxu0 0
        %2243 = vmatprep.mubr.bf16.mxu0 0
        %2244 = vmatmul.mubr.bf16.gmra.mrb[0].mxu0 %v2089
        %v2245 = vpop.f32.mrb[0].mxu0
        %v2246 = vadd.f32 0.0, %v2245
        %v2247 = vpop.f32.mrb[0].mxu0
        %v2248 = vadd.f32 0.0, %v2247
        %v2249 = vpop.f32.mrb[0].mxu0
        %v2250 = vadd.f32 0.0, %v2249
        %v2251 = vpop.f32.mrb[0].mxu0
        %v2252 = vadd.f32 0.0, %v2251
        %2253 = vdwg.mxu0
        %s2254 = scalar_lea.vmem [#allocation4], 8
        %v2255 = vld [vmem:[%s2254] sm:$0xf]
        %v2256 = vld [vmem:[%s2254 + $0x4] sm:$0xf]
        %v2257 = vpack.c.bf16 %v2250, %v2246
        %v2258 = vpack.c.bf16 %v2252, %v2248
        %v2261 = vunpack.c.l.b16 %v2255
        %v2262 = vunpack.c.l.b16 %v2256
        %v2263 = vpack.c.b16 %v2262, %v2261
        %vm2264 = vcmask 72704
        %v2266 = vsel %vm2264, %v2263, 0
        %vm2268 = vcmask 1043456
        %vm2269 = vcmask 1044480
        %v2270 = vsel %vm2268, 4294967295, 65535
        %v2271 = vsel %vm2269, %v2270, 0
        %v2273 = vand.u32 %v2257, %v2271
        %v2276 = vand.u32 %v2258, %v2271
        %2278 = vmatprep.subr.bf16.mxu0 %v2276
        %2279 = vmatpush1.bf16.msra.mxu0 %v2273
        %2280 = vmatprep.subr.bf16.mxu0 0
        %2281 = vmatpush1.bf16.msra.mxu0 0
        %2282 = vmatprep.subr.bf16.mxu0 0
        %2283 = vmatpush1.bf16.msra.mxu0 0
        %2284 = vmatprep.subr.bf16.mxu0 0
        %2285 = vmatpush1.bf16.msra.mxu0 0
        %2286 = vmatprep.subr.bf16.mxu0 0
        %2287 = vmatpush1.bf16.msra.mxu0 0
        %2288 = vmatprep.subr.bf16.mxu0 0
        %2289 = vmatpush1.bf16.msra.mxu0 0
        %2290 = vmatprep.subr.bf16.mxu0 0
        %2291 = vmatpush1.bf16.msra.mxu0 0
        %2292 = vmatprep.subr.bf16.mxu0 0
        %2293 = vmatpush1.bf16.msra.mxu0 0
        %2294 = vmatprep.subr.bf16.mxu0 0
        %2295 = vmatpush1.bf16.msra.mxu0 0
        %2296 = vmatprep.subr.bf16.mxu0 0
        %2297 = vmatpush1.bf16.msra.mxu0 0
        %2298 = vmatprep.subr.bf16.mxu0 0
        %2299 = vmatpush1.bf16.msra.mxu0 0
        %2300 = vmatprep.subr.bf16.mxu0 0
        %2301 = vmatpush1.bf16.msra.mxu0 0
        %2302 = vmatprep.subr.bf16.mxu0 0
        %2303 = vmatpush1.bf16.msra.mxu0 0
        %2304 = vmatprep.subr.bf16.mxu0 0
        %2305 = vmatpush1.bf16.msra.mxu0 0
        %2306 = vmatprep.subr.bf16.mxu0 0
        %2307 = vmatpush1.bf16.msra.mxu0 0
        %2308 = vmatprep.subr.bf16.mxu0 0
        %2309 = vmatpush1.bf16.msra.mxu0 0
        %2310 = vmatprep.mubr.bf16.mxu0 0
        %2311 = vmatmul.mubr.bf16.gmra.mrb[0].mxu0 %v2266
        %v2312 = vpop.f32.mrb[0].mxu0
        %v2313 = vadd.f32 0.0, %v2312
        %v2314 = vpop.f32.mrb[0].mxu0
        %v2315 = vadd.f32 0.0, %v2314
        %v2316 = vpop.f32.mrb[0].mxu0
        %v2317 = vadd.f32 0.0, %v2316
        %v2318 = vpop.f32.mrb[0].mxu0
        %v2319 = vadd.f32 0.0, %v2318
        %2320 = vdwg.mxu0
        %v2323 = vunpack.c.l.b16 %v2134
        %v2324 = vunpack.c.l.b16 %v2135
        %v2325 = vpack.c.b16 %v2324, %v2323
        %v2327 = vsel %vm2264, %v2325, 0
        %v2330 = vand.u32 %v2136, %v2271
        %v2333 = vand.u32 %v2137, %v2271
        %2335 = vmatprep.subr.bf16.mxu0 %v2333
        %2336 = vmatpush1.bf16.msra.mxu0 %v2330
        %2337 = vmatprep.subr.bf16.mxu0 0
        %2338 = vmatpush1.bf16.msra.mxu0 0
        %2339 = vmatprep.subr.bf16.mxu0 0
        %2340 = vmatpush1.bf16.msra.mxu0 0
        %2341 = vmatprep.subr.bf16.mxu0 0
        %2342 = vmatpush1.bf16.msra.mxu0 0
        %2343 = vmatprep.subr.bf16.mxu0 0
        %2344 = vmatpush1.bf16.msra.mxu0 0
        %2345 = vmatprep.subr.bf16.mxu0 0
        %2346 = vmatpush1.bf16.msra.mxu0 0
        %2347 = vmatprep.subr.bf16.mxu0 0
        %2348 = vmatpush1.bf16.msra.mxu0 0
        %2349 = vmatprep.subr.bf16.mxu0 0
        %2350 = vmatpush1.bf16.msra.mxu0 0
        %2351 = vmatprep.subr.bf16.mxu0 0
        %2352 = vmatpush1.bf16.msra.mxu0 0
        %2353 = vmatprep.subr.bf16.mxu0 0
        %2354 = vmatpush1.bf16.msra.mxu0 0
        %2355 = vmatprep.subr.bf16.mxu0 0
        %2356 = vmatpush1.bf16.msra.mxu0 0
        %2357 = vmatprep.subr.bf16.mxu0 0
        %2358 = vmatpush1.bf16.msra.mxu0 0
        %2359 = vmatprep.subr.bf16.mxu0 0
        %2360 = vmatpush1.bf16.msra.mxu0 0
        %2361 = vmatprep.subr.bf16.mxu0 0
        %2362 = vmatpush1.bf16.msra.mxu0 0
        %2363 = vmatprep.subr.bf16.mxu0 0
        %2364 = vmatpush1.bf16.msra.mxu0 0
        %2365 = vmatprep.subr.bf16.mxu0 0
        %2366 = vmatpush1.bf16.msra.mxu0 0
        %2367 = vmatprep.mubr.bf16.mxu0 0
        %2368 = vmatmul.mubr.bf16.gmra.mrb[0].mxu0 %v2327
        %v2369 = vpop.f32.mrb[0].mxu0
        %v2370 = vadd.f32 %v2313, %v2369
        %v2371 = vpop.f32.mrb[0].mxu0
        %v2372 = vadd.f32 %v2315, %v2371
        %v2373 = vpop.f32.mrb[0].mxu0
        %v2374 = vadd.f32 %v2317, %v2373
        %v2375 = vpop.f32.mrb[0].mxu0
        %v2376 = vadd.f32 %v2319, %v2375
        %2377 = vdwg.mxu0
        %s2378 = scalar_lea.vmem %s7, 192
        %v2379 = vld [vmem:[%s2378] sm:$0xff]
        %v2380 = vld [vmem:[%s2378 + $0x8] sm:$0xff]
        %v2381 = vld [vmem:[%s2378 + $0x10] sm:$0xff]
        %v2382 = vld [vmem:[%s2378 + $0x18] sm:$0xff]
        %v2383 = vld [vmem:[%s2378 + $0x20] sm:$0xff]
        %v2384 = vld [vmem:[%s2378 + $0x28] sm:$0xff]
        %v2385 = vld [vmem:[%s2378 + $0x30] sm:$0xff]
        %v2386 = vld [vmem:[%s2378 + $0x38] sm:$0xff]
        %v2387 = vld [vmem:[%s2378 + $0x40] sm:$0xff]
        %v2388 = vld [vmem:[%s2378 + $0x48] sm:$0xff]
        %v2389 = vld [vmem:[%s2378 + $0x50] sm:$0xff]
        %v2390 = vld [vmem:[%s2378 + $0x58] sm:$0xff]
        %v2403 = vunpack.c.l.b16 %v2379
        %v2404 = vunpack.c.h.b16 %v2379
        %v2405 = vunpack.c.l.b16 %v2380
        %v2406 = vunpack.c.h.b16 %v2380
        %v2407 = vunpack.c.l.b16 %v2381
        %v2408 = vunpack.c.h.b16 %v2381
        %v2409 = vunpack.c.l.b16 %v2382
        %v2410 = vunpack.c.h.b16 %v2382
        %v2411 = vunpack.c.l.b16 %v2383
        %v2412 = vunpack.c.h.b16 %v2383
        %v2413 = vunpack.c.l.b16 %v2384
        %v2414 = vunpack.c.h.b16 %v2384
        %v2415 = vunpack.c.l.b16 %v2385
        %v2416 = vunpack.c.h.b16 %v2385
        %v2417 = vunpack.c.l.b16 %v2386
        %v2418 = vunpack.c.h.b16 %v2386
        %v2419 = vunpack.c.l.b16 %v2387
        %v2420 = vunpack.c.h.b16 %v2387
        %v2421 = vunpack.c.l.b16 %v2388
        %v2422 = vunpack.c.h.b16 %v2388
        %v2423 = vunpack.c.l.b16 %v2389
        %v2424 = vunpack.c.h.b16 %v2389
        %v2425 = vunpack.c.l.b16 %v2390
        %v2426 = vunpack.c.h.b16 %v2390
        %v2427 = vpack.c.b16 %v2405, %v2403
        %v2428 = vpack.c.b16 %v2406, %v2404
        %v2429 = vpack.c.b16 %v2409, %v2407
        %v2430 = vpack.c.b16 %v2410, %v2408
        %v2431 = vpack.c.b16 %v2413, %v2411
        %v2432 = vpack.c.b16 %v2414, %v2412
        %v2433 = vpack.c.b16 %v2417, %v2415
        %v2434 = vpack.c.b16 %v2418, %v2416
        %v2435 = vpack.c.b16 %v2421, %v2419
        %v2436 = vpack.c.b16 %v2422, %v2420
        %v2437 = vpack.c.b16 %v2425, %v2423
        %v2438 = vpack.c.b16 %v2426, %v2424
        %2451 = vmatprep.subr.bf16.mxu0 %v2428
        %2452 = vmatpush1.bf16.msra.mxu0 %v2427
        %2453 = vmatprep.subr.bf16.mxu0 %v2430
        %2454 = vmatpush1.bf16.msra.mxu0 %v2429
        %2455 = vmatprep.subr.bf16.mxu0 %v2432
        %2456 = vmatpush1.bf16.msra.mxu0 %v2431
        %2457 = vmatprep.subr.bf16.mxu0 %v2434
        %2458 = vmatpush1.bf16.msra.mxu0 %v2433
        %2459 = vmatprep.subr.bf16.mxu0 %v2436
        %2460 = vmatpush1.bf16.msra.mxu0 %v2435
        %2461 = vmatprep.subr.bf16.mxu0 %v2438
        %2462 = vmatpush1.bf16.msra.mxu0 %v2437
        %2463 = vmatprep.subr.bf16.mxu0 0
        %2464 = vmatpush1.bf16.msra.mxu0 0
        %2465 = vmatprep.subr.bf16.mxu0 0
        %2466 = vmatpush1.bf16.msra.mxu0 0
        %2467 = vmatprep.subr.bf16.mxu0 0
        %2468 = vmatpush1.bf16.msra.mxu0 0
        %2469 = vmatprep.subr.bf16.mxu0 0
        %2470 = vmatpush1.bf16.msra.mxu0 0
        %2471 = vmatprep.subr.bf16.mxu0 0
        %2472 = vmatpush1.bf16.msra.mxu0 0
        %2473 = vmatprep.subr.bf16.mxu0 0
        %2474 = vmatpush1.bf16.msra.mxu0 0
        %2475 = vmatprep.subr.bf16.mxu0 0
        %2476 = vmatpush1.bf16.msra.mxu0 0
        %2477 = vmatprep.subr.bf16.mxu0 0
        %2478 = vmatpush1.bf16.msra.mxu0 0
        %2479 = vmatprep.subr.bf16.mxu0 0
        %2480 = vmatpush1.bf16.msra.mxu0 0
        %2481 = vmatprep.subr.bf16.mxu0 0
        %2482 = vmatpush1.bf16.msra.mxu0 0
        %2483 = vmatprep.mubr.bf16.mxu0 0
        %2484 = vmatmul.mubr.bf16.gmra.mrb[0].mxu0 %v2089
        %v2485 = vpop.f32.mrb[0].mxu0
        %v2486 = vadd.f32 0.0, %v2485
        %v2487 = vpop.f32.mrb[0].mxu0
        %v2488 = vadd.f32 0.0, %v2487
        %v2489 = vpop.f32.mrb[0].mxu0
        %v2490 = vadd.f32 0.0, %v2489
        %v2491 = vpop.f32.mrb[0].mxu0
        %v2492 = vadd.f32 0.0, %v2491
        %2493 = vdwg.mxu0
        %s2494 = scalar_lea.vmem [#allocation4], 16
        %v2495 = vld [vmem:[%s2494] sm:$0xf]
        %v2496 = vld [vmem:[%s2494 + $0x4] sm:$0xf]
        %v2497 = vpack.c.bf16 %v2490, %v2486
        %v2498 = vpack.c.bf16 %v2492, %v2488
        %v2501 = vunpack.c.l.b16 %v2495
        %v2502 = vunpack.c.l.b16 %v2496
        %v2503 = vpack.c.b16 %v2502, %v2501
        %v2505 = vsel %vm2264, %v2503, 0
        %v2508 = vand.u32 %v2497, %v2271
        %v2511 = vand.u32 %v2498, %v2271
        %2513 = vmatprep.subr.bf16.mxu0 %v2511
        %2514 = vmatpush1.bf16.msra.mxu0 %v2508
        %2515 = vmatprep.subr.bf16.mxu0 0
        %2516 = vmatpush1.bf16.msra.mxu0 0
        %2517 = vmatprep.subr.bf16.mxu0 0
        %2518 = vmatpush1.bf16.msra.mxu0 0
        %2519 = vmatprep.subr.bf16.mxu0 0
        %2520 = vmatpush1.bf16.msra.mxu0 0
        %2521 = vmatprep.subr.bf16.mxu0 0
        %2522 = vmatpush1.bf16.msra.mxu0 0
        %2523 = vmatprep.subr.bf16.mxu0 0
        %2524 = vmatpush1.bf16.msra.mxu0 0
        %2525 = vmatprep.subr.bf16.mxu0 0
        %2526 = vmatpush1.bf16.msra.mxu0 0
        %2527 = vmatprep.subr.bf16.mxu0 0
        %2528 = vmatpush1.bf16.msra.mxu0 0
        %2529 = vmatprep.subr.bf16.mxu0 0
        %2530 = vmatpush1.bf16.msra.mxu0 0
        %2531 = vmatprep.subr.bf16.mxu0 0
        %2532 = vmatpush1.bf16.msra.mxu0 0
        %2533 = vmatprep.subr.bf16.mxu0 0
        %2534 = vmatpush1.bf16.msra.mxu0 0
        %2535 = vmatprep.subr.bf16.mxu0 0
        %2536 = vmatpush1.bf16.msra.mxu0 0
        %2537 = vmatprep.subr.bf16.mxu0 0
        %2538 = vmatpush1.bf16.msra.mxu0 0
        %2539 = vmatprep.subr.bf16.mxu0 0
        %2540 = vmatpush1.bf16.msra.mxu0 0
        %2541 = vmatprep.subr.bf16.mxu0 0
        %2542 = vmatpush1.bf16.msra.mxu0 0
        %2543 = vmatprep.subr.bf16.mxu0 0
        %2544 = vmatpush1.bf16.msra.mxu0 0
        %2545 = vmatprep.mubr.bf16.mxu0 0
        %2546 = vmatmul.mubr.bf16.gmra.mrb[0].mxu0 %v2505
        %v2547 = vpop.f32.mrb[0].mxu0
        %v2548 = vadd.f32 0.0, %v2547
        %v2549 = vpop.f32.mrb[0].mxu0
        %v2550 = vadd.f32 0.0, %v2549
        %v2551 = vpop.f32.mrb[0].mxu0
        %v2552 = vadd.f32 0.0, %v2551
        %v2553 = vpop.f32.mrb[0].mxu0
        %v2554 = vadd.f32 0.0, %v2553
        %2555 = vdwg.mxu0
        %v2556 = vadd.f32 %v2370, %v2548
        %v2557 = vadd.f32 %v2372, %v2550
        %v2558 = vadd.f32 %v2374, %v2552
        %v2559 = vadd.f32 %v2376, %v2554
        %s2560 = scalar_lea.vmem %s7, 288
        %v2561 = vld [vmem:[%s2560] sm:$0xff]
        %v2562 = vld [vmem:[%s2560 + $0x8] sm:$0xff]
        %v2563 = vld [vmem:[%s2560 + $0x10] sm:$0xff]
        %v2564 = vld [vmem:[%s2560 + $0x18] sm:$0xff]
        %v2565 = vld [vmem:[%s2560 + $0x20] sm:$0xff]
        %v2566 = vld [vmem:[%s2560 + $0x28] sm:$0xff]
        %v2567 = vld [vmem:[%s2560 + $0x30] sm:$0xff]
        %v2568 = vld [vmem:[%s2560 + $0x38] sm:$0xff]
        %v2569 = vld [vmem:[%s2560 + $0x40] sm:$0xff]
        %v2570 = vld [vmem:[%s2560 + $0x48] sm:$0xff]
        %v2571 = vld [vmem:[%s2560 + $0x50] sm:$0xff]
        %v2572 = vld [vmem:[%s2560 + $0x58] sm:$0xff]
        %v2585 = vunpack.c.l.b16 %v2561
        %v2586 = vunpack.c.h.b16 %v2561
        %v2587 = vunpack.c.l.b16 %v2562
        %v2588 = vunpack.c.h.b16 %v2562
        %v2589 = vunpack.c.l.b16 %v2563
        %v2590 = vunpack.c.h.b16 %v2563
        %v2591 = vunpack.c.l.b16 %v2564
        %v2592 = vunpack.c.h.b16 %v2564
        %v2593 = vunpack.c.l.b16 %v2565
        %v2594 = vunpack.c.h.b16 %v2565
        %v2595 = vunpack.c.l.b16 %v2566
        %v2596 = vunpack.c.h.b16 %v2566
        %v2597 = vunpack.c.l.b16 %v2567
        %v2598 = vunpack.c.h.b16 %v2567
        %v2599 = vunpack.c.l.b16 %v2568
        %v2600 = vunpack.c.h.b16 %v2568
        %v2601 = vunpack.c.l.b16 %v2569
        %v2602 = vunpack.c.h.b16 %v2569
        %v2603 = vunpack.c.l.b16 %v2570
        %v2604 = vunpack.c.h.b16 %v2570
        %v2605 = vunpack.c.l.b16 %v2571
        %v2606 = vunpack.c.h.b16 %v2571
        %v2607 = vunpack.c.l.b16 %v2572
        %v2608 = vunpack.c.h.b16 %v2572
        %v2609 = vpack.c.b16 %v2587, %v2585
        %v2610 = vpack.c.b16 %v2588, %v2586
        %v2611 = vpack.c.b16 %v2591, %v2589
        %v2612 = vpack.c.b16 %v2592, %v2590
        %v2613 = vpack.c.b16 %v2595, %v2593
        %v2614 = vpack.c.b16 %v2596, %v2594
        %v2615 = vpack.c.b16 %v2599, %v2597
        %v2616 = vpack.c.b16 %v2600, %v2598
        %v2617 = vpack.c.b16 %v2603, %v2601
        %v2618 = vpack.c.b16 %v2604, %v2602
        %v2619 = vpack.c.b16 %v2607, %v2605
        %v2620 = vpack.c.b16 %v2608, %v2606
        %2633 = vmatprep.subr.bf16.mxu0 %v2610
        %2634 = vmatpush1.bf16.msra.mxu0 %v2609
        %2635 = vmatprep.subr.bf16.mxu0 %v2612
        %2636 = vmatpush1.bf16.msra.mxu0 %v2611
        %2637 = vmatprep.subr.bf16.mxu0 %v2614
        %2638 = vmatpush1.bf16.msra.mxu0 %v2613
        %2639 = vmatprep.subr.bf16.mxu0 %v2616
        %2640 = vmatpush1.bf16.msra.mxu0 %v2615
        %2641 = vmatprep.subr.bf16.mxu0 %v2618
        %2642 = vmatpush1.bf16.msra.mxu0 %v2617
        %2643 = vmatprep.subr.bf16.mxu0 %v2620
        %2644 = vmatpush1.bf16.msra.mxu0 %v2619
        %2645 = vmatprep.subr.bf16.mxu0 0
        %2646 = vmatpush1.bf16.msra.mxu0 0
        %2647 = vmatprep.subr.bf16.mxu0 0
        %2648 = vmatpush1.bf16.msra.mxu0 0
        %2649 = vmatprep.subr.bf16.mxu0 0
        %2650 = vmatpush1.bf16.msra.mxu0 0
        %2651 = vmatprep.subr.bf16.mxu0 0
        %2652 = vmatpush1.bf16.msra.mxu0 0
        %2653 = vmatprep.subr.bf16.mxu0 0
        %2654 = vmatpush1.bf16.msra.mxu0 0
        %2655 = vmatprep.subr.bf16.mxu0 0
        %2656 = vmatpush1.bf16.msra.mxu0 0
        %2657 = vmatprep.subr.bf16.mxu0 0
        %2658 = vmatpush1.bf16.msra.mxu0 0
        %2659 = vmatprep.subr.bf16.mxu0 0
        %2660 = vmatpush1.bf16.msra.mxu0 0
        %2661 = vmatprep.subr.bf16.mxu0 0
        %2662 = vmatpush1.bf16.msra.mxu0 0
        %2663 = vmatprep.subr.bf16.mxu0 0
        %2664 = vmatpush1.bf16.msra.mxu0 0
        %2665 = vmatprep.mubr.bf16.mxu0 0
        %2666 = vmatmul.mubr.bf16.gmra.mrb[0].mxu0 %v2089
        %v2667 = vpop.f32.mrb[0].mxu0
        %v2668 = vadd.f32 0.0, %v2667
        %v2669 = vpop.f32.mrb[0].mxu0
        %v2670 = vadd.f32 0.0, %v2669
        %v2671 = vpop.f32.mrb[0].mxu0
        %v2672 = vadd.f32 0.0, %v2671
        %v2673 = vpop.f32.mrb[0].mxu0
        %v2674 = vadd.f32 0.0, %v2673
        %2675 = vdwg.mxu0
        %s2676 = scalar_lea.vmem [#allocation4], 24
        %v2677 = vld [vmem:[%s2676] sm:$0xf]
        %v2678 = vld [vmem:[%s2676 + $0x4] sm:$0xf]
        %v2679 = vpack.c.bf16 %v2672, %v2668
        %v2680 = vpack.c.bf16 %v2674, %v2670
        %v2683 = vunpack.c.l.b16 %v2677
        %v2684 = vunpack.c.l.b16 %v2678
        %v2685 = vpack.c.b16 %v2684, %v2683
        %v2687 = vsel %vm2264, %v2685, 0
        %v2690 = vand.u32 %v2679, %v2271
        %v2693 = vand.u32 %v2680, %v2271
        %2695 = vmatprep.subr.bf16.mxu0 %v2693
        %2696 = vmatpush1.bf16.msra.mxu0 %v2690
        %2697 = vmatprep.subr.bf16.mxu0 0
        %2698 = vmatpush1.bf16.msra.mxu0 0
        %2699 = vmatprep.subr.bf16.mxu0 0
        %2700 = vmatpush1.bf16.msra.mxu0 0
        %2701 = vmatprep.subr.bf16.mxu0 0
        %2702 = vmatpush1.bf16.msra.mxu0 0
        %2703 = vmatprep.subr.bf16.mxu0 0
        %2704 = vmatpush1.bf16.msra.mxu0 0
        %2705 = vmatprep.subr.bf16.mxu0 0
        %2706 = vmatpush1.bf16.msra.mxu0 0
        %2707 = vmatprep.subr.bf16.mxu0 0
        %2708 = vmatpush1.bf16.msra.mxu0 0
        %2709 = vmatprep.subr.bf16.mxu0 0
        %2710 = vmatpush1.bf16.msra.mxu0 0
        %2711 = vmatprep.subr.bf16.mxu0 0
        %2712 = vmatpush1.bf16.msra.mxu0 0
        %2713 = vmatprep.subr.bf16.mxu0 0
        %2714 = vmatpush1.bf16.msra.mxu0 0
        %2715 = vmatprep.subr.bf16.mxu0 0
        %2716 = vmatpush1.bf16.msra.mxu0 0
        %2717 = vmatprep.subr.bf16.mxu0 0
        %2718 = vmatpush1.bf16.msra.mxu0 0
        %2719 = vmatprep.subr.bf16.mxu0 0
        %2720 = vmatpush1.bf16.msra.mxu0 0
        %2721 = vmatprep.subr.bf16.mxu0 0
        %2722 = vmatpush1.bf16.msra.mxu0 0
        %2723 = vmatprep.subr.bf16.mxu0 0
        %2724 = vmatpush1.bf16.msra.mxu0 0
        %2725 = vmatprep.subr.bf16.mxu0 0
        %2726 = vmatpush1.bf16.msra.mxu0 0
        %2727 = vmatprep.mubr.bf16.mxu0 0
        %2728 = vmatmul.mubr.bf16.gmra.mrb[0].mxu0 %v2687
        %v2729 = vpop.f32.mrb[0].mxu0
        %v2730 = vadd.f32 0.0, %v2729
        %v2731 = vpop.f32.mrb[0].mxu0
        %v2732 = vadd.f32 0.0, %v2731
        %v2733 = vpop.f32.mrb[0].mxu0
        %v2734 = vadd.f32 0.0, %v2733
        %v2735 = vpop.f32.mrb[0].mxu0
        %v2736 = vadd.f32 0.0, %v2735
        %2737 = vdwg.mxu0
        %v2738 = vadd.f32 %v2556, %v2730
        %v2739 = vadd.f32 %v2557, %v2732
        %v2740 = vadd.f32 %v2558, %v2734
        %v2741 = vadd.f32 %v2559, %v2736
        %s2742 = scalar_lea.vmem %s7, 384
        %v2743 = vld [vmem:[%s2742] sm:$0xff]
        %v2744 = vld [vmem:[%s2742 + $0x8] sm:$0xff]
        %v2745 = vld [vmem:[%s2742 + $0x10] sm:$0xff]
        %v2746 = vld [vmem:[%s2742 + $0x18] sm:$0xff]
        %v2747 = vld [vmem:[%s2742 + $0x20] sm:$0xff]
        %v2748 = vld [vmem:[%s2742 + $0x28] sm:$0xff]
        %v2749 = vld [vmem:[%s2742 + $0x30] sm:$0xff]
        %v2750 = vld [vmem:[%s2742 + $0x38] sm:$0xff]
        %v2751 = vld [vmem:[%s2742 + $0x40] sm:$0xff]
        %v2752 = vld [vmem:[%s2742 + $0x48] sm:$0xff]
        %v2753 = vld [vmem:[%s2742 + $0x50] sm:$0xff]
        %v2754 = vld [vmem:[%s2742 + $0x58] sm:$0xff]
        %v2767 = vunpack.c.l.b16 %v2743
        %v2768 = vunpack.c.h.b16 %v2743
        %v2769 = vunpack.c.l.b16 %v2744
        %v2770 = vunpack.c.h.b16 %v2744
        %v2771 = vunpack.c.l.b16 %v2745
        %v2772 = vunpack.c.h.b16 %v2745
        %v2773 = vunpack.c.l.b16 %v2746
        %v2774 = vunpack.c.h.b16 %v2746
        %v2775 = vunpack.c.l.b16 %v2747
        %v2776 = vunpack.c.h.b16 %v2747
        %v2777 = vunpack.c.l.b16 %v2748
        %v2778 = vunpack.c.h.b16 %v2748
        %v2779 = vunpack.c.l.b16 %v2749
        %v2780 = vunpack.c.h.b16 %v2749
        %v2781 = vunpack.c.l.b16 %v2750
        %v2782 = vunpack.c.h.b16 %v2750
        %v2783 = vunpack.c.l.b16 %v2751
        %v2784 = vunpack.c.h.b16 %v2751
        %v2785 = vunpack.c.l.b16 %v2752
        %v2786 = vunpack.c.h.b16 %v2752
        %v2787 = vunpack.c.l.b16 %v2753
        %v2788 = vunpack.c.h.b16 %v2753
        %v2789 = vunpack.c.l.b16 %v2754
        %v2790 = vunpack.c.h.b16 %v2754
        %v2791 = vpack.c.b16 %v2769, %v2767
        %v2792 = vpack.c.b16 %v2770, %v2768
        %v2793 = vpack.c.b16 %v2773, %v2771
        %v2794 = vpack.c.b16 %v2774, %v2772
        %v2795 = vpack.c.b16 %v2777, %v2775
        %v2796 = vpack.c.b16 %v2778, %v2776
        %v2797 = vpack.c.b16 %v2781, %v2779
        %v2798 = vpack.c.b16 %v2782, %v2780
        %v2799 = vpack.c.b16 %v2785, %v2783
        %v2800 = vpack.c.b16 %v2786, %v2784
        %v2801 = vpack.c.b16 %v2789, %v2787
        %v2802 = vpack.c.b16 %v2790, %v2788
        %2815 = vmatprep.subr.bf16.mxu0 %v2792
        %2816 = vmatpush1.bf16.msra.mxu0 %v2791
        %2817 = vmatprep.subr.bf16.mxu0 %v2794
        %2818 = vmatpush1.bf16.msra.mxu0 %v2793
        %2819 = vmatprep.subr.bf16.mxu0 %v2796
        %2820 = vmatpush1.bf16.msra.mxu0 %v2795
        %2821 = vmatprep.subr.bf16.mxu0 %v2798
        %2822 = vmatpush1.bf16.msra.mxu0 %v2797
        %2823 = vmatprep.subr.bf16.mxu0 %v2800
        %2824 = vmatpush1.bf16.msra.mxu0 %v2799
        %2825 = vmatprep.subr.bf16.mxu0 %v2802
        %2826 = vmatpush1.bf16.msra.mxu0 %v2801
        %2827 = vmatprep.subr.bf16.mxu0 0
        %2828 = vmatpush1.bf16.msra.mxu0 0
        %2829 = vmatprep.subr.bf16.mxu0 0
        %2830 = vmatpush1.bf16.msra.mxu0 0
        %2831 = vmatprep.subr.bf16.mxu0 0
        %2832 = vmatpush1.bf16.msra.mxu0 0
        %2833 = vmatprep.subr.bf16.mxu0 0
        %2834 = vmatpush1.bf16.msra.mxu0 0
        %2835 = vmatprep.subr.bf16.mxu0 0
        %2836 = vmatpush1.bf16.msra.mxu0 0
        %2837 = vmatprep.subr.bf16.mxu0 0
        %2838 = vmatpush1.bf16.msra.mxu0 0
        %2839 = vmatprep.subr.bf16.mxu0 0
        %2840 = vmatpush1.bf16.msra.mxu0 0
        %2841 = vmatprep.subr.bf16.mxu0 0
        %2842 = vmatpush1.bf16.msra.mxu0 0
        %2843 = vmatprep.subr.bf16.mxu0 0
        %2844 = vmatpush1.bf16.msra.mxu0 0
        %2845 = vmatprep.subr.bf16.mxu0 0
        %2846 = vmatpush1.bf16.msra.mxu0 0
        %2847 = vmatprep.mubr.bf16.mxu0 0
        %2848 = vmatmul.mubr.bf16.gmra.mrb[0].mxu0 %v2089
        %v2849 = vpop.f32.mrb[0].mxu0
        %v2850 = vadd.f32 0.0, %v2849
        %v2851 = vpop.f32.mrb[0].mxu0
        %v2852 = vadd.f32 0.0, %v2851
        %v2853 = vpop.f32.mrb[0].mxu0
        %v2854 = vadd.f32 0.0, %v2853
        %v2855 = vpop.f32.mrb[0].mxu0
        %v2856 = vadd.f32 0.0, %v2855
        %2857 = vdwg.mxu0
        %s2858 = scalar_lea.vmem [#allocation4], 32
        %v2859 = vld [vmem:[%s2858] sm:$0xf]
        %v2860 = vld [vmem:[%s2858 + $0x4] sm:$0xf]
        %v2861 = vpack.c.bf16 %v2854, %v2850
        %v2862 = vpack.c.bf16 %v2856, %v2852
        %v2865 = vunpack.c.l.b16 %v2859
        %v2866 = vunpack.c.l.b16 %v2860
        %v2867 = vpack.c.b16 %v2866, %v2865
        %v2869 = vsel %vm2264, %v2867, 0
        %v2872 = vand.u32 %v2861, %v2271
        %v2875 = vand.u32 %v2862, %v2271
        %2877 = vmatprep.subr.bf16.mxu0 %v2875
        %2878 = vmatpush1.bf16.msra.mxu0 %v2872
        %2879 = vmatprep.subr.bf16.mxu0 0
        %2880 = vmatpush1.bf16.msra.mxu0 0
        %2881 = vmatprep.subr.bf16.mxu0 0
        %2882 = vmatpush1.bf16.msra.mxu0 0
        %2883 = vmatprep.subr.bf16.mxu0 0
        %2884 = vmatpush1.bf16.msra.mxu0 0
        %2885 = vmatprep.subr.bf16.mxu0 0
        %2886 = vmatpush1.bf16.msra.mxu0 0
        %2887 = vmatprep.subr.bf16.mxu0 0
        %2888 = vmatpush1.bf16.msra.mxu0 0
        %2889 = vmatprep.subr.bf16.mxu0 0
        %2890 = vmatpush1.bf16.msra.mxu0 0
        %2891 = vmatprep.subr.bf16.mxu0 0
        %2892 = vmatpush1.bf16.msra.mxu0 0
        %2893 = vmatprep.subr.bf16.mxu0 0
        %2894 = vmatpush1.bf16.msra.mxu0 0
        %2895 = vmatprep.subr.bf16.mxu0 0
        %2896 = vmatpush1.bf16.msra.mxu0 0
        %2897 = vmatprep.subr.bf16.mxu0 0
        %2898 = vmatpush1.bf16.msra.mxu0 0
        %2899 = vmatprep.subr.bf16.mxu0 0
        %2900 = vmatpush1.bf16.msra.mxu0 0
        %2901 = vmatprep.subr.bf16.mxu0 0
        %2902 = vmatpush1.bf16.msra.mxu0 0
        %2903 = vmatprep.subr.bf16.mxu0 0
        %2904 = vmatpush1.bf16.msra.mxu0 0
        %2905 = vmatprep.subr.bf16.mxu0 0
        %2906 = vmatpush1.bf16.msra.mxu0 0
        %2907 = vmatprep.subr.bf16.mxu0 0
        %2908 = vmatpush1.bf16.msra.mxu0 0
        %2909 = vmatprep.mubr.bf16.mxu0 0
        %2910 = vmatmul.mubr.bf16.gmra.mrb[0].mxu0 %v2869
        %v2911 = vpop.f32.mrb[0].mxu0
        %v2912 = vadd.f32 0.0, %v2911
        %v2913 = vpop.f32.mrb[0].mxu0
        %v2914 = vadd.f32 0.0, %v2913
        %v2915 = vpop.f32.mrb[0].mxu0
        %v2916 = vadd.f32 0.0, %v2915
        %v2917 = vpop.f32.mrb[0].mxu0
        %v2918 = vadd.f32 0.0, %v2917
        %2919 = vdwg.mxu0
        %v2920 = vadd.f32 %v2738, %v2912
        %v2921 = vadd.f32 %v2739, %v2914
        %v2922 = vadd.f32 %v2740, %v2916
        %v2923 = vadd.f32 %v2741, %v2918
        %s2924 = scalar_lea.vmem %s7, 480
        %v2925 = vld [vmem:[%s2924] sm:$0xff]
        %v2926 = vld [vmem:[%s2924 + $0x8] sm:$0xff]
        %v2927 = vld [vmem:[%s2924 + $0x10] sm:$0xff]
        %v2928 = vld [vmem:[%s2924 + $0x18] sm:$0xff]
        %v2929 = vld [vmem:[%s2924 + $0x20] sm:$0xff]
        %v2930 = vld [vmem:[%s2924 + $0x28] sm:$0xff]
        %v2931 = vld [vmem:[%s2924 + $0x30] sm:$0xff]
        %v2932 = vld [vmem:[%s2924 + $0x38] sm:$0xff]
        %v2933 = vld [vmem:[%s2924 + $0x40] sm:$0xff]
        %v2934 = vld [vmem:[%s2924 + $0x48] sm:$0xff]
        %v2935 = vld [vmem:[%s2924 + $0x50] sm:$0xff]
        %v2936 = vld [vmem:[%s2924 + $0x58] sm:$0xff]
        %v2949 = vunpack.c.l.b16 %v2925
        %v2950 = vunpack.c.h.b16 %v2925
        %v2951 = vunpack.c.l.b16 %v2926
        %v2952 = vunpack.c.h.b16 %v2926
        %v2953 = vunpack.c.l.b16 %v2927
        %v2954 = vunpack.c.h.b16 %v2927
        %v2955 = vunpack.c.l.b16 %v2928
        %v2956 = vunpack.c.h.b16 %v2928
        %v2957 = vunpack.c.l.b16 %v2929
        %v2958 = vunpack.c.h.b16 %v2929
        %v2959 = vunpack.c.l.b16 %v2930
        %v2960 = vunpack.c.h.b16 %v2930
        %v2961 = vunpack.c.l.b16 %v2931
        %v2962 = vunpack.c.h.b16 %v2931
        %v2963 = vunpack.c.l.b16 %v2932
        %v2964 = vunpack.c.h.b16 %v2932
        %v2965 = vunpack.c.l.b16 %v2933
        %v2966 = vunpack.c.h.b16 %v2933
        %v2967 = vunpack.c.l.b16 %v2934
        %v2968 = vunpack.c.h.b16 %v2934
        %v2969 = vunpack.c.l.b16 %v2935
        %v2970 = vunpack.c.h.b16 %v2935
        %v2971 = vunpack.c.l.b16 %v2936
        %v2972 = vunpack.c.h.b16 %v2936
        %v2973 = vpack.c.b16 %v2951, %v2949
        %v2974 = vpack.c.b16 %v2952, %v2950
        %v2975 = vpack.c.b16 %v2955, %v2953
        %v2976 = vpack.c.b16 %v2956, %v2954
        %v2977 = vpack.c.b16 %v2959, %v2957
        %v2978 = vpack.c.b16 %v2960, %v2958
        %v2979 = vpack.c.b16 %v2963, %v2961
        %v2980 = vpack.c.b16 %v2964, %v2962
        %v2981 = vpack.c.b16 %v2967, %v2965
        %v2982 = vpack.c.b16 %v2968, %v2966
        %v2983 = vpack.c.b16 %v2971, %v2969
        %v2984 = vpack.c.b16 %v2972, %v2970
        %2997 = vmatprep.subr.bf16.mxu0 %v2974
        %2998 = vmatpush1.bf16.msra.mxu0 %v2973
        %2999 = vmatprep.subr.bf16.mxu0 %v2976
        %3000 = vmatpush1.bf16.msra.mxu0 %v2975
        %3001 = vmatprep.subr.bf16.mxu0 %v2978
        %3002 = vmatpush1.bf16.msra.mxu0 %v2977
        %3003 = vmatprep.subr.bf16.mxu0 %v2980
        %3004 = vmatpush1.bf16.msra.mxu0 %v2979
        %3005 = vmatprep.subr.bf16.mxu0 %v2982
        %3006 = vmatpush1.bf16.msra.mxu0 %v2981
        %3007 = vmatprep.subr.bf16.mxu0 %v2984
        %3008 = vmatpush1.bf16.msra.mxu0 %v2983
        %3009 = vmatprep.subr.bf16.mxu0 0
        %3010 = vmatpush1.bf16.msra.mxu0 0
        %3011 = vmatprep.subr.bf16.mxu0 0
        %3012 = vmatpush1.bf16.msra.mxu0 0
        %3013 = vmatprep.subr.bf16.mxu0 0
        %3014 = vmatpush1.bf16.msra.mxu0 0
        %3015 = vmatprep.subr.bf16.mxu0 0
        %3016 = vmatpush1.bf16.msra.mxu0 0
        %3017 = vmatprep.subr.bf16.mxu0 0
        %3018 = vmatpush1.bf16.msra.mxu0 0
        %3019 = vmatprep.subr.bf16.mxu0 0
        %3020 = vmatpush1.bf16.msra.mxu0 0
        %3021 = vmatprep.subr.bf16.mxu0 0
        %3022 = vmatpush1.bf16.msra.mxu0 0
        %3023 = vmatprep.subr.bf16.mxu0 0
        %3024 = vmatpush1.bf16.msra.mxu0 0
        %3025 = vmatprep.subr.bf16.mxu0 0
        %3026 = vmatpush1.bf16.msra.mxu0 0
        %3027 = vmatprep.subr.bf16.mxu0 0
        %3028 = vmatpush1.bf16.msra.mxu0 0
        %3029 = vmatprep.mubr.bf16.mxu0 0
        %3030 = vmatmul.mubr.bf16.gmra.mrb[0].mxu0 %v2089
        %v3031 = vpop.f32.mrb[0].mxu0
        %v3032 = vadd.f32 0.0, %v3031
        %v3033 = vpop.f32.mrb[0].mxu0
        %v3034 = vadd.f32 0.0, %v3033
        %v3035 = vpop.f32.mrb[0].mxu0
        %v3036 = vadd.f32 0.0, %v3035
        %v3037 = vpop.f32.mrb[0].mxu0
        %v3038 = vadd.f32 0.0, %v3037
        %3039 = vdwg.mxu0
        %s3040 = scalar_lea.vmem [#allocation4], 40
        %v3041 = vld [vmem:[%s3040] sm:$0xf]
        %v3042 = vld [vmem:[%s3040 + $0x4] sm:$0xf]
        %v3043 = vpack.c.bf16 %v3036, %v3032
        %v3044 = vpack.c.bf16 %v3038, %v3034
        %v3047 = vunpack.c.l.b16 %v3041
        %v3048 = vunpack.c.l.b16 %v3042
        %v3049 = vpack.c.b16 %v3048, %v3047
        %v3051 = vsel %vm2264, %v3049, 0
        %v3054 = vand.u32 %v3043, %v2271
        %v3057 = vand.u32 %v3044, %v2271
        %3059 = vmatprep.subr.bf16.mxu0 %v3057
        %3060 = vmatpush1.bf16.msra.mxu0 %v3054
        %3061 = vmatprep.subr.bf16.mxu0 0
        %3062 = vmatpush1.bf16.msra.mxu0 0
        %3063 = vmatprep.subr.bf16.mxu0 0
        %3064 = vmatpush1.bf16.msra.mxu0 0
        %3065 = vmatprep.subr.bf16.mxu0 0
        %3066 = vmatpush1.bf16.msra.mxu0 0
        %3067 = vmatprep.subr.bf16.mxu0 0
        %3068 = vmatpush1.bf16.msra.mxu0 0
        %3069 = vmatprep.subr.bf16.mxu0 0
        %3070 = vmatpush1.bf16.msra.mxu0 0
        %3071 = vmatprep.subr.bf16.mxu0 0
        %3072 = vmatpush1.bf16.msra.mxu0 0
        %3073 = vmatprep.subr.bf16.mxu0 0
        %3074 = vmatpush1.bf16.msra.mxu0 0
        %3075 = vmatprep.subr.bf16.mxu0 0
        %3076 = vmatpush1.bf16.msra.mxu0 0
        %3077 = vmatprep.subr.bf16.mxu0 0
        %3078 = vmatpush1.bf16.msra.mxu0 0
        %3079 = vmatprep.subr.bf16.mxu0 0
        %3080 = vmatpush1.bf16.msra.mxu0 0
        %3081 = vmatprep.subr.bf16.mxu0 0
        %3082 = vmatpush1.bf16.msra.mxu0 0
        %3083 = vmatprep.subr.bf16.mxu0 0
        %3084 = vmatpush1.bf16.msra.mxu0 0
        %3085 = vmatprep.subr.bf16.mxu0 0
        %3086 = vmatpush1.bf16.msra.mxu0 0
        %3087 = vmatprep.subr.bf16.mxu0 0
        %3088 = vmatpush1.bf16.msra.mxu0 0
        %3089 = vmatprep.subr.bf16.mxu0 0
        %3090 = vmatpush1.bf16.msra.mxu0 0
        %3091 = vmatprep.mubr.bf16.mxu0 0
        %3092 = vmatmul.mubr.bf16.gmra.mrb[0].mxu0 %v3051
        %v3093 = vpop.f32.mrb[0].mxu0
        %v3094 = vadd.f32 0.0, %v3093
        %v3095 = vpop.f32.mrb[0].mxu0
        %v3096 = vadd.f32 0.0, %v3095
        %v3097 = vpop.f32.mrb[0].mxu0
        %v3098 = vadd.f32 0.0, %v3097
        %v3099 = vpop.f32.mrb[0].mxu0
        %v3100 = vadd.f32 0.0, %v3099
        %3101 = vdwg.mxu0
        %v3102 = vadd.f32 %v2920, %v3094
        %v3103 = vadd.f32 %v2921, %v3096
        %v3104 = vadd.f32 %v2922, %v3098
        %v3105 = vadd.f32 %v2923, %v3100
        %s3106 = scalar_lea.vmem %s7, 576
        %v3107 = vld [vmem:[%s3106] sm:$0xff]
        %v3108 = vld [vmem:[%s3106 + $0x8] sm:$0xff]
        %v3109 = vld [vmem:[%s3106 + $0x10] sm:$0xff]
        %v3110 = vld [vmem:[%s3106 + $0x18] sm:$0xff]
        %v3111 = vld [vmem:[%s3106 + $0x20] sm:$0xff]
        %v3112 = vld [vmem:[%s3106 + $0x28] sm:$0xff]
        %v3113 = vld [vmem:[%s3106 + $0x30] sm:$0xff]
        %v3114 = vld [vmem:[%s3106 + $0x38] sm:$0xff]
        %v3115 = vld [vmem:[%s3106 + $0x40] sm:$0xff]
        %v3116 = vld [vmem:[%s3106 + $0x48] sm:$0xff]
        %v3117 = vld [vmem:[%s3106 + $0x50] sm:$0xff]
        %v3118 = vld [vmem:[%s3106 + $0x58] sm:$0xff]
        %v3131 = vunpack.c.l.b16 %v3107
        %v3132 = vunpack.c.h.b16 %v3107
        %v3133 = vunpack.c.l.b16 %v3108
        %v3134 = vunpack.c.h.b16 %v3108
        %v3135 = vunpack.c.l.b16 %v3109
        %v3136 = vunpack.c.h.b16 %v3109
        %v3137 = vunpack.c.l.b16 %v3110
        %v3138 = vunpack.c.h.b16 %v3110
        %v3139 = vunpack.c.l.b16 %v3111
        %v3140 = vunpack.c.h.b16 %v3111
        %v3141 = vunpack.c.l.b16 %v3112
        %v3142 = vunpack.c.h.b16 %v3112
        %v3143 = vunpack.c.l.b16 %v3113
        %v3144 = vunpack.c.h.b16 %v3113
        %v3145 = vunpack.c.l.b16 %v3114
        %v3146 = vunpack.c.h.b16 %v3114
        %v3147 = vunpack.c.l.b16 %v3115
        %v3148 = vunpack.c.h.b16 %v3115
        %v3149 = vunpack.c.l.b16 %v3116
        %v3150 = vunpack.c.h.b16 %v3116
        %v3151 = vunpack.c.l.b16 %v3117
        %v3152 = vunpack.c.h.b16 %v3117
        %v3153 = vunpack.c.l.b16 %v3118
        %v3154 = vunpack.c.h.b16 %v3118
        %v3155 = vpack.c.b16 %v3133, %v3131
        %v3156 = vpack.c.b16 %v3134, %v3132
        %v3157 = vpack.c.b16 %v3137, %v3135
        %v3158 = vpack.c.b16 %v3138, %v3136
        %v3159 = vpack.c.b16 %v3141, %v3139
        %v3160 = vpack.c.b16 %v3142, %v3140
        %v3161 = vpack.c.b16 %v3145, %v3143
        %v3162 = vpack.c.b16 %v3146, %v3144
        %v3163 = vpack.c.b16 %v3149, %v3147
        %v3164 = vpack.c.b16 %v3150, %v3148
        %v3165 = vpack.c.b16 %v3153, %v3151
        %v3166 = vpack.c.b16 %v3154, %v3152
        %3179 = vmatprep.subr.bf16.mxu0 %v3156
        %3180 = vmatpush1.bf16.msra.mxu0 %v3155
        %3181 = vmatprep.subr.bf16.mxu0 %v3158
        %3182 = vmatpush1.bf16.msra.mxu0 %v3157
        %3183 = vmatprep.subr.bf16.mxu0 %v3160
        %3184 = vmatpush1.bf16.msra.mxu0 %v3159
        %3185 = vmatprep.subr.bf16.mxu0 %v3162
        %3186 = vmatpush1.bf16.msra.mxu0 %v3161
        %3187 = vmatprep.subr.bf16.mxu0 %v3164
        %3188 = vmatpush1.bf16.msra.mxu0 %v3163
        %3189 = vmatprep.subr.bf16.mxu0 %v3166
        %3190 = vmatpush1.bf16.msra.mxu0 %v3165
        %3191 = vmatprep.subr.bf16.mxu0 0
        %3192 = vmatpush1.bf16.msra.mxu0 0
        %3193 = vmatprep.subr.bf16.mxu0 0
        %3194 = vmatpush1.bf16.msra.mxu0 0
        %3195 = vmatprep.subr.bf16.mxu0 0
        %3196 = vmatpush1.bf16.msra.mxu0 0
        %3197 = vmatprep.subr.bf16.mxu0 0
        %3198 = vmatpush1.bf16.msra.mxu0 0
        %3199 = vmatprep.subr.bf16.mxu0 0
        %3200 = vmatpush1.bf16.msra.mxu0 0
        %3201 = vmatprep.subr.bf16.mxu0 0
        %3202 = vmatpush1.bf16.msra.mxu0 0
        %3203 = vmatprep.subr.bf16.mxu0 0
        %3204 = vmatpush1.bf16.msra.mxu0 0
        %3205 = vmatprep.subr.bf16.mxu0 0
        %3206 = vmatpush1.bf16.msra.mxu0 0
        %3207 = vmatprep.subr.bf16.mxu0 0
        %3208 = vmatpush1.bf16.msra.mxu0 0
        %3209 = vmatprep.subr.bf16.mxu0 0
        %3210 = vmatpush1.bf16.msra.mxu0 0
        %3211 = vmatprep.mubr.bf16.mxu0 0
        %3212 = vmatmul.mubr.bf16.gmra.mrb[0].mxu0 %v2089
        %v3213 = vpop.f32.mrb[0].mxu0
        %v3214 = vadd.f32 0.0, %v3213
        %v3215 = vpop.f32.mrb[0].mxu0
        %v3216 = vadd.f32 0.0, %v3215
        %v3217 = vpop.f32.mrb[0].mxu0
        %v3218 = vadd.f32 0.0, %v3217
        %v3219 = vpop.f32.mrb[0].mxu0
        %v3220 = vadd.f32 0.0, %v3219
        %3221 = vdwg.mxu0
        %s3222 = scalar_lea.vmem [#allocation4], 48
        %v3223 = vld [vmem:[%s3222] sm:$0xf]
        %v3224 = vld [vmem:[%s3222 + $0x4] sm:$0xf]
        %v3225 = vpack.c.bf16 %v3218, %v3214
        %v3226 = vpack.c.bf16 %v3220, %v3216
        %v3229 = vunpack.c.l.b16 %v3223
        %v3230 = vunpack.c.l.b16 %v3224
        %v3231 = vpack.c.b16 %v3230, %v3229
        %v3233 = vsel %vm2264, %v3231, 0
        %v3236 = vand.u32 %v3225, %v2271
        %v3239 = vand.u32 %v3226, %v2271
        %3241 = vmatprep.subr.bf16.mxu0 %v3239
        %3242 = vmatpush1.bf16.msra.mxu0 %v3236
        %3243 = vmatprep.subr.bf16.mxu0 0
        %3244 = vmatpush1.bf16.msra.mxu0 0
        %3245 = vmatprep.subr.bf16.mxu0 0
        %3246 = vmatpush1.bf16.msra.mxu0 0
        %3247 = vmatprep.subr.bf16.mxu0 0
        %3248 = vmatpush1.bf16.msra.mxu0 0
        %3249 = vmatprep.subr.bf16.mxu0 0
        %3250 = vmatpush1.bf16.msra.mxu0 0
        %3251 = vmatprep.subr.bf16.mxu0 0
        %3252 = vmatpush1.bf16.msra.mxu0 0
        %3253 = vmatprep.subr.bf16.mxu0 0
        %3254 = vmatpush1.bf16.msra.mxu0 0
        %3255 = vmatprep.subr.bf16.mxu0 0
        %3256 = vmatpush1.bf16.msra.mxu0 0
        %3257 = vmatprep.subr.bf16.mxu0 0
        %3258 = vmatpush1.bf16.msra.mxu0 0
        %3259 = vmatprep.subr.bf16.mxu0 0
        %3260 = vmatpush1.bf16.msra.mxu0 0
        %3261 = vmatprep.subr.bf16.mxu0 0
        %3262 = vmatpush1.bf16.msra.mxu0 0
        %3263 = vmatprep.subr.bf16.mxu0 0
        %3264 = vmatpush1.bf16.msra.mxu0 0
        %3265 = vmatprep.subr.bf16.mxu0 0
        %3266 = vmatpush1.bf16.msra.mxu0 0
        %3267 = vmatprep.subr.bf16.mxu0 0
        %3268 = vmatpush1.bf16.msra.mxu0 0
        %3269 = vmatprep.subr.bf16.mxu0 0
        %3270 = vmatpush1.bf16.msra.mxu0 0
        %3271 = vmatprep.subr.bf16.mxu0 0
        %3272 = vmatpush1.bf16.msra.mxu0 0
        %3273 = vmatprep.mubr.bf16.mxu0 0
        %3274 = vmatmul.mubr.bf16.gmra.mrb[0].mxu0 %v3233
        %v3275 = vpop.f32.mrb[0].mxu0
        %v3276 = vadd.f32 0.0, %v3275
        %v3277 = vpop.f32.mrb[0].mxu0
        %v3278 = vadd.f32 0.0, %v3277
        %v3279 = vpop.f32.mrb[0].mxu0
        %v3280 = vadd.f32 0.0, %v3279
        %v3281 = vpop.f32.mrb[0].mxu0
        %v3282 = vadd.f32 0.0, %v3281
        %3283 = vdwg.mxu0
        %v3284 = vadd.f32 %v3102, %v3276
        %v3285 = vadd.f32 %v3103, %v3278
        %v3286 = vadd.f32 %v3104, %v3280
        %v3287 = vadd.f32 %v3105, %v3282
        %s3288 = scalar_lea.vmem %s7, 672
        %v3289 = vld [vmem:[%s3288] sm:$0xff]
        %v3290 = vld [vmem:[%s3288 + $0x8] sm:$0xff]
        %v3291 = vld [vmem:[%s3288 + $0x10] sm:$0xff]
        %v3292 = vld [vmem:[%s3288 + $0x18] sm:$0xff]
        %v3293 = vld [vmem:[%s3288 + $0x20] sm:$0xff]
        %v3294 = vld [vmem:[%s3288 + $0x28] sm:$0xff]
        %v3295 = vld [vmem:[%s3288 + $0x30] sm:$0xff]
        %v3296 = vld [vmem:[%s3288 + $0x38] sm:$0xff]
        %v3297 = vld [vmem:[%s3288 + $0x40] sm:$0xff]
        %v3298 = vld [vmem:[%s3288 + $0x48] sm:$0xff]
        %v3299 = vld [vmem:[%s3288 + $0x50] sm:$0xff]
        %v3300 = vld [vmem:[%s3288 + $0x58] sm:$0xff]
        %v3313 = vunpack.c.l.b16 %v3289
        %v3314 = vunpack.c.h.b16 %v3289
        %v3315 = vunpack.c.l.b16 %v3290
        %v3316 = vunpack.c.h.b16 %v3290
        %v3317 = vunpack.c.l.b16 %v3291
        %v3318 = vunpack.c.h.b16 %v3291
        %v3319 = vunpack.c.l.b16 %v3292
        %v3320 = vunpack.c.h.b16 %v3292
        %v3321 = vunpack.c.l.b16 %v3293
        %v3322 = vunpack.c.h.b16 %v3293
        %v3323 = vunpack.c.l.b16 %v3294
        %v3324 = vunpack.c.h.b16 %v3294
        %v3325 = vunpack.c.l.b16 %v3295
        %v3326 = vunpack.c.h.b16 %v3295
        %v3327 = vunpack.c.l.b16 %v3296
        %v3328 = vunpack.c.h.b16 %v3296
        %v3329 = vunpack.c.l.b16 %v3297
        %v3330 = vunpack.c.h.b16 %v3297
        %v3331 = vunpack.c.l.b16 %v3298
        %v3332 = vunpack.c.h.b16 %v3298
        %v3333 = vunpack.c.l.b16 %v3299
        %v3334 = vunpack.c.h.b16 %v3299
        %v3335 = vunpack.c.l.b16 %v3300
        %v3336 = vunpack.c.h.b16 %v3300
        %v3337 = vpack.c.b16 %v3315, %v3313
        %v3338 = vpack.c.b16 %v3316, %v3314
        %v3339 = vpack.c.b16 %v3319, %v3317
        %v3340 = vpack.c.b16 %v3320, %v3318
        %v3341 = vpack.c.b16 %v3323, %v3321
        %v3342 = vpack.c.b16 %v3324, %v3322
        %v3343 = vpack.c.b16 %v3327, %v3325
        %v3344 = vpack.c.b16 %v3328, %v3326
        %v3345 = vpack.c.b16 %v3331, %v3329
        %v3346 = vpack.c.b16 %v3332, %v3330
        %v3347 = vpack.c.b16 %v3335, %v3333
        %v3348 = vpack.c.b16 %v3336, %v3334
        %3361 = vmatprep.subr.bf16.mxu0 %v3338
        %3362 = vmatpush1.bf16.msra.mxu0 %v3337
        %3363 = vmatprep.subr.bf16.mxu0 %v3340
        %3364 = vmatpush1.bf16.msra.mxu0 %v3339
        %3365 = vmatprep.subr.bf16.mxu0 %v3342
        %3366 = vmatpush1.bf16.msra.mxu0 %v3341
        %3367 = vmatprep.subr.bf16.mxu0 %v3344
        %3368 = vmatpush1.bf16.msra.mxu0 %v3343
        %3369 = vmatprep.subr.bf16.mxu0 %v3346
        %3370 = vmatpush1.bf16.msra.mxu0 %v3345
        %3371 = vmatprep.subr.bf16.mxu0 %v3348
        %3372 = vmatpush1.bf16.msra.mxu0 %v3347
        %3373 = vmatprep.subr.bf16.mxu0 0
        %3374 = vmatpush1.bf16.msra.mxu0 0
        %3375 = vmatprep.subr.bf16.mxu0 0
        %3376 = vmatpush1.bf16.msra.mxu0 0
        %3377 = vmatprep.subr.bf16.mxu0 0
        %3378 = vmatpush1.bf16.msra.mxu0 0
        %3379 = vmatprep.subr.bf16.mxu0 0
        %3380 = vmatpush1.bf16.msra.mxu0 0
        %3381 = vmatprep.subr.bf16.mxu0 0
        %3382 = vmatpush1.bf16.msra.mxu0 0
        %3383 = vmatprep.subr.bf16.mxu0 0
        %3384 = vmatpush1.bf16.msra.mxu0 0
        %3385 = vmatprep.subr.bf16.mxu0 0
        %3386 = vmatpush1.bf16.msra.mxu0 0
        %3387 = vmatprep.subr.bf16.mxu0 0
        %3388 = vmatpush1.bf16.msra.mxu0 0
        %3389 = vmatprep.subr.bf16.mxu0 0
        %3390 = vmatpush1.bf16.msra.mxu0 0
        %3391 = vmatprep.subr.bf16.mxu0 0
        %3392 = vmatpush1.bf16.msra.mxu0 0
        %3393 = vmatprep.mubr.bf16.mxu0 0
        %3394 = vmatmul.mubr.bf16.gmra.mrb[0].mxu0 %v2089
        %v3395 = vpop.f32.mrb[0].mxu0
        %v3396 = vadd.f32 0.0, %v3395
        %v3397 = vpop.f32.mrb[0].mxu0
        %v3398 = vadd.f32 0.0, %v3397
        %v3399 = vpop.f32.mrb[0].mxu0
        %v3400 = vadd.f32 0.0, %v3399
        %v3401 = vpop.f32.mrb[0].mxu0
        %v3402 = vadd.f32 0.0, %v3401
        %3403 = vdwg.mxu0
        %s3404 = scalar_lea.vmem [#allocation4], 56
        %v3405 = vld [vmem:[%s3404] sm:$0xf]
        %v3406 = vld [vmem:[%s3404 + $0x4] sm:$0xf]
        %v3407 = vpack.c.bf16 %v3400, %v3396
        %v3408 = vpack.c.bf16 %v3402, %v3398
        %v3411 = vunpack.c.l.b16 %v3405
        %v3412 = vunpack.c.l.b16 %v3406
        %v3413 = vpack.c.b16 %v3412, %v3411
        %v3415 = vsel %vm2264, %v3413, 0
        %v3418 = vand.u32 %v3407, %v2271
        %v3421 = vand.u32 %v3408, %v2271
        %3423 = vmatprep.subr.bf16.mxu0 %v3421
        %3424 = vmatpush1.bf16.msra.mxu0 %v3418
        %3425 = vmatprep.subr.bf16.mxu0 0
        %3426 = vmatpush1.bf16.msra.mxu0 0
        %3427 = vmatprep.subr.bf16.mxu0 0
        %3428 = vmatpush1.bf16.msra.mxu0 0
        %3429 = vmatprep.subr.bf16.mxu0 0
        %3430 = vmatpush1.bf16.msra.mxu0 0
        %3431 = vmatprep.subr.bf16.mxu0 0
        %3432 = vmatpush1.bf16.msra.mxu0 0
        %3433 = vmatprep.subr.bf16.mxu0 0
        %3434 = vmatpush1.bf16.msra.mxu0 0
        %3435 = vmatprep.subr.bf16.mxu0 0
        %3436 = vmatpush1.bf16.msra.mxu0 0
        %3437 = vmatprep.subr.bf16.mxu0 0
        %3438 = vmatpush1.bf16.msra.mxu0 0
        %3439 = vmatprep.subr.bf16.mxu0 0
        %3440 = vmatpush1.bf16.msra.mxu0 0
        %3441 = vmatprep.subr.bf16.mxu0 0
        %3442 = vmatpush1.bf16.msra.mxu0 0
        %3443 = vmatprep.subr.bf16.mxu0 0
        %3444 = vmatpush1.bf16.msra.mxu0 0
        %3445 = vmatprep.subr.bf16.mxu0 0
        %3446 = vmatpush1.bf16.msra.mxu0 0
        %3447 = vmatprep.subr.bf16.mxu0 0
        %3448 = vmatpush1.bf16.msra.mxu0 0
        %3449 = vmatprep.subr.bf16.mxu0 0
        %3450 = vmatpush1.bf16.msra.mxu0 0
        %3451 = vmatprep.subr.bf16.mxu0 0
        %3452 = vmatpush1.bf16.msra.mxu0 0
        %3453 = vmatprep.subr.bf16.mxu0 0
        %3454 = vmatpush1.bf16.msra.mxu0 0
        %3455 = vmatprep.mubr.bf16.mxu0 0
        %3456 = vmatmul.mubr.bf16.gmra.mrb[0].mxu0 %v3415
        %v3457 = vpop.f32.mrb[0].mxu0
        %v3458 = vadd.f32 0.0, %v3457
        %v3459 = vpop.f32.mrb[0].mxu0
        %v3460 = vadd.f32 0.0, %v3459
        %v3461 = vpop.f32.mrb[0].mxu0
        %v3462 = vadd.f32 0.0, %v3461
        %v3463 = vpop.f32.mrb[0].mxu0
        %v3464 = vadd.f32 0.0, %v3463
        %3465 = vdwg.mxu0
        %v3466 = vadd.f32 %v3284, %v3458
        %v3467 = vadd.f32 %v3285, %v3460
        %v3468 = vadd.f32 %v3286, %v3462
        %v3469 = vadd.f32 %v3287, %v3464
        %s3470 = scalar_lea.vmem %s7, 768
        %v3471 = vld [vmem:[%s3470] sm:$0xff]
        %v3472 = vld [vmem:[%s3470 + $0x8] sm:$0xff]
        %v3473 = vld [vmem:[%s3470 + $0x10] sm:$0xff]
        %v3474 = vld [vmem:[%s3470 + $0x18] sm:$0xff]
        %v3475 = vld [vmem:[%s3470 + $0x20] sm:$0xff]
        %v3476 = vld [vmem:[%s3470 + $0x28] sm:$0xff]
        %v3477 = vld [vmem:[%s3470 + $0x30] sm:$0xff]
        %v3478 = vld [vmem:[%s3470 + $0x38] sm:$0xff]
        %v3479 = vld [vmem:[%s3470 + $0x40] sm:$0xff]
        %v3480 = vld [vmem:[%s3470 + $0x48] sm:$0xff]
        %v3481 = vld [vmem:[%s3470 + $0x50] sm:$0xff]
        %v3482 = vld [vmem:[%s3470 + $0x58] sm:$0xff]
        %v3495 = vunpack.c.l.b16 %v3471
        %v3496 = vunpack.c.h.b16 %v3471
        %v3497 = vunpack.c.l.b16 %v3472
        %v3498 = vunpack.c.h.b16 %v3472
        %v3499 = vunpack.c.l.b16 %v3473
        %v3500 = vunpack.c.h.b16 %v3473
        %v3501 = vunpack.c.l.b16 %v3474
        %v3502 = vunpack.c.h.b16 %v3474
        %v3503 = vunpack.c.l.b16 %v3475
        %v3504 = vunpack.c.h.b16 %v3475
        %v3505 = vunpack.c.l.b16 %v3476
        %v3506 = vunpack.c.h.b16 %v3476
        %v3507 = vunpack.c.l.b16 %v3477
        %v3508 = vunpack.c.h.b16 %v3477
        %v3509 = vunpack.c.l.b16 %v3478
        %v3510 = vunpack.c.h.b16 %v3478
        %v3511 = vunpack.c.l.b16 %v3479
        %v3512 = vunpack.c.h.b16 %v3479
        %v3513 = vunpack.c.l.b16 %v3480
        %v3514 = vunpack.c.h.b16 %v3480
        %v3515 = vunpack.c.l.b16 %v3481
        %v3516 = vunpack.c.h.b16 %v3481
        %v3517 = vunpack.c.l.b16 %v3482
        %v3518 = vunpack.c.h.b16 %v3482
        %v3519 = vpack.c.b16 %v3497, %v3495
        %v3520 = vpack.c.b16 %v3498, %v3496
        %v3521 = vpack.c.b16 %v3501, %v3499
        %v3522 = vpack.c.b16 %v3502, %v3500
        %v3523 = vpack.c.b16 %v3505, %v3503
        %v3524 = vpack.c.b16 %v3506, %v3504
        %v3525 = vpack.c.b16 %v3509, %v3507
        %v3526 = vpack.c.b16 %v3510, %v3508
        %v3527 = vpack.c.b16 %v3513, %v3511
        %v3528 = vpack.c.b16 %v3514, %v3512
        %v3529 = vpack.c.b16 %v3517, %v3515
        %v3530 = vpack.c.b16 %v3518, %v3516
        %3543 = vmatprep.subr.bf16.mxu0 %v3520
        %3544 = vmatpush1.bf16.msra.mxu0 %v3519
        %3545 = vmatprep.subr.bf16.mxu0 %v3522
        %3546 = vmatpush1.bf16.msra.mxu0 %v3521
        %3547 = vmatprep.subr.bf16.mxu0 %v3524
        %3548 = vmatpush1.bf16.msra.mxu0 %v3523
        %3549 = vmatprep.subr.bf16.mxu0 %v3526
        %3550 = vmatpush1.bf16.msra.mxu0 %v3525
        %3551 = vmatprep.subr.bf16.mxu0 %v3528
        %3552 = vmatpush1.bf16.msra.mxu0 %v3527
        %3553 = vmatprep.subr.bf16.mxu0 %v3530
        %3554 = vmatpush1.bf16.msra.mxu0 %v3529
        %3555 = vmatprep.subr.bf16.mxu0 0
        %3556 = vmatpush1.bf16.msra.mxu0 0
        %3557 = vmatprep.subr.bf16.mxu0 0
        %3558 = vmatpush1.bf16.msra.mxu0 0
        %3559 = vmatprep.subr.bf16.mxu0 0
        %3560 = vmatpush1.bf16.msra.mxu0 0
        %3561 = vmatprep.subr.bf16.mxu0 0
        %3562 = vmatpush1.bf16.msra.mxu0 0
        %3563 = vmatprep.subr.bf16.mxu0 0
        %3564 = vmatpush1.bf16.msra.mxu0 0
        %3565 = vmatprep.subr.bf16.mxu0 0
        %3566 = vmatpush1.bf16.msra.mxu0 0
        %3567 = vmatprep.subr.bf16.mxu0 0
        %3568 = vmatpush1.bf16.msra.mxu0 0
        %3569 = vmatprep.subr.bf16.mxu0 0
        %3570 = vmatpush1.bf16.msra.mxu0 0
        %3571 = vmatprep.subr.bf16.mxu0 0
        %3572 = vmatpush1.bf16.msra.mxu0 0
        %3573 = vmatprep.subr.bf16.mxu0 0
        %3574 = vmatpush1.bf16.msra.mxu0 0
        %3575 = vmatprep.mubr.bf16.mxu0 0
        %3576 = vmatmul.mubr.bf16.gmra.mrb[0].mxu0 %v2089
        %v3577 = vpop.f32.mrb[0].mxu0
        %v3578 = vadd.f32 0.0, %v3577
        %v3579 = vpop.f32.mrb[0].mxu0
        %v3580 = vadd.f32 0.0, %v3579
        %v3581 = vpop.f32.mrb[0].mxu0
        %v3582 = vadd.f32 0.0, %v3581
        %v3583 = vpop.f32.mrb[0].mxu0
        %v3584 = vadd.f32 0.0, %v3583
        %3585 = vdwg.mxu0
        %s3586 = scalar_lea.vmem [#allocation4], 64
        %v3587 = vld [vmem:[%s3586] sm:$0xf]
        %v3588 = vld [vmem:[%s3586 + $0x4] sm:$0xf]
        %v3589 = vpack.c.bf16 %v3582, %v3578
        %v3590 = vpack.c.bf16 %v3584, %v3580
        %v3593 = vunpack.c.l.b16 %v3587
        %v3594 = vunpack.c.l.b16 %v3588
        %v3595 = vpack.c.b16 %v3594, %v3593
        %v3597 = vsel %vm2264, %v3595, 0
        %v3600 = vand.u32 %v3589, %v2271
        %v3603 = vand.u32 %v3590, %v2271
        %3605 = vmatprep.subr.bf16.mxu0 %v3603
        %3606 = vmatpush1.bf16.msra.mxu0 %v3600
        %3607 = vmatprep.subr.bf16.mxu0 0
        %3608 = vmatpush1.bf16.msra.mxu0 0
        %3609 = vmatprep.subr.bf16.mxu0 0
        %3610 = vmatpush1.bf16.msra.mxu0 0
        %3611 = vmatprep.subr.bf16.mxu0 0
        %3612 = vmatpush1.bf16.msra.mxu0 0
        %3613 = vmatprep.subr.bf16.mxu0 0
        %3614 = vmatpush1.bf16.msra.mxu0 0
        %3615 = vmatprep.subr.bf16.mxu0 0
        %3616 = vmatpush1.bf16.msra.mxu0 0
        %3617 = vmatprep.subr.bf16.mxu0 0
        %3618 = vmatpush1.bf16.msra.mxu0 0
        %3619 = vmatprep.subr.bf16.mxu0 0
        %3620 = vmatpush1.bf16.msra.mxu0 0
        %3621 = vmatprep.subr.bf16.mxu0 0
        %3622 = vmatpush1.bf16.msra.mxu0 0
        %3623 = vmatprep.subr.bf16.mxu0 0
        %3624 = vmatpush1.bf16.msra.mxu0 0
        %3625 = vmatprep.subr.bf16.mxu0 0
        %3626 = vmatpush1.bf16.msra.mxu0 0
        %3627 = vmatprep.subr.bf16.mxu0 0
        %3628 = vmatpush1.bf16.msra.mxu0 0
        %3629 = vmatprep.subr.bf16.mxu0 0
        %3630 = vmatpush1.bf16.msra.mxu0 0
        %3631 = vmatprep.subr.bf16.mxu0 0
        %3632 = vmatpush1.bf16.msra.mxu0 0
        %3633 = vmatprep.subr.bf16.mxu0 0
        %3634 = vmatpush1.bf16.msra.mxu0 0
        %3635 = vmatprep.subr.bf16.mxu0 0
        %3636 = vmatpush1.bf16.msra.mxu0 0
        %3637 = vmatprep.mubr.bf16.mxu0 0
        %3638 = vmatmul.mubr.bf16.gmra.mrb[0].mxu0 %v3597
        %v3639 = vpop.f32.mrb[0].mxu0
        %v3640 = vadd.f32 0.0, %v3639
        %v3641 = vpop.f32.mrb[0].mxu0
        %v3642 = vadd.f32 0.0, %v3641
        %v3643 = vpop.f32.mrb[0].mxu0
        %v3644 = vadd.f32 0.0, %v3643
        %v3645 = vpop.f32.mrb[0].mxu0
        %v3646 = vadd.f32 0.0, %v3645
        %3647 = vdwg.mxu0
        %v3648 = vadd.f32 %v3466, %v3640
        %v3649 = vadd.f32 %v3467, %v3642
        %v3650 = vadd.f32 %v3468, %v3644
        %v3651 = vadd.f32 %v3469, %v3646
        %v3652 = vld [vmem:[#allocation11] sm:$0x3]
        %v3654 = vlaneseq
        %v3655 = vshrl.u32 %v3654, 7
        %v3656 = vsub.s32 0, %v3655
        %v3657 = vrot.slane %v3652, %v3656
        %v3658 = vlaneseq
        %v3659 = vshrl.u32 %v3658, 7
        %v3660 = vsub.s32 1, %v3659
        %v3661 = vrot.slane %v3652, %v3660
        %v3664 = vadd.f32 %v3648, %v3657
        %v3665 = vadd.f32 %v3649, %v3661
        %v3666 = vadd.f32 %v3650, %v3657
        %v3667 = vadd.f32 %v3651, %v3661
        %v3668 = vmul.f32 %v3664, 0.2
        %v3669 = vmul.f32 %v3665, 0.2
        %v3670 = vmul.f32 %v3666, 0.2
        %v3671 = vmul.f32 %v3667, 0.2
        %v3672 = vmax.f32 %v3664, %v3668
        %v3673 = vmax.f32 %v3665, %v3669
        %v3674 = vmax.f32 %v3666, %v3670
        %v3675 = vmax.f32 %v3667, %v3671
        %v3676 = vpack.c.bf16 %v3674, %v3672
        %v3677 = vpack.c.bf16 %v3675, %v3673
        %v3678 = vld [vmem:[#allocation12] sm:$0xff]
        %v3679 = vld [vmem:[#allocation12 + $0x8] sm:$0xff]
        %v3680 = vld [vmem:[#allocation12 + $0x10] sm:$0xff]
        %v3681 = vld [vmem:[#allocation12 + $0x18] sm:$0xff]
        %v3682 = vld [vmem:[#allocation12 + $0x20] sm:$0xff]
        %v3683 = vld [vmem:[#allocation12 + $0x28] sm:$0xff]
        %v3684 = vld [vmem:[#allocation12 + $0x30] sm:$0xff]
        %v3685 = vld [vmem:[#allocation12 + $0x38] sm:$0xff]
        %v3686 = vld [vmem:[#allocation12 + $0x40] sm:$0xff]
        %v3687 = vld [vmem:[#allocation12 + $0x48] sm:$0xff]
        %v3688 = vld [vmem:[#allocation12 + $0x50] sm:$0xff]
        %v3689 = vld [vmem:[#allocation12 + $0x58] sm:$0xff]
        %v3690 = vld [vmem:[#allocation12 + $0x60] sm:$0xff]
        %v3691 = vld [vmem:[#allocation12 + $0x68] sm:$0xff]
        %v3692 = vld [vmem:[#allocation12 + $0x70] sm:$0xff]
        %v3693 = vld [vmem:[#allocation12 + $0x78] sm:$0xff]
        %v3694 = vld [vmem:[#allocation12 + $0x80] sm:$0xff]
        %v3695 = vld [vmem:[#allocation12 + $0x88] sm:$0xff]
        %v3696 = vld [vmem:[#allocation12 + $0x90] sm:$0xff]
        %v3697 = vld [vmem:[#allocation12 + $0x98] sm:$0xff]
        %v3698 = vld [vmem:[#allocation12 + $0xa0] sm:$0xff]
        %v3699 = vld [vmem:[#allocation12 + $0xa8] sm:$0xff]
        %v3700 = vld [vmem:[#allocation12 + $0xb0] sm:$0xff]
        %v3701 = vld [vmem:[#allocation12 + $0xb8] sm:$0xff]
        %v3702 = vld [vmem:[#allocation12 + $0xc0] sm:$0xff]
        %v3703 = vld [vmem:[#allocation12 + $0xc8] sm:$0xff]
        %v3704 = vld [vmem:[#allocation12 + $0xd0] sm:$0xff]
        %v3705 = vld [vmem:[#allocation12 + $0xd8] sm:$0xff]
        %v3706 = vld [vmem:[#allocation12 + $0xe0] sm:$0xff]
        %v3707 = vld [vmem:[#allocation12 + $0xe8] sm:$0xff]
        %v3708 = vld [vmem:[#allocation12 + $0xf0] sm:$0xff]
        %v3709 = vld [vmem:[#allocation12 + $0xf8] sm:$0xff]
        %v3742 = vunpack.c.l.b16 %v3678
        %v3743 = vunpack.c.h.b16 %v3678
        %v3744 = vunpack.c.l.b16 %v3679
        %v3745 = vunpack.c.h.b16 %v3679
        %v3746 = vunpack.c.l.b16 %v3680
        %v3747 = vunpack.c.h.b16 %v3680
        %v3748 = vunpack.c.l.b16 %v3681
        %v3749 = vunpack.c.h.b16 %v3681
        %v3750 = vunpack.c.l.b16 %v3682
        %v3751 = vunpack.c.h.b16 %v3682
        %v3752 = vunpack.c.l.b16 %v3683
        %v3753 = vunpack.c.h.b16 %v3683
        %v3754 = vunpack.c.l.b16 %v3684
        %v3755 = vunpack.c.h.b16 %v3684
        %v3756 = vunpack.c.l.b16 %v3685
        %v3757 = vunpack.c.h.b16 %v3685
        %v3758 = vunpack.c.l.b16 %v3686
        %v3759 = vunpack.c.h.b16 %v3686
        %v3760 = vunpack.c.l.b16 %v3687
        %v3761 = vunpack.c.h.b16 %v3687
        %v3762 = vunpack.c.l.b16 %v3688
        %v3763 = vunpack.c.h.b16 %v3688
        %v3764 = vunpack.c.l.b16 %v3689
        %v3765 = vunpack.c.h.b16 %v3689
        %v3766 = vunpack.c.l.b16 %v3690
        %v3767 = vunpack.c.h.b16 %v3690
        %v3768 = vunpack.c.l.b16 %v3691
        %v3769 = vunpack.c.h.b16 %v3691
        %v3770 = vunpack.c.l.b16 %v3692
        %v3771 = vunpack.c.h.b16 %v3692
        %v3772 = vunpack.c.l.b16 %v3693
        %v3773 = vunpack.c.h.b16 %v3693
        %v3774 = vunpack.c.l.b16 %v3694
        %v3775 = vunpack.c.h.b16 %v3694
        %v3776 = vunpack.c.l.b16 %v3695
        %v3777 = vunpack.c.h.b16 %v3695
        %v3778 = vunpack.c.l.b16 %v3696
        %v3779 = vunpack.c.h.b16 %v3696
        %v3780 = vunpack.c.l.b16 %v3697
        %v3781 = vunpack.c.h.b16 %v3697
        %v3782 = vunpack.c.l.b16 %v3698
        %v3783 = vunpack.c.h.b16 %v3698
        %v3784 = vunpack.c.l.b16 %v3699
        %v3785 = vunpack.c.h.b16 %v3699
        %v3786 = vunpack.c.l.b16 %v3700
        %v3787 = vunpack.c.h.b16 %v3700
        %v3788 = vunpack.c.l.b16 %v3701
        %v3789 = vunpack.c.h.b16 %v3701
        %v3790 = vunpack.c.l.b16 %v3702
        %v3791 = vunpack.c.h.b16 %v3702
        %v3792 = vunpack.c.l.b16 %v3703
        %v3793 = vunpack.c.h.b16 %v3703
        %v3794 = vunpack.c.l.b16 %v3704
        %v3795 = vunpack.c.h.b16 %v3704
        %v3796 = vunpack.c.l.b16 %v3705
        %v3797 = vunpack.c.h.b16 %v3705
        %v3798 = vunpack.c.l.b16 %v3706
        %v3799 = vunpack.c.h.b16 %v3706
        %v3800 = vunpack.c.l.b16 %v3707
        %v3801 = vunpack.c.h.b16 %v3707
        %v3802 = vunpack.c.l.b16 %v3708
        %v3803 = vunpack.c.h.b16 %v3708
        %v3804 = vunpack.c.l.b16 %v3709
        %v3805 = vunpack.c.h.b16 %v3709
        %v3806 = vpack.c.b16 %v3744, %v3742
        %v3807 = vpack.c.b16 %v3745, %v3743
        %v3808 = vpack.c.b16 %v3748, %v3746
        %v3809 = vpack.c.b16 %v3749, %v3747
        %v3810 = vpack.c.b16 %v3752, %v3750
        %v3811 = vpack.c.b16 %v3753, %v3751
        %v3812 = vpack.c.b16 %v3756, %v3754
        %v3813 = vpack.c.b16 %v3757, %v3755
        %v3814 = vpack.c.b16 %v3760, %v3758
        %v3815 = vpack.c.b16 %v3761, %v3759
        %v3816 = vpack.c.b16 %v3764, %v3762
        %v3817 = vpack.c.b16 %v3765, %v3763
        %v3818 = vpack.c.b16 %v3768, %v3766
        %v3819 = vpack.c.b16 %v3769, %v3767
        %v3820 = vpack.c.b16 %v3772, %v3770
        %v3821 = vpack.c.b16 %v3773, %v3771
        %v3822 = vpack.c.b16 %v3776, %v3774
        %v3823 = vpack.c.b16 %v3777, %v3775
        %v3824 = vpack.c.b16 %v3780, %v3778
        %v3825 = vpack.c.b16 %v3781, %v3779
        %v3826 = vpack.c.b16 %v3784, %v3782
        %v3827 = vpack.c.b16 %v3785, %v3783
        %v3828 = vpack.c.b16 %v3788, %v3786
        %v3829 = vpack.c.b16 %v3789, %v3787
        %v3830 = vpack.c.b16 %v3792, %v3790
        %v3831 = vpack.c.b16 %v3793, %v3791
        %v3832 = vpack.c.b16 %v3796, %v3794
        %v3833 = vpack.c.b16 %v3797, %v3795
        %v3834 = vpack.c.b16 %v3800, %v3798
        %v3835 = vpack.c.b16 %v3801, %v3799
        %v3836 = vpack.c.b16 %v3804, %v3802
        %v3837 = vpack.c.b16 %v3805, %v3803
        %3870 = vmatprep.subr.bf16.mxu0 %v3807
        %3871 = vmatpush1.bf16.msra.mxu0 %v3806
        %3872 = vmatprep.subr.bf16.mxu0 %v3809
        %3873 = vmatpush1.bf16.msra.mxu0 %v3808
        %3874 = vmatprep.subr.bf16.mxu0 %v3811
        %3875 = vmatpush1.bf16.msra.mxu0 %v3810
        %3876 = vmatprep.subr.bf16.mxu0 %v3813
        %3877 = vmatpush1.bf16.msra.mxu0 %v3812
        %3878 = vmatprep.subr.bf16.mxu0 %v3815
        %3879 = vmatpush1.bf16.msra.mxu0 %v3814
        %3880 = vmatprep.subr.bf16.mxu0 %v3817
        %3881 = vmatpush1.bf16.msra.mxu0 %v3816
        %3882 = vmatprep.subr.bf16.mxu0 %v3819
        %3883 = vmatpush1.bf16.msra.mxu0 %v3818
        %3884 = vmatprep.subr.bf16.mxu0 %v3821
        %3885 = vmatpush1.bf16.msra.mxu0 %v3820
        %3886 = vmatprep.subr.bf16.mxu0 %v3823
        %3887 = vmatpush1.bf16.msra.mxu0 %v3822
        %3888 = vmatprep.subr.bf16.mxu0 %v3825
        %3889 = vmatpush1.bf16.msra.mxu0 %v3824
        %3890 = vmatprep.subr.bf16.mxu0 %v3827
        %3891 = vmatpush1.bf16.msra.mxu0 %v3826
        %3892 = vmatprep.subr.bf16.mxu0 %v3829
        %3893 = vmatpush1.bf16.msra.mxu0 %v3828
        %3894 = vmatprep.subr.bf16.mxu0 %v3831
        %3895 = vmatpush1.bf16.msra.mxu0 %v3830
        %3896 = vmatprep.subr.bf16.mxu0 %v3833
        %3897 = vmatpush1.bf16.msra.mxu0 %v3832
        %3898 = vmatprep.subr.bf16.mxu0 %v3835
        %3899 = vmatpush1.bf16.msra.mxu0 %v3834
        %3900 = vmatprep.subr.bf16.mxu0 %v3837
        %3901 = vmatpush1.bf16.msra.mxu0 %v3836
        %3902 = vmatprep.mubr.bf16.mxu0 %v3677
        %3903 = vmatmul.mubr.bf16.gmra.mrb[0].mxu0 %v3676
        %v3904 = vpop.f32.mrb[0].mxu0
        %v3905 = vadd.f32 0.0, %v3904
        %v3906 = vpop.f32.mrb[0].mxu0
        %v3907 = vadd.f32 0.0, %v3906
        %v3908 = vpop.f32.mrb[0].mxu0
        %v3909 = vadd.f32 0.0, %v3908
        %v3910 = vpop.f32.mrb[0].mxu0
        %v3911 = vadd.f32 0.0, %v3910
        %3912 = vdwg.mxu0
        %v3913 = vpack.c.bf16 %v3909, %v3905
        %v3914 = vpack.c.bf16 %v3911, %v3907
        %3915 = vst [vmem:[#allocation2] sm:$0xff] %v3913
        %3916 = vst [vmem:[#allocation2 + $0x8] sm:$0xff] %v3914
        %s3917 = scalar_lea.vmem [#allocation12], 256
        %v3918 = vld [vmem:[%s3917] sm:$0xff]
        %v3919 = vld [vmem:[%s3917 + $0x8] sm:$0xff]
        %v3920 = vld [vmem:[%s3917 + $0x10] sm:$0xff]
        %v3921 = vld [vmem:[%s3917 + $0x18] sm:$0xff]
        %v3922 = vld [vmem:[%s3917 + $0x20] sm:$0xff]
        %v3923 = vld [vmem:[%s3917 + $0x28] sm:$0xff]
        %v3924 = vld [vmem:[%s3917 + $0x30] sm:$0xff]
        %v3925 = vld [vmem:[%s3917 + $0x38] sm:$0xff]
        %v3926 = vld [vmem:[%s3917 + $0x40] sm:$0xff]
        %v3927 = vld [vmem:[%s3917 + $0x48] sm:$0xff]
        %v3928 = vld [vmem:[%s3917 + $0x50] sm:$0xff]
        %v3929 = vld [vmem:[%s3917 + $0x58] sm:$0xff]
        %v3930 = vld [vmem:[%s3917 + $0x60] sm:$0xff]
        %v3931 = vld [vmem:[%s3917 + $0x68] sm:$0xff]
        %v3932 = vld [vmem:[%s3917 + $0x70] sm:$0xff]
        %v3933 = vld [vmem:[%s3917 + $0x78] sm:$0xff]
        %v3934 = vld [vmem:[%s3917 + $0x80] sm:$0xff]
        %v3935 = vld [vmem:[%s3917 + $0x88] sm:$0xff]
        %v3936 = vld [vmem:[%s3917 + $0x90] sm:$0xff]
        %v3937 = vld [vmem:[%s3917 + $0x98] sm:$0xff]
        %v3938 = vld [vmem:[%s3917 + $0xa0] sm:$0xff]
        %v3939 = vld [vmem:[%s3917 + $0xa8] sm:$0xff]
        %v3940 = vld [vmem:[%s3917 + $0xb0] sm:$0xff]
        %v3941 = vld [vmem:[%s3917 + $0xb8] sm:$0xff]
        %v3942 = vld [vmem:[%s3917 + $0xc0] sm:$0xff]
        %v3943 = vld [vmem:[%s3917 + $0xc8] sm:$0xff]
        %v3944 = vld [vmem:[%s3917 + $0xd0] sm:$0xff]
        %v3945 = vld [vmem:[%s3917 + $0xd8] sm:$0xff]
        %v3946 = vld [vmem:[%s3917 + $0xe0] sm:$0xff]
        %v3947 = vld [vmem:[%s3917 + $0xe8] sm:$0xff]
        %v3948 = vld [vmem:[%s3917 + $0xf0] sm:$0xff]
        %v3949 = vld [vmem:[%s3917 + $0xf8] sm:$0xff]
        %v3982 = vunpack.c.l.b16 %v3918
        %v3983 = vunpack.c.h.b16 %v3918
        %v3984 = vunpack.c.l.b16 %v3919
        %v3985 = vunpack.c.h.b16 %v3919
        %v3986 = vunpack.c.l.b16 %v3920
        %v3987 = vunpack.c.h.b16 %v3920
        %v3988 = vunpack.c.l.b16 %v3921
        %v3989 = vunpack.c.h.b16 %v3921
        %v3990 = vunpack.c.l.b16 %v3922
        %v3991 = vunpack.c.h.b16 %v3922
        %v3992 = vunpack.c.l.b16 %v3923
        %v3993 = vunpack.c.h.b16 %v3923
        %v3994 = vunpack.c.l.b16 %v3924
        %v3995 = vunpack.c.h.b16 %v3924
        %v3996 = vunpack.c.l.b16 %v3925
        %v3997 = vunpack.c.h.b16 %v3925
        %v3998 = vunpack.c.l.b16 %v3926
        %v3999 = vunpack.c.h.b16 %v3926
        %v4000 = vunpack.c.l.b16 %v3927
        %v4001 = vunpack.c.h.b16 %v3927
        %v4002 = vunpack.c.l.b16 %v3928
        %v4003 = vunpack.c.h.b16 %v3928
        %v4004 = vunpack.c.l.b16 %v3929
        %v4005 = vunpack.c.h.b16 %v3929
        %v4006 = vunpack.c.l.b16 %v3930
        %v4007 = vunpack.c.h.b16 %v3930
        %v4008 = vunpack.c.l.b16 %v3931
        %v4009 = vunpack.c.h.b16 %v3931
        %v4010 = vunpack.c.l.b16 %v3932
        %v4011 = vunpack.c.h.b16 %v3932
        %v4012 = vunpack.c.l.b16 %v3933
        %v4013 = vunpack.c.h.b16 %v3933
        %v4014 = vunpack.c.l.b16 %v3934
        %v4015 = vunpack.c.h.b16 %v3934
        %v4016 = vunpack.c.l.b16 %v3935
        %v4017 = vunpack.c.h.b16 %v3935
        %v4018 = vunpack.c.l.b16 %v3936
        %v4019 = vunpack.c.h.b16 %v3936
        %v4020 = vunpack.c.l.b16 %v3937
        %v4021 = vunpack.c.h.b16 %v3937
        %v4022 = vunpack.c.l.b16 %v3938
        %v4023 = vunpack.c.h.b16 %v3938
        %v4024 = vunpack.c.l.b16 %v3939
        %v4025 = vunpack.c.h.b16 %v3939
        %v4026 = vunpack.c.l.b16 %v3940
        %v4027 = vunpack.c.h.b16 %v3940
        %v4028 = vunpack.c.l.b16 %v3941
        %v4029 = vunpack.c.h.b16 %v3941
        %v4030 = vunpack.c.l.b16 %v3942
        %v4031 = vunpack.c.h.b16 %v3942
        %v4032 = vunpack.c.l.b16 %v3943
        %v4033 = vunpack.c.h.b16 %v3943
        %v4034 = vunpack.c.l.b16 %v3944
        %v4035 = vunpack.c.h.b16 %v3944
        %v4036 = vunpack.c.l.b16 %v3945
        %v4037 = vunpack.c.h.b16 %v3945
        %v4038 = vunpack.c.l.b16 %v3946
        %v4039 = vunpack.c.h.b16 %v3946
        %v4040 = vunpack.c.l.b16 %v3947
        %v4041 = vunpack.c.h.b16 %v3947
        %v4042 = vunpack.c.l.b16 %v3948
        %v4043 = vunpack.c.h.b16 %v3948
        %v4044 = vunpack.c.l.b16 %v3949
        %v4045 = vunpack.c.h.b16 %v3949
        %v4046 = vpack.c.b16 %v3984, %v3982
        %v4047 = vpack.c.b16 %v3985, %v3983
        %v4048 = vpack.c.b16 %v3988, %v3986
        %v4049 = vpack.c.b16 %v3989, %v3987
        %v4050 = vpack.c.b16 %v3992, %v3990
        %v4051 = vpack.c.b16 %v3993, %v3991
        %v4052 = vpack.c.b16 %v3996, %v3994
        %v4053 = vpack.c.b16 %v3997, %v3995
        %v4054 = vpack.c.b16 %v4000, %v3998
        %v4055 = vpack.c.b16 %v4001, %v3999
        %v4056 = vpack.c.b16 %v4004, %v4002
        %v4057 = vpack.c.b16 %v4005, %v4003
        %v4058 = vpack.c.b16 %v4008, %v4006
        %v4059 = vpack.c.b16 %v4009, %v4007
        %v4060 = vpack.c.b16 %v4012, %v4010
        %v4061 = vpack.c.b16 %v4013, %v4011
        %v4062 = vpack.c.b16 %v4016, %v4014
        %v4063 = vpack.c.b16 %v4017, %v4015
        %v4064 = vpack.c.b16 %v4020, %v4018
        %v4065 = vpack.c.b16 %v4021, %v4019
        %v4066 = vpack.c.b16 %v4024, %v4022
        %v4067 = vpack.c.b16 %v4025, %v4023
        %v4068 = vpack.c.b16 %v4028, %v4026
        %v4069 = vpack.c.b16 %v4029, %v4027
        %v4070 = vpack.c.b16 %v4032, %v4030
        %v4071 = vpack.c.b16 %v4033, %v4031
        %v4072 = vpack.c.b16 %v4036, %v4034
        %v4073 = vpack.c.b16 %v4037, %v4035
        %v4074 = vpack.c.b16 %v4040, %v4038
        %v4075 = vpack.c.b16 %v4041, %v4039
        %v4076 = vpack.c.b16 %v4044, %v4042
        %v4077 = vpack.c.b16 %v4045, %v4043
        %4110 = vmatprep.subr.bf16.mxu0 %v4047
        %4111 = vmatpush1.bf16.msra.mxu0 %v4046
        %4112 = vmatprep.subr.bf16.mxu0 %v4049
        %4113 = vmatpush1.bf16.msra.mxu0 %v4048
        %4114 = vmatprep.subr.bf16.mxu0 %v4051
        %4115 = vmatpush1.bf16.msra.mxu0 %v4050
        %4116 = vmatprep.subr.bf16.mxu0 %v4053
        %4117 = vmatpush1.bf16.msra.mxu0 %v4052
        %4118 = vmatprep.subr.bf16.mxu0 %v4055
        %4119 = vmatpush1.bf16.msra.mxu0 %v4054
        %4120 = vmatprep.subr.bf16.mxu0 %v4057
        %4121 = vmatpush1.bf16.msra.mxu0 %v4056
        %4122 = vmatprep.subr.bf16.mxu0 %v4059
        %4123 = vmatpush1.bf16.msra.mxu0 %v4058
        %4124 = vmatprep.subr.bf16.mxu0 %v4061
        %4125 = vmatpush1.bf16.msra.mxu0 %v4060
        %4126 = vmatprep.subr.bf16.mxu0 %v4063
        %4127 = vmatpush1.bf16.msra.mxu0 %v4062
        %4128 = vmatprep.subr.bf16.mxu0 %v4065
        %4129 = vmatpush1.bf16.msra.mxu0 %v4064
        %4130 = vmatprep.subr.bf16.mxu0 %v4067
        %4131 = vmatpush1.bf16.msra.mxu0 %v4066
        %4132 = vmatprep.subr.bf16.mxu0 %v4069
        %4133 = vmatpush1.bf16.msra.mxu0 %v4068
        %4134 = vmatprep.subr.bf16.mxu0 %v4071
        %4135 = vmatpush1.bf16.msra.mxu0 %v4070
        %4136 = vmatprep.subr.bf16.mxu0 %v4073
        %4137 = vmatpush1.bf16.msra.mxu0 %v4072
        %4138 = vmatprep.subr.bf16.mxu0 %v4075
        %4139 = vmatpush1.bf16.msra.mxu0 %v4074
        %4140 = vmatprep.subr.bf16.mxu0 %v4077
        %4141 = vmatpush1.bf16.msra.mxu0 %v4076
        %4142 = vmatprep.mubr.bf16.mxu0 %v3677
        %4143 = vmatmul.mubr.bf16.gmra.mrb[0].mxu0 %v3676
        %v4144 = vpop.f32.mrb[0].mxu0
        %v4145 = vadd.f32 0.0, %v4144
        %v4146 = vpop.f32.mrb[0].mxu0
        %v4147 = vadd.f32 0.0, %v4146
        %v4148 = vpop.f32.mrb[0].mxu0
        %v4149 = vadd.f32 0.0, %v4148
        %v4150 = vpop.f32.mrb[0].mxu0
        %v4151 = vadd.f32 0.0, %v4150
        %4152 = vdwg.mxu0
        %v4153 = vpack.c.bf16 %v4149, %v4145
        %v4154 = vpack.c.bf16 %v4151, %v4147
        %4155 = vst [vmem:[#allocation2 + $0x10] sm:$0xff] %v4153
        %4156 = vst [vmem:[#allocation2 + $0x18] sm:$0xff] %v4154
        %s4157 = scalar_lea.vmem [#allocation12], 512
        %v4158 = vld [vmem:[%s4157] sm:$0xff]
        %v4159 = vld [vmem:[%s4157 + $0x8] sm:$0xff]
        %v4160 = vld [vmem:[%s4157 + $0x10] sm:$0xff]
        %v4161 = vld [vmem:[%s4157 + $0x18] sm:$0xff]
        %v4162 = vld [vmem:[%s4157 + $0x20] sm:$0xff]
        %v4163 = vld [vmem:[%s4157 + $0x28] sm:$0xff]
        %v4164 = vld [vmem:[%s4157 + $0x30] sm:$0xff]
        %v4165 = vld [vmem:[%s4157 + $0x38] sm:$0xff]
        %v4166 = vld [vmem:[%s4157 + $0x40] sm:$0xff]
        %v4167 = vld [vmem:[%s4157 + $0x48] sm:$0xff]
        %v4168 = vld [vmem:[%s4157 + $0x50] sm:$0xff]
        %v4169 = vld [vmem:[%s4157 + $0x58] sm:$0xff]
        %v4170 = vld [vmem:[%s4157 + $0x60] sm:$0xff]
        %v4171 = vld [vmem:[%s4157 + $0x68] sm:$0xff]
        %v4172 = vld [vmem:[%s4157 + $0x70] sm:$0xff]
        %v4173 = vld [vmem:[%s4157 + $0x78] sm:$0xff]
        %v4174 = vld [vmem:[%s4157 + $0x80] sm:$0xff]
        %v4175 = vld [vmem:[%s4157 + $0x88] sm:$0xff]
        %v4176 = vld [vmem:[%s4157 + $0x90] sm:$0xff]
        %v4177 = vld [vmem:[%s4157 + $0x98] sm:$0xff]
        %v4178 = vld [vmem:[%s4157 + $0xa0] sm:$0xff]
        %v4179 = vld [vmem:[%s4157 + $0xa8] sm:$0xff]
        %v4180 = vld [vmem:[%s4157 + $0xb0] sm:$0xff]
        %v4181 = vld [vmem:[%s4157 + $0xb8] sm:$0xff]
        %v4182 = vld [vmem:[%s4157 + $0xc0] sm:$0xff]
        %v4183 = vld [vmem:[%s4157 + $0xc8] sm:$0xff]
        %v4184 = vld [vmem:[%s4157 + $0xd0] sm:$0xff]
        %v4185 = vld [vmem:[%s4157 + $0xd8] sm:$0xff]
        %v4186 = vld [vmem:[%s4157 + $0xe0] sm:$0xff]
        %v4187 = vld [vmem:[%s4157 + $0xe8] sm:$0xff]
        %v4188 = vld [vmem:[%s4157 + $0xf0] sm:$0xff]
        %v4189 = vld [vmem:[%s4157 + $0xf8] sm:$0xff]
        %v4222 = vunpack.c.l.b16 %v4158
        %v4223 = vunpack.c.h.b16 %v4158
        %v4224 = vunpack.c.l.b16 %v4159
        %v4225 = vunpack.c.h.b16 %v4159
        %v4226 = vunpack.c.l.b16 %v4160
        %v4227 = vunpack.c.h.b16 %v4160
        %v4228 = vunpack.c.l.b16 %v4161
        %v4229 = vunpack.c.h.b16 %v4161
        %v4230 = vunpack.c.l.b16 %v4162
        %v4231 = vunpack.c.h.b16 %v4162
        %v4232 = vunpack.c.l.b16 %v4163
        %v4233 = vunpack.c.h.b16 %v4163
        %v4234 = vunpack.c.l.b16 %v4164
        %v4235 = vunpack.c.h.b16 %v4164
        %v4236 = vunpack.c.l.b16 %v4165
        %v4237 = vunpack.c.h.b16 %v4165
        %v4238 = vunpack.c.l.b16 %v4166
        %v4239 = vunpack.c.h.b16 %v4166
        %v4240 = vunpack.c.l.b16 %v4167
        %v4241 = vunpack.c.h.b16 %v4167
        %v4242 = vunpack.c.l.b16 %v4168
        %v4243 = vunpack.c.h.b16 %v4168
        %v4244 = vunpack.c.l.b16 %v4169
        %v4245 = vunpack.c.h.b16 %v4169
        %v4246 = vunpack.c.l.b16 %v4170
        %v4247 = vunpack.c.h.b16 %v4170
        %v4248 = vunpack.c.l.b16 %v4171
        %v4249 = vunpack.c.h.b16 %v4171
        %v4250 = vunpack.c.l.b16 %v4172
        %v4251 = vunpack.c.h.b16 %v4172
        %v4252 = vunpack.c.l.b16 %v4173
        %v4253 = vunpack.c.h.b16 %v4173
        %v4254 = vunpack.c.l.b16 %v4174
        %v4255 = vunpack.c.h.b16 %v4174
        %v4256 = vunpack.c.l.b16 %v4175
        %v4257 = vunpack.c.h.b16 %v4175
        %v4258 = vunpack.c.l.b16 %v4176
        %v4259 = vunpack.c.h.b16 %v4176
        %v4260 = vunpack.c.l.b16 %v4177
        %v4261 = vunpack.c.h.b16 %v4177
        %v4262 = vunpack.c.l.b16 %v4178
        %v4263 = vunpack.c.h.b16 %v4178
        %v4264 = vunpack.c.l.b16 %v4179
        %v4265 = vunpack.c.h.b16 %v4179
        %v4266 = vunpack.c.l.b16 %v4180
        %v4267 = vunpack.c.h.b16 %v4180
        %v4268 = vunpack.c.l.b16 %v4181
        %v4269 = vunpack.c.h.b16 %v4181
        %v4270 = vunpack.c.l.b16 %v4182
        %v4271 = vunpack.c.h.b16 %v4182
        %v4272 = vunpack.c.l.b16 %v4183
        %v4273 = vunpack.c.h.b16 %v4183
        %v4274 = vunpack.c.l.b16 %v4184
        %v4275 = vunpack.c.h.b16 %v4184
        %v4276 = vunpack.c.l.b16 %v4185
        %v4277 = vunpack.c.h.b16 %v4185
        %v4278 = vunpack.c.l.b16 %v4186
        %v4279 = vunpack.c.h.b16 %v4186
        %v4280 = vunpack.c.l.b16 %v4187
        %v4281 = vunpack.c.h.b16 %v4187
        %v4282 = vunpack.c.l.b16 %v4188
        %v4283 = vunpack.c.h.b16 %v4188
        %v4284 = vunpack.c.l.b16 %v4189
        %v4285 = vunpack.c.h.b16 %v4189
        %v4286 = vpack.c.b16 %v4224, %v4222
        %v4287 = vpack.c.b16 %v4225, %v4223
        %v4288 = vpack.c.b16 %v4228, %v4226
        %v4289 = vpack.c.b16 %v4229, %v4227
        %v4290 = vpack.c.b16 %v4232, %v4230
        %v4291 = vpack.c.b16 %v4233, %v4231
        %v4292 = vpack.c.b16 %v4236, %v4234
        %v4293 = vpack.c.b16 %v4237, %v4235
        %v4294 = vpack.c.b16 %v4240, %v4238
        %v4295 = vpack.c.b16 %v4241, %v4239
        %v4296 = vpack.c.b16 %v4244, %v4242
        %v4297 = vpack.c.b16 %v4245, %v4243
        %v4298 = vpack.c.b16 %v4248, %v4246
        %v4299 = vpack.c.b16 %v4249, %v4247
        %v4300 = vpack.c.b16 %v4252, %v4250
        %v4301 = vpack.c.b16 %v4253, %v4251
        %v4302 = vpack.c.b16 %v4256, %v4254
        %v4303 = vpack.c.b16 %v4257, %v4255
        %v4304 = vpack.c.b16 %v4260, %v4258
        %v4305 = vpack.c.b16 %v4261, %v4259
        %v4306 = vpack.c.b16 %v4264, %v4262
        %v4307 = vpack.c.b16 %v4265, %v4263
        %v4308 = vpack.c.b16 %v4268, %v4266
        %v4309 = vpack.c.b16 %v4269, %v4267
        %v4310 = vpack.c.b16 %v4272, %v4270
        %v4311 = vpack.c.b16 %v4273, %v4271
        %v4312 = vpack.c.b16 %v4276, %v4274
        %v4313 = vpack.c.b16 %v4277, %v4275
        %v4314 = vpack.c.b16 %v4280, %v4278
        %v4315 = vpack.c.b16 %v4281, %v4279
        %v4316 = vpack.c.b16 %v4284, %v4282
        %v4317 = vpack.c.b16 %v4285, %v4283
        %4350 = vmatprep.subr.bf16.mxu0 %v4287
        %4351 = vmatpush1.bf16.msra.mxu0 %v4286
        %4352 = vmatprep.subr.bf16.mxu0 %v4289
        %4353 = vmatpush1.bf16.msra.mxu0 %v4288
        %4354 = vmatprep.subr.bf16.mxu0 %v4291
        %4355 = vmatpush1.bf16.msra.mxu0 %v4290
        %4356 = vmatprep.subr.bf16.mxu0 %v4293
        %4357 = vmatpush1.bf16.msra.mxu0 %v4292
        %4358 = vmatprep.subr.bf16.mxu0 %v4295
        %4359 = vmatpush1.bf16.msra.mxu0 %v4294
        %4360 = vmatprep.subr.bf16.mxu0 %v4297
        %4361 = vmatpush1.bf16.msra.mxu0 %v4296
        %4362 = vmatprep.subr.bf16.mxu0 %v4299
        %4363 = vmatpush1.bf16.msra.mxu0 %v4298
        %4364 = vmatprep.subr.bf16.mxu0 %v4301
        %4365 = vmatpush1.bf16.msra.mxu0 %v4300
        %4366 = vmatprep.subr.bf16.mxu0 %v4303
        %4367 = vmatpush1.bf16.msra.mxu0 %v4302
        %4368 = vmatprep.subr.bf16.mxu0 %v4305
        %4369 = vmatpush1.bf16.msra.mxu0 %v4304
        %4370 = vmatprep.subr.bf16.mxu0 %v4307
        %4371 = vmatpush1.bf16.msra.mxu0 %v4306
        %4372 = vmatprep.subr.bf16.mxu0 %v4309
        %4373 = vmatpush1.bf16.msra.mxu0 %v4308
        %4374 = vmatprep.subr.bf16.mxu0 %v4311
        %4375 = vmatpush1.bf16.msra.mxu0 %v4310
        %4376 = vmatprep.subr.bf16.mxu0 %v4313
        %4377 = vmatpush1.bf16.msra.mxu0 %v4312
        %4378 = vmatprep.subr.bf16.mxu0 %v4315
        %4379 = vmatpush1.bf16.msra.mxu0 %v4314
        %4380 = vmatprep.subr.bf16.mxu0 %v4317
        %4381 = vmatpush1.bf16.msra.mxu0 %v4316
        %4382 = vmatprep.mubr.bf16.mxu0 %v3677
        %4383 = vmatmul.mubr.bf16.gmra.mrb[0].mxu0 %v3676
        %v4384 = vpop.f32.mrb[0].mxu0
        %v4385 = vadd.f32 0.0, %v4384
        %v4386 = vpop.f32.mrb[0].mxu0
        %v4387 = vadd.f32 0.0, %v4386
        %v4388 = vpop.f32.mrb[0].mxu0
        %v4389 = vadd.f32 0.0, %v4388
        %v4390 = vpop.f32.mrb[0].mxu0
        %v4391 = vadd.f32 0.0, %v4390
        %4392 = vdwg.mxu0
        %v4393 = vpack.c.bf16 %v4389, %v4385
        %v4394 = vpack.c.bf16 %v4391, %v4387
        %4395 = vst [vmem:[#allocation2 + $0x20] sm:$0xff] %v4393
        %4396 = vst [vmem:[#allocation2 + $0x28] sm:$0xff] %v4394
        %s4397 = scalar_lea.vmem [#allocation12], 768
        %v4398 = vld [vmem:[%s4397] sm:$0xff]
        %v4399 = vld [vmem:[%s4397 + $0x8] sm:$0xff]
        %v4400 = vld [vmem:[%s4397 + $0x10] sm:$0xff]
        %v4401 = vld [vmem:[%s4397 + $0x18] sm:$0xff]
        %v4402 = vld [vmem:[%s4397 + $0x20] sm:$0xff]
        %v4403 = vld [vmem:[%s4397 + $0x28] sm:$0xff]
        %v4404 = vld [vmem:[%s4397 + $0x30] sm:$0xff]
        %v4405 = vld [vmem:[%s4397 + $0x38] sm:$0xff]
        %v4406 = vld [vmem:[%s4397 + $0x40] sm:$0xff]
        %v4407 = vld [vmem:[%s4397 + $0x48] sm:$0xff]
        %v4408 = vld [vmem:[%s4397 + $0x50] sm:$0xff]
        %v4409 = vld [vmem:[%s4397 + $0x58] sm:$0xff]
        %v4410 = vld [vmem:[%s4397 + $0x60] sm:$0xff]
        %v4411 = vld [vmem:[%s4397 + $0x68] sm:$0xff]
        %v4412 = vld [vmem:[%s4397 + $0x70] sm:$0xff]
        %v4413 = vld [vmem:[%s4397 + $0x78] sm:$0xff]
        %v4414 = vld [vmem:[%s4397 + $0x80] sm:$0xff]
        %v4415 = vld [vmem:[%s4397 + $0x88] sm:$0xff]
        %v4416 = vld [vmem:[%s4397 + $0x90] sm:$0xff]
        %v4417 = vld [vmem:[%s4397 + $0x98] sm:$0xff]
        %v4418 = vld [vmem:[%s4397 + $0xa0] sm:$0xff]
        %v4419 = vld [vmem:[%s4397 + $0xa8] sm:$0xff]
        %v4420 = vld [vmem:[%s4397 + $0xb0] sm:$0xff]
        %v4421 = vld [vmem:[%s4397 + $0xb8] sm:$0xff]
        %v4422 = vld [vmem:[%s4397 + $0xc0] sm:$0xff]
        %v4423 = vld [vmem:[%s4397 + $0xc8] sm:$0xff]
        %v4424 = vld [vmem:[%s4397 + $0xd0] sm:$0xff]
        %v4425 = vld [vmem:[%s4397 + $0xd8] sm:$0xff]
        %v4426 = vld [vmem:[%s4397 + $0xe0] sm:$0xff]
        %v4427 = vld [vmem:[%s4397 + $0xe8] sm:$0xff]
        %v4428 = vld [vmem:[%s4397 + $0xf0] sm:$0xff]
        %v4429 = vld [vmem:[%s4397 + $0xf8] sm:$0xff]
        %v4462 = vunpack.c.l.b16 %v4398
        %v4463 = vunpack.c.h.b16 %v4398
        %v4464 = vunpack.c.l.b16 %v4399
        %v4465 = vunpack.c.h.b16 %v4399
        %v4466 = vunpack.c.l.b16 %v4400
        %v4467 = vunpack.c.h.b16 %v4400
        %v4468 = vunpack.c.l.b16 %v4401
        %v4469 = vunpack.c.h.b16 %v4401
        %v4470 = vunpack.c.l.b16 %v4402
        %v4471 = vunpack.c.h.b16 %v4402
        %v4472 = vunpack.c.l.b16 %v4403
        %v4473 = vunpack.c.h.b16 %v4403
        %v4474 = vunpack.c.l.b16 %v4404
        %v4475 = vunpack.c.h.b16 %v4404
        %v4476 = vunpack.c.l.b16 %v4405
        %v4477 = vunpack.c.h.b16 %v4405
        %v4478 = vunpack.c.l.b16 %v4406
        %v4479 = vunpack.c.h.b16 %v4406
        %v4480 = vunpack.c.l.b16 %v4407
        %v4481 = vunpack.c.h.b16 %v4407
        %v4482 = vunpack.c.l.b16 %v4408
        %v4483 = vunpack.c.h.b16 %v4408
        %v4484 = vunpack.c.l.b16 %v4409
        %v4485 = vunpack.c.h.b16 %v4409
        %v4486 = vunpack.c.l.b16 %v4410
        %v4487 = vunpack.c.h.b16 %v4410
        %v4488 = vunpack.c.l.b16 %v4411
        %v4489 = vunpack.c.h.b16 %v4411
        %v4490 = vunpack.c.l.b16 %v4412
        %v4491 = vunpack.c.h.b16 %v4412
        %v4492 = vunpack.c.l.b16 %v4413
        %v4493 = vunpack.c.h.b16 %v4413
        %v4494 = vunpack.c.l.b16 %v4414
        %v4495 = vunpack.c.h.b16 %v4414
        %v4496 = vunpack.c.l.b16 %v4415
        %v4497 = vunpack.c.h.b16 %v4415
        %v4498 = vunpack.c.l.b16 %v4416
        %v4499 = vunpack.c.h.b16 %v4416
        %v4500 = vunpack.c.l.b16 %v4417
        %v4501 = vunpack.c.h.b16 %v4417
        %v4502 = vunpack.c.l.b16 %v4418
        %v4503 = vunpack.c.h.b16 %v4418
        %v4504 = vunpack.c.l.b16 %v4419
        %v4505 = vunpack.c.h.b16 %v4419
        %v4506 = vunpack.c.l.b16 %v4420
        %v4507 = vunpack.c.h.b16 %v4420
        %v4508 = vunpack.c.l.b16 %v4421
        %v4509 = vunpack.c.h.b16 %v4421
        %v4510 = vunpack.c.l.b16 %v4422
        %v4511 = vunpack.c.h.b16 %v4422
        %v4512 = vunpack.c.l.b16 %v4423
        %v4513 = vunpack.c.h.b16 %v4423
        %v4514 = vunpack.c.l.b16 %v4424
        %v4515 = vunpack.c.h.b16 %v4424
        %v4516 = vunpack.c.l.b16 %v4425
        %v4517 = vunpack.c.h.b16 %v4425
        %v4518 = vunpack.c.l.b16 %v4426
        %v4519 = vunpack.c.h.b16 %v4426
        %v4520 = vunpack.c.l.b16 %v4427
        %v4521 = vunpack.c.h.b16 %v4427
        %v4522 = vunpack.c.l.b16 %v4428
        %v4523 = vunpack.c.h.b16 %v4428
        %v4524 = vunpack.c.l.b16 %v4429
        %v4525 = vunpack.c.h.b16 %v4429
        %v4526 = vpack.c.b16 %v4464, %v4462
        %v4527 = vpack.c.b16 %v4465, %v4463
        %v4528 = vpack.c.b16 %v4468, %v4466
        %v4529 = vpack.c.b16 %v4469, %v4467
        %v4530 = vpack.c.b16 %v4472, %v4470
        %v4531 = vpack.c.b16 %v4473, %v4471
        %v4532 = vpack.c.b16 %v4476, %v4474
        %v4533 = vpack.c.b16 %v4477, %v4475
        %v4534 = vpack.c.b16 %v4480, %v4478
        %v4535 = vpack.c.b16 %v4481, %v4479
        %v4536 = vpack.c.b16 %v4484, %v4482
        %v4537 = vpack.c.b16 %v4485, %v4483
        %v4538 = vpack.c.b16 %v4488, %v4486
        %v4539 = vpack.c.b16 %v4489, %v4487
        %v4540 = vpack.c.b16 %v4492, %v4490
        %v4541 = vpack.c.b16 %v4493, %v4491
        %v4542 = vpack.c.b16 %v4496, %v4494
        %v4543 = vpack.c.b16 %v4497, %v4495
        %v4544 = vpack.c.b16 %v4500, %v4498
        %v4545 = vpack.c.b16 %v4501, %v4499
        %v4546 = vpack.c.b16 %v4504, %v4502
        %v4547 = vpack.c.b16 %v4505, %v4503
        %v4548 = vpack.c.b16 %v4508, %v4506
        %v4549 = vpack.c.b16 %v4509, %v4507
        %v4550 = vpack.c.b16 %v4512, %v4510
        %v4551 = vpack.c.b16 %v4513, %v4511
        %v4552 = vpack.c.b16 %v4516, %v4514
        %v4553 = vpack.c.b16 %v4517, %v4515
        %v4554 = vpack.c.b16 %v4520, %v4518
        %v4555 = vpack.c.b16 %v4521, %v4519
        %v4556 = vpack.c.b16 %v4524, %v4522
        %v4557 = vpack.c.b16 %v4525, %v4523
        %4590 = vmatprep.subr.bf16.mxu0 %v4527
        %4591 = vmatpush1.bf16.msra.mxu0 %v4526
        %4592 = vmatprep.subr.bf16.mxu0 %v4529
        %4593 = vmatpush1.bf16.msra.mxu0 %v4528
        %4594 = vmatprep.subr.bf16.mxu0 %v4531
        %4595 = vmatpush1.bf16.msra.mxu0 %v4530
        %4596 = vmatprep.subr.bf16.mxu0 %v4533
        %4597 = vmatpush1.bf16.msra.mxu0 %v4532
        %4598 = vmatprep.subr.bf16.mxu0 %v4535
        %4599 = vmatpush1.bf16.msra.mxu0 %v4534
        %4600 = vmatprep.subr.bf16.mxu0 %v4537
        %4601 = vmatpush1.bf16.msra.mxu0 %v4536
        %4602 = vmatprep.subr.bf16.mxu0 %v4539
        %4603 = vmatpush1.bf16.msra.mxu0 %v4538
        %4604 = vmatprep.subr.bf16.mxu0 %v4541
        %4605 = vmatpush1.bf16.msra.mxu0 %v4540
        %4606 = vmatprep.subr.bf16.mxu0 %v4543
        %4607 = vmatpush1.bf16.msra.mxu0 %v4542
        %4608 = vmatprep.subr.bf16.mxu0 %v4545
        %4609 = vmatpush1.bf16.msra.mxu0 %v4544
        %4610 = vmatprep.subr.bf16.mxu0 %v4547
        %4611 = vmatpush1.bf16.msra.mxu0 %v4546
        %4612 = vmatprep.subr.bf16.mxu0 %v4549
        %4613 = vmatpush1.bf16.msra.mxu0 %v4548
        %4614 = vmatprep.subr.bf16.mxu0 %v4551
        %4615 = vmatpush1.bf16.msra.mxu0 %v4550
        %4616 = vmatprep.subr.bf16.mxu0 %v4553
        %4617 = vmatpush1.bf16.msra.mxu0 %v4552
        %4618 = vmatprep.subr.bf16.mxu0 %v4555
        %4619 = vmatpush1.bf16.msra.mxu0 %v4554
        %4620 = vmatprep.subr.bf16.mxu0 %v4557
        %4621 = vmatpush1.bf16.msra.mxu0 %v4556
        %4622 = vmatprep.mubr.bf16.mxu0 %v3677
        %4623 = vmatmul.mubr.bf16.gmra.mrb[0].mxu0 %v3676
        %v4624 = vpop.f32.mrb[0].mxu0
        %v4625 = vadd.f32 0.0, %v4624
        %v4626 = vpop.f32.mrb[0].mxu0
        %v4627 = vadd.f32 0.0, %v4626
        %v4628 = vpop.f32.mrb[0].mxu0
        %v4629 = vadd.f32 0.0, %v4628
        %v4630 = vpop.f32.mrb[0].mxu0
        %v4631 = vadd.f32 0.0, %v4630
        %4632 = vdwg.mxu0
        %v4633 = vpack.c.bf16 %v4629, %v4625
        %v4634 = vpack.c.bf16 %v4631, %v4627
        %4635 = vst [vmem:[#allocation2 + $0x30] sm:$0xff] %v4633
        %4636 = vst [vmem:[#allocation2 + $0x38] sm:$0xff] %v4634
        %s4637 = scalar_lea.vmem [#allocation12], 1024
        %v4638 = vld [vmem:[%s4637] sm:$0xff]
        %v4639 = vld [vmem:[%s4637 + $0x8] sm:$0xff]
        %v4640 = vld [vmem:[%s4637 + $0x10] sm:$0xff]
        %v4641 = vld [vmem:[%s4637 + $0x18] sm:$0xff]
        %v4642 = vld [vmem:[%s4637 + $0x20] sm:$0xff]
        %v4643 = vld [vmem:[%s4637 + $0x28] sm:$0xff]
        %v4644 = vld [vmem:[%s4637 + $0x30] sm:$0xff]
        %v4645 = vld [vmem:[%s4637 + $0x38] sm:$0xff]
        %v4646 = vld [vmem:[%s4637 + $0x40] sm:$0xff]
        %v4647 = vld [vmem:[%s4637 + $0x48] sm:$0xff]
        %v4648 = vld [vmem:[%s4637 + $0x50] sm:$0xff]
        %v4649 = vld [vmem:[%s4637 + $0x58] sm:$0xff]
        %v4650 = vld [vmem:[%s4637 + $0x60] sm:$0xff]
        %v4651 = vld [vmem:[%s4637 + $0x68] sm:$0xff]
        %v4652 = vld [vmem:[%s4637 + $0x70] sm:$0xff]
        %v4653 = vld [vmem:[%s4637 + $0x78] sm:$0xff]
        %v4654 = vld [vmem:[%s4637 + $0x80] sm:$0xff]
        %v4655 = vld [vmem:[%s4637 + $0x88] sm:$0xff]
        %v4656 = vld [vmem:[%s4637 + $0x90] sm:$0xff]
        %v4657 = vld [vmem:[%s4637 + $0x98] sm:$0xff]
        %v4658 = vld [vmem:[%s4637 + $0xa0] sm:$0xff]
        %v4659 = vld [vmem:[%s4637 + $0xa8] sm:$0xff]
        %v4660 = vld [vmem:[%s4637 + $0xb0] sm:$0xff]
        %v4661 = vld [vmem:[%s4637 + $0xb8] sm:$0xff]
        %v4662 = vld [vmem:[%s4637 + $0xc0] sm:$0xff]
        %v4663 = vld [vmem:[%s4637 + $0xc8] sm:$0xff]
        %v4664 = vld [vmem:[%s4637 + $0xd0] sm:$0xff]
        %v4665 = vld [vmem:[%s4637 + $0xd8] sm:$0xff]
        %v4666 = vld [vmem:[%s4637 + $0xe0] sm:$0xff]
        %v4667 = vld [vmem:[%s4637 + $0xe8] sm:$0xff]
        %v4668 = vld [vmem:[%s4637 + $0xf0] sm:$0xff]
        %v4669 = vld [vmem:[%s4637 + $0xf8] sm:$0xff]
        %v4702 = vunpack.c.l.b16 %v4638
        %v4703 = vunpack.c.h.b16 %v4638
        %v4704 = vunpack.c.l.b16 %v4639
        %v4705 = vunpack.c.h.b16 %v4639
        %v4706 = vunpack.c.l.b16 %v4640
        %v4707 = vunpack.c.h.b16 %v4640
        %v4708 = vunpack.c.l.b16 %v4641
        %v4709 = vunpack.c.h.b16 %v4641
        %v4710 = vunpack.c.l.b16 %v4642
        %v4711 = vunpack.c.h.b16 %v4642
        %v4712 = vunpack.c.l.b16 %v4643
        %v4713 = vunpack.c.h.b16 %v4643
        %v4714 = vunpack.c.l.b16 %v4644
        %v4715 = vunpack.c.h.b16 %v4644
        %v4716 = vunpack.c.l.b16 %v4645
        %v4717 = vunpack.c.h.b16 %v4645
        %v4718 = vunpack.c.l.b16 %v4646
        %v4719 = vunpack.c.h.b16 %v4646
        %v4720 = vunpack.c.l.b16 %v4647
        %v4721 = vunpack.c.h.b16 %v4647
        %v4722 = vunpack.c.l.b16 %v4648
        %v4723 = vunpack.c.h.b16 %v4648
        %v4724 = vunpack.c.l.b16 %v4649
        %v4725 = vunpack.c.h.b16 %v4649
        %v4726 = vunpack.c.l.b16 %v4650
        %v4727 = vunpack.c.h.b16 %v4650
        %v4728 = vunpack.c.l.b16 %v4651
        %v4729 = vunpack.c.h.b16 %v4651
        %v4730 = vunpack.c.l.b16 %v4652
        %v4731 = vunpack.c.h.b16 %v4652
        %v4732 = vunpack.c.l.b16 %v4653
        %v4733 = vunpack.c.h.b16 %v4653
        %v4734 = vunpack.c.l.b16 %v4654
        %v4735 = vunpack.c.h.b16 %v4654
        %v4736 = vunpack.c.l.b16 %v4655
        %v4737 = vunpack.c.h.b16 %v4655
        %v4738 = vunpack.c.l.b16 %v4656
        %v4739 = vunpack.c.h.b16 %v4656
        %v4740 = vunpack.c.l.b16 %v4657
        %v4741 = vunpack.c.h.b16 %v4657
        %v4742 = vunpack.c.l.b16 %v4658
        %v4743 = vunpack.c.h.b16 %v4658
        %v4744 = vunpack.c.l.b16 %v4659
        %v4745 = vunpack.c.h.b16 %v4659
        %v4746 = vunpack.c.l.b16 %v4660
        %v4747 = vunpack.c.h.b16 %v4660
        %v4748 = vunpack.c.l.b16 %v4661
        %v4749 = vunpack.c.h.b16 %v4661
        %v4750 = vunpack.c.l.b16 %v4662
        %v4751 = vunpack.c.h.b16 %v4662
        %v4752 = vunpack.c.l.b16 %v4663
        %v4753 = vunpack.c.h.b16 %v4663
        %v4754 = vunpack.c.l.b16 %v4664
        %v4755 = vunpack.c.h.b16 %v4664
        %v4756 = vunpack.c.l.b16 %v4665
        %v4757 = vunpack.c.h.b16 %v4665
        %v4758 = vunpack.c.l.b16 %v4666
        %v4759 = vunpack.c.h.b16 %v4666
        %v4760 = vunpack.c.l.b16 %v4667
        %v4761 = vunpack.c.h.b16 %v4667
        %v4762 = vunpack.c.l.b16 %v4668
        %v4763 = vunpack.c.h.b16 %v4668
        %v4764 = vunpack.c.l.b16 %v4669
        %v4765 = vunpack.c.h.b16 %v4669
        %v4766 = vpack.c.b16 %v4704, %v4702
        %v4767 = vpack.c.b16 %v4705, %v4703
        %v4768 = vpack.c.b16 %v4708, %v4706
        %v4769 = vpack.c.b16 %v4709, %v4707
        %v4770 = vpack.c.b16 %v4712, %v4710
        %v4771 = vpack.c.b16 %v4713, %v4711
        %v4772 = vpack.c.b16 %v4716, %v4714
        %v4773 = vpack.c.b16 %v4717, %v4715
        %v4774 = vpack.c.b16 %v4720, %v4718
        %v4775 = vpack.c.b16 %v4721, %v4719
        %v4776 = vpack.c.b16 %v4724, %v4722
        %v4777 = vpack.c.b16 %v4725, %v4723
        %v4778 = vpack.c.b16 %v4728, %v4726
        %v4779 = vpack.c.b16 %v4729, %v4727
        %v4780 = vpack.c.b16 %v4732, %v4730
        %v4781 = vpack.c.b16 %v4733, %v4731
        %v4782 = vpack.c.b16 %v4736, %v4734
        %v4783 = vpack.c.b16 %v4737, %v4735
        %v4784 = vpack.c.b16 %v4740, %v4738
        %v4785 = vpack.c.b16 %v4741, %v4739
        %v4786 = vpack.c.b16 %v4744, %v4742
        %v4787 = vpack.c.b16 %v4745, %v4743
        %v4788 = vpack.c.b16 %v4748, %v4746
        %v4789 = vpack.c.b16 %v4749, %v4747
        %v4790 = vpack.c.b16 %v4752, %v4750
        %v4791 = vpack.c.b16 %v4753, %v4751
        %v4792 = vpack.c.b16 %v4756, %v4754
        %v4793 = vpack.c.b16 %v4757, %v4755
        %v4794 = vpack.c.b16 %v4760, %v4758
        %v4795 = vpack.c.b16 %v4761, %v4759
        %v4796 = vpack.c.b16 %v4764, %v4762
        %v4797 = vpack.c.b16 %v4765, %v4763
        %4830 = vmatprep.subr.bf16.mxu0 %v4767
        %4831 = vmatpush1.bf16.msra.mxu0 %v4766
        %4832 = vmatprep.subr.bf16.mxu0 %v4769
        %4833 = vmatpush1.bf16.msra.mxu0 %v4768
        %4834 = vmatprep.subr.bf16.mxu0 %v4771
        %4835 = vmatpush1.bf16.msra.mxu0 %v4770
        %4836 = vmatprep.subr.bf16.mxu0 %v4773
        %4837 = vmatpush1.bf16.msra.mxu0 %v4772
        %4838 = vmatprep.subr.bf16.mxu0 %v4775
        %4839 = vmatpush1.bf16.msra.mxu0 %v4774
        %4840 = vmatprep.subr.bf16.mxu0 %v4777
        %4841 = vmatpush1.bf16.msra.mxu0 %v4776
        %4842 = vmatprep.subr.bf16.mxu0 %v4779
        %4843 = vmatpush1.bf16.msra.mxu0 %v4778
        %4844 = vmatprep.subr.bf16.mxu0 %v4781
        %4845 = vmatpush1.bf16.msra.mxu0 %v4780
        %4846 = vmatprep.subr.bf16.mxu0 %v4783
        %4847 = vmatpush1.bf16.msra.mxu0 %v4782
        %4848 = vmatprep.subr.bf16.mxu0 %v4785
        %4849 = vmatpush1.bf16.msra.mxu0 %v4784
        %4850 = vmatprep.subr.bf16.mxu0 %v4787
        %4851 = vmatpush1.bf16.msra.mxu0 %v4786
        %4852 = vmatprep.subr.bf16.mxu0 %v4789
        %4853 = vmatpush1.bf16.msra.mxu0 %v4788
        %4854 = vmatprep.subr.bf16.mxu0 %v4791
        %4855 = vmatpush1.bf16.msra.mxu0 %v4790
        %4856 = vmatprep.subr.bf16.mxu0 %v4793
        %4857 = vmatpush1.bf16.msra.mxu0 %v4792
        %4858 = vmatprep.subr.bf16.mxu0 %v4795
        %4859 = vmatpush1.bf16.msra.mxu0 %v4794
        %4860 = vmatprep.subr.bf16.mxu0 %v4797
        %4861 = vmatpush1.bf16.msra.mxu0 %v4796
        %4862 = vmatprep.mubr.bf16.mxu0 %v3677
        %4863 = vmatmul.mubr.bf16.gmra.mrb[0].mxu0 %v3676
        %v4864 = vpop.f32.mrb[0].mxu0
        %v4865 = vadd.f32 0.0, %v4864
        %v4866 = vpop.f32.mrb[0].mxu0
        %v4867 = vadd.f32 0.0, %v4866
        %v4868 = vpop.f32.mrb[0].mxu0
        %v4869 = vadd.f32 0.0, %v4868
        %v4870 = vpop.f32.mrb[0].mxu0
        %v4871 = vadd.f32 0.0, %v4870
        %4872 = vdwg.mxu0
        %v4873 = vpack.c.bf16 %v4869, %v4865
        %v4874 = vpack.c.bf16 %v4871, %v4867
        %4875 = vst [vmem:[#allocation2 + $0x40] sm:$0xff] %v4873
        %4876 = vst [vmem:[#allocation2 + $0x48] sm:$0xff] %v4874
        %s4877 = scalar_lea.vmem [#allocation12], 1280
        %v4878 = vld [vmem:[%s4877] sm:$0xff]
        %v4879 = vld [vmem:[%s4877 + $0x8] sm:$0xff]
        %v4880 = vld [vmem:[%s4877 + $0x10] sm:$0xff]
        %v4881 = vld [vmem:[%s4877 + $0x18] sm:$0xff]
        %v4882 = vld [vmem:[%s4877 + $0x20] sm:$0xff]
        %v4883 = vld [vmem:[%s4877 + $0x28] sm:$0xff]
        %v4884 = vld [vmem:[%s4877 + $0x30] sm:$0xff]
        %v4885 = vld [vmem:[%s4877 + $0x38] sm:$0xff]
        %v4886 = vld [vmem:[%s4877 + $0x40] sm:$0xff]
        %v4887 = vld [vmem:[%s4877 + $0x48] sm:$0xff]
        %v4888 = vld [vmem:[%s4877 + $0x50] sm:$0xff]
        %v4889 = vld [vmem:[%s4877 + $0x58] sm:$0xff]
        %v4890 = vld [vmem:[%s4877 + $0x60] sm:$0xff]
        %v4891 = vld [vmem:[%s4877 + $0x68] sm:$0xff]
        %v4892 = vld [vmem:[%s4877 + $0x70] sm:$0xff]
        %v4893 = vld [vmem:[%s4877 + $0x78] sm:$0xff]
        %v4894 = vld [vmem:[%s4877 + $0x80] sm:$0xff]
        %v4895 = vld [vmem:[%s4877 + $0x88] sm:$0xff]
        %v4896 = vld [vmem:[%s4877 + $0x90] sm:$0xff]
        %v4897 = vld [vmem:[%s4877 + $0x98] sm:$0xff]
        %v4898 = vld [vmem:[%s4877 + $0xa0] sm:$0xff]
        %v4899 = vld [vmem:[%s4877 + $0xa8] sm:$0xff]
        %v4900 = vld [vmem:[%s4877 + $0xb0] sm:$0xff]
        %v4901 = vld [vmem:[%s4877 + $0xb8] sm:$0xff]
        %v4902 = vld [vmem:[%s4877 + $0xc0] sm:$0xff]
        %v4903 = vld [vmem:[%s4877 + $0xc8] sm:$0xff]
        %v4904 = vld [vmem:[%s4877 + $0xd0] sm:$0xff]
        %v4905 = vld [vmem:[%s4877 + $0xd8] sm:$0xff]
        %v4906 = vld [vmem:[%s4877 + $0xe0] sm:$0xff]
        %v4907 = vld [vmem:[%s4877 + $0xe8] sm:$0xff]
        %v4908 = vld [vmem:[%s4877 + $0xf0] sm:$0xff]
        %v4909 = vld [vmem:[%s4877 + $0xf8] sm:$0xff]
        %v4942 = vunpack.c.l.b16 %v4878
        %v4943 = vunpack.c.h.b16 %v4878
        %v4944 = vunpack.c.l.b16 %v4879
        %v4945 = vunpack.c.h.b16 %v4879
        %v4946 = vunpack.c.l.b16 %v4880
        %v4947 = vunpack.c.h.b16 %v4880
        %v4948 = vunpack.c.l.b16 %v4881
        %v4949 = vunpack.c.h.b16 %v4881
        %v4950 = vunpack.c.l.b16 %v4882
        %v4951 = vunpack.c.h.b16 %v4882
        %v4952 = vunpack.c.l.b16 %v4883
        %v4953 = vunpack.c.h.b16 %v4883
        %v4954 = vunpack.c.l.b16 %v4884
        %v4955 = vunpack.c.h.b16 %v4884
        %v4956 = vunpack.c.l.b16 %v4885
        %v4957 = vunpack.c.h.b16 %v4885
        %v4958 = vunpack.c.l.b16 %v4886
        %v4959 = vunpack.c.h.b16 %v4886
        %v4960 = vunpack.c.l.b16 %v4887
        %v4961 = vunpack.c.h.b16 %v4887
        %v4962 = vunpack.c.l.b16 %v4888
        %v4963 = vunpack.c.h.b16 %v4888
        %v4964 = vunpack.c.l.b16 %v4889
        %v4965 = vunpack.c.h.b16 %v4889
        %v4966 = vunpack.c.l.b16 %v4890
        %v4967 = vunpack.c.h.b16 %v4890
        %v4968 = vunpack.c.l.b16 %v4891
        %v4969 = vunpack.c.h.b16 %v4891
        %v4970 = vunpack.c.l.b16 %v4892
        %v4971 = vunpack.c.h.b16 %v4892
        %v4972 = vunpack.c.l.b16 %v4893
        %v4973 = vunpack.c.h.b16 %v4893
        %v4974 = vunpack.c.l.b16 %v4894
        %v4975 = vunpack.c.h.b16 %v4894
        %v4976 = vunpack.c.l.b16 %v4895
        %v4977 = vunpack.c.h.b16 %v4895
        %v4978 = vunpack.c.l.b16 %v4896
        %v4979 = vunpack.c.h.b16 %v4896
        %v4980 = vunpack.c.l.b16 %v4897
        %v4981 = vunpack.c.h.b16 %v4897
        %v4982 = vunpack.c.l.b16 %v4898
        %v4983 = vunpack.c.h.b16 %v4898
        %v4984 = vunpack.c.l.b16 %v4899
        %v4985 = vunpack.c.h.b16 %v4899
        %v4986 = vunpack.c.l.b16 %v4900
        %v4987 = vunpack.c.h.b16 %v4900
        %v4988 = vunpack.c.l.b16 %v4901
        %v4989 = vunpack.c.h.b16 %v4901
        %v4990 = vunpack.c.l.b16 %v4902
        %v4991 = vunpack.c.h.b16 %v4902
        %v4992 = vunpack.c.l.b16 %v4903
        %v4993 = vunpack.c.h.b16 %v4903
        %v4994 = vunpack.c.l.b16 %v4904
        %v4995 = vunpack.c.h.b16 %v4904
        %v4996 = vunpack.c.l.b16 %v4905
        %v4997 = vunpack.c.h.b16 %v4905
        %v4998 = vunpack.c.l.b16 %v4906
        %v4999 = vunpack.c.h.b16 %v4906
        %v5000 = vunpack.c.l.b16 %v4907
        %v5001 = vunpack.c.h.b16 %v4907
        %v5002 = vunpack.c.l.b16 %v4908
        %v5003 = vunpack.c.h.b16 %v4908
        %v5004 = vunpack.c.l.b16 %v4909
        %v5005 = vunpack.c.h.b16 %v4909
        %v5006 = vpack.c.b16 %v4944, %v4942
        %v5007 = vpack.c.b16 %v4945, %v4943
        %v5008 = vpack.c.b16 %v4948, %v4946
        %v5009 = vpack.c.b16 %v4949, %v4947
        %v5010 = vpack.c.b16 %v4952, %v4950
        %v5011 = vpack.c.b16 %v4953, %v4951
        %v5012 = vpack.c.b16 %v4956, %v4954
        %v5013 = vpack.c.b16 %v4957, %v4955
        %v5014 = vpack.c.b16 %v4960, %v4958
        %v5015 = vpack.c.b16 %v4961, %v4959
        %v5016 = vpack.c.b16 %v4964, %v4962
        %v5017 = vpack.c.b16 %v4965, %v4963
        %v5018 = vpack.c.b16 %v4968, %v4966
        %v5019 = vpack.c.b16 %v4969, %v4967
        %v5020 = vpack.c.b16 %v4972, %v4970
        %v5021 = vpack.c.b16 %v4973, %v4971
        %v5022 = vpack.c.b16 %v4976, %v4974
        %v5023 = vpack.c.b16 %v4977, %v4975
        %v5024 = vpack.c.b16 %v4980, %v4978
        %v5025 = vpack.c.b16 %v4981, %v4979
        %v5026 = vpack.c.b16 %v4984, %v4982
        %v5027 = vpack.c.b16 %v4985, %v4983
        %v5028 = vpack.c.b16 %v4988, %v4986
        %v5029 = vpack.c.b16 %v4989, %v4987
        %v5030 = vpack.c.b16 %v4992, %v4990
        %v5031 = vpack.c.b16 %v4993, %v4991
        %v5032 = vpack.c.b16 %v4996, %v4994
        %v5033 = vpack.c.b16 %v4997, %v4995
        %v5034 = vpack.c.b16 %v5000, %v4998
        %v5035 = vpack.c.b16 %v5001, %v4999
        %v5036 = vpack.c.b16 %v5004, %v5002
        %v5037 = vpack.c.b16 %v5005, %v5003
        %5070 = vmatprep.subr.bf16.mxu0 %v5007
        %5071 = vmatpush1.bf16.msra.mxu0 %v5006
        %5072 = vmatprep.subr.bf16.mxu0 %v5009
        %5073 = vmatpush1.bf16.msra.mxu0 %v5008
        %5074 = vmatprep.subr.bf16.mxu0 %v5011
        %5075 = vmatpush1.bf16.msra.mxu0 %v5010
        %5076 = vmatprep.subr.bf16.mxu0 %v5013
        %5077 = vmatpush1.bf16.msra.mxu0 %v5012
        %5078 = vmatprep.subr.bf16.mxu0 %v5015
        %5079 = vmatpush1.bf16.msra.mxu0 %v5014
        %5080 = vmatprep.subr.bf16.mxu0 %v5017
        %5081 = vmatpush1.bf16.msra.mxu0 %v5016
        %5082 = vmatprep.subr.bf16.mxu0 %v5019
        %5083 = vmatpush1.bf16.msra.mxu0 %v5018
        %5084 = vmatprep.subr.bf16.mxu0 %v5021
        %5085 = vmatpush1.bf16.msra.mxu0 %v5020
        %5086 = vmatprep.subr.bf16.mxu0 %v5023
        %5087 = vmatpush1.bf16.msra.mxu0 %v5022
        %5088 = vmatprep.subr.bf16.mxu0 %v5025
        %5089 = vmatpush1.bf16.msra.mxu0 %v5024
        %5090 = vmatprep.subr.bf16.mxu0 %v5027
        %5091 = vmatpush1.bf16.msra.mxu0 %v5026
        %5092 = vmatprep.subr.bf16.mxu0 %v5029
        %5093 = vmatpush1.bf16.msra.mxu0 %v5028
        %5094 = vmatprep.subr.bf16.mxu0 %v5031
        %5095 = vmatpush1.bf16.msra.mxu0 %v5030
        %5096 = vmatprep.subr.bf16.mxu0 %v5033
        %5097 = vmatpush1.bf16.msra.mxu0 %v5032
        %5098 = vmatprep.subr.bf16.mxu0 %v5035
        %5099 = vmatpush1.bf16.msra.mxu0 %v5034
        %5100 = vmatprep.subr.bf16.mxu0 %v5037
        %5101 = vmatpush1.bf16.msra.mxu0 %v5036
        %5102 = vmatprep.mubr.bf16.mxu0 %v3677
        %5103 = vmatmul.mubr.bf16.gmra.mrb[0].mxu0 %v3676
        %v5104 = vpop.f32.mrb[0].mxu0
        %v5105 = vadd.f32 0.0, %v5104
        %v5106 = vpop.f32.mrb[0].mxu0
        %v5107 = vadd.f32 0.0, %v5106
        %v5108 = vpop.f32.mrb[0].mxu0
        %v5109 = vadd.f32 0.0, %v5108
        %v5110 = vpop.f32.mrb[0].mxu0
        %v5111 = vadd.f32 0.0, %v5110
        %5112 = vdwg.mxu0
        %v5113 = vpack.c.bf16 %v5109, %v5105
        %v5114 = vpack.c.bf16 %v5111, %v5107
        %5115 = vst [vmem:[#allocation2 + $0x50] sm:$0xff] %v5113
        %5116 = vst [vmem:[#allocation2 + $0x58] sm:$0xff] %v5114
        %s5117 = scalar_lea.vmem [#allocation12], 1536
        %v5118 = vld [vmem:[%s5117] sm:$0xff]
        %v5119 = vld [vmem:[%s5117 + $0x8] sm:$0xff]
        %v5120 = vld [vmem:[%s5117 + $0x10] sm:$0xff]
        %v5121 = vld [vmem:[%s5117 + $0x18] sm:$0xff]
        %v5122 = vld [vmem:[%s5117 + $0x20] sm:$0xff]
        %v5123 = vld [vmem:[%s5117 + $0x28] sm:$0xff]
        %v5124 = vld [vmem:[%s5117 + $0x30] sm:$0xff]
        %v5125 = vld [vmem:[%s5117 + $0x38] sm:$0xff]
        %v5126 = vld [vmem:[%s5117 + $0x40] sm:$0xff]
        %v5127 = vld [vmem:[%s5117 + $0x48] sm:$0xff]
        %v5128 = vld [vmem:[%s5117 + $0x50] sm:$0xff]
        %v5129 = vld [vmem:[%s5117 + $0x58] sm:$0xff]
        %v5130 = vld [vmem:[%s5117 + $0x60] sm:$0xff]
        %v5131 = vld [vmem:[%s5117 + $0x68] sm:$0xff]
        %v5132 = vld [vmem:[%s5117 + $0x70] sm:$0xff]
        %v5133 = vld [vmem:[%s5117 + $0x78] sm:$0xff]
        %v5134 = vld [vmem:[%s5117 + $0x80] sm:$0xff]
        %v5135 = vld [vmem:[%s5117 + $0x88] sm:$0xff]
        %v5136 = vld [vmem:[%s5117 + $0x90] sm:$0xff]
        %v5137 = vld [vmem:[%s5117 + $0x98] sm:$0xff]
        %v5138 = vld [vmem:[%s5117 + $0xa0] sm:$0xff]
        %v5139 = vld [vmem:[%s5117 + $0xa8] sm:$0xff]
        %v5140 = vld [vmem:[%s5117 + $0xb0] sm:$0xff]
        %v5141 = vld [vmem:[%s5117 + $0xb8] sm:$0xff]
        %v5142 = vld [vmem:[%s5117 + $0xc0] sm:$0xff]
        %v5143 = vld [vmem:[%s5117 + $0xc8] sm:$0xff]
        %v5144 = vld [vmem:[%s5117 + $0xd0] sm:$0xff]
        %v5145 = vld [vmem:[%s5117 + $0xd8] sm:$0xff]
        %v5146 = vld [vmem:[%s5117 + $0xe0] sm:$0xff]
        %v5147 = vld [vmem:[%s5117 + $0xe8] sm:$0xff]
        %v5148 = vld [vmem:[%s5117 + $0xf0] sm:$0xff]
        %v5149 = vld [vmem:[%s5117 + $0xf8] sm:$0xff]
        %v5182 = vunpack.c.l.b16 %v5118
        %v5183 = vunpack.c.h.b16 %v5118
        %v5184 = vunpack.c.l.b16 %v5119
        %v5185 = vunpack.c.h.b16 %v5119
        %v5186 = vunpack.c.l.b16 %v5120
        %v5187 = vunpack.c.h.b16 %v5120
        %v5188 = vunpack.c.l.b16 %v5121
        %v5189 = vunpack.c.h.b16 %v5121
        %v5190 = vunpack.c.l.b16 %v5122
        %v5191 = vunpack.c.h.b16 %v5122
        %v5192 = vunpack.c.l.b16 %v5123
        %v5193 = vunpack.c.h.b16 %v5123
        %v5194 = vunpack.c.l.b16 %v5124
        %v5195 = vunpack.c.h.b16 %v5124
        %v5196 = vunpack.c.l.b16 %v5125
        %v5197 = vunpack.c.h.b16 %v5125
        %v5198 = vunpack.c.l.b16 %v5126
        %v5199 = vunpack.c.h.b16 %v5126
        %v5200 = vunpack.c.l.b16 %v5127
        %v5201 = vunpack.c.h.b16 %v5127
        %v5202 = vunpack.c.l.b16 %v5128
        %v5203 = vunpack.c.h.b16 %v5128
        %v5204 = vunpack.c.l.b16 %v5129
        %v5205 = vunpack.c.h.b16 %v5129
        %v5206 = vunpack.c.l.b16 %v5130
        %v5207 = vunpack.c.h.b16 %v5130
        %v5208 = vunpack.c.l.b16 %v5131
        %v5209 = vunpack.c.h.b16 %v5131
        %v5210 = vunpack.c.l.b16 %v5132
        %v5211 = vunpack.c.h.b16 %v5132
        %v5212 = vunpack.c.l.b16 %v5133
        %v5213 = vunpack.c.h.b16 %v5133
        %v5214 = vunpack.c.l.b16 %v5134
        %v5215 = vunpack.c.h.b16 %v5134
        %v5216 = vunpack.c.l.b16 %v5135
        %v5217 = vunpack.c.h.b16 %v5135
        %v5218 = vunpack.c.l.b16 %v5136
        %v5219 = vunpack.c.h.b16 %v5136
        %v5220 = vunpack.c.l.b16 %v5137
        %v5221 = vunpack.c.h.b16 %v5137
        %v5222 = vunpack.c.l.b16 %v5138
        %v5223 = vunpack.c.h.b16 %v5138
        %v5224 = vunpack.c.l.b16 %v5139
        %v5225 = vunpack.c.h.b16 %v5139
        %v5226 = vunpack.c.l.b16 %v5140
        %v5227 = vunpack.c.h.b16 %v5140
        %v5228 = vunpack.c.l.b16 %v5141
        %v5229 = vunpack.c.h.b16 %v5141
        %v5230 = vunpack.c.l.b16 %v5142
        %v5231 = vunpack.c.h.b16 %v5142
        %v5232 = vunpack.c.l.b16 %v5143
        %v5233 = vunpack.c.h.b16 %v5143
        %v5234 = vunpack.c.l.b16 %v5144
        %v5235 = vunpack.c.h.b16 %v5144
        %v5236 = vunpack.c.l.b16 %v5145
        %v5237 = vunpack.c.h.b16 %v5145
        %v5238 = vunpack.c.l.b16 %v5146
        %v5239 = vunpack.c.h.b16 %v5146
        %v5240 = vunpack.c.l.b16 %v5147
        %v5241 = vunpack.c.h.b16 %v5147
        %v5242 = vunpack.c.l.b16 %v5148
        %v5243 = vunpack.c.h.b16 %v5148
        %v5244 = vunpack.c.l.b16 %v5149
        %v5245 = vunpack.c.h.b16 %v5149
        %v5246 = vpack.c.b16 %v5184, %v5182
        %v5247 = vpack.c.b16 %v5185, %v5183
        %v5248 = vpack.c.b16 %v5188, %v5186
        %v5249 = vpack.c.b16 %v5189, %v5187
        %v5250 = vpack.c.b16 %v5192, %v5190
        %v5251 = vpack.c.b16 %v5193, %v5191
        %v5252 = vpack.c.b16 %v5196, %v5194
        %v5253 = vpack.c.b16 %v5197, %v5195
        %v5254 = vpack.c.b16 %v5200, %v5198
        %v5255 = vpack.c.b16 %v5201, %v5199
        %v5256 = vpack.c.b16 %v5204, %v5202
        %v5257 = vpack.c.b16 %v5205, %v5203
        %v5258 = vpack.c.b16 %v5208, %v5206
        %v5259 = vpack.c.b16 %v5209, %v5207
        %v5260 = vpack.c.b16 %v5212, %v5210
        %v5261 = vpack.c.b16 %v5213, %v5211
        %v5262 = vpack.c.b16 %v5216, %v5214
        %v5263 = vpack.c.b16 %v5217, %v5215
        %v5264 = vpack.c.b16 %v5220, %v5218
        %v5265 = vpack.c.b16 %v5221, %v5219
        %v5266 = vpack.c.b16 %v5224, %v5222
        %v5267 = vpack.c.b16 %v5225, %v5223
        %v5268 = vpack.c.b16 %v5228, %v5226
        %v5269 = vpack.c.b16 %v5229, %v5227
        %v5270 = vpack.c.b16 %v5232, %v5230
        %v5271 = vpack.c.b16 %v5233, %v5231
        %v5272 = vpack.c.b16 %v5236, %v5234
        %v5273 = vpack.c.b16 %v5237, %v5235
        %v5274 = vpack.c.b16 %v5240, %v5238
        %v5275 = vpack.c.b16 %v5241, %v5239
        %v5276 = vpack.c.b16 %v5244, %v5242
        %v5277 = vpack.c.b16 %v5245, %v5243
        %5310 = vmatprep.subr.bf16.mxu0 %v5247
        %5311 = vmatpush1.bf16.msra.mxu0 %v5246
        %5312 = vmatprep.subr.bf16.mxu0 %v5249
        %5313 = vmatpush1.bf16.msra.mxu0 %v5248
        %5314 = vmatprep.subr.bf16.mxu0 %v5251
        %5315 = vmatpush1.bf16.msra.mxu0 %v5250
        %5316 = vmatprep.subr.bf16.mxu0 %v5253
        %5317 = vmatpush1.bf16.msra.mxu0 %v5252
        %5318 = vmatprep.subr.bf16.mxu0 %v5255
        %5319 = vmatpush1.bf16.msra.mxu0 %v5254
        %5320 = vmatprep.subr.bf16.mxu0 %v5257
        %5321 = vmatpush1.bf16.msra.mxu0 %v5256
        %5322 = vmatprep.subr.bf16.mxu0 %v5259
        %5323 = vmatpush1.bf16.msra.mxu0 %v5258
        %5324 = vmatprep.subr.bf16.mxu0 %v5261
        %5325 = vmatpush1.bf16.msra.mxu0 %v5260
        %5326 = vmatprep.subr.bf16.mxu0 %v5263
        %5327 = vmatpush1.bf16.msra.mxu0 %v5262
        %5328 = vmatprep.subr.bf16.mxu0 %v5265
        %5329 = vmatpush1.bf16.msra.mxu0 %v5264
        %5330 = vmatprep.subr.bf16.mxu0 %v5267
        %5331 = vmatpush1.bf16.msra.mxu0 %v5266
        %5332 = vmatprep.subr.bf16.mxu0 %v5269
        %5333 = vmatpush1.bf16.msra.mxu0 %v5268
        %5334 = vmatprep.subr.bf16.mxu0 %v5271
        %5335 = vmatpush1.bf16.msra.mxu0 %v5270
        %5336 = vmatprep.subr.bf16.mxu0 %v5273
        %5337 = vmatpush1.bf16.msra.mxu0 %v5272
        %5338 = vmatprep.subr.bf16.mxu0 %v5275
        %5339 = vmatpush1.bf16.msra.mxu0 %v5274
        %5340 = vmatprep.subr.bf16.mxu0 %v5277
        %5341 = vmatpush1.bf16.msra.mxu0 %v5276
        %5342 = vmatprep.mubr.bf16.mxu0 %v3677
        %5343 = vmatmul.mubr.bf16.gmra.mrb[0].mxu0 %v3676
        %v5344 = vpop.f32.mrb[0].mxu0
        %v5345 = vadd.f32 0.0, %v5344
        %v5346 = vpop.f32.mrb[0].mxu0
        %v5347 = vadd.f32 0.0, %v5346
        %v5348 = vpop.f32.mrb[0].mxu0
        %v5349 = vadd.f32 0.0, %v5348
        %v5350 = vpop.f32.mrb[0].mxu0
        %v5351 = vadd.f32 0.0, %v5350
        %5352 = vdwg.mxu0
        %v5353 = vpack.c.bf16 %v5349, %v5345
        %v5354 = vpack.c.bf16 %v5351, %v5347
        %5355 = vst [vmem:[#allocation2 + $0x60] sm:$0xff] %v5353
        %5356 = vst [vmem:[#allocation2 + $0x68] sm:$0xff] %v5354
        %s5357 = scalar_lea.vmem [#allocation12], 1792
        %v5358 = vld [vmem:[%s5357] sm:$0xff]
        %v5359 = vld [vmem:[%s5357 + $0x8] sm:$0xff]
        %v5360 = vld [vmem:[%s5357 + $0x10] sm:$0xff]
        %v5361 = vld [vmem:[%s5357 + $0x18] sm:$0xff]
        %v5362 = vld [vmem:[%s5357 + $0x20] sm:$0xff]
        %v5363 = vld [vmem:[%s5357 + $0x28] sm:$0xff]
        %v5364 = vld [vmem:[%s5357 + $0x30] sm:$0xff]
        %v5365 = vld [vmem:[%s5357 + $0x38] sm:$0xff]
        %v5366 = vld [vmem:[%s5357 + $0x40] sm:$0xff]
        %v5367 = vld [vmem:[%s5357 + $0x48] sm:$0xff]
        %v5368 = vld [vmem:[%s5357 + $0x50] sm:$0xff]
        %v5369 = vld [vmem:[%s5357 + $0x58] sm:$0xff]
        %v5370 = vld [vmem:[%s5357 + $0x60] sm:$0xff]
        %v5371 = vld [vmem:[%s5357 + $0x68] sm:$0xff]
        %v5372 = vld [vmem:[%s5357 + $0x70] sm:$0xff]
        %v5373 = vld [vmem:[%s5357 + $0x78] sm:$0xff]
        %v5374 = vld [vmem:[%s5357 + $0x80] sm:$0xff]
        %v5375 = vld [vmem:[%s5357 + $0x88] sm:$0xff]
        %v5376 = vld [vmem:[%s5357 + $0x90] sm:$0xff]
        %v5377 = vld [vmem:[%s5357 + $0x98] sm:$0xff]
        %v5378 = vld [vmem:[%s5357 + $0xa0] sm:$0xff]
        %v5379 = vld [vmem:[%s5357 + $0xa8] sm:$0xff]
        %v5380 = vld [vmem:[%s5357 + $0xb0] sm:$0xff]
        %v5381 = vld [vmem:[%s5357 + $0xb8] sm:$0xff]
        %v5382 = vld [vmem:[%s5357 + $0xc0] sm:$0xff]
        %v5383 = vld [vmem:[%s5357 + $0xc8] sm:$0xff]
        %v5384 = vld [vmem:[%s5357 + $0xd0] sm:$0xff]
        %v5385 = vld [vmem:[%s5357 + $0xd8] sm:$0xff]
        %v5386 = vld [vmem:[%s5357 + $0xe0] sm:$0xff]
        %v5387 = vld [vmem:[%s5357 + $0xe8] sm:$0xff]
        %v5388 = vld [vmem:[%s5357 + $0xf0] sm:$0xff]
        %v5389 = vld [vmem:[%s5357 + $0xf8] sm:$0xff]
        %v5422 = vunpack.c.l.b16 %v5358
        %v5423 = vunpack.c.h.b16 %v5358
        %v5424 = vunpack.c.l.b16 %v5359
        %v5425 = vunpack.c.h.b16 %v5359
        %v5426 = vunpack.c.l.b16 %v5360
        %v5427 = vunpack.c.h.b16 %v5360
        %v5428 = vunpack.c.l.b16 %v5361
        %v5429 = vunpack.c.h.b16 %v5361
        %v5430 = vunpack.c.l.b16 %v5362
        %v5431 = vunpack.c.h.b16 %v5362
        %v5432 = vunpack.c.l.b16 %v5363
        %v5433 = vunpack.c.h.b16 %v5363
        %v5434 = vunpack.c.l.b16 %v5364
        %v5435 = vunpack.c.h.b16 %v5364
        %v5436 = vunpack.c.l.b16 %v5365
        %v5437 = vunpack.c.h.b16 %v5365
        %v5438 = vunpack.c.l.b16 %v5366
        %v5439 = vunpack.c.h.b16 %v5366
        %v5440 = vunpack.c.l.b16 %v5367
        %v5441 = vunpack.c.h.b16 %v5367
        %v5442 = vunpack.c.l.b16 %v5368
        %v5443 = vunpack.c.h.b16 %v5368
        %v5444 = vunpack.c.l.b16 %v5369
        %v5445 = vunpack.c.h.b16 %v5369
        %v5446 = vunpack.c.l.b16 %v5370
        %v5447 = vunpack.c.h.b16 %v5370
        %v5448 = vunpack.c.l.b16 %v5371
        %v5449 = vunpack.c.h.b16 %v5371
        %v5450 = vunpack.c.l.b16 %v5372
        %v5451 = vunpack.c.h.b16 %v5372
        %v5452 = vunpack.c.l.b16 %v5373
        %v5453 = vunpack.c.h.b16 %v5373
        %v5454 = vunpack.c.l.b16 %v5374
        %v5455 = vunpack.c.h.b16 %v5374
        %v5456 = vunpack.c.l.b16 %v5375
        %v5457 = vunpack.c.h.b16 %v5375
        %v5458 = vunpack.c.l.b16 %v5376
        %v5459 = vunpack.c.h.b16 %v5376
        %v5460 = vunpack.c.l.b16 %v5377
        %v5461 = vunpack.c.h.b16 %v5377
        %v5462 = vunpack.c.l.b16 %v5378
        %v5463 = vunpack.c.h.b16 %v5378
        %v5464 = vunpack.c.l.b16 %v5379
        %v5465 = vunpack.c.h.b16 %v5379
        %v5466 = vunpack.c.l.b16 %v5380
        %v5467 = vunpack.c.h.b16 %v5380
        %v5468 = vunpack.c.l.b16 %v5381
        %v5469 = vunpack.c.h.b16 %v5381
        %v5470 = vunpack.c.l.b16 %v5382
        %v5471 = vunpack.c.h.b16 %v5382
        %v5472 = vunpack.c.l.b16 %v5383
        %v5473 = vunpack.c.h.b16 %v5383
        %v5474 = vunpack.c.l.b16 %v5384
        %v5475 = vunpack.c.h.b16 %v5384
        %v5476 = vunpack.c.l.b16 %v5385
        %v5477 = vunpack.c.h.b16 %v5385
        %v5478 = vunpack.c.l.b16 %v5386
        %v5479 = vunpack.c.h.b16 %v5386
        %v5480 = vunpack.c.l.b16 %v5387
        %v5481 = vunpack.c.h.b16 %v5387
        %v5482 = vunpack.c.l.b16 %v5388
        %v5483 = vunpack.c.h.b16 %v5388
        %v5484 = vunpack.c.l.b16 %v5389
        %v5485 = vunpack.c.h.b16 %v5389
        %v5486 = vpack.c.b16 %v5424, %v5422
        %v5487 = vpack.c.b16 %v5425, %v5423
        %v5488 = vpack.c.b16 %v5428, %v5426
        %v5489 = vpack.c.b16 %v5429, %v5427
        %v5490 = vpack.c.b16 %v5432, %v5430
        %v5491 = vpack.c.b16 %v5433, %v5431
        %v5492 = vpack.c.b16 %v5436, %v5434
        %v5493 = vpack.c.b16 %v5437, %v5435
        %v5494 = vpack.c.b16 %v5440, %v5438
        %v5495 = vpack.c.b16 %v5441, %v5439
        %v5496 = vpack.c.b16 %v5444, %v5442
        %v5497 = vpack.c.b16 %v5445, %v5443
        %v5498 = vpack.c.b16 %v5448, %v5446
        %v5499 = vpack.c.b16 %v5449, %v5447
        %v5500 = vpack.c.b16 %v5452, %v5450
        %v5501 = vpack.c.b16 %v5453, %v5451
        %v5502 = vpack.c.b16 %v5456, %v5454
        %v5503 = vpack.c.b16 %v5457, %v5455
        %v5504 = vpack.c.b16 %v5460, %v5458
        %v5505 = vpack.c.b16 %v5461, %v5459
        %v5506 = vpack.c.b16 %v5464, %v5462
        %v5507 = vpack.c.b16 %v5465, %v5463
        %v5508 = vpack.c.b16 %v5468, %v5466
        %v5509 = vpack.c.b16 %v5469, %v5467
        %v5510 = vpack.c.b16 %v5472, %v5470
        %v5511 = vpack.c.b16 %v5473, %v5471
        %v5512 = vpack.c.b16 %v5476, %v5474
        %v5513 = vpack.c.b16 %v5477, %v5475
        %v5514 = vpack.c.b16 %v5480, %v5478
        %v5515 = vpack.c.b16 %v5481, %v5479
        %v5516 = vpack.c.b16 %v5484, %v5482
        %v5517 = vpack.c.b16 %v5485, %v5483
        %5550 = vmatprep.subr.bf16.mxu0 %v5487
        %5551 = vmatpush1.bf16.msra.mxu0 %v5486
        %5552 = vmatprep.subr.bf16.mxu0 %v5489
        %5553 = vmatpush1.bf16.msra.mxu0 %v5488
        %5554 = vmatprep.subr.bf16.mxu0 %v5491
        %5555 = vmatpush1.bf16.msra.mxu0 %v5490
        %5556 = vmatprep.subr.bf16.mxu0 %v5493
        %5557 = vmatpush1.bf16.msra.mxu0 %v5492
        %5558 = vmatprep.subr.bf16.mxu0 %v5495
        %5559 = vmatpush1.bf16.msra.mxu0 %v5494
        %5560 = vmatprep.subr.bf16.mxu0 %v5497
        %5561 = vmatpush1.bf16.msra.mxu0 %v5496
        %5562 = vmatprep.subr.bf16.mxu0 %v5499
        %5563 = vmatpush1.bf16.msra.mxu0 %v5498
        %5564 = vmatprep.subr.bf16.mxu0 %v5501
        %5565 = vmatpush1.bf16.msra.mxu0 %v5500
        %5566 = vmatprep.subr.bf16.mxu0 %v5503
        %5567 = vmatpush1.bf16.msra.mxu0 %v5502
        %5568 = vmatprep.subr.bf16.mxu0 %v5505
        %5569 = vmatpush1.bf16.msra.mxu0 %v5504
        %5570 = vmatprep.subr.bf16.mxu0 %v5507
        %5571 = vmatpush1.bf16.msra.mxu0 %v5506
        %5572 = vmatprep.subr.bf16.mxu0 %v5509
        %5573 = vmatpush1.bf16.msra.mxu0 %v5508
        %5574 = vmatprep.subr.bf16.mxu0 %v5511
        %5575 = vmatpush1.bf16.msra.mxu0 %v5510
        %5576 = vmatprep.subr.bf16.mxu0 %v5513
        %5577 = vmatpush1.bf16.msra.mxu0 %v5512
        %5578 = vmatprep.subr.bf16.mxu0 %v5515
        %5579 = vmatpush1.bf16.msra.mxu0 %v5514
        %5580 = vmatprep.subr.bf16.mxu0 %v5517
        %5581 = vmatpush1.bf16.msra.mxu0 %v5516
        %5582 = vmatprep.mubr.bf16.mxu0 %v3677
        %5583 = vmatmul.mubr.bf16.gmra.mrb[0].mxu0 %v3676
        %v5584 = vpop.f32.mrb[0].mxu0
        %v5585 = vadd.f32 0.0, %v5584
        %v5586 = vpop.f32.mrb[0].mxu0
        %v5587 = vadd.f32 0.0, %v5586
        %v5588 = vpop.f32.mrb[0].mxu0
        %v5589 = vadd.f32 0.0, %v5588
        %v5590 = vpop.f32.mrb[0].mxu0
        %v5591 = vadd.f32 0.0, %v5590
        %5592 = vdwg.mxu0
        %v5593 = vpack.c.bf16 %v5589, %v5585
        %v5594 = vpack.c.bf16 %v5591, %v5587
        %5595 = vst [vmem:[#allocation2 + $0x70] sm:$0xff] %v5593
        %5596 = vst [vmem:[#allocation2 + $0x78] sm:$0xff] %v5594
        %s5597 = scalar_lea.vmem [#allocation12], 2048
        %v5598 = vld [vmem:[%s5597] sm:$0xff]
        %v5599 = vld [vmem:[%s5597 + $0x8] sm:$0xff]
        %v5600 = vld [vmem:[%s5597 + $0x10] sm:$0xff]
        %v5601 = vld [vmem:[%s5597 + $0x18] sm:$0xff]
        %v5602 = vld [vmem:[%s5597 + $0x20] sm:$0xff]
        %v5603 = vld [vmem:[%s5597 + $0x28] sm:$0xff]
        %v5604 = vld [vmem:[%s5597 + $0x30] sm:$0xff]
        %v5605 = vld [vmem:[%s5597 + $0x38] sm:$0xff]
        %v5606 = vld [vmem:[%s5597 + $0x40] sm:$0xff]
        %v5607 = vld [vmem:[%s5597 + $0x48] sm:$0xff]
        %v5608 = vld [vmem:[%s5597 + $0x50] sm:$0xff]
        %v5609 = vld [vmem:[%s5597 + $0x58] sm:$0xff]
        %v5610 = vld [vmem:[%s5597 + $0x60] sm:$0xff]
        %v5611 = vld [vmem:[%s5597 + $0x68] sm:$0xff]
        %v5612 = vld [vmem:[%s5597 + $0x70] sm:$0xff]
        %v5613 = vld [vmem:[%s5597 + $0x78] sm:$0xff]
        %v5614 = vld [vmem:[%s5597 + $0x80] sm:$0xff]
        %v5615 = vld [vmem:[%s5597 + $0x88] sm:$0xff]
        %v5616 = vld [vmem:[%s5597 + $0x90] sm:$0xff]
        %v5617 = vld [vmem:[%s5597 + $0x98] sm:$0xff]
        %v5618 = vld [vmem:[%s5597 + $0xa0] sm:$0xff]
        %v5619 = vld [vmem:[%s5597 + $0xa8] sm:$0xff]
        %v5620 = vld [vmem:[%s5597 + $0xb0] sm:$0xff]
        %v5621 = vld [vmem:[%s5597 + $0xb8] sm:$0xff]
        %v5622 = vld [vmem:[%s5597 + $0xc0] sm:$0xff]
        %v5623 = vld [vmem:[%s5597 + $0xc8] sm:$0xff]
        %v5624 = vld [vmem:[%s5597 + $0xd0] sm:$0xff]
        %v5625 = vld [vmem:[%s5597 + $0xd8] sm:$0xff]
        %v5626 = vld [vmem:[%s5597 + $0xe0] sm:$0xff]
        %v5627 = vld [vmem:[%s5597 + $0xe8] sm:$0xff]
        %v5628 = vld [vmem:[%s5597 + $0xf0] sm:$0xff]
        %v5629 = vld [vmem:[%s5597 + $0xf8] sm:$0xff]
        %v5662 = vunpack.c.l.b16 %v5598
        %v5663 = vunpack.c.h.b16 %v5598
        %v5664 = vunpack.c.l.b16 %v5599
        %v5665 = vunpack.c.h.b16 %v5599
        %v5666 = vunpack.c.l.b16 %v5600
        %v5667 = vunpack.c.h.b16 %v5600
        %v5668 = vunpack.c.l.b16 %v5601
        %v5669 = vunpack.c.h.b16 %v5601
        %v5670 = vunpack.c.l.b16 %v5602
        %v5671 = vunpack.c.h.b16 %v5602
        %v5672 = vunpack.c.l.b16 %v5603
        %v5673 = vunpack.c.h.b16 %v5603
        %v5674 = vunpack.c.l.b16 %v5604
        %v5675 = vunpack.c.h.b16 %v5604
        %v5676 = vunpack.c.l.b16 %v5605
        %v5677 = vunpack.c.h.b16 %v5605
        %v5678 = vunpack.c.l.b16 %v5606
        %v5679 = vunpack.c.h.b16 %v5606
        %v5680 = vunpack.c.l.b16 %v5607
        %v5681 = vunpack.c.h.b16 %v5607
        %v5682 = vunpack.c.l.b16 %v5608
        %v5683 = vunpack.c.h.b16 %v5608
        %v5684 = vunpack.c.l.b16 %v5609
        %v5685 = vunpack.c.h.b16 %v5609
        %v5686 = vunpack.c.l.b16 %v5610
        %v5687 = vunpack.c.h.b16 %v5610
        %v5688 = vunpack.c.l.b16 %v5611
        %v5689 = vunpack.c.h.b16 %v5611
        %v5690 = vunpack.c.l.b16 %v5612
        %v5691 = vunpack.c.h.b16 %v5612
        %v5692 = vunpack.c.l.b16 %v5613
        %v5693 = vunpack.c.h.b16 %v5613
        %v5694 = vunpack.c.l.b16 %v5614
        %v5695 = vunpack.c.h.b16 %v5614
        %v5696 = vunpack.c.l.b16 %v5615
        %v5697 = vunpack.c.h.b16 %v5615
        %v5698 = vunpack.c.l.b16 %v5616
        %v5699 = vunpack.c.h.b16 %v5616
        %v5700 = vunpack.c.l.b16 %v5617
        %v5701 = vunpack.c.h.b16 %v5617
        %v5702 = vunpack.c.l.b16 %v5618
        %v5703 = vunpack.c.h.b16 %v5618
        %v5704 = vunpack.c.l.b16 %v5619
        %v5705 = vunpack.c.h.b16 %v5619
        %v5706 = vunpack.c.l.b16 %v5620
        %v5707 = vunpack.c.h.b16 %v5620
        %v5708 = vunpack.c.l.b16 %v5621
        %v5709 = vunpack.c.h.b16 %v5621
        %v5710 = vunpack.c.l.b16 %v5622
        %v5711 = vunpack.c.h.b16 %v5622
        %v5712 = vunpack.c.l.b16 %v5623
        %v5713 = vunpack.c.h.b16 %v5623
        %v5714 = vunpack.c.l.b16 %v5624
        %v5715 = vunpack.c.h.b16 %v5624
        %v5716 = vunpack.c.l.b16 %v5625
        %v5717 = vunpack.c.h.b16 %v5625
        %v5718 = vunpack.c.l.b16 %v5626
        %v5719 = vunpack.c.h.b16 %v5626
        %v5720 = vunpack.c.l.b16 %v5627
        %v5721 = vunpack.c.h.b16 %v5627
        %v5722 = vunpack.c.l.b16 %v5628
        %v5723 = vunpack.c.h.b16 %v5628
        %v5724 = vunpack.c.l.b16 %v5629
        %v5725 = vunpack.c.h.b16 %v5629
        %v5726 = vpack.c.b16 %v5664, %v5662
        %v5727 = vpack.c.b16 %v5665, %v5663
        %v5728 = vpack.c.b16 %v5668, %v5666
        %v5729 = vpack.c.b16 %v5669, %v5667
        %v5730 = vpack.c.b16 %v5672, %v5670
        %v5731 = vpack.c.b16 %v5673, %v5671
        %v5732 = vpack.c.b16 %v5676, %v5674
        %v5733 = vpack.c.b16 %v5677, %v5675
        %v5734 = vpack.c.b16 %v5680, %v5678
        %v5735 = vpack.c.b16 %v5681, %v5679
        %v5736 = vpack.c.b16 %v5684, %v5682
        %v5737 = vpack.c.b16 %v5685, %v5683
        %v5738 = vpack.c.b16 %v5688, %v5686
        %v5739 = vpack.c.b16 %v5689, %v5687
        %v5740 = vpack.c.b16 %v5692, %v5690
        %v5741 = vpack.c.b16 %v5693, %v5691
        %v5742 = vpack.c.b16 %v5696, %v5694
        %v5743 = vpack.c.b16 %v5697, %v5695
        %v5744 = vpack.c.b16 %v5700, %v5698
        %v5745 = vpack.c.b16 %v5701, %v5699
        %v5746 = vpack.c.b16 %v5704, %v5702
        %v5747 = vpack.c.b16 %v5705, %v5703
        %v5748 = vpack.c.b16 %v5708, %v5706
        %v5749 = vpack.c.b16 %v5709, %v5707
        %v5750 = vpack.c.b16 %v5712, %v5710
        %v5751 = vpack.c.b16 %v5713, %v5711
        %v5752 = vpack.c.b16 %v5716, %v5714
        %v5753 = vpack.c.b16 %v5717, %v5715
        %v5754 = vpack.c.b16 %v5720, %v5718
        %v5755 = vpack.c.b16 %v5721, %v5719
        %v5756 = vpack.c.b16 %v5724, %v5722
        %v5757 = vpack.c.b16 %v5725, %v5723
        %5790 = vmatprep.subr.bf16.mxu0 %v5727
        %5791 = vmatpush1.bf16.msra.mxu0 %v5726
        %5792 = vmatprep.subr.bf16.mxu0 %v5729
        %5793 = vmatpush1.bf16.msra.mxu0 %v5728
        %5794 = vmatprep.subr.bf16.mxu0 %v5731
        %5795 = vmatpush1.bf16.msra.mxu0 %v5730
        %5796 = vmatprep.subr.bf16.mxu0 %v5733
        %5797 = vmatpush1.bf16.msra.mxu0 %v5732
        %5798 = vmatprep.subr.bf16.mxu0 %v5735
        %5799 = vmatpush1.bf16.msra.mxu0 %v5734
        %5800 = vmatprep.subr.bf16.mxu0 %v5737
        %5801 = vmatpush1.bf16.msra.mxu0 %v5736
        %5802 = vmatprep.subr.bf16.mxu0 %v5739
        %5803 = vmatpush1.bf16.msra.mxu0 %v5738
        %5804 = vmatprep.subr.bf16.mxu0 %v5741
        %5805 = vmatpush1.bf16.msra.mxu0 %v5740
        %5806 = vmatprep.subr.bf16.mxu0 %v5743
        %5807 = vmatpush1.bf16.msra.mxu0 %v5742
        %5808 = vmatprep.subr.bf16.mxu0 %v5745
        %5809 = vmatpush1.bf16.msra.mxu0 %v5744
        %5810 = vmatprep.subr.bf16.mxu0 %v5747
        %5811 = vmatpush1.bf16.msra.mxu0 %v5746
        %5812 = vmatprep.subr.bf16.mxu0 %v5749
        %5813 = vmatpush1.bf16.msra.mxu0 %v5748
        %5814 = vmatprep.subr.bf16.mxu0 %v5751
        %5815 = vmatpush1.bf16.msra.mxu0 %v5750
        %5816 = vmatprep.subr.bf16.mxu0 %v5753
        %5817 = vmatpush1.bf16.msra.mxu0 %v5752
        %5818 = vmatprep.subr.bf16.mxu0 %v5755
        %5819 = vmatpush1.bf16.msra.mxu0 %v5754
        %5820 = vmatprep.subr.bf16.mxu0 %v5757
        %5821 = vmatpush1.bf16.msra.mxu0 %v5756
        %5822 = vmatprep.mubr.bf16.mxu0 %v3677
        %5823 = vmatmul.mubr.bf16.gmra.mrb[0].mxu0 %v3676
        %v5824 = vpop.f32.mrb[0].mxu0
        %v5825 = vadd.f32 0.0, %v5824
        %v5826 = vpop.f32.mrb[0].mxu0
        %v5827 = vadd.f32 0.0, %v5826
        %v5828 = vpop.f32.mrb[0].mxu0
        %v5829 = vadd.f32 0.0, %v5828
        %v5830 = vpop.f32.mrb[0].mxu0
        %v5831 = vadd.f32 0.0, %v5830
        %5832 = vdwg.mxu0
        %v5833 = vpack.c.bf16 %v5829, %v5825
        %v5834 = vpack.c.bf16 %v5831, %v5827
        %5835 = vst [vmem:[#allocation2 + $0x80] sm:$0xff] %v5833
        %5836 = vst [vmem:[#allocation2 + $0x88] sm:$0xff] %v5834
        %v5837 = vld [vmem:[#allocation6] sm:$0xff]
        %v5838 = vld [vmem:[#allocation6 + $0x8] sm:$0xff]
        %v5839 = vld [vmem:[#allocation6 + $0x10] sm:$0xff]
        %v5840 = vld [vmem:[#allocation6 + $0x18] sm:$0xff]
        %v5841 = vld [vmem:[#allocation6 + $0x20] sm:$0xff]
        %v5842 = vld [vmem:[#allocation6 + $0x28] sm:$0xff]
        %v5843 = vld [vmem:[#allocation6 + $0x30] sm:$0xff]
        %v5844 = vld [vmem:[#allocation6 + $0x38] sm:$0xff]
        %v5845 = vld [vmem:[#allocation2] sm:$0xff]
        %v5846 = vld [vmem:[#allocation2 + $0x8] sm:$0xff]
        %v5847 = vld [vmem:[#allocation2 + $0x10] sm:$0xff]
        %v5848 = vld [vmem:[#allocation2 + $0x18] sm:$0xff]
        %v5849 = vld [vmem:[#allocation2 + $0x20] sm:$0xff]
        %v5850 = vld [vmem:[#allocation2 + $0x28] sm:$0xff]
        %v5851 = vld [vmem:[#allocation2 + $0x30] sm:$0xff]
        %v5852 = vld [vmem:[#allocation2 + $0x38] sm:$0xff]
        %v5853 = vld [vmem:[#allocation2 + $0x40] sm:$0xff]
        %v5854 = vld [vmem:[#allocation2 + $0x48] sm:$0xff]
        %v5855 = vld [vmem:[#allocation2 + $0x50] sm:$0xff]
        %v5856 = vld [vmem:[#allocation2 + $0x58] sm:$0xff]
        %v5857 = vld [vmem:[#allocation2 + $0x60] sm:$0xff]
        %v5858 = vld [vmem:[#allocation2 + $0x68] sm:$0xff]
        %v5859 = vld [vmem:[#allocation2 + $0x70] sm:$0xff]
        %v5860 = vld [vmem:[#allocation2 + $0x78] sm:$0xff]
        %v5861 = vld [vmem:[#allocation2 + $0x80] sm:$0xff]
        %v5862 = vld [vmem:[#allocation2 + $0x88] sm:$0xff]
        %v5863 = vld [vmem:[#allocation14] sm:$0x3]
        %v5865 = vlaneseq
        %v5866 = vshrl.u32 %v5865, 7
        %v5867 = vsub.s32 0, %v5866
        %v5868 = vrot.slane %v5863, %v5867
        %v5869 = vlaneseq
        %v5870 = vshrl.u32 %v5869, 7
        %v5871 = vsub.s32 1, %v5870
        %v5872 = vrot.slane %v5863, %v5871
        %v5883 = vunpack.c.l.b16 %v5837
        %v5884 = vunpack.c.h.b16 %v5837
        %v5885 = vunpack.c.l.b16 %v5838
        %v5886 = vunpack.c.h.b16 %v5838
        %v5887 = vunpack.c.l.b16 %v5839
        %v5888 = vunpack.c.h.b16 %v5839
        %v5889 = vunpack.c.l.b16 %v5840
        %v5890 = vunpack.c.h.b16 %v5840
        %v5891 = vunpack.c.l.b16 %v5841
        %v5892 = vunpack.c.h.b16 %v5841
        %v5893 = vunpack.c.l.b16 %v5842
        %v5894 = vunpack.c.h.b16 %v5842
        %v5895 = vunpack.c.l.b16 %v5843
        %v5896 = vunpack.c.h.b16 %v5843
        %v5897 = vunpack.c.l.b16 %v5844
        %v5898 = vunpack.c.h.b16 %v5844
        %v5899 = vpack.c.b16 %v5885, %v5883
        %v5900 = vpack.c.b16 %v5886, %v5884
        %v5901 = vpack.c.b16 %v5889, %v5887
        %v5902 = vpack.c.b16 %v5890, %v5888
        %v5903 = vpack.c.b16 %v5893, %v5891
        %v5904 = vpack.c.b16 %v5894, %v5892
        %v5905 = vpack.c.b16 %v5897, %v5895
        %v5906 = vpack.c.b16 %v5898, %v5896
        %vm5911 = vcmask 130048
        %v5913 = vsel %vm5911, %v5900, 0
        %v5916 = vsel %vm5911, %v5902, 0
        %v5919 = vsel %vm5911, %v5904, 0
        %v5922 = vsel %vm5911, %v5906, 0
        %5924 = vmatprep.subr.bf16.mxu0 %v5846
        %5925 = vmatpush1.bf16.msra.mxu0 %v5845
        %5926 = vmatprep.subr.bf16.mxu0 %v5848
        %5927 = vmatpush1.bf16.msra.mxu0 %v5847
        %5928 = vmatprep.subr.bf16.mxu0 %v5850
        %5929 = vmatpush1.bf16.msra.mxu0 %v5849
        %5930 = vmatprep.subr.bf16.mxu0 %v5852
        %5931 = vmatpush1.bf16.msra.mxu0 %v5851
        %5932 = vmatprep.subr.bf16.mxu0 %v5854
        %5933 = vmatpush1.bf16.msra.mxu0 %v5853
        %5934 = vmatprep.subr.bf16.mxu0 %v5856
        %5935 = vmatpush1.bf16.msra.mxu0 %v5855
        %5936 = vmatprep.subr.bf16.mxu0 %v5858
        %5937 = vmatpush1.bf16.msra.mxu0 %v5857
        %5938 = vmatprep.subr.bf16.mxu0 %v5860
        %5939 = vmatpush1.bf16.msra.mxu0 %v5859
        %5940 = vmatprep.subr.bf16.mxu0 %v5862
        %5941 = vmatpush1.bf16.msra.mxu0 %v5861
        %5942 = vmatprep.subr.bf16.mxu0 0
        %5943 = vmatpush1.bf16.msra.mxu0 0
        %5944 = vmatprep.subr.bf16.mxu0 0
        %5945 = vmatpush1.bf16.msra.mxu0 0
        %5946 = vmatprep.subr.bf16.mxu0 0
        %5947 = vmatpush1.bf16.msra.mxu0 0
        %5948 = vmatprep.subr.bf16.mxu0 0
        %5949 = vmatpush1.bf16.msra.mxu0 0
        %5950 = vmatprep.subr.bf16.mxu0 0
        %5951 = vmatpush1.bf16.msra.mxu0 0
        %5952 = vmatprep.subr.bf16.mxu0 0
        %5953 = vmatpush1.bf16.msra.mxu0 0
        %5954 = vmatprep.subr.bf16.mxu0 0
        %5955 = vmatpush1.bf16.msra.mxu0 0
        %5956 = vmatprep.mubr.bf16.mxu0 %v5913
        %5957 = vmatmul.mubr.bf16.gmra.mrb[0].mxu0 %v5899
        %v5958 = vpop.f32.mrb[0].mxu0
        %v5959 = vadd.f32 %v5868, %v5958
        %v5960 = vpop.f32.mrb[0].mxu0
        %v5961 = vadd.f32 %v5872, %v5960
        %v5962 = vpop.f32.mrb[0].mxu0
        %v5963 = vadd.f32 %v5868, %v5962
        %v5964 = vpop.f32.mrb[0].mxu0
        %v5965 = vadd.f32 %v5872, %v5964
        %5966 = vmatprep.mubr.bf16.mxu0 %v5916
        %5967 = vmatmul.mubr.bf16.gmra.mrb[0].mxu0 %v5901
        %v5968 = vpop.f32.mrb[0].mxu0
        %v5969 = vadd.f32 %v5868, %v5968
        %v5970 = vpop.f32.mrb[0].mxu0
        %v5971 = vadd.f32 %v5872, %v5970
        %v5972 = vpop.f32.mrb[0].mxu0
        %v5973 = vadd.f32 %v5868, %v5972
        %v5974 = vpop.f32.mrb[0].mxu0
        %v5975 = vadd.f32 %v5872, %v5974
        %5976 = vmatprep.mubr.bf16.mxu0 %v5919
        %5977 = vmatmul.mubr.bf16.gmra.mrb[0].mxu0 %v5903
        %v5978 = vpop.f32.mrb[0].mxu0
        %v5979 = vadd.f32 %v5868, %v5978
        %v5980 = vpop.f32.mrb[0].mxu0
        %v5981 = vadd.f32 %v5872, %v5980
        %v5982 = vpop.f32.mrb[0].mxu0
        %v5983 = vadd.f32 %v5868, %v5982
        %v5984 = vpop.f32.mrb[0].mxu0
        %v5985 = vadd.f32 %v5872, %v5984
        %5986 = vmatprep.mubr.bf16.mxu0 %v5922
        %5987 = vmatmul.mubr.bf16.gmra.mrb[0].mxu0 %v5905
        %v5988 = vpop.f32.mrb[0].mxu0
        %v5989 = vadd.f32 %v5868, %v5988
        %v5990 = vpop.f32.mrb[0].mxu0
        %v5991 = vadd.f32 %v5872, %v5990
        %v5992 = vpop.f32.mrb[0].mxu0
        %v5993 = vadd.f32 %v5868, %v5992
        %v5994 = vpop.f32.mrb[0].mxu0
        %v5995 = vadd.f32 %v5872, %v5994
        %5996 = vdwg.mxu0
        %v5997 = vmul.f32 %v5959, 0.2
        %v5998 = vmul.f32 %v5961, 0.2
        %v5999 = vmul.f32 %v5963, 0.2
        %v6000 = vmul.f32 %v5965, 0.2
        %v6001 = vmul.f32 %v5969, 0.2
        %v6002 = vmul.f32 %v5971, 0.2
        %v6003 = vmul.f32 %v5973, 0.2
        %v6004 = vmul.f32 %v5975, 0.2
        %v6005 = vmul.f32 %v5979, 0.2
        %v6006 = vmul.f32 %v5981, 0.2
        %v6007 = vmul.f32 %v5983, 0.2
        %v6008 = vmul.f32 %v5985, 0.2
        %v6009 = vmul.f32 %v5989, 0.2
        %v6010 = vmul.f32 %v5991, 0.2
        %v6011 = vmul.f32 %v5993, 0.2
        %v6012 = vmul.f32 %v5995, 0.2
        %v6013 = vmax.f32 %v5959, %v5997
        %v6014 = vmax.f32 %v5961, %v5998
        %v6015 = vmax.f32 %v5963, %v5999
        %v6016 = vmax.f32 %v5965, %v6000
        %v6017 = vmax.f32 %v5969, %v6001
        %v6018 = vmax.f32 %v5971, %v6002
        %v6019 = vmax.f32 %v5973, %v6003
        %v6020 = vmax.f32 %v5975, %v6004
        %v6021 = vmax.f32 %v5979, %v6005
        %v6022 = vmax.f32 %v5981, %v6006
        %v6023 = vmax.f32 %v5983, %v6007
        %v6024 = vmax.f32 %v5985, %v6008
        %v6025 = vmax.f32 %v5989, %v6009
        %v6026 = vmax.f32 %v5991, %v6010
        %v6027 = vmax.f32 %v5993, %v6011
        %v6028 = vmax.f32 %v5995, %v6012
        %v6029 = vpack.c.bf16 %v6015, %v6013
        %v6030 = vpack.c.bf16 %v6016, %v6014
        %v6031 = vpack.c.bf16 %v6019, %v6017
        %v6032 = vpack.c.bf16 %v6020, %v6018
        %v6033 = vpack.c.bf16 %v6023, %v6021
        %v6034 = vpack.c.bf16 %v6024, %v6022
        %v6035 = vpack.c.bf16 %v6027, %v6025
        %v6036 = vpack.c.bf16 %v6028, %v6026
        %v6037 = vld [vmem:[#allocation15] sm:$0xff]
        %v6038 = vld [vmem:[#allocation15 + $0x8] sm:$0xff]
        %v6039 = vld [vmem:[#allocation15 + $0x10] sm:$0xff]
        %v6040 = vld [vmem:[#allocation15 + $0x18] sm:$0xff]
        %v6041 = vld [vmem:[#allocation15 + $0x20] sm:$0xff]
        %v6042 = vld [vmem:[#allocation15 + $0x28] sm:$0xff]
        %v6043 = vld [vmem:[#allocation15 + $0x30] sm:$0xff]
        %v6044 = vld [vmem:[#allocation15 + $0x38] sm:$0xff]
        %v6045 = vld [vmem:[#allocation15 + $0x40] sm:$0xff]
        %v6046 = vld [vmem:[#allocation15 + $0x48] sm:$0xff]
        %v6047 = vld [vmem:[#allocation15 + $0x50] sm:$0xff]
        %v6048 = vld [vmem:[#allocation15 + $0x58] sm:$0xff]
        %v6049 = vld [vmem:[#allocation15 + $0x60] sm:$0xff]
        %v6050 = vld [vmem:[#allocation15 + $0x68] sm:$0xff]
        %v6051 = vld [vmem:[#allocation15 + $0x70] sm:$0xff]
        %v6052 = vld [vmem:[#allocation15 + $0x78] sm:$0xff]
        %v6053 = vld [vmem:[#allocation15 + $0x80] sm:$0xff]
        %v6054 = vld [vmem:[#allocation15 + $0x88] sm:$0xff]
        %v6055 = vld [vmem:[#allocation15 + $0x90] sm:$0xff]
        %v6056 = vld [vmem:[#allocation15 + $0x98] sm:$0xff]
        %v6057 = vld [vmem:[#allocation15 + $0xa0] sm:$0xff]
        %v6058 = vld [vmem:[#allocation15 + $0xa8] sm:$0xff]
        %v6059 = vld [vmem:[#allocation15 + $0xb0] sm:$0xff]
        %v6060 = vld [vmem:[#allocation15 + $0xb8] sm:$0xff]
        %v6061 = vld [vmem:[#allocation15 + $0xc0] sm:$0xff]
        %v6062 = vld [vmem:[#allocation15 + $0xc8] sm:$0xff]
        %v6063 = vld [vmem:[#allocation15 + $0xd0] sm:$0xff]
        %v6064 = vld [vmem:[#allocation15 + $0xd8] sm:$0xff]
        %v6065 = vld [vmem:[#allocation15 + $0xe0] sm:$0xff]
        %v6066 = vld [vmem:[#allocation15 + $0xe8] sm:$0xff]
        %v6067 = vld [vmem:[#allocation15 + $0xf0] sm:$0xff]
        %v6068 = vld [vmem:[#allocation15 + $0xf8] sm:$0xff]
        %v6101 = vunpack.c.l.b16 %v6037
        %v6102 = vunpack.c.h.b16 %v6037
        %v6103 = vunpack.c.l.b16 %v6038
        %v6104 = vunpack.c.h.b16 %v6038
        %v6105 = vunpack.c.l.b16 %v6039
        %v6106 = vunpack.c.h.b16 %v6039
        %v6107 = vunpack.c.l.b16 %v6040
        %v6108 = vunpack.c.h.b16 %v6040
        %v6109 = vunpack.c.l.b16 %v6041
        %v6110 = vunpack.c.h.b16 %v6041
        %v6111 = vunpack.c.l.b16 %v6042
        %v6112 = vunpack.c.h.b16 %v6042
        %v6113 = vunpack.c.l.b16 %v6043
        %v6114 = vunpack.c.h.b16 %v6043
        %v6115 = vunpack.c.l.b16 %v6044
        %v6116 = vunpack.c.h.b16 %v6044
        %v6117 = vunpack.c.l.b16 %v6045
        %v6118 = vunpack.c.h.b16 %v6045
        %v6119 = vunpack.c.l.b16 %v6046
        %v6120 = vunpack.c.h.b16 %v6046
        %v6121 = vunpack.c.l.b16 %v6047
        %v6122 = vunpack.c.h.b16 %v6047
        %v6123 = vunpack.c.l.b16 %v6048
        %v6124 = vunpack.c.h.b16 %v6048
        %v6125 = vunpack.c.l.b16 %v6049
        %v6126 = vunpack.c.h.b16 %v6049
        %v6127 = vunpack.c.l.b16 %v6050
        %v6128 = vunpack.c.h.b16 %v6050
        %v6129 = vunpack.c.l.b16 %v6051
        %v6130 = vunpack.c.h.b16 %v6051
        %v6131 = vunpack.c.l.b16 %v6052
        %v6132 = vunpack.c.h.b16 %v6052
        %v6133 = vunpack.c.l.b16 %v6053
        %v6134 = vunpack.c.h.b16 %v6053
        %v6135 = vunpack.c.l.b16 %v6054
        %v6136 = vunpack.c.h.b16 %v6054
        %v6137 = vunpack.c.l.b16 %v6055
        %v6138 = vunpack.c.h.b16 %v6055
        %v6139 = vunpack.c.l.b16 %v6056
        %v6140 = vunpack.c.h.b16 %v6056
        %v6141 = vunpack.c.l.b16 %v6057
        %v6142 = vunpack.c.h.b16 %v6057
        %v6143 = vunpack.c.l.b16 %v6058
        %v6144 = vunpack.c.h.b16 %v6058
        %v6145 = vunpack.c.l.b16 %v6059
        %v6146 = vunpack.c.h.b16 %v6059
        %v6147 = vunpack.c.l.b16 %v6060
        %v6148 = vunpack.c.h.b16 %v6060
        %v6149 = vunpack.c.l.b16 %v6061
        %v6150 = vunpack.c.h.b16 %v6061
        %v6151 = vunpack.c.l.b16 %v6062
        %v6152 = vunpack.c.h.b16 %v6062
        %v6153 = vunpack.c.l.b16 %v6063
        %v6154 = vunpack.c.h.b16 %v6063
        %v6155 = vunpack.c.l.b16 %v6064
        %v6156 = vunpack.c.h.b16 %v6064
        %v6157 = vunpack.c.l.b16 %v6065
        %v6158 = vunpack.c.h.b16 %v6065
        %v6159 = vunpack.c.l.b16 %v6066
        %v6160 = vunpack.c.h.b16 %v6066
        %v6161 = vunpack.c.l.b16 %v6067
        %v6162 = vunpack.c.h.b16 %v6067
        %v6163 = vunpack.c.l.b16 %v6068
        %v6164 = vunpack.c.h.b16 %v6068
        %v6165 = vpack.c.b16 %v6103, %v6101
        %v6166 = vpack.c.b16 %v6104, %v6102
        %v6167 = vpack.c.b16 %v6107, %v6105
        %v6168 = vpack.c.b16 %v6108, %v6106
        %v6169 = vpack.c.b16 %v6111, %v6109
        %v6170 = vpack.c.b16 %v6112, %v6110
        %v6171 = vpack.c.b16 %v6115, %v6113
        %v6172 = vpack.c.b16 %v6116, %v6114
        %v6173 = vpack.c.b16 %v6119, %v6117
        %v6174 = vpack.c.b16 %v6120, %v6118
        %v6175 = vpack.c.b16 %v6123, %v6121
        %v6176 = vpack.c.b16 %v6124, %v6122
        %v6177 = vpack.c.b16 %v6127, %v6125
        %v6178 = vpack.c.b16 %v6128, %v6126
        %v6179 = vpack.c.b16 %v6131, %v6129
        %v6180 = vpack.c.b16 %v6132, %v6130
        %v6181 = vpack.c.b16 %v6135, %v6133
        %v6182 = vpack.c.b16 %v6136, %v6134
        %v6183 = vpack.c.b16 %v6139, %v6137
        %v6184 = vpack.c.b16 %v6140, %v6138
        %v6185 = vpack.c.b16 %v6143, %v6141
        %v6186 = vpack.c.b16 %v6144, %v6142
        %v6187 = vpack.c.b16 %v6147, %v6145
        %v6188 = vpack.c.b16 %v6148, %v6146
        %v6189 = vpack.c.b16 %v6151, %v6149
        %v6190 = vpack.c.b16 %v6152, %v6150
        %v6191 = vpack.c.b16 %v6155, %v6153
        %v6192 = vpack.c.b16 %v6156, %v6154
        %v6193 = vpack.c.b16 %v6159, %v6157
        %v6194 = vpack.c.b16 %v6160, %v6158
        %v6195 = vpack.c.b16 %v6163, %v6161
        %v6196 = vpack.c.b16 %v6164, %v6162
        %6229 = vmatprep.subr.bf16.mxu0 %v6166
        %6230 = vmatpush1.bf16.msra.mxu0 %v6165
        %6231 = vmatprep.subr.bf16.mxu0 %v6168
        %6232 = vmatpush1.bf16.msra.mxu0 %v6167
        %6233 = vmatprep.subr.bf16.mxu0 %v6170
        %6234 = vmatpush1.bf16.msra.mxu0 %v6169
        %6235 = vmatprep.subr.bf16.mxu0 %v6172
        %6236 = vmatpush1.bf16.msra.mxu0 %v6171
        %6237 = vmatprep.subr.bf16.mxu0 %v6174
        %6238 = vmatpush1.bf16.msra.mxu0 %v6173
        %6239 = vmatprep.subr.bf16.mxu0 %v6176
        %6240 = vmatpush1.bf16.msra.mxu0 %v6175
        %6241 = vmatprep.subr.bf16.mxu0 %v6178
        %6242 = vmatpush1.bf16.msra.mxu0 %v6177
        %6243 = vmatprep.subr.bf16.mxu0 %v6180
        %6244 = vmatpush1.bf16.msra.mxu0 %v6179
        %6245 = vmatprep.subr.bf16.mxu0 %v6182
        %6246 = vmatpush1.bf16.msra.mxu0 %v6181
        %6247 = vmatprep.subr.bf16.mxu0 %v6184
        %6248 = vmatpush1.bf16.msra.mxu0 %v6183
        %6249 = vmatprep.subr.bf16.mxu0 %v6186
        %6250 = vmatpush1.bf16.msra.mxu0 %v6185
        %6251 = vmatprep.subr.bf16.mxu0 %v6188
        %6252 = vmatpush1.bf16.msra.mxu0 %v6187
        %6253 = vmatprep.subr.bf16.mxu0 %v6190
        %6254 = vmatpush1.bf16.msra.mxu0 %v6189
        %6255 = vmatprep.subr.bf16.mxu0 %v6192
        %6256 = vmatpush1.bf16.msra.mxu0 %v6191
        %6257 = vmatprep.subr.bf16.mxu0 %v6194
        %6258 = vmatpush1.bf16.msra.mxu0 %v6193
        %6259 = vmatprep.subr.bf16.mxu0 %v6196
        %6260 = vmatpush1.bf16.msra.mxu0 %v6195
        %6261 = vmatprep.mubr.bf16.mxu0 %v6030
        %6262 = vmatmul.mubr.bf16.gmra.mrb[0].mxu0 %v6029
        %v6263 = vpop.f32.mrb[0].mxu0
        %v6264 = vadd.f32 0.0, %v6263
        %v6265 = vpop.f32.mrb[0].mxu0
        %v6266 = vadd.f32 0.0, %v6265
        %v6267 = vpop.f32.mrb[0].mxu0
        %v6268 = vadd.f32 0.0, %v6267
        %v6269 = vpop.f32.mrb[0].mxu0
        %v6270 = vadd.f32 0.0, %v6269
        %6271 = vmatprep.mubr.bf16.mxu0 %v6032
        %6272 = vmatmul.mubr.bf16.gmra.mrb[0].mxu0 %v6031
        %v6273 = vpop.f32.mrb[0].mxu0
        %v6274 = vadd.f32 0.0, %v6273
        %v6275 = vpop.f32.mrb[0].mxu0
        %v6276 = vadd.f32 0.0, %v6275
        %v6277 = vpop.f32.mrb[0].mxu0
        %v6278 = vadd.f32 0.0, %v6277
        %v6279 = vpop.f32.mrb[0].mxu0
        %v6280 = vadd.f32 0.0, %v6279
        %6281 = vmatprep.mubr.bf16.mxu0 %v6034
        %6282 = vmatmul.mubr.bf16.gmra.mrb[0].mxu0 %v6033
        %v6283 = vpop.f32.mrb[0].mxu0
        %v6284 = vadd.f32 0.0, %v6283
        %v6285 = vpop.f32.mrb[0].mxu0
        %v6286 = vadd.f32 0.0, %v6285
        %v6287 = vpop.f32.mrb[0].mxu0
        %v6288 = vadd.f32 0.0, %v6287
        %v6289 = vpop.f32.mrb[0].mxu0
        %v6290 = vadd.f32 0.0, %v6289
        %6291 = vmatprep.mubr.bf16.mxu0 %v6036
        %6292 = vmatmul.mubr.bf16.gmra.mrb[0].mxu0 %v6035
        %v6293 = vpop.f32.mrb[0].mxu0
        %v6294 = vadd.f32 0.0, %v6293
        %v6295 = vpop.f32.mrb[0].mxu0
        %v6296 = vadd.f32 0.0, %v6295
        %v6297 = vpop.f32.mrb[0].mxu0
        %v6298 = vadd.f32 0.0, %v6297
        %v6299 = vpop.f32.mrb[0].mxu0
        %v6300 = vadd.f32 0.0, %v6299
        %6301 = vdwg.mxu0
        %v6302 = vpack.c.bf16 %v6268, %v6264
        %v6303 = vpack.c.bf16 %v6270, %v6266
        %v6304 = vpack.c.bf16 %v6278, %v6274
        %v6305 = vpack.c.bf16 %v6280, %v6276
        %v6306 = vpack.c.bf16 %v6288, %v6284
        %v6307 = vpack.c.bf16 %v6290, %v6286
        %v6308 = vpack.c.bf16 %v6298, %v6294
        %v6309 = vpack.c.bf16 %v6300, %v6296
        %6310 = vst [vmem:[#allocation3] sm:$0xff] %v6302
        %6311 = vst [vmem:[#allocation3 + $0x8] sm:$0xff] %v6303
        %6312 = vst [vmem:[#allocation3 + $0x10] sm:$0xff] %v6304
        %6313 = vst [vmem:[#allocation3 + $0x18] sm:$0xff] %v6305
        %6314 = vst [vmem:[#allocation3 + $0x20] sm:$0xff] %v6306
        %6315 = vst [vmem:[#allocation3 + $0x28] sm:$0xff] %v6307
        %6316 = vst [vmem:[#allocation3 + $0x30] sm:$0xff] %v6308
        %6317 = vst [vmem:[#allocation3 + $0x38] sm:$0xff] %v6309
        %s6318 = scalar_lea.vmem [#allocation15], 256
        %v6319 = vld [vmem:[%s6318] sm:$0xff]
        %v6320 = vld [vmem:[%s6318 + $0x8] sm:$0xff]
        %v6321 = vld [vmem:[%s6318 + $0x10] sm:$0xff]
        %v6322 = vld [vmem:[%s6318 + $0x18] sm:$0xff]
        %v6323 = vld [vmem:[%s6318 + $0x20] sm:$0xff]
        %v6324 = vld [vmem:[%s6318 + $0x28] sm:$0xff]
        %v6325 = vld [vmem:[%s6318 + $0x30] sm:$0xff]
        %v6326 = vld [vmem:[%s6318 + $0x38] sm:$0xff]
        %v6327 = vld [vmem:[%s6318 + $0x40] sm:$0xff]
        %v6328 = vld [vmem:[%s6318 + $0x48] sm:$0xff]
        %v6329 = vld [vmem:[%s6318 + $0x50] sm:$0xff]
        %v6330 = vld [vmem:[%s6318 + $0x58] sm:$0xff]
        %v6331 = vld [vmem:[%s6318 + $0x60] sm:$0xff]
        %v6332 = vld [vmem:[%s6318 + $0x68] sm:$0xff]
        %v6333 = vld [vmem:[%s6318 + $0x70] sm:$0xff]
        %v6334 = vld [vmem:[%s6318 + $0x78] sm:$0xff]
        %v6335 = vld [vmem:[%s6318 + $0x80] sm:$0xff]
        %v6336 = vld [vmem:[%s6318 + $0x88] sm:$0xff]
        %v6337 = vld [vmem:[%s6318 + $0x90] sm:$0xff]
        %v6338 = vld [vmem:[%s6318 + $0x98] sm:$0xff]
        %v6339 = vld [vmem:[%s6318 + $0xa0] sm:$0xff]
        %v6340 = vld [vmem:[%s6318 + $0xa8] sm:$0xff]
        %v6341 = vld [vmem:[%s6318 + $0xb0] sm:$0xff]
        %v6342 = vld [vmem:[%s6318 + $0xb8] sm:$0xff]
        %v6343 = vld [vmem:[%s6318 + $0xc0] sm:$0xff]
        %v6344 = vld [vmem:[%s6318 + $0xc8] sm:$0xff]
        %v6345 = vld [vmem:[%s6318 + $0xd0] sm:$0xff]
        %v6346 = vld [vmem:[%s6318 + $0xd8] sm:$0xff]
        %v6347 = vld [vmem:[%s6318 + $0xe0] sm:$0xff]
        %v6348 = vld [vmem:[%s6318 + $0xe8] sm:$0xff]
        %v6349 = vld [vmem:[%s6318 + $0xf0] sm:$0xff]
        %v6350 = vld [vmem:[%s6318 + $0xf8] sm:$0xff]
        %v6383 = vunpack.c.l.b16 %v6319
        %v6384 = vunpack.c.h.b16 %v6319
        %v6385 = vunpack.c.l.b16 %v6320
        %v6386 = vunpack.c.h.b16 %v6320
        %v6387 = vunpack.c.l.b16 %v6321
        %v6388 = vunpack.c.h.b16 %v6321
        %v6389 = vunpack.c.l.b16 %v6322
        %v6390 = vunpack.c.h.b16 %v6322
        %v6391 = vunpack.c.l.b16 %v6323
        %v6392 = vunpack.c.h.b16 %v6323
        %v6393 = vunpack.c.l.b16 %v6324
        %v6394 = vunpack.c.h.b16 %v6324
        %v6395 = vunpack.c.l.b16 %v6325
        %v6396 = vunpack.c.h.b16 %v6325
        %v6397 = vunpack.c.l.b16 %v6326
        %v6398 = vunpack.c.h.b16 %v6326
        %v6399 = vunpack.c.l.b16 %v6327
        %v6400 = vunpack.c.h.b16 %v6327
        %v6401 = vunpack.c.l.b16 %v6328
        %v6402 = vunpack.c.h.b16 %v6328
        %v6403 = vunpack.c.l.b16 %v6329
        %v6404 = vunpack.c.h.b16 %v6329
        %v6405 = vunpack.c.l.b16 %v6330
        %v6406 = vunpack.c.h.b16 %v6330
        %v6407 = vunpack.c.l.b16 %v6331
        %v6408 = vunpack.c.h.b16 %v6331
        %v6409 = vunpack.c.l.b16 %v6332
        %v6410 = vunpack.c.h.b16 %v6332
        %v6411 = vunpack.c.l.b16 %v6333
        %v6412 = vunpack.c.h.b16 %v6333
        %v6413 = vunpack.c.l.b16 %v6334
        %v6414 = vunpack.c.h.b16 %v6334
        %v6415 = vunpack.c.l.b16 %v6335
        %v6416 = vunpack.c.h.b16 %v6335
        %v6417 = vunpack.c.l.b16 %v6336
        %v6418 = vunpack.c.h.b16 %v6336
        %v6419 = vunpack.c.l.b16 %v6337
        %v6420 = vunpack.c.h.b16 %v6337
        %v6421 = vunpack.c.l.b16 %v6338
        %v6422 = vunpack.c.h.b16 %v6338
        %v6423 = vunpack.c.l.b16 %v6339
        %v6424 = vunpack.c.h.b16 %v6339
        %v6425 = vunpack.c.l.b16 %v6340
        %v6426 = vunpack.c.h.b16 %v6340
        %v6427 = vunpack.c.l.b16 %v6341
        %v6428 = vunpack.c.h.b16 %v6341
        %v6429 = vunpack.c.l.b16 %v6342
        %v6430 = vunpack.c.h.b16 %v6342
        %v6431 = vunpack.c.l.b16 %v6343
        %v6432 = vunpack.c.h.b16 %v6343
        %v6433 = vunpack.c.l.b16 %v6344
        %v6434 = vunpack.c.h.b16 %v6344
        %v6435 = vunpack.c.l.b16 %v6345
        %v6436 = vunpack.c.h.b16 %v6345
        %v6437 = vunpack.c.l.b16 %v6346
        %v6438 = vunpack.c.h.b16 %v6346
        %v6439 = vunpack.c.l.b16 %v6347
        %v6440 = vunpack.c.h.b16 %v6347
        %v6441 = vunpack.c.l.b16 %v6348
        %v6442 = vunpack.c.h.b16 %v6348
        %v6443 = vunpack.c.l.b16 %v6349
        %v6444 = vunpack.c.h.b16 %v6349
        %v6445 = vunpack.c.l.b16 %v6350
        %v6446 = vunpack.c.h.b16 %v6350
        %v6447 = vpack.c.b16 %v6385, %v6383
        %v6448 = vpack.c.b16 %v6386, %v6384
        %v6449 = vpack.c.b16 %v6389, %v6387
        %v6450 = vpack.c.b16 %v6390, %v6388
        %v6451 = vpack.c.b16 %v6393, %v6391
        %v6452 = vpack.c.b16 %v6394, %v6392
        %v6453 = vpack.c.b16 %v6397, %v6395
        %v6454 = vpack.c.b16 %v6398, %v6396
        %v6455 = vpack.c.b16 %v6401, %v6399
        %v6456 = vpack.c.b16 %v6402, %v6400
        %v6457 = vpack.c.b16 %v6405, %v6403
        %v6458 = vpack.c.b16 %v6406, %v6404
        %v6459 = vpack.c.b16 %v6409, %v6407
        %v6460 = vpack.c.b16 %v6410, %v6408
        %v6461 = vpack.c.b16 %v6413, %v6411
        %v6462 = vpack.c.b16 %v6414, %v6412
        %v6463 = vpack.c.b16 %v6417, %v6415
        %v6464 = vpack.c.b16 %v6418, %v6416
        %v6465 = vpack.c.b16 %v6421, %v6419
        %v6466 = vpack.c.b16 %v6422, %v6420
        %v6467 = vpack.c.b16 %v6425, %v6423
        %v6468 = vpack.c.b16 %v6426, %v6424
        %v6469 = vpack.c.b16 %v6429, %v6427
        %v6470 = vpack.c.b16 %v6430, %v6428
        %v6471 = vpack.c.b16 %v6433, %v6431
        %v6472 = vpack.c.b16 %v6434, %v6432
        %v6473 = vpack.c.b16 %v6437, %v6435
        %v6474 = vpack.c.b16 %v6438, %v6436
        %v6475 = vpack.c.b16 %v6441, %v6439
        %v6476 = vpack.c.b16 %v6442, %v6440
        %v6477 = vpack.c.b16 %v6445, %v6443
        %v6478 = vpack.c.b16 %v6446, %v6444
        %6511 = vmatprep.subr.bf16.mxu0 %v6448
        %6512 = vmatpush1.bf16.msra.mxu0 %v6447
        %6513 = vmatprep.subr.bf16.mxu0 %v6450
        %6514 = vmatpush1.bf16.msra.mxu0 %v6449
        %6515 = vmatprep.subr.bf16.mxu0 %v6452
        %6516 = vmatpush1.bf16.msra.mxu0 %v6451
        %6517 = vmatprep.subr.bf16.mxu0 %v6454
        %6518 = vmatpush1.bf16.msra.mxu0 %v6453
        %6519 = vmatprep.subr.bf16.mxu0 %v6456
        %6520 = vmatpush1.bf16.msra.mxu0 %v6455
        %6521 = vmatprep.subr.bf16.mxu0 %v6458
        %6522 = vmatpush1.bf16.msra.mxu0 %v6457
        %6523 = vmatprep.subr.bf16.mxu0 %v6460
        %6524 = vmatpush1.bf16.msra.mxu0 %v6459
        %6525 = vmatprep.subr.bf16.mxu0 %v6462
        %6526 = vmatpush1.bf16.msra.mxu0 %v6461
        %6527 = vmatprep.subr.bf16.mxu0 %v6464
        %6528 = vmatpush1.bf16.msra.mxu0 %v6463
        %6529 = vmatprep.subr.bf16.mxu0 %v6466
        %6530 = vmatpush1.bf16.msra.mxu0 %v6465
        %6531 = vmatprep.subr.bf16.mxu0 %v6468
        %6532 = vmatpush1.bf16.msra.mxu0 %v6467
        %6533 = vmatprep.subr.bf16.mxu0 %v6470
        %6534 = vmatpush1.bf16.msra.mxu0 %v6469
        %6535 = vmatprep.subr.bf16.mxu0 %v6472
        %6536 = vmatpush1.bf16.msra.mxu0 %v6471
        %6537 = vmatprep.subr.bf16.mxu0 %v6474
        %6538 = vmatpush1.bf16.msra.mxu0 %v6473
        %6539 = vmatprep.subr.bf16.mxu0 %v6476
        %6540 = vmatpush1.bf16.msra.mxu0 %v6475
        %6541 = vmatprep.subr.bf16.mxu0 %v6478
        %6542 = vmatpush1.bf16.msra.mxu0 %v6477
        %6543 = vmatprep.mubr.bf16.mxu0 %v6030
        %6544 = vmatmul.mubr.bf16.gmra.mrb[0].mxu0 %v6029
        %v6545 = vpop.f32.mrb[0].mxu0
        %v6546 = vadd.f32 0.0, %v6545
        %v6547 = vpop.f32.mrb[0].mxu0
        %v6548 = vadd.f32 0.0, %v6547
        %v6549 = vpop.f32.mrb[0].mxu0
        %v6550 = vadd.f32 0.0, %v6549
        %v6551 = vpop.f32.mrb[0].mxu0
        %v6552 = vadd.f32 0.0, %v6551
        %6553 = vmatprep.mubr.bf16.mxu0 %v6032
        %6554 = vmatmul.mubr.bf16.gmra.mrb[0].mxu0 %v6031
        %v6555 = vpop.f32.mrb[0].mxu0
        %v6556 = vadd.f32 0.0, %v6555
        %v6557 = vpop.f32.mrb[0].mxu0
        %v6558 = vadd.f32 0.0, %v6557
        %v6559 = vpop.f32.mrb[0].mxu0
        %v6560 = vadd.f32 0.0, %v6559
        %v6561 = vpop.f32.mrb[0].mxu0
        %v6562 = vadd.f32 0.0, %v6561
        %6563 = vmatprep.mubr.bf16.mxu0 %v6034
        %6564 = vmatmul.mubr.bf16.gmra.mrb[0].mxu0 %v6033
        %v6565 = vpop.f32.mrb[0].mxu0
        %v6566 = vadd.f32 0.0, %v6565
        %v6567 = vpop.f32.mrb[0].mxu0
        %v6568 = vadd.f32 0.0, %v6567
        %v6569 = vpop.f32.mrb[0].mxu0
        %v6570 = vadd.f32 0.0, %v6569
        %v6571 = vpop.f32.mrb[0].mxu0
        %v6572 = vadd.f32 0.0, %v6571
        %6573 = vmatprep.mubr.bf16.mxu0 %v6036
        %6574 = vmatmul.mubr.bf16.gmra.mrb[0].mxu0 %v6035
        %v6575 = vpop.f32.mrb[0].mxu0
        %v6576 = vadd.f32 0.0, %v6575
        %v6577 = vpop.f32.mrb[0].mxu0
        %v6578 = vadd.f32 0.0, %v6577
        %v6579 = vpop.f32.mrb[0].mxu0
        %v6580 = vadd.f32 0.0, %v6579
        %v6581 = vpop.f32.mrb[0].mxu0
        %v6582 = vadd.f32 0.0, %v6581
        %6583 = vdwg.mxu0
        %v6584 = vpack.c.bf16 %v6550, %v6546
        %v6585 = vpack.c.bf16 %v6552, %v6548
        %v6586 = vpack.c.bf16 %v6560, %v6556
        %v6587 = vpack.c.bf16 %v6562, %v6558
        %v6588 = vpack.c.bf16 %v6570, %v6566
        %v6589 = vpack.c.bf16 %v6572, %v6568
        %v6590 = vpack.c.bf16 %v6580, %v6576
        %v6591 = vpack.c.bf16 %v6582, %v6578
        %6592 = vst [vmem:[#allocation3 + $0x40] sm:$0xff] %v6584
        %6593 = vst [vmem:[#allocation3 + $0x48] sm:$0xff] %v6585
        %6594 = vst [vmem:[#allocation3 + $0x50] sm:$0xff] %v6586
        %6595 = vst [vmem:[#allocation3 + $0x58] sm:$0xff] %v6587
        %6596 = vst [vmem:[#allocation3 + $0x60] sm:$0xff] %v6588
        %6597 = vst [vmem:[#allocation3 + $0x68] sm:$0xff] %v6589
        %6598 = vst [vmem:[#allocation3 + $0x70] sm:$0xff] %v6590
        %6599 = vst [vmem:[#allocation3 + $0x78] sm:$0xff] %v6591
        %s6600 = scalar_lea.vmem [#allocation15], 512
        %v6601 = vld [vmem:[%s6600] sm:$0xff]
        %v6602 = vld [vmem:[%s6600 + $0x8] sm:$0xff]
        %v6603 = vld [vmem:[%s6600 + $0x10] sm:$0xff]
        %v6604 = vld [vmem:[%s6600 + $0x18] sm:$0xff]
        %v6605 = vld [vmem:[%s6600 + $0x20] sm:$0xff]
        %v6606 = vld [vmem:[%s6600 + $0x28] sm:$0xff]
        %v6607 = vld [vmem:[%s6600 + $0x30] sm:$0xff]
        %v6608 = vld [vmem:[%s6600 + $0x38] sm:$0xff]
        %v6609 = vld [vmem:[%s6600 + $0x40] sm:$0xff]
        %v6610 = vld [vmem:[%s6600 + $0x48] sm:$0xff]
        %v6611 = vld [vmem:[%s6600 + $0x50] sm:$0xff]
        %v6612 = vld [vmem:[%s6600 + $0x58] sm:$0xff]
        %v6613 = vld [vmem:[%s6600 + $0x60] sm:$0xff]
        %v6614 = vld [vmem:[%s6600 + $0x68] sm:$0xff]
        %v6615 = vld [vmem:[%s6600 + $0x70] sm:$0xff]
        %v6616 = vld [vmem:[%s6600 + $0x78] sm:$0xff]
        %v6617 = vld [vmem:[%s6600 + $0x80] sm:$0xff]
        %v6618 = vld [vmem:[%s6600 + $0x88] sm:$0xff]
        %v6619 = vld [vmem:[%s6600 + $0x90] sm:$0xff]
        %v6620 = vld [vmem:[%s6600 + $0x98] sm:$0xff]
        %v6621 = vld [vmem:[%s6600 + $0xa0] sm:$0xff]
        %v6622 = vld [vmem:[%s6600 + $0xa8] sm:$0xff]
        %v6623 = vld [vmem:[%s6600 + $0xb0] sm:$0xff]
        %v6624 = vld [vmem:[%s6600 + $0xb8] sm:$0xff]
        %v6625 = vld [vmem:[%s6600 + $0xc0] sm:$0xff]
        %v6626 = vld [vmem:[%s6600 + $0xc8] sm:$0xff]
        %v6627 = vld [vmem:[%s6600 + $0xd0] sm:$0xff]
        %v6628 = vld [vmem:[%s6600 + $0xd8] sm:$0xff]
        %v6629 = vld [vmem:[%s6600 + $0xe0] sm:$0xff]
        %v6630 = vld [vmem:[%s6600 + $0xe8] sm:$0xff]
        %v6631 = vld [vmem:[%s6600 + $0xf0] sm:$0xff]
        %v6632 = vld [vmem:[%s6600 + $0xf8] sm:$0xff]
        %v6665 = vunpack.c.l.b16 %v6601
        %v6666 = vunpack.c.h.b16 %v6601
        %v6667 = vunpack.c.l.b16 %v6602
        %v6668 = vunpack.c.h.b16 %v6602
        %v6669 = vunpack.c.l.b16 %v6603
        %v6670 = vunpack.c.h.b16 %v6603
        %v6671 = vunpack.c.l.b16 %v6604
        %v6672 = vunpack.c.h.b16 %v6604
        %v6673 = vunpack.c.l.b16 %v6605
        %v6674 = vunpack.c.h.b16 %v6605
        %v6675 = vunpack.c.l.b16 %v6606
        %v6676 = vunpack.c.h.b16 %v6606
        %v6677 = vunpack.c.l.b16 %v6607
        %v6678 = vunpack.c.h.b16 %v6607
        %v6679 = vunpack.c.l.b16 %v6608
        %v6680 = vunpack.c.h.b16 %v6608
        %v6681 = vunpack.c.l.b16 %v6609
        %v6682 = vunpack.c.h.b16 %v6609
        %v6683 = vunpack.c.l.b16 %v6610
        %v6684 = vunpack.c.h.b16 %v6610
        %v6685 = vunpack.c.l.b16 %v6611
        %v6686 = vunpack.c.h.b16 %v6611
        %v6687 = vunpack.c.l.b16 %v6612
        %v6688 = vunpack.c.h.b16 %v6612
        %v6689 = vunpack.c.l.b16 %v6613
        %v6690 = vunpack.c.h.b16 %v6613
        %v6691 = vunpack.c.l.b16 %v6614
        %v6692 = vunpack.c.h.b16 %v6614
        %v6693 = vunpack.c.l.b16 %v6615
        %v6694 = vunpack.c.h.b16 %v6615
        %v6695 = vunpack.c.l.b16 %v6616
        %v6696 = vunpack.c.h.b16 %v6616
        %v6697 = vunpack.c.l.b16 %v6617
        %v6698 = vunpack.c.h.b16 %v6617
        %v6699 = vunpack.c.l.b16 %v6618
        %v6700 = vunpack.c.h.b16 %v6618
        %v6701 = vunpack.c.l.b16 %v6619
        %v6702 = vunpack.c.h.b16 %v6619
        %v6703 = vunpack.c.l.b16 %v6620
        %v6704 = vunpack.c.h.b16 %v6620
        %v6705 = vunpack.c.l.b16 %v6621
        %v6706 = vunpack.c.h.b16 %v6621
        %v6707 = vunpack.c.l.b16 %v6622
        %v6708 = vunpack.c.h.b16 %v6622
        %v6709 = vunpack.c.l.b16 %v6623
        %v6710 = vunpack.c.h.b16 %v6623
        %v6711 = vunpack.c.l.b16 %v6624
        %v6712 = vunpack.c.h.b16 %v6624
        %v6713 = vunpack.c.l.b16 %v6625
        %v6714 = vunpack.c.h.b16 %v6625
        %v6715 = vunpack.c.l.b16 %v6626
        %v6716 = vunpack.c.h.b16 %v6626
        %v6717 = vunpack.c.l.b16 %v6627
        %v6718 = vunpack.c.h.b16 %v6627
        %v6719 = vunpack.c.l.b16 %v6628
        %v6720 = vunpack.c.h.b16 %v6628
        %v6721 = vunpack.c.l.b16 %v6629
        %v6722 = vunpack.c.h.b16 %v6629
        %v6723 = vunpack.c.l.b16 %v6630
        %v6724 = vunpack.c.h.b16 %v6630
        %v6725 = vunpack.c.l.b16 %v6631
        %v6726 = vunpack.c.h.b16 %v6631
        %v6727 = vunpack.c.l.b16 %v6632
        %v6728 = vunpack.c.h.b16 %v6632
        %v6729 = vpack.c.b16 %v6667, %v6665
        %v6730 = vpack.c.b16 %v6668, %v6666
        %v6731 = vpack.c.b16 %v6671, %v6669
        %v6732 = vpack.c.b16 %v6672, %v6670
        %v6733 = vpack.c.b16 %v6675, %v6673
        %v6734 = vpack.c.b16 %v6676, %v6674
        %v6735 = vpack.c.b16 %v6679, %v6677
        %v6736 = vpack.c.b16 %v6680, %v6678
        %v6737 = vpack.c.b16 %v6683, %v6681
        %v6738 = vpack.c.b16 %v6684, %v6682
        %v6739 = vpack.c.b16 %v6687, %v6685
        %v6740 = vpack.c.b16 %v6688, %v6686
        %v6741 = vpack.c.b16 %v6691, %v6689
        %v6742 = vpack.c.b16 %v6692, %v6690
        %v6743 = vpack.c.b16 %v6695, %v6693
        %v6744 = vpack.c.b16 %v6696, %v6694
        %v6745 = vpack.c.b16 %v6699, %v6697
        %v6746 = vpack.c.b16 %v6700, %v6698
        %v6747 = vpack.c.b16 %v6703, %v6701
        %v6748 = vpack.c.b16 %v6704, %v6702
        %v6749 = vpack.c.b16 %v6707, %v6705
        %v6750 = vpack.c.b16 %v6708, %v6706
        %v6751 = vpack.c.b16 %v6711, %v6709
        %v6752 = vpack.c.b16 %v6712, %v6710
        %v6753 = vpack.c.b16 %v6715, %v6713
        %v6754 = vpack.c.b16 %v6716, %v6714
        %v6755 = vpack.c.b16 %v6719, %v6717
        %v6756 = vpack.c.b16 %v6720, %v6718
        %v6757 = vpack.c.b16 %v6723, %v6721
        %v6758 = vpack.c.b16 %v6724, %v6722
        %v6759 = vpack.c.b16 %v6727, %v6725
        %v6760 = vpack.c.b16 %v6728, %v6726
        %6793 = vmatprep.subr.bf16.mxu0 %v6730
        %6794 = vmatpush1.bf16.msra.mxu0 %v6729
        %6795 = vmatprep.subr.bf16.mxu0 %v6732
        %6796 = vmatpush1.bf16.msra.mxu0 %v6731
        %6797 = vmatprep.subr.bf16.mxu0 %v6734
        %6798 = vmatpush1.bf16.msra.mxu0 %v6733
        %6799 = vmatprep.subr.bf16.mxu0 %v6736
        %6800 = vmatpush1.bf16.msra.mxu0 %v6735
        %6801 = vmatprep.subr.bf16.mxu0 %v6738
        %6802 = vmatpush1.bf16.msra.mxu0 %v6737
        %6803 = vmatprep.subr.bf16.mxu0 %v6740
        %6804 = vmatpush1.bf16.msra.mxu0 %v6739
        %6805 = vmatprep.subr.bf16.mxu0 %v6742
        %6806 = vmatpush1.bf16.msra.mxu0 %v6741
        %6807 = vmatprep.subr.bf16.mxu0 %v6744
        %6808 = vmatpush1.bf16.msra.mxu0 %v6743
        %6809 = vmatprep.subr.bf16.mxu0 %v6746
        %6810 = vmatpush1.bf16.msra.mxu0 %v6745
        %6811 = vmatprep.subr.bf16.mxu0 %v6748
        %6812 = vmatpush1.bf16.msra.mxu0 %v6747
        %6813 = vmatprep.subr.bf16.mxu0 %v6750
        %6814 = vmatpush1.bf16.msra.mxu0 %v6749
        %6815 = vmatprep.subr.bf16.mxu0 %v6752
        %6816 = vmatpush1.bf16.msra.mxu0 %v6751
        %6817 = vmatprep.subr.bf16.mxu0 %v6754
        %6818 = vmatpush1.bf16.msra.mxu0 %v6753
        %6819 = vmatprep.subr.bf16.mxu0 %v6756
        %6820 = vmatpush1.bf16.msra.mxu0 %v6755
        %6821 = vmatprep.subr.bf16.mxu0 %v6758
        %6822 = vmatpush1.bf16.msra.mxu0 %v6757
        %6823 = vmatprep.subr.bf16.mxu0 %v6760
        %6824 = vmatpush1.bf16.msra.mxu0 %v6759
        %6825 = vmatprep.mubr.bf16.mxu0 %v6030
        %6826 = vmatmul.mubr.bf16.gmra.mrb[0].mxu0 %v6029
        %v6827 = vpop.f32.mrb[0].mxu0
        %v6828 = vadd.f32 0.0, %v6827
        %v6829 = vpop.f32.mrb[0].mxu0
        %v6830 = vadd.f32 0.0, %v6829
        %v6831 = vpop.f32.mrb[0].mxu0
        %v6832 = vadd.f32 0.0, %v6831
        %v6833 = vpop.f32.mrb[0].mxu0
        %v6834 = vadd.f32 0.0, %v6833
        %6835 = vmatprep.mubr.bf16.mxu0 %v6032
        %6836 = vmatmul.mubr.bf16.gmra.mrb[0].mxu0 %v6031
        %v6837 = vpop.f32.mrb[0].mxu0
        %v6838 = vadd.f32 0.0, %v6837
        %v6839 = vpop.f32.mrb[0].mxu0
        %v6840 = vadd.f32 0.0, %v6839
        %v6841 = vpop.f32.mrb[0].mxu0
        %v6842 = vadd.f32 0.0, %v6841
        %v6843 = vpop.f32.mrb[0].mxu0
        %v6844 = vadd.f32 0.0, %v6843
        %6845 = vmatprep.mubr.bf16.mxu0 %v6034
        %6846 = vmatmul.mubr.bf16.gmra.mrb[0].mxu0 %v6033
        %v6847 = vpop.f32.mrb[0].mxu0
        %v6848 = vadd.f32 0.0, %v6847
        %v6849 = vpop.f32.mrb[0].mxu0
        %v6850 = vadd.f32 0.0, %v6849
        %v6851 = vpop.f32.mrb[0].mxu0
        %v6852 = vadd.f32 0.0, %v6851
        %v6853 = vpop.f32.mrb[0].mxu0
        %v6854 = vadd.f32 0.0, %v6853
        %6855 = vmatprep.mubr.bf16.mxu0 %v6036
        %6856 = vmatmul.mubr.bf16.gmra.mrb[0].mxu0 %v6035
        %v6857 = vpop.f32.mrb[0].mxu0
        %v6858 = vadd.f32 0.0, %v6857
        %v6859 = vpop.f32.mrb[0].mxu0
        %v6860 = vadd.f32 0.0, %v6859
        %v6861 = vpop.f32.mrb[0].mxu0
        %v6862 = vadd.f32 0.0, %v6861
        %v6863 = vpop.f32.mrb[0].mxu0
        %v6864 = vadd.f32 0.0, %v6863
        %6865 = vdwg.mxu0
        %v6866 = vpack.c.bf16 %v6832, %v6828
        %v6867 = vpack.c.bf16 %v6834, %v6830
        %v6868 = vpack.c.bf16 %v6842, %v6838
        %v6869 = vpack.c.bf16 %v6844, %v6840
        %v6870 = vpack.c.bf16 %v6852, %v6848
        %v6871 = vpack.c.bf16 %v6854, %v6850
        %v6872 = vpack.c.bf16 %v6862, %v6858
        %v6873 = vpack.c.bf16 %v6864, %v6860
        %6874 = vst [vmem:[#allocation3 + $0x80] sm:$0xff] %v6866
        %6875 = vst [vmem:[#allocation3 + $0x88] sm:$0xff] %v6867
        %6876 = vst [vmem:[#allocation3 + $0x90] sm:$0xff] %v6868
        %6877 = vst [vmem:[#allocation3 + $0x98] sm:$0xff] %v6869
        %6878 = vst [vmem:[#allocation3 + $0xa0] sm:$0xff] %v6870
        %6879 = vst [vmem:[#allocation3 + $0xa8] sm:$0xff] %v6871
        %6880 = vst [vmem:[#allocation3 + $0xb0] sm:$0xff] %v6872
        %6881 = vst [vmem:[#allocation3 + $0xb8] sm:$0xff] %v6873
        %s6882 = scalar_lea.vmem [#allocation15], 768
        %v6883 = vld [vmem:[%s6882] sm:$0xff]
        %v6884 = vld [vmem:[%s6882 + $0x8] sm:$0xff]
        %v6885 = vld [vmem:[%s6882 + $0x10] sm:$0xff]
        %v6886 = vld [vmem:[%s6882 + $0x18] sm:$0xff]
        %v6887 = vld [vmem:[%s6882 + $0x20] sm:$0xff]
        %v6888 = vld [vmem:[%s6882 + $0x28] sm:$0xff]
        %v6889 = vld [vmem:[%s6882 + $0x30] sm:$0xff]
        %v6890 = vld [vmem:[%s6882 + $0x38] sm:$0xff]
        %v6891 = vld [vmem:[%s6882 + $0x40] sm:$0xff]
        %v6892 = vld [vmem:[%s6882 + $0x48] sm:$0xff]
        %v6893 = vld [vmem:[%s6882 + $0x50] sm:$0xff]
        %v6894 = vld [vmem:[%s6882 + $0x58] sm:$0xff]
        %v6895 = vld [vmem:[%s6882 + $0x60] sm:$0xff]
        %v6896 = vld [vmem:[%s6882 + $0x68] sm:$0xff]
        %v6897 = vld [vmem:[%s6882 + $0x70] sm:$0xff]
        %v6898 = vld [vmem:[%s6882 + $0x78] sm:$0xff]
        %v6899 = vld [vmem:[%s6882 + $0x80] sm:$0xff]
        %v6900 = vld [vmem:[%s6882 + $0x88] sm:$0xff]
        %v6901 = vld [vmem:[%s6882 + $0x90] sm:$0xff]
        %v6902 = vld [vmem:[%s6882 + $0x98] sm:$0xff]
        %v6903 = vld [vmem:[%s6882 + $0xa0] sm:$0xff]
        %v6904 = vld [vmem:[%s6882 + $0xa8] sm:$0xff]
        %v6905 = vld [vmem:[%s6882 + $0xb0] sm:$0xff]
        %v6906 = vld [vmem:[%s6882 + $0xb8] sm:$0xff]
        %v6907 = vld [vmem:[%s6882 + $0xc0] sm:$0xff]
        %v6908 = vld [vmem:[%s6882 + $0xc8] sm:$0xff]
        %v6909 = vld [vmem:[%s6882 + $0xd0] sm:$0xff]
        %v6910 = vld [vmem:[%s6882 + $0xd8] sm:$0xff]
        %v6911 = vld [vmem:[%s6882 + $0xe0] sm:$0xff]
        %v6912 = vld [vmem:[%s6882 + $0xe8] sm:$0xff]
        %v6913 = vld [vmem:[%s6882 + $0xf0] sm:$0xff]
        %v6914 = vld [vmem:[%s6882 + $0xf8] sm:$0xff]
        %v6947 = vunpack.c.l.b16 %v6883
        %v6948 = vunpack.c.h.b16 %v6883
        %v6949 = vunpack.c.l.b16 %v6884
        %v6950 = vunpack.c.h.b16 %v6884
        %v6951 = vunpack.c.l.b16 %v6885
        %v6952 = vunpack.c.h.b16 %v6885
        %v6953 = vunpack.c.l.b16 %v6886
        %v6954 = vunpack.c.h.b16 %v6886
        %v6955 = vunpack.c.l.b16 %v6887
        %v6956 = vunpack.c.h.b16 %v6887
        %v6957 = vunpack.c.l.b16 %v6888
        %v6958 = vunpack.c.h.b16 %v6888
        %v6959 = vunpack.c.l.b16 %v6889
        %v6960 = vunpack.c.h.b16 %v6889
        %v6961 = vunpack.c.l.b16 %v6890
        %v6962 = vunpack.c.h.b16 %v6890
        %v6963 = vunpack.c.l.b16 %v6891
        %v6964 = vunpack.c.h.b16 %v6891
        %v6965 = vunpack.c.l.b16 %v6892
        %v6966 = vunpack.c.h.b16 %v6892
        %v6967 = vunpack.c.l.b16 %v6893
        %v6968 = vunpack.c.h.b16 %v6893
        %v6969 = vunpack.c.l.b16 %v6894
        %v6970 = vunpack.c.h.b16 %v6894
        %v6971 = vunpack.c.l.b16 %v6895
        %v6972 = vunpack.c.h.b16 %v6895
        %v6973 = vunpack.c.l.b16 %v6896
        %v6974 = vunpack.c.h.b16 %v6896
        %v6975 = vunpack.c.l.b16 %v6897
        %v6976 = vunpack.c.h.b16 %v6897
        %v6977 = vunpack.c.l.b16 %v6898
        %v6978 = vunpack.c.h.b16 %v6898
        %v6979 = vunpack.c.l.b16 %v6899
        %v6980 = vunpack.c.h.b16 %v6899
        %v6981 = vunpack.c.l.b16 %v6900
        %v6982 = vunpack.c.h.b16 %v6900
        %v6983 = vunpack.c.l.b16 %v6901
        %v6984 = vunpack.c.h.b16 %v6901
        %v6985 = vunpack.c.l.b16 %v6902
        %v6986 = vunpack.c.h.b16 %v6902
        %v6987 = vunpack.c.l.b16 %v6903
        %v6988 = vunpack.c.h.b16 %v6903
        %v6989 = vunpack.c.l.b16 %v6904
        %v6990 = vunpack.c.h.b16 %v6904
        %v6991 = vunpack.c.l.b16 %v6905
        %v6992 = vunpack.c.h.b16 %v6905
        %v6993 = vunpack.c.l.b16 %v6906
        %v6994 = vunpack.c.h.b16 %v6906
        %v6995 = vunpack.c.l.b16 %v6907
        %v6996 = vunpack.c.h.b16 %v6907
        %v6997 = vunpack.c.l.b16 %v6908
        %v6998 = vunpack.c.h.b16 %v6908
        %v6999 = vunpack.c.l.b16 %v6909
        %v7000 = vunpack.c.h.b16 %v6909
        %v7001 = vunpack.c.l.b16 %v6910
        %v7002 = vunpack.c.h.b16 %v6910
        %v7003 = vunpack.c.l.b16 %v6911
        %v7004 = vunpack.c.h.b16 %v6911
        %v7005 = vunpack.c.l.b16 %v6912
        %v7006 = vunpack.c.h.b16 %v6912
        %v7007 = vunpack.c.l.b16 %v6913
        %v7008 = vunpack.c.h.b16 %v6913
        %v7009 = vunpack.c.l.b16 %v6914
        %v7010 = vunpack.c.h.b16 %v6914
        %v7011 = vpack.c.b16 %v6949, %v6947
        %v7012 = vpack.c.b16 %v6950, %v6948
        %v7013 = vpack.c.b16 %v6953, %v6951
        %v7014 = vpack.c.b16 %v6954, %v6952
        %v7015 = vpack.c.b16 %v6957, %v6955
        %v7016 = vpack.c.b16 %v6958, %v6956
        %v7017 = vpack.c.b16 %v6961, %v6959
        %v7018 = vpack.c.b16 %v6962, %v6960
        %v7019 = vpack.c.b16 %v6965, %v6963
        %v7020 = vpack.c.b16 %v6966, %v6964
        %v7021 = vpack.c.b16 %v6969, %v6967
        %v7022 = vpack.c.b16 %v6970, %v6968
        %v7023 = vpack.c.b16 %v6973, %v6971
        %v7024 = vpack.c.b16 %v6974, %v6972
        %v7025 = vpack.c.b16 %v6977, %v6975
        %v7026 = vpack.c.b16 %v6978, %v6976
        %v7027 = vpack.c.b16 %v6981, %v6979
        %v7028 = vpack.c.b16 %v6982, %v6980
        %v7029 = vpack.c.b16 %v6985, %v6983
        %v7030 = vpack.c.b16 %v6986, %v6984
        %v7031 = vpack.c.b16 %v6989, %v6987
        %v7032 = vpack.c.b16 %v6990, %v6988
        %v7033 = vpack.c.b16 %v6993, %v6991
        %v7034 = vpack.c.b16 %v6994, %v6992
        %v7035 = vpack.c.b16 %v6997, %v6995
        %v7036 = vpack.c.b16 %v6998, %v6996
        %v7037 = vpack.c.b16 %v7001, %v6999
        %v7038 = vpack.c.b16 %v7002, %v7000
        %v7039 = vpack.c.b16 %v7005, %v7003
        %v7040 = vpack.c.b16 %v7006, %v7004
        %v7041 = vpack.c.b16 %v7009, %v7007
        %v7042 = vpack.c.b16 %v7010, %v7008
        %7075 = vmatprep.subr.bf16.mxu0 %v7012
        %7076 = vmatpush1.bf16.msra.mxu0 %v7011
        %7077 = vmatprep.subr.bf16.mxu0 %v7014
        %7078 = vmatpush1.bf16.msra.mxu0 %v7013
        %7079 = vmatprep.subr.bf16.mxu0 %v7016
        %7080 = vmatpush1.bf16.msra.mxu0 %v7015
        %7081 = vmatprep.subr.bf16.mxu0 %v7018
        %7082 = vmatpush1.bf16.msra.mxu0 %v7017
        %7083 = vmatprep.subr.bf16.mxu0 %v7020
        %7084 = vmatpush1.bf16.msra.mxu0 %v7019
        %7085 = vmatprep.subr.bf16.mxu0 %v7022
        %7086 = vmatpush1.bf16.msra.mxu0 %v7021
        %7087 = vmatprep.subr.bf16.mxu0 %v7024
        %7088 = vmatpush1.bf16.msra.mxu0 %v7023
        %7089 = vmatprep.subr.bf16.mxu0 %v7026
        %7090 = vmatpush1.bf16.msra.mxu0 %v7025
        %7091 = vmatprep.subr.bf16.mxu0 %v7028
        %7092 = vmatpush1.bf16.msra.mxu0 %v7027
        %7093 = vmatprep.subr.bf16.mxu0 %v7030
        %7094 = vmatpush1.bf16.msra.mxu0 %v7029
        %7095 = vmatprep.subr.bf16.mxu0 %v7032
        %7096 = vmatpush1.bf16.msra.mxu0 %v7031
        %7097 = vmatprep.subr.bf16.mxu0 %v7034
        %7098 = vmatpush1.bf16.msra.mxu0 %v7033
        %7099 = vmatprep.subr.bf16.mxu0 %v7036
        %7100 = vmatpush1.bf16.msra.mxu0 %v7035
        %7101 = vmatprep.subr.bf16.mxu0 %v7038
        %7102 = vmatpush1.bf16.msra.mxu0 %v7037
        %7103 = vmatprep.subr.bf16.mxu0 %v7040
        %7104 = vmatpush1.bf16.msra.mxu0 %v7039
        %7105 = vmatprep.subr.bf16.mxu0 %v7042
        %7106 = vmatpush1.bf16.msra.mxu0 %v7041
        %7107 = vmatprep.mubr.bf16.mxu0 %v6030
        %7108 = vmatmul.mubr.bf16.gmra.mrb[0].mxu0 %v6029
        %v7109 = vpop.f32.mrb[0].mxu0
        %v7110 = vadd.f32 0.0, %v7109
        %v7111 = vpop.f32.mrb[0].mxu0
        %v7112 = vadd.f32 0.0, %v7111
        %v7113 = vpop.f32.mrb[0].mxu0
        %v7114 = vadd.f32 0.0, %v7113
        %v7115 = vpop.f32.mrb[0].mxu0
        %v7116 = vadd.f32 0.0, %v7115
        %7117 = vmatprep.mubr.bf16.mxu0 %v6032
        %7118 = vmatmul.mubr.bf16.gmra.mrb[0].mxu0 %v6031
        %v7119 = vpop.f32.mrb[0].mxu0
        %v7120 = vadd.f32 0.0, %v7119
        %v7121 = vpop.f32.mrb[0].mxu0
        %v7122 = vadd.f32 0.0, %v7121
        %v7123 = vpop.f32.mrb[0].mxu0
        %v7124 = vadd.f32 0.0, %v7123
        %v7125 = vpop.f32.mrb[0].mxu0
        %v7126 = vadd.f32 0.0, %v7125
        %7127 = vmatprep.mubr.bf16.mxu0 %v6034
        %7128 = vmatmul.mubr.bf16.gmra.mrb[0].mxu0 %v6033
        %v7129 = vpop.f32.mrb[0].mxu0
        %v7130 = vadd.f32 0.0, %v7129
        %v7131 = vpop.f32.mrb[0].mxu0
        %v7132 = vadd.f32 0.0, %v7131
        %v7133 = vpop.f32.mrb[0].mxu0
        %v7134 = vadd.f32 0.0, %v7133
        %v7135 = vpop.f32.mrb[0].mxu0
        %v7136 = vadd.f32 0.0, %v7135
        %7137 = vmatprep.mubr.bf16.mxu0 %v6036
        %7138 = vmatmul.mubr.bf16.gmra.mrb[0].mxu0 %v6035
        %v7139 = vpop.f32.mrb[0].mxu0
        %v7140 = vadd.f32 0.0, %v7139
        %v7141 = vpop.f32.mrb[0].mxu0
        %v7142 = vadd.f32 0.0, %v7141
        %v7143 = vpop.f32.mrb[0].mxu0
        %v7144 = vadd.f32 0.0, %v7143
        %v7145 = vpop.f32.mrb[0].mxu0
        %v7146 = vadd.f32 0.0, %v7145
        %7147 = vdwg.mxu0
        %v7148 = vpack.c.bf16 %v7114, %v7110
        %v7149 = vpack.c.bf16 %v7116, %v7112
        %v7150 = vpack.c.bf16 %v7124, %v7120
        %v7151 = vpack.c.bf16 %v7126, %v7122
        %v7152 = vpack.c.bf16 %v7134, %v7130
        %v7153 = vpack.c.bf16 %v7136, %v7132
        %v7154 = vpack.c.bf16 %v7144, %v7140
        %v7155 = vpack.c.bf16 %v7146, %v7142
        %7156 = vst [vmem:[#allocation3 + $0xc0] sm:$0xff] %v7148
        %7157 = vst [vmem:[#allocation3 + $0xc8] sm:$0xff] %v7149
        %7158 = vst [vmem:[#allocation3 + $0xd0] sm:$0xff] %v7150
        %7159 = vst [vmem:[#allocation3 + $0xd8] sm:$0xff] %v7151
        %7160 = vst [vmem:[#allocation3 + $0xe0] sm:$0xff] %v7152
        %7161 = vst [vmem:[#allocation3 + $0xe8] sm:$0xff] %v7153
        %7162 = vst [vmem:[#allocation3 + $0xf0] sm:$0xff] %v7154
        %7163 = vst [vmem:[#allocation3 + $0xf8] sm:$0xff] %v7155
        %s7164 = scalar_lea.vmem [#allocation15], 1024
        %v7165 = vld [vmem:[%s7164] sm:$0xff]
        %v7166 = vld [vmem:[%s7164 + $0x8] sm:$0xff]
        %v7167 = vld [vmem:[%s7164 + $0x10] sm:$0xff]
        %v7168 = vld [vmem:[%s7164 + $0x18] sm:$0xff]
        %v7169 = vld [vmem:[%s7164 + $0x20] sm:$0xff]
        %v7170 = vld [vmem:[%s7164 + $0x28] sm:$0xff]
        %v7171 = vld [vmem:[%s7164 + $0x30] sm:$0xff]
        %v7172 = vld [vmem:[%s7164 + $0x38] sm:$0xff]
        %v7173 = vld [vmem:[%s7164 + $0x40] sm:$0xff]
        %v7174 = vld [vmem:[%s7164 + $0x48] sm:$0xff]
        %v7175 = vld [vmem:[%s7164 + $0x50] sm:$0xff]
        %v7176 = vld [vmem:[%s7164 + $0x58] sm:$0xff]
        %v7177 = vld [vmem:[%s7164 + $0x60] sm:$0xff]
        %v7178 = vld [vmem:[%s7164 + $0x68] sm:$0xff]
        %v7179 = vld [vmem:[%s7164 + $0x70] sm:$0xff]
        %v7180 = vld [vmem:[%s7164 + $0x78] sm:$0xff]
        %v7181 = vld [vmem:[%s7164 + $0x80] sm:$0xff]
        %v7182 = vld [vmem:[%s7164 + $0x88] sm:$0xff]
        %v7183 = vld [vmem:[%s7164 + $0x90] sm:$0xff]
        %v7184 = vld [vmem:[%s7164 + $0x98] sm:$0xff]
        %v7185 = vld [vmem:[%s7164 + $0xa0] sm:$0xff]
        %v7186 = vld [vmem:[%s7164 + $0xa8] sm:$0xff]
        %v7187 = vld [vmem:[%s7164 + $0xb0] sm:$0xff]
        %v7188 = vld [vmem:[%s7164 + $0xb8] sm:$0xff]
        %v7189 = vld [vmem:[%s7164 + $0xc0] sm:$0xff]
        %v7190 = vld [vmem:[%s7164 + $0xc8] sm:$0xff]
        %v7191 = vld [vmem:[%s7164 + $0xd0] sm:$0xff]
        %v7192 = vld [vmem:[%s7164 + $0xd8] sm:$0xff]
        %v7193 = vld [vmem:[%s7164 + $0xe0] sm:$0xff]
        %v7194 = vld [vmem:[%s7164 + $0xe8] sm:$0xff]
        %v7195 = vld [vmem:[%s7164 + $0xf0] sm:$0xff]
        %v7196 = vld [vmem:[%s7164 + $0xf8] sm:$0xff]
        %v7229 = vunpack.c.l.b16 %v7165
        %v7230 = vunpack.c.h.b16 %v7165
        %v7231 = vunpack.c.l.b16 %v7166
        %v7232 = vunpack.c.h.b16 %v7166
        %v7233 = vunpack.c.l.b16 %v7167
        %v7234 = vunpack.c.h.b16 %v7167
        %v7235 = vunpack.c.l.b16 %v7168
        %v7236 = vunpack.c.h.b16 %v7168
        %v7237 = vunpack.c.l.b16 %v7169
        %v7238 = vunpack.c.h.b16 %v7169
        %v7239 = vunpack.c.l.b16 %v7170
        %v7240 = vunpack.c.h.b16 %v7170
        %v7241 = vunpack.c.l.b16 %v7171
        %v7242 = vunpack.c.h.b16 %v7171
        %v7243 = vunpack.c.l.b16 %v7172
        %v7244 = vunpack.c.h.b16 %v7172
        %v7245 = vunpack.c.l.b16 %v7173
        %v7246 = vunpack.c.h.b16 %v7173
        %v7247 = vunpack.c.l.b16 %v7174
        %v7248 = vunpack.c.h.b16 %v7174
        %v7249 = vunpack.c.l.b16 %v7175
        %v7250 = vunpack.c.h.b16 %v7175
        %v7251 = vunpack.c.l.b16 %v7176
        %v7252 = vunpack.c.h.b16 %v7176
        %v7253 = vunpack.c.l.b16 %v7177
        %v7254 = vunpack.c.h.b16 %v7177
        %v7255 = vunpack.c.l.b16 %v7178
        %v7256 = vunpack.c.h.b16 %v7178
        %v7257 = vunpack.c.l.b16 %v7179
        %v7258 = vunpack.c.h.b16 %v7179
        %v7259 = vunpack.c.l.b16 %v7180
        %v7260 = vunpack.c.h.b16 %v7180
        %v7261 = vunpack.c.l.b16 %v7181
        %v7262 = vunpack.c.h.b16 %v7181
        %v7263 = vunpack.c.l.b16 %v7182
        %v7264 = vunpack.c.h.b16 %v7182
        %v7265 = vunpack.c.l.b16 %v7183
        %v7266 = vunpack.c.h.b16 %v7183
        %v7267 = vunpack.c.l.b16 %v7184
        %v7268 = vunpack.c.h.b16 %v7184
        %v7269 = vunpack.c.l.b16 %v7185
        %v7270 = vunpack.c.h.b16 %v7185
        %v7271 = vunpack.c.l.b16 %v7186
        %v7272 = vunpack.c.h.b16 %v7186
        %v7273 = vunpack.c.l.b16 %v7187
        %v7274 = vunpack.c.h.b16 %v7187
        %v7275 = vunpack.c.l.b16 %v7188
        %v7276 = vunpack.c.h.b16 %v7188
        %v7277 = vunpack.c.l.b16 %v7189
        %v7278 = vunpack.c.h.b16 %v7189
        %v7279 = vunpack.c.l.b16 %v7190
        %v7280 = vunpack.c.h.b16 %v7190
        %v7281 = vunpack.c.l.b16 %v7191
        %v7282 = vunpack.c.h.b16 %v7191
        %v7283 = vunpack.c.l.b16 %v7192
        %v7284 = vunpack.c.h.b16 %v7192
        %v7285 = vunpack.c.l.b16 %v7193
        %v7286 = vunpack.c.h.b16 %v7193
        %v7287 = vunpack.c.l.b16 %v7194
        %v7288 = vunpack.c.h.b16 %v7194
        %v7289 = vunpack.c.l.b16 %v7195
        %v7290 = vunpack.c.h.b16 %v7195
        %v7291 = vunpack.c.l.b16 %v7196
        %v7292 = vunpack.c.h.b16 %v7196
        %v7293 = vpack.c.b16 %v7231, %v7229
        %v7294 = vpack.c.b16 %v7232, %v7230
        %v7295 = vpack.c.b16 %v7235, %v7233
        %v7296 = vpack.c.b16 %v7236, %v7234
        %v7297 = vpack.c.b16 %v7239, %v7237
        %v7298 = vpack.c.b16 %v7240, %v7238
        %v7299 = vpack.c.b16 %v7243, %v7241
        %v7300 = vpack.c.b16 %v7244, %v7242
        %v7301 = vpack.c.b16 %v7247, %v7245
        %v7302 = vpack.c.b16 %v7248, %v7246
        %v7303 = vpack.c.b16 %v7251, %v7249
        %v7304 = vpack.c.b16 %v7252, %v7250
        %v7305 = vpack.c.b16 %v7255, %v7253
        %v7306 = vpack.c.b16 %v7256, %v7254
        %v7307 = vpack.c.b16 %v7259, %v7257
        %v7308 = vpack.c.b16 %v7260, %v7258
        %v7309 = vpack.c.b16 %v7263, %v7261
        %v7310 = vpack.c.b16 %v7264, %v7262
        %v7311 = vpack.c.b16 %v7267, %v7265
        %v7312 = vpack.c.b16 %v7268, %v7266
        %v7313 = vpack.c.b16 %v7271, %v7269
        %v7314 = vpack.c.b16 %v7272, %v7270
        %v7315 = vpack.c.b16 %v7275, %v7273
        %v7316 = vpack.c.b16 %v7276, %v7274
        %v7317 = vpack.c.b16 %v7279, %v7277
        %v7318 = vpack.c.b16 %v7280, %v7278
        %v7319 = vpack.c.b16 %v7283, %v7281
        %v7320 = vpack.c.b16 %v7284, %v7282
        %v7321 = vpack.c.b16 %v7287, %v7285
        %v7322 = vpack.c.b16 %v7288, %v7286
        %v7323 = vpack.c.b16 %v7291, %v7289
        %v7324 = vpack.c.b16 %v7292, %v7290
        %7357 = vmatprep.subr.bf16.mxu0 %v7294
        %7358 = vmatpush1.bf16.msra.mxu0 %v7293
        %7359 = vmatprep.subr.bf16.mxu0 %v7296
        %7360 = vmatpush1.bf16.msra.mxu0 %v7295
        %7361 = vmatprep.subr.bf16.mxu0 %v7298
        %7362 = vmatpush1.bf16.msra.mxu0 %v7297
        %7363 = vmatprep.subr.bf16.mxu0 %v7300
        %7364 = vmatpush1.bf16.msra.mxu0 %v7299
        %7365 = vmatprep.subr.bf16.mxu0 %v7302
        %7366 = vmatpush1.bf16.msra.mxu0 %v7301
        %7367 = vmatprep.subr.bf16.mxu0 %v7304
        %7368 = vmatpush1.bf16.msra.mxu0 %v7303
        %7369 = vmatprep.subr.bf16.mxu0 %v7306
        %7370 = vmatpush1.bf16.msra.mxu0 %v7305
        %7371 = vmatprep.subr.bf16.mxu0 %v7308
        %7372 = vmatpush1.bf16.msra.mxu0 %v7307
        %7373 = vmatprep.subr.bf16.mxu0 %v7310
        %7374 = vmatpush1.bf16.msra.mxu0 %v7309
        %7375 = vmatprep.subr.bf16.mxu0 %v7312
        %7376 = vmatpush1.bf16.msra.mxu0 %v7311
        %7377 = vmatprep.subr.bf16.mxu0 %v7314
        %7378 = vmatpush1.bf16.msra.mxu0 %v7313
        %7379 = vmatprep.subr.bf16.mxu0 %v7316
        %7380 = vmatpush1.bf16.msra.mxu0 %v7315
        %7381 = vmatprep.subr.bf16.mxu0 %v7318
        %7382 = vmatpush1.bf16.msra.mxu0 %v7317
        %7383 = vmatprep.subr.bf16.mxu0 %v7320
        %7384 = vmatpush1.bf16.msra.mxu0 %v7319
        %7385 = vmatprep.subr.bf16.mxu0 %v7322
        %7386 = vmatpush1.bf16.msra.mxu0 %v7321
        %7387 = vmatprep.subr.bf16.mxu0 %v7324
        %7388 = vmatpush1.bf16.msra.mxu0 %v7323
        %7389 = vmatprep.mubr.bf16.mxu0 %v6030
        %7390 = vmatmul.mubr.bf16.gmra.mrb[0].mxu0 %v6029
        %v7391 = vpop.f32.mrb[0].mxu0
        %v7392 = vadd.f32 0.0, %v7391
        %v7393 = vpop.f32.mrb[0].mxu0
        %v7394 = vadd.f32 0.0, %v7393
        %v7395 = vpop.f32.mrb[0].mxu0
        %v7396 = vadd.f32 0.0, %v7395
        %v7397 = vpop.f32.mrb[0].mxu0
        %v7398 = vadd.f32 0.0, %v7397
        %7399 = vmatprep.mubr.bf16.mxu0 %v6032
        %7400 = vmatmul.mubr.bf16.gmra.mrb[0].mxu0 %v6031
        %v7401 = vpop.f32.mrb[0].mxu0
        %v7402 = vadd.f32 0.0, %v7401
        %v7403 = vpop.f32.mrb[0].mxu0
        %v7404 = vadd.f32 0.0, %v7403
        %v7405 = vpop.f32.mrb[0].mxu0
        %v7406 = vadd.f32 0.0, %v7405
        %v7407 = vpop.f32.mrb[0].mxu0
        %v7408 = vadd.f32 0.0, %v7407
        %7409 = vmatprep.mubr.bf16.mxu0 %v6034
        %7410 = vmatmul.mubr.bf16.gmra.mrb[0].mxu0 %v6033
        %v7411 = vpop.f32.mrb[0].mxu0
        %v7412 = vadd.f32 0.0, %v7411
        %v7413 = vpop.f32.mrb[0].mxu0
        %v7414 = vadd.f32 0.0, %v7413
        %v7415 = vpop.f32.mrb[0].mxu0
        %v7416 = vadd.f32 0.0, %v7415
        %v7417 = vpop.f32.mrb[0].mxu0
        %v7418 = vadd.f32 0.0, %v7417
        %7419 = vmatprep.mubr.bf16.mxu0 %v6036
        %7420 = vmatmul.mubr.bf16.gmra.mrb[0].mxu0 %v6035
        %v7421 = vpop.f32.mrb[0].mxu0
        %v7422 = vadd.f32 0.0, %v7421
        %v7423 = vpop.f32.mrb[0].mxu0
        %v7424 = vadd.f32 0.0, %v7423
        %v7425 = vpop.f32.mrb[0].mxu0
        %v7426 = vadd.f32 0.0, %v7425
        %v7427 = vpop.f32.mrb[0].mxu0
        %v7428 = vadd.f32 0.0, %v7427
        %7429 = vdwg.mxu0
        %v7430 = vpack.c.bf16 %v7396, %v7392
        %v7431 = vpack.c.bf16 %v7398, %v7394
        %v7432 = vpack.c.bf16 %v7406, %v7402
        %v7433 = vpack.c.bf16 %v7408, %v7404
        %v7434 = vpack.c.bf16 %v7416, %v7412
        %v7435 = vpack.c.bf16 %v7418, %v7414
        %v7436 = vpack.c.bf16 %v7426, %v7422
        %v7437 = vpack.c.bf16 %v7428, %v7424
        %7438 = vst [vmem:[#allocation3 + $0x100] sm:$0xff] %v7430
        %7439 = vst [vmem:[#allocation3 + $0x108] sm:$0xff] %v7431
        %7440 = vst [vmem:[#allocation3 + $0x110] sm:$0xff] %v7432
        %7441 = vst [vmem:[#allocation3 + $0x118] sm:$0xff] %v7433
        %7442 = vst [vmem:[#allocation3 + $0x120] sm:$0xff] %v7434
        %7443 = vst [vmem:[#allocation3 + $0x128] sm:$0xff] %v7435
        %7444 = vst [vmem:[#allocation3 + $0x130] sm:$0xff] %v7436
        %7445 = vst [vmem:[#allocation3 + $0x138] sm:$0xff] %v7437
        %s7446 = scalar_lea.vmem [#allocation15], 1280
        %v7447 = vld [vmem:[%s7446] sm:$0xff]
        %v7448 = vld [vmem:[%s7446 + $0x8] sm:$0xff]
        %v7449 = vld [vmem:[%s7446 + $0x10] sm:$0xff]
        %v7450 = vld [vmem:[%s7446 + $0x18] sm:$0xff]
        %v7451 = vld [vmem:[%s7446 + $0x20] sm:$0xff]
        %v7452 = vld [vmem:[%s7446 + $0x28] sm:$0xff]
        %v7453 = vld [vmem:[%s7446 + $0x30] sm:$0xff]
        %v7454 = vld [vmem:[%s7446 + $0x38] sm:$0xff]
        %v7455 = vld [vmem:[%s7446 + $0x40] sm:$0xff]
        %v7456 = vld [vmem:[%s7446 + $0x48] sm:$0xff]
        %v7457 = vld [vmem:[%s7446 + $0x50] sm:$0xff]
        %v7458 = vld [vmem:[%s7446 + $0x58] sm:$0xff]
        %v7459 = vld [vmem:[%s7446 + $0x60] sm:$0xff]
        %v7460 = vld [vmem:[%s7446 + $0x68] sm:$0xff]
        %v7461 = vld [vmem:[%s7446 + $0x70] sm:$0xff]
        %v7462 = vld [vmem:[%s7446 + $0x78] sm:$0xff]
        %v7463 = vld [vmem:[%s7446 + $0x80] sm:$0xff]
        %v7464 = vld [vmem:[%s7446 + $0x88] sm:$0xff]
        %v7465 = vld [vmem:[%s7446 + $0x90] sm:$0xff]
        %v7466 = vld [vmem:[%s7446 + $0x98] sm:$0xff]
        %v7467 = vld [vmem:[%s7446 + $0xa0] sm:$0xff]
        %v7468 = vld [vmem:[%s7446 + $0xa8] sm:$0xff]
        %v7469 = vld [vmem:[%s7446 + $0xb0] sm:$0xff]
        %v7470 = vld [vmem:[%s7446 + $0xb8] sm:$0xff]
        %v7471 = vld [vmem:[%s7446 + $0xc0] sm:$0xff]
        %v7472 = vld [vmem:[%s7446 + $0xc8] sm:$0xff]
        %v7473 = vld [vmem:[%s7446 + $0xd0] sm:$0xff]
        %v7474 = vld [vmem:[%s7446 + $0xd8] sm:$0xff]
        %v7475 = vld [vmem:[%s7446 + $0xe0] sm:$0xff]
        %v7476 = vld [vmem:[%s7446 + $0xe8] sm:$0xff]
        %v7477 = vld [vmem:[%s7446 + $0xf0] sm:$0xff]
        %v7478 = vld [vmem:[%s7446 + $0xf8] sm:$0xff]
        %v7511 = vunpack.c.l.b16 %v7447
        %v7512 = vunpack.c.h.b16 %v7447
        %v7513 = vunpack.c.l.b16 %v7448
        %v7514 = vunpack.c.h.b16 %v7448
        %v7515 = vunpack.c.l.b16 %v7449
        %v7516 = vunpack.c.h.b16 %v7449
        %v7517 = vunpack.c.l.b16 %v7450
        %v7518 = vunpack.c.h.b16 %v7450
        %v7519 = vunpack.c.l.b16 %v7451
        %v7520 = vunpack.c.h.b16 %v7451
        %v7521 = vunpack.c.l.b16 %v7452
        %v7522 = vunpack.c.h.b16 %v7452
        %v7523 = vunpack.c.l.b16 %v7453
        %v7524 = vunpack.c.h.b16 %v7453
        %v7525 = vunpack.c.l.b16 %v7454
        %v7526 = vunpack.c.h.b16 %v7454
        %v7527 = vunpack.c.l.b16 %v7455
        %v7528 = vunpack.c.h.b16 %v7455
        %v7529 = vunpack.c.l.b16 %v7456
        %v7530 = vunpack.c.h.b16 %v7456
        %v7531 = vunpack.c.l.b16 %v7457
        %v7532 = vunpack.c.h.b16 %v7457
        %v7533 = vunpack.c.l.b16 %v7458
        %v7534 = vunpack.c.h.b16 %v7458
        %v7535 = vunpack.c.l.b16 %v7459
        %v7536 = vunpack.c.h.b16 %v7459
        %v7537 = vunpack.c.l.b16 %v7460
        %v7538 = vunpack.c.h.b16 %v7460
        %v7539 = vunpack.c.l.b16 %v7461
        %v7540 = vunpack.c.h.b16 %v7461
        %v7541 = vunpack.c.l.b16 %v7462
        %v7542 = vunpack.c.h.b16 %v7462
        %v7543 = vunpack.c.l.b16 %v7463
        %v7544 = vunpack.c.h.b16 %v7463
        %v7545 = vunpack.c.l.b16 %v7464
        %v7546 = vunpack.c.h.b16 %v7464
        %v7547 = vunpack.c.l.b16 %v7465
        %v7548 = vunpack.c.h.b16 %v7465
        %v7549 = vunpack.c.l.b16 %v7466
        %v7550 = vunpack.c.h.b16 %v7466
        %v7551 = vunpack.c.l.b16 %v7467
        %v7552 = vunpack.c.h.b16 %v7467
        %v7553 = vunpack.c.l.b16 %v7468
        %v7554 = vunpack.c.h.b16 %v7468
        %v7555 = vunpack.c.l.b16 %v7469
        %v7556 = vunpack.c.h.b16 %v7469
        %v7557 = vunpack.c.l.b16 %v7470
        %v7558 = vunpack.c.h.b16 %v7470
        %v7559 = vunpack.c.l.b16 %v7471
        %v7560 = vunpack.c.h.b16 %v7471
        %v7561 = vunpack.c.l.b16 %v7472
        %v7562 = vunpack.c.h.b16 %v7472
        %v7563 = vunpack.c.l.b16 %v7473
        %v7564 = vunpack.c.h.b16 %v7473
        %v7565 = vunpack.c.l.b16 %v7474
        %v7566 = vunpack.c.h.b16 %v7474
        %v7567 = vunpack.c.l.b16 %v7475
        %v7568 = vunpack.c.h.b16 %v7475
        %v7569 = vunpack.c.l.b16 %v7476
        %v7570 = vunpack.c.h.b16 %v7476
        %v7571 = vunpack.c.l.b16 %v7477
        %v7572 = vunpack.c.h.b16 %v7477
        %v7573 = vunpack.c.l.b16 %v7478
        %v7574 = vunpack.c.h.b16 %v7478
        %v7575 = vpack.c.b16 %v7513, %v7511
        %v7576 = vpack.c.b16 %v7514, %v7512
        %v7577 = vpack.c.b16 %v7517, %v7515
        %v7578 = vpack.c.b16 %v7518, %v7516
        %v7579 = vpack.c.b16 %v7521, %v7519
        %v7580 = vpack.c.b16 %v7522, %v7520
        %v7581 = vpack.c.b16 %v7525, %v7523
        %v7582 = vpack.c.b16 %v7526, %v7524
        %v7583 = vpack.c.b16 %v7529, %v7527
        %v7584 = vpack.c.b16 %v7530, %v7528
        %v7585 = vpack.c.b16 %v7533, %v7531
        %v7586 = vpack.c.b16 %v7534, %v7532
        %v7587 = vpack.c.b16 %v7537, %v7535
        %v7588 = vpack.c.b16 %v7538, %v7536
        %v7589 = vpack.c.b16 %v7541, %v7539
        %v7590 = vpack.c.b16 %v7542, %v7540
        %v7591 = vpack.c.b16 %v7545, %v7543
        %v7592 = vpack.c.b16 %v7546, %v7544
        %v7593 = vpack.c.b16 %v7549, %v7547
        %v7594 = vpack.c.b16 %v7550, %v7548
        %v7595 = vpack.c.b16 %v7553, %v7551
        %v7596 = vpack.c.b16 %v7554, %v7552
        %v7597 = vpack.c.b16 %v7557, %v7555
        %v7598 = vpack.c.b16 %v7558, %v7556
        %v7599 = vpack.c.b16 %v7561, %v7559
        %v7600 = vpack.c.b16 %v7562, %v7560
        %v7601 = vpack.c.b16 %v7565, %v7563
        %v7602 = vpack.c.b16 %v7566, %v7564
        %v7603 = vpack.c.b16 %v7569, %v7567
        %v7604 = vpack.c.b16 %v7570, %v7568
        %v7605 = vpack.c.b16 %v7573, %v7571
        %v7606 = vpack.c.b16 %v7574, %v7572
        %7639 = vmatprep.subr.bf16.mxu0 %v7576
        %7640 = vmatpush1.bf16.msra.mxu0 %v7575
        %7641 = vmatprep.subr.bf16.mxu0 %v7578
        %7642 = vmatpush1.bf16.msra.mxu0 %v7577
        %7643 = vmatprep.subr.bf16.mxu0 %v7580
        %7644 = vmatpush1.bf16.msra.mxu0 %v7579
        %7645 = vmatprep.subr.bf16.mxu0 %v7582
        %7646 = vmatpush1.bf16.msra.mxu0 %v7581
        %7647 = vmatprep.subr.bf16.mxu0 %v7584
        %7648 = vmatpush1.bf16.msra.mxu0 %v7583
        %7649 = vmatprep.subr.bf16.mxu0 %v7586
        %7650 = vmatpush1.bf16.msra.mxu0 %v7585
        %7651 = vmatprep.subr.bf16.mxu0 %v7588
        %7652 = vmatpush1.bf16.msra.mxu0 %v7587
        %7653 = vmatprep.subr.bf16.mxu0 %v7590
        %7654 = vmatpush1.bf16.msra.mxu0 %v7589
        %7655 = vmatprep.subr.bf16.mxu0 %v7592
        %7656 = vmatpush1.bf16.msra.mxu0 %v7591
        %7657 = vmatprep.subr.bf16.mxu0 %v7594
        %7658 = vmatpush1.bf16.msra.mxu0 %v7593
        %7659 = vmatprep.subr.bf16.mxu0 %v7596
        %7660 = vmatpush1.bf16.msra.mxu0 %v7595
        %7661 = vmatprep.subr.bf16.mxu0 %v7598
        %7662 = vmatpush1.bf16.msra.mxu0 %v7597
        %7663 = vmatprep.subr.bf16.mxu0 %v7600
        %7664 = vmatpush1.bf16.msra.mxu0 %v7599
        %7665 = vmatprep.subr.bf16.mxu0 %v7602
        %7666 = vmatpush1.bf16.msra.mxu0 %v7601
        %7667 = vmatprep.subr.bf16.mxu0 %v7604
        %7668 = vmatpush1.bf16.msra.mxu0 %v7603
        %7669 = vmatprep.subr.bf16.mxu0 %v7606
        %7670 = vmatpush1.bf16.msra.mxu0 %v7605
        %7671 = vmatprep.mubr.bf16.mxu0 %v6030
        %7672 = vmatmul.mubr.bf16.gmra.mrb[0].mxu0 %v6029
        %v7673 = vpop.f32.mrb[0].mxu0
        %v7674 = vadd.f32 0.0, %v7673
        %v7675 = vpop.f32.mrb[0].mxu0
        %v7676 = vadd.f32 0.0, %v7675
        %v7677 = vpop.f32.mrb[0].mxu0
        %v7678 = vadd.f32 0.0, %v7677
        %v7679 = vpop.f32.mrb[0].mxu0
        %v7680 = vadd.f32 0.0, %v7679
        %7681 = vmatprep.mubr.bf16.mxu0 %v6032
        %7682 = vmatmul.mubr.bf16.gmra.mrb[0].mxu0 %v6031
        %v7683 = vpop.f32.mrb[0].mxu0
        %v7684 = vadd.f32 0.0, %v7683
        %v7685 = vpop.f32.mrb[0].mxu0
        %v7686 = vadd.f32 0.0, %v7685
        %v7687 = vpop.f32.mrb[0].mxu0
        %v7688 = vadd.f32 0.0, %v7687
        %v7689 = vpop.f32.mrb[0].mxu0
        %v7690 = vadd.f32 0.0, %v7689
        %7691 = vmatprep.mubr.bf16.mxu0 %v6034
        %7692 = vmatmul.mubr.bf16.gmra.mrb[0].mxu0 %v6033
        %v7693 = vpop.f32.mrb[0].mxu0
        %v7694 = vadd.f32 0.0, %v7693
        %v7695 = vpop.f32.mrb[0].mxu0
        %v7696 = vadd.f32 0.0, %v7695
        %v7697 = vpop.f32.mrb[0].mxu0
        %v7698 = vadd.f32 0.0, %v7697
        %v7699 = vpop.f32.mrb[0].mxu0
        %v7700 = vadd.f32 0.0, %v7699
        %7701 = vmatprep.mubr.bf16.mxu0 %v6036
        %7702 = vmatmul.mubr.bf16.gmra.mrb[0].mxu0 %v6035
        %v7703 = vpop.f32.mrb[0].mxu0
        %v7704 = vadd.f32 0.0, %v7703
        %v7705 = vpop.f32.mrb[0].mxu0
        %v7706 = vadd.f32 0.0, %v7705
        %v7707 = vpop.f32.mrb[0].mxu0
        %v7708 = vadd.f32 0.0, %v7707
        %v7709 = vpop.f32.mrb[0].mxu0
        %v7710 = vadd.f32 0.0, %v7709
        %7711 = vdwg.mxu0
        %v7712 = vpack.c.bf16 %v7678, %v7674
        %v7713 = vpack.c.bf16 %v7680, %v7676
        %v7714 = vpack.c.bf16 %v7688, %v7684
        %v7715 = vpack.c.bf16 %v7690, %v7686
        %v7716 = vpack.c.bf16 %v7698, %v7694
        %v7717 = vpack.c.bf16 %v7700, %v7696
        %v7718 = vpack.c.bf16 %v7708, %v7704
        %v7719 = vpack.c.bf16 %v7710, %v7706
        %7720 = vst [vmem:[#allocation3 + $0x140] sm:$0xff] %v7712
        %7721 = vst [vmem:[#allocation3 + $0x148] sm:$0xff] %v7713
        %7722 = vst [vmem:[#allocation3 + $0x150] sm:$0xff] %v7714
        %7723 = vst [vmem:[#allocation3 + $0x158] sm:$0xff] %v7715
        %7724 = vst [vmem:[#allocation3 + $0x160] sm:$0xff] %v7716
        %7725 = vst [vmem:[#allocation3 + $0x168] sm:$0xff] %v7717
        %7726 = vst [vmem:[#allocation3 + $0x170] sm:$0xff] %v7718
        %7727 = vst [vmem:[#allocation3 + $0x178] sm:$0xff] %v7719
        %s7728 = scalar_lea.vmem [#allocation15], 1536
        %v7729 = vld [vmem:[%s7728] sm:$0xff]
        %v7730 = vld [vmem:[%s7728 + $0x8] sm:$0xff]
        %v7731 = vld [vmem:[%s7728 + $0x10] sm:$0xff]
        %v7732 = vld [vmem:[%s7728 + $0x18] sm:$0xff]
        %v7733 = vld [vmem:[%s7728 + $0x20] sm:$0xff]
        %v7734 = vld [vmem:[%s7728 + $0x28] sm:$0xff]
        %v7735 = vld [vmem:[%s7728 + $0x30] sm:$0xff]
        %v7736 = vld [vmem:[%s7728 + $0x38] sm:$0xff]
        %v7737 = vld [vmem:[%s7728 + $0x40] sm:$0xff]
        %v7738 = vld [vmem:[%s7728 + $0x48] sm:$0xff]
        %v7739 = vld [vmem:[%s7728 + $0x50] sm:$0xff]
        %v7740 = vld [vmem:[%s7728 + $0x58] sm:$0xff]
        %v7741 = vld [vmem:[%s7728 + $0x60] sm:$0xff]
        %v7742 = vld [vmem:[%s7728 + $0x68] sm:$0xff]
        %v7743 = vld [vmem:[%s7728 + $0x70] sm:$0xff]
        %v7744 = vld [vmem:[%s7728 + $0x78] sm:$0xff]
        %v7745 = vld [vmem:[%s7728 + $0x80] sm:$0xff]
        %v7746 = vld [vmem:[%s7728 + $0x88] sm:$0xff]
        %v7747 = vld [vmem:[%s7728 + $0x90] sm:$0xff]
        %v7748 = vld [vmem:[%s7728 + $0x98] sm:$0xff]
        %v7749 = vld [vmem:[%s7728 + $0xa0] sm:$0xff]
        %v7750 = vld [vmem:[%s7728 + $0xa8] sm:$0xff]
        %v7751 = vld [vmem:[%s7728 + $0xb0] sm:$0xff]
        %v7752 = vld [vmem:[%s7728 + $0xb8] sm:$0xff]
        %v7753 = vld [vmem:[%s7728 + $0xc0] sm:$0xff]
        %v7754 = vld [vmem:[%s7728 + $0xc8] sm:$0xff]
        %v7755 = vld [vmem:[%s7728 + $0xd0] sm:$0xff]
        %v7756 = vld [vmem:[%s7728 + $0xd8] sm:$0xff]
        %v7757 = vld [vmem:[%s7728 + $0xe0] sm:$0xff]
        %v7758 = vld [vmem:[%s7728 + $0xe8] sm:$0xff]
        %v7759 = vld [vmem:[%s7728 + $0xf0] sm:$0xff]
        %v7760 = vld [vmem:[%s7728 + $0xf8] sm:$0xff]
        %v7793 = vunpack.c.l.b16 %v7729
        %v7794 = vunpack.c.h.b16 %v7729
        %v7795 = vunpack.c.l.b16 %v7730
        %v7796 = vunpack.c.h.b16 %v7730
        %v7797 = vunpack.c.l.b16 %v7731
        %v7798 = vunpack.c.h.b16 %v7731
        %v7799 = vunpack.c.l.b16 %v7732
        %v7800 = vunpack.c.h.b16 %v7732
        %v7801 = vunpack.c.l.b16 %v7733
        %v7802 = vunpack.c.h.b16 %v7733
        %v7803 = vunpack.c.l.b16 %v7734
        %v7804 = vunpack.c.h.b16 %v7734
        %v7805 = vunpack.c.l.b16 %v7735
        %v7806 = vunpack.c.h.b16 %v7735
        %v7807 = vunpack.c.l.b16 %v7736
        %v7808 = vunpack.c.h.b16 %v7736
        %v7809 = vunpack.c.l.b16 %v7737
        %v7810 = vunpack.c.h.b16 %v7737
        %v7811 = vunpack.c.l.b16 %v7738
        %v7812 = vunpack.c.h.b16 %v7738
        %v7813 = vunpack.c.l.b16 %v7739
        %v7814 = vunpack.c.h.b16 %v7739
        %v7815 = vunpack.c.l.b16 %v7740
        %v7816 = vunpack.c.h.b16 %v7740
        %v7817 = vunpack.c.l.b16 %v7741
        %v7818 = vunpack.c.h.b16 %v7741
        %v7819 = vunpack.c.l.b16 %v7742
        %v7820 = vunpack.c.h.b16 %v7742
        %v7821 = vunpack.c.l.b16 %v7743
        %v7822 = vunpack.c.h.b16 %v7743
        %v7823 = vunpack.c.l.b16 %v7744
        %v7824 = vunpack.c.h.b16 %v7744
        %v7825 = vunpack.c.l.b16 %v7745
        %v7826 = vunpack.c.h.b16 %v7745
        %v7827 = vunpack.c.l.b16 %v7746
        %v7828 = vunpack.c.h.b16 %v7746
        %v7829 = vunpack.c.l.b16 %v7747
        %v7830 = vunpack.c.h.b16 %v7747
        %v7831 = vunpack.c.l.b16 %v7748
        %v7832 = vunpack.c.h.b16 %v7748
        %v7833 = vunpack.c.l.b16 %v7749
        %v7834 = vunpack.c.h.b16 %v7749
        %v7835 = vunpack.c.l.b16 %v7750
        %v7836 = vunpack.c.h.b16 %v7750
        %v7837 = vunpack.c.l.b16 %v7751
        %v7838 = vunpack.c.h.b16 %v7751
        %v7839 = vunpack.c.l.b16 %v7752
        %v7840 = vunpack.c.h.b16 %v7752
        %v7841 = vunpack.c.l.b16 %v7753
        %v7842 = vunpack.c.h.b16 %v7753
        %v7843 = vunpack.c.l.b16 %v7754
        %v7844 = vunpack.c.h.b16 %v7754
        %v7845 = vunpack.c.l.b16 %v7755
        %v7846 = vunpack.c.h.b16 %v7755
        %v7847 = vunpack.c.l.b16 %v7756
        %v7848 = vunpack.c.h.b16 %v7756
        %v7849 = vunpack.c.l.b16 %v7757
        %v7850 = vunpack.c.h.b16 %v7757
        %v7851 = vunpack.c.l.b16 %v7758
        %v7852 = vunpack.c.h.b16 %v7758
        %v7853 = vunpack.c.l.b16 %v7759
        %v7854 = vunpack.c.h.b16 %v7759
        %v7855 = vunpack.c.l.b16 %v7760
        %v7856 = vunpack.c.h.b16 %v7760
        %v7857 = vpack.c.b16 %v7795, %v7793
        %v7858 = vpack.c.b16 %v7796, %v7794
        %v7859 = vpack.c.b16 %v7799, %v7797
        %v7860 = vpack.c.b16 %v7800, %v7798
        %v7861 = vpack.c.b16 %v7803, %v7801
        %v7862 = vpack.c.b16 %v7804, %v7802
        %v7863 = vpack.c.b16 %v7807, %v7805
        %v7864 = vpack.c.b16 %v7808, %v7806
        %v7865 = vpack.c.b16 %v7811, %v7809
        %v7866 = vpack.c.b16 %v7812, %v7810
        %v7867 = vpack.c.b16 %v7815, %v7813
        %v7868 = vpack.c.b16 %v7816, %v7814
        %v7869 = vpack.c.b16 %v7819, %v7817
        %v7870 = vpack.c.b16 %v7820, %v7818
        %v7871 = vpack.c.b16 %v7823, %v7821
        %v7872 = vpack.c.b16 %v7824, %v7822
        %v7873 = vpack.c.b16 %v7827, %v7825
        %v7874 = vpack.c.b16 %v7828, %v7826
        %v7875 = vpack.c.b16 %v7831, %v7829
        %v7876 = vpack.c.b16 %v7832, %v7830
        %v7877 = vpack.c.b16 %v7835, %v7833
        %v7878 = vpack.c.b16 %v7836, %v7834
        %v7879 = vpack.c.b16 %v7839, %v7837
        %v7880 = vpack.c.b16 %v7840, %v7838
        %v7881 = vpack.c.b16 %v7843, %v7841
        %v7882 = vpack.c.b16 %v7844, %v7842
        %v7883 = vpack.c.b16 %v7847, %v7845
        %v7884 = vpack.c.b16 %v7848, %v7846
        %v7885 = vpack.c.b16 %v7851, %v7849
        %v7886 = vpack.c.b16 %v7852, %v7850
        %v7887 = vpack.c.b16 %v7855, %v7853
        %v7888 = vpack.c.b16 %v7856, %v7854
        %7921 = vmatprep.subr.bf16.mxu0 %v7858
        %7922 = vmatpush1.bf16.msra.mxu0 %v7857
        %7923 = vmatprep.subr.bf16.mxu0 %v7860
        %7924 = vmatpush1.bf16.msra.mxu0 %v7859
        %7925 = vmatprep.subr.bf16.mxu0 %v7862
        %7926 = vmatpush1.bf16.msra.mxu0 %v7861
        %7927 = vmatprep.subr.bf16.mxu0 %v7864
        %7928 = vmatpush1.bf16.msra.mxu0 %v7863
        %7929 = vmatprep.subr.bf16.mxu0 %v7866
        %7930 = vmatpush1.bf16.msra.mxu0 %v7865
        %7931 = vmatprep.subr.bf16.mxu0 %v7868
        %7932 = vmatpush1.bf16.msra.mxu0 %v7867
        %7933 = vmatprep.subr.bf16.mxu0 %v7870
        %7934 = vmatpush1.bf16.msra.mxu0 %v7869
        %7935 = vmatprep.subr.bf16.mxu0 %v7872
        %7936 = vmatpush1.bf16.msra.mxu0 %v7871
        %7937 = vmatprep.subr.bf16.mxu0 %v7874
        %7938 = vmatpush1.bf16.msra.mxu0 %v7873
        %7939 = vmatprep.subr.bf16.mxu0 %v7876
        %7940 = vmatpush1.bf16.msra.mxu0 %v7875
        %7941 = vmatprep.subr.bf16.mxu0 %v7878
        %7942 = vmatpush1.bf16.msra.mxu0 %v7877
        %7943 = vmatprep.subr.bf16.mxu0 %v7880
        %7944 = vmatpush1.bf16.msra.mxu0 %v7879
        %7945 = vmatprep.subr.bf16.mxu0 %v7882
        %7946 = vmatpush1.bf16.msra.mxu0 %v7881
        %7947 = vmatprep.subr.bf16.mxu0 %v7884
        %7948 = vmatpush1.bf16.msra.mxu0 %v7883
        %7949 = vmatprep.subr.bf16.mxu0 %v7886
        %7950 = vmatpush1.bf16.msra.mxu0 %v7885
        %7951 = vmatprep.subr.bf16.mxu0 %v7888
        %7952 = vmatpush1.bf16.msra.mxu0 %v7887
        %7953 = vmatprep.mubr.bf16.mxu0 %v6030
        %7954 = vmatmul.mubr.bf16.gmra.mrb[0].mxu0 %v6029
        %v7955 = vpop.f32.mrb[0].mxu0
        %v7956 = vadd.f32 0.0, %v7955
        %v7957 = vpop.f32.mrb[0].mxu0
        %v7958 = vadd.f32 0.0, %v7957
        %v7959 = vpop.f32.mrb[0].mxu0
        %v7960 = vadd.f32 0.0, %v7959
        %v7961 = vpop.f32.mrb[0].mxu0
        %v7962 = vadd.f32 0.0, %v7961
        %7963 = vmatprep.mubr.bf16.mxu0 %v6032
        %7964 = vmatmul.mubr.bf16.gmra.mrb[0].mxu0 %v6031
        %v7965 = vpop.f32.mrb[0].mxu0
        %v7966 = vadd.f32 0.0, %v7965
        %v7967 = vpop.f32.mrb[0].mxu0
        %v7968 = vadd.f32 0.0, %v7967
        %v7969 = vpop.f32.mrb[0].mxu0
        %v7970 = vadd.f32 0.0, %v7969
        %v7971 = vpop.f32.mrb[0].mxu0
        %v7972 = vadd.f32 0.0, %v7971
        %7973 = vmatprep.mubr.bf16.mxu0 %v6034
        %7974 = vmatmul.mubr.bf16.gmra.mrb[0].mxu0 %v6033
        %v7975 = vpop.f32.mrb[0].mxu0
        %v7976 = vadd.f32 0.0, %v7975
        %v7977 = vpop.f32.mrb[0].mxu0
        %v7978 = vadd.f32 0.0, %v7977
        %v7979 = vpop.f32.mrb[0].mxu0
        %v7980 = vadd.f32 0.0, %v7979
        %v7981 = vpop.f32.mrb[0].mxu0
        %v7982 = vadd.f32 0.0, %v7981
        %7983 = vmatprep.mubr.bf16.mxu0 %v6036
        %7984 = vmatmul.mubr.bf16.gmra.mrb[0].mxu0 %v6035
        %v7985 = vpop.f32.mrb[0].mxu0
        %v7986 = vadd.f32 0.0, %v7985
        %v7987 = vpop.f32.mrb[0].mxu0
        %v7988 = vadd.f32 0.0, %v7987
        %v7989 = vpop.f32.mrb[0].mxu0
        %v7990 = vadd.f32 0.0, %v7989
        %v7991 = vpop.f32.mrb[0].mxu0
        %v7992 = vadd.f32 0.0, %v7991
        %7993 = vdwg.mxu0
        %v7994 = vpack.c.bf16 %v7960, %v7956
        %v7995 = vpack.c.bf16 %v7962, %v7958
        %v7996 = vpack.c.bf16 %v7970, %v7966
        %v7997 = vpack.c.bf16 %v7972, %v7968
        %v7998 = vpack.c.bf16 %v7980, %v7976
        %v7999 = vpack.c.bf16 %v7982, %v7978
        %v8000 = vpack.c.bf16 %v7990, %v7986
        %v8001 = vpack.c.bf16 %v7992, %v7988
        %8002 = vst [vmem:[#allocation3 + $0x180] sm:$0xff] %v7994
        %8003 = vst [vmem:[#allocation3 + $0x188] sm:$0xff] %v7995
        %8004 = vst [vmem:[#allocation3 + $0x190] sm:$0xff] %v7996
        %8005 = vst [vmem:[#allocation3 + $0x198] sm:$0xff] %v7997
        %8006 = vst [vmem:[#allocation3 + $0x1a0] sm:$0xff] %v7998
        %8007 = vst [vmem:[#allocation3 + $0x1a8] sm:$0xff] %v7999
        %8008 = vst [vmem:[#allocation3 + $0x1b0] sm:$0xff] %v8000
        %8009 = vst [vmem:[#allocation3 + $0x1b8] sm:$0xff] %v8001
        %s8010 = scalar_lea.vmem [#allocation15], 1792
        %v8011 = vld [vmem:[%s8010] sm:$0xff]
        %v8012 = vld [vmem:[%s8010 + $0x8] sm:$0xff]
        %v8013 = vld [vmem:[%s8010 + $0x10] sm:$0xff]
        %v8014 = vld [vmem:[%s8010 + $0x18] sm:$0xff]
        %v8015 = vld [vmem:[%s8010 + $0x20] sm:$0xff]
        %v8016 = vld [vmem:[%s8010 + $0x28] sm:$0xff]
        %v8017 = vld [vmem:[%s8010 + $0x30] sm:$0xff]
        %v8018 = vld [vmem:[%s8010 + $0x38] sm:$0xff]
        %v8019 = vld [vmem:[%s8010 + $0x40] sm:$0xff]
        %v8020 = vld [vmem:[%s8010 + $0x48] sm:$0xff]
        %v8021 = vld [vmem:[%s8010 + $0x50] sm:$0xff]
        %v8022 = vld [vmem:[%s8010 + $0x58] sm:$0xff]
        %v8023 = vld [vmem:[%s8010 + $0x60] sm:$0xff]
        %v8024 = vld [vmem:[%s8010 + $0x68] sm:$0xff]
        %v8025 = vld [vmem:[%s8010 + $0x70] sm:$0xff]
        %v8026 = vld [vmem:[%s8010 + $0x78] sm:$0xff]
        %v8027 = vld [vmem:[%s8010 + $0x80] sm:$0xff]
        %v8028 = vld [vmem:[%s8010 + $0x88] sm:$0xff]
        %v8029 = vld [vmem:[%s8010 + $0x90] sm:$0xff]
        %v8030 = vld [vmem:[%s8010 + $0x98] sm:$0xff]
        %v8031 = vld [vmem:[%s8010 + $0xa0] sm:$0xff]
        %v8032 = vld [vmem:[%s8010 + $0xa8] sm:$0xff]
        %v8033 = vld [vmem:[%s8010 + $0xb0] sm:$0xff]
        %v8034 = vld [vmem:[%s8010 + $0xb8] sm:$0xff]
        %v8035 = vld [vmem:[%s8010 + $0xc0] sm:$0xff]
        %v8036 = vld [vmem:[%s8010 + $0xc8] sm:$0xff]
        %v8037 = vld [vmem:[%s8010 + $0xd0] sm:$0xff]
        %v8038 = vld [vmem:[%s8010 + $0xd8] sm:$0xff]
        %v8039 = vld [vmem:[%s8010 + $0xe0] sm:$0xff]
        %v8040 = vld [vmem:[%s8010 + $0xe8] sm:$0xff]
        %v8041 = vld [vmem:[%s8010 + $0xf0] sm:$0xff]
        %v8042 = vld [vmem:[%s8010 + $0xf8] sm:$0xff]
        %v8075 = vunpack.c.l.b16 %v8011
        %v8076 = vunpack.c.h.b16 %v8011
        %v8077 = vunpack.c.l.b16 %v8012
        %v8078 = vunpack.c.h.b16 %v8012
        %v8079 = vunpack.c.l.b16 %v8013
        %v8080 = vunpack.c.h.b16 %v8013
        %v8081 = vunpack.c.l.b16 %v8014
        %v8082 = vunpack.c.h.b16 %v8014
        %v8083 = vunpack.c.l.b16 %v8015
        %v8084 = vunpack.c.h.b16 %v8015
        %v8085 = vunpack.c.l.b16 %v8016
        %v8086 = vunpack.c.h.b16 %v8016
        %v8087 = vunpack.c.l.b16 %v8017
        %v8088 = vunpack.c.h.b16 %v8017
        %v8089 = vunpack.c.l.b16 %v8018
        %v8090 = vunpack.c.h.b16 %v8018
        %v8091 = vunpack.c.l.b16 %v8019
        %v8092 = vunpack.c.h.b16 %v8019
        %v8093 = vunpack.c.l.b16 %v8020
        %v8094 = vunpack.c.h.b16 %v8020
        %v8095 = vunpack.c.l.b16 %v8021
        %v8096 = vunpack.c.h.b16 %v8021
        %v8097 = vunpack.c.l.b16 %v8022
        %v8098 = vunpack.c.h.b16 %v8022
        %v8099 = vunpack.c.l.b16 %v8023
        %v8100 = vunpack.c.h.b16 %v8023
        %v8101 = vunpack.c.l.b16 %v8024
        %v8102 = vunpack.c.h.b16 %v8024
        %v8103 = vunpack.c.l.b16 %v8025
        %v8104 = vunpack.c.h.b16 %v8025
        %v8105 = vunpack.c.l.b16 %v8026
        %v8106 = vunpack.c.h.b16 %v8026
        %v8107 = vunpack.c.l.b16 %v8027
        %v8108 = vunpack.c.h.b16 %v8027
        %v8109 = vunpack.c.l.b16 %v8028
        %v8110 = vunpack.c.h.b16 %v8028
        %v8111 = vunpack.c.l.b16 %v8029
        %v8112 = vunpack.c.h.b16 %v8029
        %v8113 = vunpack.c.l.b16 %v8030
        %v8114 = vunpack.c.h.b16 %v8030
        %v8115 = vunpack.c.l.b16 %v8031
        %v8116 = vunpack.c.h.b16 %v8031
        %v8117 = vunpack.c.l.b16 %v8032
        %v8118 = vunpack.c.h.b16 %v8032
        %v8119 = vunpack.c.l.b16 %v8033
        %v8120 = vunpack.c.h.b16 %v8033
        %v8121 = vunpack.c.l.b16 %v8034
        %v8122 = vunpack.c.h.b16 %v8034
        %v8123 = vunpack.c.l.b16 %v8035
        %v8124 = vunpack.c.h.b16 %v8035
        %v8125 = vunpack.c.l.b16 %v8036
        %v8126 = vunpack.c.h.b16 %v8036
        %v8127 = vunpack.c.l.b16 %v8037
        %v8128 = vunpack.c.h.b16 %v8037
        %v8129 = vunpack.c.l.b16 %v8038
        %v8130 = vunpack.c.h.b16 %v8038
        %v8131 = vunpack.c.l.b16 %v8039
        %v8132 = vunpack.c.h.b16 %v8039
        %v8133 = vunpack.c.l.b16 %v8040
        %v8134 = vunpack.c.h.b16 %v8040
        %v8135 = vunpack.c.l.b16 %v8041
        %v8136 = vunpack.c.h.b16 %v8041
        %v8137 = vunpack.c.l.b16 %v8042
        %v8138 = vunpack.c.h.b16 %v8042
        %v8139 = vpack.c.b16 %v8077, %v8075
        %v8140 = vpack.c.b16 %v8078, %v8076
        %v8141 = vpack.c.b16 %v8081, %v8079
        %v8142 = vpack.c.b16 %v8082, %v8080
        %v8143 = vpack.c.b16 %v8085, %v8083
        %v8144 = vpack.c.b16 %v8086, %v8084
        %v8145 = vpack.c.b16 %v8089, %v8087
        %v8146 = vpack.c.b16 %v8090, %v8088
        %v8147 = vpack.c.b16 %v8093, %v8091
        %v8148 = vpack.c.b16 %v8094, %v8092
        %v8149 = vpack.c.b16 %v8097, %v8095
        %v8150 = vpack.c.b16 %v8098, %v8096
        %v8151 = vpack.c.b16 %v8101, %v8099
        %v8152 = vpack.c.b16 %v8102, %v8100
        %v8153 = vpack.c.b16 %v8105, %v8103
        %v8154 = vpack.c.b16 %v8106, %v8104
        %v8155 = vpack.c.b16 %v8109, %v8107
        %v8156 = vpack.c.b16 %v8110, %v8108
        %v8157 = vpack.c.b16 %v8113, %v8111
        %v8158 = vpack.c.b16 %v8114, %v8112
        %v8159 = vpack.c.b16 %v8117, %v8115
        %v8160 = vpack.c.b16 %v8118, %v8116
        %v8161 = vpack.c.b16 %v8121, %v8119
        %v8162 = vpack.c.b16 %v8122, %v8120
        %v8163 = vpack.c.b16 %v8125, %v8123
        %v8164 = vpack.c.b16 %v8126, %v8124
        %v8165 = vpack.c.b16 %v8129, %v8127
        %v8166 = vpack.c.b16 %v8130, %v8128
        %v8167 = vpack.c.b16 %v8133, %v8131
        %v8168 = vpack.c.b16 %v8134, %v8132
        %v8169 = vpack.c.b16 %v8137, %v8135
        %v8170 = vpack.c.b16 %v8138, %v8136
        %8203 = vmatprep.subr.bf16.mxu0 %v8140
        %8204 = vmatpush1.bf16.msra.mxu0 %v8139
        %8205 = vmatprep.subr.bf16.mxu0 %v8142
        %8206 = vmatpush1.bf16.msra.mxu0 %v8141
        %8207 = vmatprep.subr.bf16.mxu0 %v8144
        %8208 = vmatpush1.bf16.msra.mxu0 %v8143
        %8209 = vmatprep.subr.bf16.mxu0 %v8146
        %8210 = vmatpush1.bf16.msra.mxu0 %v8145
        %8211 = vmatprep.subr.bf16.mxu0 %v8148
        %8212 = vmatpush1.bf16.msra.mxu0 %v8147
        %8213 = vmatprep.subr.bf16.mxu0 %v8150
        %8214 = vmatpush1.bf16.msra.mxu0 %v8149
        %8215 = vmatprep.subr.bf16.mxu0 %v8152
        %8216 = vmatpush1.bf16.msra.mxu0 %v8151
        %8217 = vmatprep.subr.bf16.mxu0 %v8154
        %8218 = vmatpush1.bf16.msra.mxu0 %v8153
        %8219 = vmatprep.subr.bf16.mxu0 %v8156
        %8220 = vmatpush1.bf16.msra.mxu0 %v8155
        %8221 = vmatprep.subr.bf16.mxu0 %v8158
        %8222 = vmatpush1.bf16.msra.mxu0 %v8157
        %8223 = vmatprep.subr.bf16.mxu0 %v8160
        %8224 = vmatpush1.bf16.msra.mxu0 %v8159
        %8225 = vmatprep.subr.bf16.mxu0 %v8162
        %8226 = vmatpush1.bf16.msra.mxu0 %v8161
        %8227 = vmatprep.subr.bf16.mxu0 %v8164
        %8228 = vmatpush1.bf16.msra.mxu0 %v8163
        %8229 = vmatprep.subr.bf16.mxu0 %v8166
        %8230 = vmatpush1.bf16.msra.mxu0 %v8165
        %8231 = vmatprep.subr.bf16.mxu0 %v8168
        %8232 = vmatpush1.bf16.msra.mxu0 %v8167
        %8233 = vmatprep.subr.bf16.mxu0 %v8170
        %8234 = vmatpush1.bf16.msra.mxu0 %v8169
        %8235 = vmatprep.mubr.bf16.mxu0 %v6030
        %8236 = vmatmul.mubr.bf16.gmra.mrb[0].mxu0 %v6029
        %v8237 = vpop.f32.mrb[0].mxu0
        %v8238 = vadd.f32 0.0, %v8237
        %v8239 = vpop.f32.mrb[0].mxu0
        %v8240 = vadd.f32 0.0, %v8239
        %v8241 = vpop.f32.mrb[0].mxu0
        %v8242 = vadd.f32 0.0, %v8241
        %v8243 = vpop.f32.mrb[0].mxu0
        %v8244 = vadd.f32 0.0, %v8243
        %8245 = vmatprep.mubr.bf16.mxu0 %v6032
        %8246 = vmatmul.mubr.bf16.gmra.mrb[0].mxu0 %v6031
        %v8247 = vpop.f32.mrb[0].mxu0
        %v8248 = vadd.f32 0.0, %v8247
        %v8249 = vpop.f32.mrb[0].mxu0
        %v8250 = vadd.f32 0.0, %v8249
        %v8251 = vpop.f32.mrb[0].mxu0
        %v8252 = vadd.f32 0.0, %v8251
        %v8253 = vpop.f32.mrb[0].mxu0
        %v8254 = vadd.f32 0.0, %v8253
        %8255 = vmatprep.mubr.bf16.mxu0 %v6034
        %8256 = vmatmul.mubr.bf16.gmra.mrb[0].mxu0 %v6033
        %v8257 = vpop.f32.mrb[0].mxu0
        %v8258 = vadd.f32 0.0, %v8257
        %v8259 = vpop.f32.mrb[0].mxu0
        %v8260 = vadd.f32 0.0, %v8259
        %v8261 = vpop.f32.mrb[0].mxu0
        %v8262 = vadd.f32 0.0, %v8261
        %v8263 = vpop.f32.mrb[0].mxu0
        %v8264 = vadd.f32 0.0, %v8263
        %8265 = vmatprep.mubr.bf16.mxu0 %v6036
        %8266 = vmatmul.mubr.bf16.gmra.mrb[0].mxu0 %v6035
        %v8267 = vpop.f32.mrb[0].mxu0
        %v8268 = vadd.f32 0.0, %v8267
        %v8269 = vpop.f32.mrb[0].mxu0
        %v8270 = vadd.f32 0.0, %v8269
        %v8271 = vpop.f32.mrb[0].mxu0
        %v8272 = vadd.f32 0.0, %v8271
        %v8273 = vpop.f32.mrb[0].mxu0
        %v8274 = vadd.f32 0.0, %v8273
        %8275 = vdwg.mxu0
        %v8276 = vpack.c.bf16 %v8242, %v8238
        %v8277 = vpack.c.bf16 %v8244, %v8240
        %v8278 = vpack.c.bf16 %v8252, %v8248
        %v8279 = vpack.c.bf16 %v8254, %v8250
        %v8280 = vpack.c.bf16 %v8262, %v8258
        %v8281 = vpack.c.bf16 %v8264, %v8260
        %v8282 = vpack.c.bf16 %v8272, %v8268
        %v8283 = vpack.c.bf16 %v8274, %v8270
        %8284 = vst [vmem:[#allocation3 + $0x1c0] sm:$0xff] %v8276
        %8285 = vst [vmem:[#allocation3 + $0x1c8] sm:$0xff] %v8277
        %8286 = vst [vmem:[#allocation3 + $0x1d0] sm:$0xff] %v8278
        %8287 = vst [vmem:[#allocation3 + $0x1d8] sm:$0xff] %v8279
        %8288 = vst [vmem:[#allocation3 + $0x1e0] sm:$0xff] %v8280
        %8289 = vst [vmem:[#allocation3 + $0x1e8] sm:$0xff] %v8281
        %8290 = vst [vmem:[#allocation3 + $0x1f0] sm:$0xff] %v8282
        %8291 = vst [vmem:[#allocation3 + $0x1f8] sm:$0xff] %v8283
        %s8292 = scalar_lea.vmem [#allocation15], 2048
        %v8293 = vld [vmem:[%s8292] sm:$0xff]
        %v8294 = vld [vmem:[%s8292 + $0x8] sm:$0xff]
        %v8295 = vld [vmem:[%s8292 + $0x10] sm:$0xff]
        %v8296 = vld [vmem:[%s8292 + $0x18] sm:$0xff]
        %v8297 = vld [vmem:[%s8292 + $0x20] sm:$0xff]
        %v8298 = vld [vmem:[%s8292 + $0x28] sm:$0xff]
        %v8299 = vld [vmem:[%s8292 + $0x30] sm:$0xff]
        %v8300 = vld [vmem:[%s8292 + $0x38] sm:$0xff]
        %v8301 = vld [vmem:[%s8292 + $0x40] sm:$0xff]
        %v8302 = vld [vmem:[%s8292 + $0x48] sm:$0xff]
        %v8303 = vld [vmem:[%s8292 + $0x50] sm:$0xff]
        %v8304 = vld [vmem:[%s8292 + $0x58] sm:$0xff]
        %v8305 = vld [vmem:[%s8292 + $0x60] sm:$0xff]
        %v8306 = vld [vmem:[%s8292 + $0x68] sm:$0xff]
        %v8307 = vld [vmem:[%s8292 + $0x70] sm:$0xff]
        %v8308 = vld [vmem:[%s8292 + $0x78] sm:$0xff]
        %v8309 = vld [vmem:[%s8292 + $0x80] sm:$0xff]
        %v8310 = vld [vmem:[%s8292 + $0x88] sm:$0xff]
        %v8311 = vld [vmem:[%s8292 + $0x90] sm:$0xff]
        %v8312 = vld [vmem:[%s8292 + $0x98] sm:$0xff]
        %v8313 = vld [vmem:[%s8292 + $0xa0] sm:$0xff]
        %v8314 = vld [vmem:[%s8292 + $0xa8] sm:$0xff]
        %v8315 = vld [vmem:[%s8292 + $0xb0] sm:$0xff]
        %v8316 = vld [vmem:[%s8292 + $0xb8] sm:$0xff]
        %v8317 = vld [vmem:[%s8292 + $0xc0] sm:$0xff]
        %v8318 = vld [vmem:[%s8292 + $0xc8] sm:$0xff]
        %v8319 = vld [vmem:[%s8292 + $0xd0] sm:$0xff]
        %v8320 = vld [vmem:[%s8292 + $0xd8] sm:$0xff]
        %v8321 = vld [vmem:[%s8292 + $0xe0] sm:$0xff]
        %v8322 = vld [vmem:[%s8292 + $0xe8] sm:$0xff]
        %v8323 = vld [vmem:[%s8292 + $0xf0] sm:$0xff]
        %v8324 = vld [vmem:[%s8292 + $0xf8] sm:$0xff]
        %v8357 = vunpack.c.l.b16 %v8293
        %v8358 = vunpack.c.h.b16 %v8293
        %v8359 = vunpack.c.l.b16 %v8294
        %v8360 = vunpack.c.h.b16 %v8294
        %v8361 = vunpack.c.l.b16 %v8295
        %v8362 = vunpack.c.h.b16 %v8295
        %v8363 = vunpack.c.l.b16 %v8296
        %v8364 = vunpack.c.h.b16 %v8296
        %v8365 = vunpack.c.l.b16 %v8297
        %v8366 = vunpack.c.h.b16 %v8297
        %v8367 = vunpack.c.l.b16 %v8298
        %v8368 = vunpack.c.h.b16 %v8298
        %v8369 = vunpack.c.l.b16 %v8299
        %v8370 = vunpack.c.h.b16 %v8299
        %v8371 = vunpack.c.l.b16 %v8300
        %v8372 = vunpack.c.h.b16 %v8300
        %v8373 = vunpack.c.l.b16 %v8301
        %v8374 = vunpack.c.h.b16 %v8301
        %v8375 = vunpack.c.l.b16 %v8302
        %v8376 = vunpack.c.h.b16 %v8302
        %v8377 = vunpack.c.l.b16 %v8303
        %v8378 = vunpack.c.h.b16 %v8303
        %v8379 = vunpack.c.l.b16 %v8304
        %v8380 = vunpack.c.h.b16 %v8304
        %v8381 = vunpack.c.l.b16 %v8305
        %v8382 = vunpack.c.h.b16 %v8305
        %v8383 = vunpack.c.l.b16 %v8306
        %v8384 = vunpack.c.h.b16 %v8306
        %v8385 = vunpack.c.l.b16 %v8307
        %v8386 = vunpack.c.h.b16 %v8307
        %v8387 = vunpack.c.l.b16 %v8308
        %v8388 = vunpack.c.h.b16 %v8308
        %v8389 = vunpack.c.l.b16 %v8309
        %v8390 = vunpack.c.h.b16 %v8309
        %v8391 = vunpack.c.l.b16 %v8310
        %v8392 = vunpack.c.h.b16 %v8310
        %v8393 = vunpack.c.l.b16 %v8311
        %v8394 = vunpack.c.h.b16 %v8311
        %v8395 = vunpack.c.l.b16 %v8312
        %v8396 = vunpack.c.h.b16 %v8312
        %v8397 = vunpack.c.l.b16 %v8313
        %v8398 = vunpack.c.h.b16 %v8313
        %v8399 = vunpack.c.l.b16 %v8314
        %v8400 = vunpack.c.h.b16 %v8314
        %v8401 = vunpack.c.l.b16 %v8315
        %v8402 = vunpack.c.h.b16 %v8315
        %v8403 = vunpack.c.l.b16 %v8316
        %v8404 = vunpack.c.h.b16 %v8316
        %v8405 = vunpack.c.l.b16 %v8317
        %v8406 = vunpack.c.h.b16 %v8317
        %v8407 = vunpack.c.l.b16 %v8318
        %v8408 = vunpack.c.h.b16 %v8318
        %v8409 = vunpack.c.l.b16 %v8319
        %v8410 = vunpack.c.h.b16 %v8319
        %v8411 = vunpack.c.l.b16 %v8320
        %v8412 = vunpack.c.h.b16 %v8320
        %v8413 = vunpack.c.l.b16 %v8321
        %v8414 = vunpack.c.h.b16 %v8321
        %v8415 = vunpack.c.l.b16 %v8322
        %v8416 = vunpack.c.h.b16 %v8322
        %v8417 = vunpack.c.l.b16 %v8323
        %v8418 = vunpack.c.h.b16 %v8323
        %v8419 = vunpack.c.l.b16 %v8324
        %v8420 = vunpack.c.h.b16 %v8324
        %v8421 = vpack.c.b16 %v8359, %v8357
        %v8422 = vpack.c.b16 %v8360, %v8358
        %v8423 = vpack.c.b16 %v8363, %v8361
        %v8424 = vpack.c.b16 %v8364, %v8362
        %v8425 = vpack.c.b16 %v8367, %v8365
        %v8426 = vpack.c.b16 %v8368, %v8366
        %v8427 = vpack.c.b16 %v8371, %v8369
        %v8428 = vpack.c.b16 %v8372, %v8370
        %v8429 = vpack.c.b16 %v8375, %v8373
        %v8430 = vpack.c.b16 %v8376, %v8374
        %v8431 = vpack.c.b16 %v8379, %v8377
        %v8432 = vpack.c.b16 %v8380, %v8378
        %v8433 = vpack.c.b16 %v8383, %v8381
        %v8434 = vpack.c.b16 %v8384, %v8382
        %v8435 = vpack.c.b16 %v8387, %v8385
        %v8436 = vpack.c.b16 %v8388, %v8386
        %v8437 = vpack.c.b16 %v8391, %v8389
        %v8438 = vpack.c.b16 %v8392, %v8390
        %v8439 = vpack.c.b16 %v8395, %v8393
        %v8440 = vpack.c.b16 %v8396, %v8394
        %v8441 = vpack.c.b16 %v8399, %v8397
        %v8442 = vpack.c.b16 %v8400, %v8398
        %v8443 = vpack.c.b16 %v8403, %v8401
        %v8444 = vpack.c.b16 %v8404, %v8402
        %v8445 = vpack.c.b16 %v8407, %v8405
        %v8446 = vpack.c.b16 %v8408, %v8406
        %v8447 = vpack.c.b16 %v8411, %v8409
        %v8448 = vpack.c.b16 %v8412, %v8410
        %v8449 = vpack.c.b16 %v8415, %v8413
        %v8450 = vpack.c.b16 %v8416, %v8414
        %v8451 = vpack.c.b16 %v8419, %v8417
        %v8452 = vpack.c.b16 %v8420, %v8418
        %8485 = vmatprep.subr.bf16.mxu0 %v8422
        %8486 = vmatpush1.bf16.msra.mxu0 %v8421
        %8487 = vmatprep.subr.bf16.mxu0 %v8424
        %8488 = vmatpush1.bf16.msra.mxu0 %v8423
        %8489 = vmatprep.subr.bf16.mxu0 %v8426
        %8490 = vmatpush1.bf16.msra.mxu0 %v8425
        %8491 = vmatprep.subr.bf16.mxu0 %v8428
        %8492 = vmatpush1.bf16.msra.mxu0 %v8427
        %8493 = vmatprep.subr.bf16.mxu0 %v8430
        %8494 = vmatpush1.bf16.msra.mxu0 %v8429
        %8495 = vmatprep.subr.bf16.mxu0 %v8432
        %8496 = vmatpush1.bf16.msra.mxu0 %v8431
        %8497 = vmatprep.subr.bf16.mxu0 %v8434
        %8498 = vmatpush1.bf16.msra.mxu0 %v8433
        %8499 = vmatprep.subr.bf16.mxu0 %v8436
        %8500 = vmatpush1.bf16.msra.mxu0 %v8435
        %8501 = vmatprep.subr.bf16.mxu0 %v8438
        %8502 = vmatpush1.bf16.msra.mxu0 %v8437
        %8503 = vmatprep.subr.bf16.mxu0 %v8440
        %8504 = vmatpush1.bf16.msra.mxu0 %v8439
        %8505 = vmatprep.subr.bf16.mxu0 %v8442
        %8506 = vmatpush1.bf16.msra.mxu0 %v8441
        %8507 = vmatprep.subr.bf16.mxu0 %v8444
        %8508 = vmatpush1.bf16.msra.mxu0 %v8443
        %8509 = vmatprep.subr.bf16.mxu0 %v8446
        %8510 = vmatpush1.bf16.msra.mxu0 %v8445
        %8511 = vmatprep.subr.bf16.mxu0 %v8448
        %8512 = vmatpush1.bf16.msra.mxu0 %v8447
        %8513 = vmatprep.subr.bf16.mxu0 %v8450
        %8514 = vmatpush1.bf16.msra.mxu0 %v8449
        %8515 = vmatprep.subr.bf16.mxu0 %v8452
        %8516 = vmatpush1.bf16.msra.mxu0 %v8451
        %8517 = vmatprep.mubr.bf16.mxu0 %v6030
        %8518 = vmatmul.mubr.bf16.gmra.mrb[0].mxu0 %v6029
        %v8519 = vpop.f32.mrb[0].mxu0
        %v8520 = vadd.f32 0.0, %v8519
        %v8521 = vpop.f32.mrb[0].mxu0
        %v8522 = vadd.f32 0.0, %v8521
        %v8523 = vpop.f32.mrb[0].mxu0
        %v8524 = vadd.f32 0.0, %v8523
        %v8525 = vpop.f32.mrb[0].mxu0
        %v8526 = vadd.f32 0.0, %v8525
        %8527 = vmatprep.mubr.bf16.mxu0 %v6032
        %8528 = vmatmul.mubr.bf16.gmra.mrb[0].mxu0 %v6031
        %v8529 = vpop.f32.mrb[0].mxu0
        %v8530 = vadd.f32 0.0, %v8529
        %v8531 = vpop.f32.mrb[0].mxu0
        %v8532 = vadd.f32 0.0, %v8531
        %v8533 = vpop.f32.mrb[0].mxu0
        %v8534 = vadd.f32 0.0, %v8533
        %v8535 = vpop.f32.mrb[0].mxu0
        %v8536 = vadd.f32 0.0, %v8535
        %8537 = vmatprep.mubr.bf16.mxu0 %v6034
        %8538 = vmatmul.mubr.bf16.gmra.mrb[0].mxu0 %v6033
        %v8539 = vpop.f32.mrb[0].mxu0
        %v8540 = vadd.f32 0.0, %v8539
        %v8541 = vpop.f32.mrb[0].mxu0
        %v8542 = vadd.f32 0.0, %v8541
        %v8543 = vpop.f32.mrb[0].mxu0
        %v8544 = vadd.f32 0.0, %v8543
        %v8545 = vpop.f32.mrb[0].mxu0
        %v8546 = vadd.f32 0.0, %v8545
        %8547 = vmatprep.mubr.bf16.mxu0 %v6036
        %8548 = vmatmul.mubr.bf16.gmra.mrb[0].mxu0 %v6035
        %v8549 = vpop.f32.mrb[0].mxu0
        %v8550 = vadd.f32 0.0, %v8549
        %v8551 = vpop.f32.mrb[0].mxu0
        %v8552 = vadd.f32 0.0, %v8551
        %v8553 = vpop.f32.mrb[0].mxu0
        %v8554 = vadd.f32 0.0, %v8553
        %v8555 = vpop.f32.mrb[0].mxu0
        %v8556 = vadd.f32 0.0, %v8555
        %8557 = vdwg.mxu0
        %v8558 = vpack.c.bf16 %v8524, %v8520
        %v8559 = vpack.c.bf16 %v8526, %v8522
        %v8560 = vpack.c.bf16 %v8534, %v8530
        %v8561 = vpack.c.bf16 %v8536, %v8532
        %v8562 = vpack.c.bf16 %v8544, %v8540
        %v8563 = vpack.c.bf16 %v8546, %v8542
        %v8564 = vpack.c.bf16 %v8554, %v8550
        %v8565 = vpack.c.bf16 %v8556, %v8552
        %8566 = vst [vmem:[#allocation3 + $0x200] sm:$0xff] %v8558
        %8567 = vst [vmem:[#allocation3 + $0x208] sm:$0xff] %v8559
        %8568 = vst [vmem:[#allocation3 + $0x210] sm:$0xff] %v8560
        %8569 = vst [vmem:[#allocation3 + $0x218] sm:$0xff] %v8561
        %8570 = vst [vmem:[#allocation3 + $0x220] sm:$0xff] %v8562
        %8571 = vst [vmem:[#allocation3 + $0x228] sm:$0xff] %v8563
        %8572 = vst [vmem:[#allocation3 + $0x230] sm:$0xff] %v8564
        %8573 = vst [vmem:[#allocation3 + $0x238] sm:$0xff] %v8565
        %v8574 = vld [vmem:[#allocation8] sm:$0xff]
        %v8575 = vld [vmem:[#allocation8 + $0x8] sm:$0xff]
        %v8576 = vld [vmem:[#allocation8 + $0x10] sm:$0xf]
        %v8577 = vld [vmem:[#allocation8 + $0x14] sm:$0xff]
        %v8578 = vld [vmem:[#allocation8 + $0x1c] sm:$0xff]
        %v8579 = vld [vmem:[#allocation8 + $0x24] sm:$0xf]
        %v8580 = vld [vmem:[#allocation8 + $0x28] sm:$0xff]
        %v8581 = vld [vmem:[#allocation8 + $0x30] sm:$0xff]
        %v8582 = vld [vmem:[#allocation8 + $0x38] sm:$0xf]
        %v8583 = vld [vmem:[#allocation8 + $0x3c] sm:$0xff]
        %v8584 = vld [vmem:[#allocation8 + $0x44] sm:$0xff]
        %v8585 = vld [vmem:[#allocation8 + $0x4c] sm:$0xf]
        %v8586 = vld [vmem:[#allocation8 + $0x50] sm:$0xff]
        %v8587 = vld [vmem:[#allocation8 + $0x58] sm:$0xff]
        %v8588 = vld [vmem:[#allocation8 + $0x60] sm:$0xf]
        %v8589 = vld [vmem:[#allocation8 + $0x64] sm:$0xff]
        %v8590 = vld [vmem:[#allocation8 + $0x6c] sm:$0xff]
        %v8591 = vld [vmem:[#allocation8 + $0x74] sm:$0xf]
        %v8592 = vld [vmem:[#allocation8 + $0x78] sm:$0xff]
        %v8593 = vld [vmem:[#allocation8 + $0x80] sm:$0xff]
        %v8594 = vld [vmem:[#allocation8 + $0x88] sm:$0xf]
        %v8595 = vld [vmem:[#allocation8 + $0x8c] sm:$0xff]
        %v8596 = vld [vmem:[#allocation8 + $0x94] sm:$0xff]
        %v8597 = vld [vmem:[#allocation8 + $0x9c] sm:$0xf]
        %v8598 = vld [vmem:[#allocation8 + $0xa0] sm:$0xff]
        %v8599 = vld [vmem:[#allocation8 + $0xa8] sm:$0xff]
        %v8600 = vld [vmem:[#allocation8 + $0xb0] sm:$0xf]
        %v8601 = vld [vmem:[#allocation8 + $0xb4] sm:$0xff]
        %v8602 = vld [vmem:[#allocation8 + $0xbc] sm:$0xff]
        %v8603 = vld [vmem:[#allocation8 + $0xc4] sm:$0xf]
        %v8604 = vld [vmem:[#allocation8 + $0xc8] sm:$0xff]
        %v8605 = vld [vmem:[#allocation8 + $0xd0] sm:$0xff]
        %v8606 = vld [vmem:[#allocation8 + $0xd8] sm:$0xf]
        %v8607 = vld [vmem:[#allocation8 + $0xdc] sm:$0xff]
        %v8608 = vld [vmem:[#allocation8 + $0xe4] sm:$0xff]
        %v8609 = vld [vmem:[#allocation8 + $0xec] sm:$0xf]
        %v8610 = vld [vmem:[#allocation8 + $0xf0] sm:$0xff]
        %v8611 = vld [vmem:[#allocation8 + $0xf8] sm:$0xff]
        %v8612 = vld [vmem:[#allocation8 + $0x100] sm:$0xf]
        %v8613 = vld [vmem:[#allocation8 + $0x104] sm:$0xff]
        %v8614 = vld [vmem:[#allocation8 + $0x10c] sm:$0xff]
        %v8615 = vld [vmem:[#allocation8 + $0x114] sm:$0xf]
        %v8616 = vld [vmem:[#allocation8 + $0x118] sm:$0xff]
        %v8617 = vld [vmem:[#allocation8 + $0x120] sm:$0xff]
        %v8618 = vld [vmem:[#allocation8 + $0x128] sm:$0xf]
        %v8619 = vld [vmem:[#allocation8 + $0x12c] sm:$0xff]
        %v8620 = vld [vmem:[#allocation8 + $0x134] sm:$0xff]
        %v8621 = vld [vmem:[#allocation8 + $0x13c] sm:$0xf]
        %v8622 = vld [vmem:[#allocation8 + $0x140] sm:$0xff]
        %v8623 = vld [vmem:[#allocation8 + $0x148] sm:$0xff]
        %v8624 = vld [vmem:[#allocation8 + $0x150] sm:$0xf]
        %v8625 = vld [vmem:[#allocation8 + $0x154] sm:$0xff]
        %v8626 = vld [vmem:[#allocation8 + $0x15c] sm:$0xff]
        %v8627 = vld [vmem:[#allocation8 + $0x164] sm:$0xf]
        %v8628 = vld [vmem:[#allocation8 + $0x168] sm:$0xff]
        %v8629 = vld [vmem:[#allocation8 + $0x170] sm:$0xff]
        %v8630 = vld [vmem:[#allocation8 + $0x178] sm:$0xf]
        %v8631 = vld [vmem:[#allocation8 + $0x17c] sm:$0xff]
        %v8632 = vld [vmem:[#allocation8 + $0x184] sm:$0xff]
        %v8633 = vld [vmem:[#allocation8 + $0x18c] sm:$0xf]
        %v8634 = vld [vmem:[#allocation8 + $0x190] sm:$0xff]
        %v8635 = vld [vmem:[#allocation8 + $0x198] sm:$0xff]
        %v8636 = vld [vmem:[#allocation8 + $0x1a0] sm:$0xf]
        %v8637 = vld [vmem:[#allocation8 + $0x1a4] sm:$0xff]
        %v8638 = vld [vmem:[#allocation8 + $0x1ac] sm:$0xff]
        %v8639 = vld [vmem:[#allocation8 + $0x1b4] sm:$0xf]
        %v8640 = vld [vmem:[#allocation8 + $0x1b8] sm:$0xff]
        %v8641 = vld [vmem:[#allocation8 + $0x1c0] sm:$0xff]
        %v8642 = vld [vmem:[#allocation8 + $0x1c8] sm:$0xf]
        %v8643 = vld [vmem:[#allocation8 + $0x1cc] sm:$0xff]
        %v8644 = vld [vmem:[#allocation8 + $0x1d4] sm:$0xff]
        %v8645 = vld [vmem:[#allocation8 + $0x1dc] sm:$0xf]
        %v8646 = vld [vmem:[#allocation8 + $0x1e0] sm:$0x33]
        %v8647 = vld [vmem:[#allocation8 + $0x1e8] sm:$0x33]
        %v8648 = vld [vmem:[#allocation8 + $0x1f0] sm:$0x3]
        %v8649 = vld [vmem:[#allocation3] sm:$0xff]
        %v8650 = vld [vmem:[#allocation3 + $0x8] sm:$0xff]
        %v8651 = vld [vmem:[#allocation3 + $0x10] sm:$0xff]
        %v8652 = vld [vmem:[#allocation3 + $0x18] sm:$0xff]
        %v8653 = vld [vmem:[#allocation3 + $0x20] sm:$0xff]
        %v8654 = vld [vmem:[#allocation3 + $0x28] sm:$0xff]
        %v8655 = vld [vmem:[#allocation3 + $0x30] sm:$0xff]
        %v8656 = vld [vmem:[#allocation3 + $0x38] sm:$0xff]
        %v8657 = vld [vmem:[#allocation3 + $0x40] sm:$0xff]
        %v8658 = vld [vmem:[#allocation3 + $0x48] sm:$0xff]
        %v8659 = vld [vmem:[#allocation3 + $0x50] sm:$0xff]
        %v8660 = vld [vmem:[#allocation3 + $0x58] sm:$0xff]
        %v8661 = vld [vmem:[#allocation3 + $0x60] sm:$0xff]
        %v8662 = vld [vmem:[#allocation3 + $0x68] sm:$0xff]
        %v8663 = vld [vmem:[#allocation3 + $0x70] sm:$0xff]
        %v8664 = vld [vmem:[#allocation3 + $0x78] sm:$0xff]
        %v8665 = vld [vmem:[#allocation3 + $0x80] sm:$0xff]
        %v8666 = vld [vmem:[#allocation3 + $0x88] sm:$0xff]
        %v8667 = vld [vmem:[#allocation3 + $0x90] sm:$0xff]
        %v8668 = vld [vmem:[#allocation3 + $0x98] sm:$0xff]
        %v8669 = vld [vmem:[#allocation3 + $0xa0] sm:$0xff]
        %v8670 = vld [vmem:[#allocation3 + $0xa8] sm:$0xff]
        %v8671 = vld [vmem:[#allocation3 + $0xb0] sm:$0xff]
        %v8672 = vld [vmem:[#allocation3 + $0xb8] sm:$0xff]
        %v8673 = vld [vmem:[#allocation3 + $0xc0] sm:$0xff]
        %v8674 = vld [vmem:[#allocation3 + $0xc8] sm:$0xff]
        %v8675 = vld [vmem:[#allocation3 + $0xd0] sm:$0xff]
        %v8676 = vld [vmem:[#allocation3 + $0xd8] sm:$0xff]
        %v8677 = vld [vmem:[#allocation3 + $0xe0] sm:$0xff]
        %v8678 = vld [vmem:[#allocation3 + $0xe8] sm:$0xff]
        %v8679 = vld [vmem:[#allocation3 + $0xf0] sm:$0xff]
        %v8680 = vld [vmem:[#allocation3 + $0xf8] sm:$0xff]
        %v8681 = vld [vmem:[#allocation3 + $0x100] sm:$0xff]
        %v8682 = vld [vmem:[#allocation3 + $0x108] sm:$0xff]
        %v8683 = vld [vmem:[#allocation3 + $0x110] sm:$0xff]
        %v8684 = vld [vmem:[#allocation3 + $0x118] sm:$0xff]
        %v8685 = vld [vmem:[#allocation3 + $0x120] sm:$0xff]
        %v8686 = vld [vmem:[#allocation3 + $0x128] sm:$0xff]
        %v8687 = vld [vmem:[#allocation3 + $0x130] sm:$0xff]
        %v8688 = vld [vmem:[#allocation3 + $0x138] sm:$0xff]
        %v8689 = vld [vmem:[#allocation3 + $0x140] sm:$0xff]
        %v8690 = vld [vmem:[#allocation3 + $0x148] sm:$0xff]
        %v8691 = vld [vmem:[#allocation3 + $0x150] sm:$0xff]
        %v8692 = vld [vmem:[#allocation3 + $0x158] sm:$0xff]
        %v8693 = vld [vmem:[#allocation3 + $0x160] sm:$0xff]
        %v8694 = vld [vmem:[#allocation3 + $0x168] sm:$0xff]
        %v8695 = vld [vmem:[#allocation3 + $0x170] sm:$0xff]
        %v8696 = vld [vmem:[#allocation3 + $0x178] sm:$0xff]
        %v8697 = vld [vmem:[#allocation3 + $0x180] sm:$0xff]
        %v8698 = vld [vmem:[#allocation3 + $0x188] sm:$0xff]
        %v8699 = vld [vmem:[#allocation3 + $0x190] sm:$0xff]
        %v8700 = vld [vmem:[#allocation3 + $0x198] sm:$0xff]
        %v8701 = vld [vmem:[#allocation3 + $0x1a0] sm:$0xff]
        %v8702 = vld [vmem:[#allocation3 + $0x1a8] sm:$0xff]
        %v8703 = vld [vmem:[#allocation3 + $0x1b0] sm:$0xff]
        %v8704 = vld [vmem:[#allocation3 + $0x1b8] sm:$0xff]
        %v8705 = vld [vmem:[#allocation3 + $0x1c0] sm:$0xff]
        %v8706 = vld [vmem:[#allocation3 + $0x1c8] sm:$0xff]
        %v8707 = vld [vmem:[#allocation3 + $0x1d0] sm:$0xff]
        %v8708 = vld [vmem:[#allocation3 + $0x1d8] sm:$0xff]
        %v8709 = vld [vmem:[#allocation3 + $0x1e0] sm:$0xff]
        %v8710 = vld [vmem:[#allocation3 + $0x1e8] sm:$0xff]
        %v8711 = vld [vmem:[#allocation3 + $0x1f0] sm:$0xff]
        %v8712 = vld [vmem:[#allocation3 + $0x1f8] sm:$0xff]
        %v8713 = vld [vmem:[#allocation3 + $0x200] sm:$0xff]
        %v8714 = vld [vmem:[#allocation3 + $0x208] sm:$0xff]
        %v8715 = vld [vmem:[#allocation3 + $0x210] sm:$0xff]
        %v8716 = vld [vmem:[#allocation3 + $0x218] sm:$0xff]
        %v8717 = vld [vmem:[#allocation3 + $0x220] sm:$0xff]
        %v8718 = vld [vmem:[#allocation3 + $0x228] sm:$0xff]
        %v8719 = vld [vmem:[#allocation3 + $0x230] sm:$0xff]
        %v8720 = vld [vmem:[#allocation3 + $0x238] sm:$0xff]
        %v8721 = vld [vmem:[#allocation17] sm:$0x3]
        %v8723 = vlaneseq
        %v8724 = vshrl.u32 %v8723, 7
        %v8725 = vsub.s32 0, %v8724
        %v8726 = vrot.slane %v8721, %v8725
        %v8727 = vlaneseq
        %v8728 = vshrl.u32 %v8727, 7
        %v8729 = vsub.s32 1, %v8728
        %v8730 = vrot.slane %v8721, %v8729
        %v8808 = vunpack.c.l.b16 %v8574
        %v8809 = vunpack.c.h.b16 %v8574
        %v8810 = vunpack.c.l.b16 %v8575
        %v8811 = vunpack.c.h.b16 %v8575
        %v8812 = vunpack.c.l.b16 %v8576
        %v8813 = vunpack.c.l.b16 %v8577
        %v8814 = vunpack.c.h.b16 %v8577
        %v8815 = vunpack.c.l.b16 %v8578
        %v8816 = vunpack.c.h.b16 %v8578
        %v8817 = vunpack.c.l.b16 %v8579
        %v8818 = vunpack.c.l.b16 %v8580
        %v8819 = vunpack.c.h.b16 %v8580
        %v8820 = vunpack.c.l.b16 %v8581
        %v8821 = vunpack.c.h.b16 %v8581
        %v8822 = vunpack.c.l.b16 %v8582
        %v8823 = vunpack.c.l.b16 %v8583
        %v8824 = vunpack.c.h.b16 %v8583
        %v8825 = vunpack.c.l.b16 %v8584
        %v8826 = vunpack.c.h.b16 %v8584
        %v8827 = vunpack.c.l.b16 %v8585
        %v8828 = vunpack.c.l.b16 %v8586
        %v8829 = vunpack.c.h.b16 %v8586
        %v8830 = vunpack.c.l.b16 %v8587
        %v8831 = vunpack.c.h.b16 %v8587
        %v8832 = vunpack.c.l.b16 %v8588
        %v8833 = vunpack.c.l.b16 %v8589
        %v8834 = vunpack.c.h.b16 %v8589
        %v8835 = vunpack.c.l.b16 %v8590
        %v8836 = vunpack.c.h.b16 %v8590
        %v8837 = vunpack.c.l.b16 %v8591
        %v8838 = vunpack.c.l.b16 %v8592
        %v8839 = vunpack.c.h.b16 %v8592
        %v8840 = vunpack.c.l.b16 %v8593
        %v8841 = vunpack.c.h.b16 %v8593
        %v8842 = vunpack.c.l.b16 %v8594
        %v8843 = vunpack.c.l.b16 %v8595
        %v8844 = vunpack.c.h.b16 %v8595
        %v8845 = vunpack.c.l.b16 %v8596
        %v8846 = vunpack.c.h.b16 %v8596
        %v8847 = vunpack.c.l.b16 %v8597
        %v8848 = vunpack.c.l.b16 %v8598
        %v8849 = vunpack.c.h.b16 %v8598
        %v8850 = vunpack.c.l.b16 %v8599
        %v8851 = vunpack.c.h.b16 %v8599
        %v8852 = vunpack.c.l.b16 %v8600
        %v8853 = vunpack.c.l.b16 %v8601
        %v8854 = vunpack.c.h.b16 %v8601
        %v8855 = vunpack.c.l.b16 %v8602
        %v8856 = vunpack.c.h.b16 %v8602
        %v8857 = vunpack.c.l.b16 %v8603
        %v8858 = vunpack.c.l.b16 %v8604
        %v8859 = vunpack.c.h.b16 %v8604
        %v8860 = vunpack.c.l.b16 %v8605
        %v8861 = vunpack.c.h.b16 %v8605
        %v8862 = vunpack.c.l.b16 %v8606
        %v8863 = vunpack.c.l.b16 %v8607
        %v8864 = vunpack.c.h.b16 %v8607
        %v8865 = vunpack.c.l.b16 %v8608
        %v8866 = vunpack.c.h.b16 %v8608
        %v8867 = vunpack.c.l.b16 %v8609
        %v8868 = vunpack.c.l.b16 %v8610
        %v8869 = vunpack.c.h.b16 %v8610
        %v8870 = vunpack.c.l.b16 %v8611
        %v8871 = vunpack.c.h.b16 %v8611
        %v8872 = vunpack.c.l.b16 %v8612
        %v8873 = vunpack.c.l.b16 %v8613
        %v8874 = vunpack.c.h.b16 %v8613
        %v8875 = vunpack.c.l.b16 %v8614
        %v8876 = vunpack.c.h.b16 %v8614
        %v8877 = vunpack.c.l.b16 %v8615
        %v8878 = vunpack.c.l.b16 %v8616
        %v8879 = vunpack.c.h.b16 %v8616
        %v8880 = vunpack.c.l.b16 %v8617
        %v8881 = vunpack.c.h.b16 %v8617
        %v8882 = vunpack.c.l.b16 %v8618
        %v8883 = vunpack.c.l.b16 %v8619
        %v8884 = vunpack.c.h.b16 %v8619
        %v8885 = vunpack.c.l.b16 %v8620
        %v8886 = vunpack.c.h.b16 %v8620
        %v8887 = vunpack.c.l.b16 %v8621
        %v8888 = vunpack.c.l.b16 %v8622
        %v8889 = vunpack.c.h.b16 %v8622
        %v8890 = vunpack.c.l.b16 %v8623
        %v8891 = vunpack.c.h.b16 %v8623
        %v8892 = vunpack.c.l.b16 %v8624
        %v8893 = vunpack.c.l.b16 %v8625
        %v8894 = vunpack.c.h.b16 %v8625
        %v8895 = vunpack.c.l.b16 %v8626
        %v8896 = vunpack.c.h.b16 %v8626
        %v8897 = vunpack.c.l.b16 %v8627
        %v8898 = vunpack.c.l.b16 %v8628
        %v8899 = vunpack.c.h.b16 %v8628
        %v8900 = vunpack.c.l.b16 %v8629
        %v8901 = vunpack.c.h.b16 %v8629
        %v8902 = vunpack.c.l.b16 %v8630
        %v8903 = vunpack.c.l.b16 %v8631
        %v8904 = vunpack.c.h.b16 %v8631
        %v8905 = vunpack.c.l.b16 %v8632
        %v8906 = vunpack.c.h.b16 %v8632
        %v8907 = vunpack.c.l.b16 %v8633
        %v8908 = vunpack.c.l.b16 %v8634
        %v8909 = vunpack.c.h.b16 %v8634
        %v8910 = vunpack.c.l.b16 %v8635
        %v8911 = vunpack.c.h.b16 %v8635
        %v8912 = vunpack.c.l.b16 %v8636
        %v8913 = vunpack.c.l.b16 %v8637
        %v8914 = vunpack.c.h.b16 %v8637
        %v8915 = vunpack.c.l.b16 %v8638
        %v8916 = vunpack.c.h.b16 %v8638
        %v8917 = vunpack.c.l.b16 %v8639
        %v8918 = vunpack.c.l.b16 %v8640
        %v8919 = vunpack.c.h.b16 %v8640
        %v8920 = vunpack.c.l.b16 %v8641
        %v8921 = vunpack.c.h.b16 %v8641
        %v8922 = vunpack.c.l.b16 %v8642
        %v8923 = vunpack.c.l.b16 %v8643
        %v8924 = vunpack.c.h.b16 %v8643
        %v8925 = vunpack.c.l.b16 %v8644
        %v8926 = vunpack.c.h.b16 %v8644
        %v8927 = vunpack.c.l.b16 %v8645
        %v8928 = vunpack.c.l.b16 %v8646
        %v8929 = vunpack.c.h.b16 %v8646
        %v8930 = vunpack.c.l.b16 %v8647
        %v8931 = vunpack.c.h.b16 %v8647
        %v8932 = vunpack.c.l.b16 %v8648
        %v8933 = vpack.c.b16 %v8813, %v8808
        %v8934 = vpack.c.b16 %v8814, %v8809
        %v8935 = vpack.c.b16 %v8815, %v8810
        %v8936 = vpack.c.b16 %v8816, %v8811
        %v8937 = vpack.c.b16 %v8817, %v8812
        %v8938 = vpack.c.b16 %v8823, %v8818
        %v8939 = vpack.c.b16 %v8824, %v8819
        %v8940 = vpack.c.b16 %v8825, %v8820
        %v8941 = vpack.c.b16 %v8826, %v8821
        %v8942 = vpack.c.b16 %v8827, %v8822
        %v8943 = vpack.c.b16 %v8833, %v8828
        %v8944 = vpack.c.b16 %v8834, %v8829
        %v8945 = vpack.c.b16 %v8835, %v8830
        %v8946 = vpack.c.b16 %v8836, %v8831
        %v8947 = vpack.c.b16 %v8837, %v8832
        %v8948 = vpack.c.b16 %v8843, %v8838
        %v8949 = vpack.c.b16 %v8844, %v8839
        %v8950 = vpack.c.b16 %v8845, %v8840
        %v8951 = vpack.c.b16 %v8846, %v8841
        %v8952 = vpack.c.b16 %v8847, %v8842
        %v8953 = vpack.c.b16 %v8853, %v8848
        %v8954 = vpack.c.b16 %v8854, %v8849
        %v8955 = vpack.c.b16 %v8855, %v8850
        %v8956 = vpack.c.b16 %v8856, %v8851
        %v8957 = vpack.c.b16 %v8857, %v8852
        %v8958 = vpack.c.b16 %v8863, %v8858
        %v8959 = vpack.c.b16 %v8864, %v8859
        %v8960 = vpack.c.b16 %v8865, %v8860
        %v8961 = vpack.c.b16 %v8866, %v8861
        %v8962 = vpack.c.b16 %v8867, %v8862
        %v8963 = vpack.c.b16 %v8873, %v8868
        %v8964 = vpack.c.b16 %v8874, %v8869
        %v8965 = vpack.c.b16 %v8875, %v8870
        %v8966 = vpack.c.b16 %v8876, %v8871
        %v8967 = vpack.c.b16 %v8877, %v8872
        %v8968 = vpack.c.b16 %v8883, %v8878
        %v8969 = vpack.c.b16 %v8884, %v8879
        %v8970 = vpack.c.b16 %v8885, %v8880
        %v8971 = vpack.c.b16 %v8886, %v8881
        %v8972 = vpack.c.b16 %v8887, %v8882
        %v8973 = vpack.c.b16 %v8893, %v8888
        %v8974 = vpack.c.b16 %v8894, %v8889
        %v8975 = vpack.c.b16 %v8895, %v8890
        %v8976 = vpack.c.b16 %v8896, %v8891
        %v8977 = vpack.c.b16 %v8897, %v8892
        %v8978 = vpack.c.b16 %v8903, %v8898
        %v8979 = vpack.c.b16 %v8904, %v8899
        %v8980 = vpack.c.b16 %v8905, %v8900
        %v8981 = vpack.c.b16 %v8906, %v8901
        %v8982 = vpack.c.b16 %v8907, %v8902
        %v8983 = vpack.c.b16 %v8913, %v8908
        %v8984 = vpack.c.b16 %v8914, %v8909
        %v8985 = vpack.c.b16 %v8915, %v8910
        %v8986 = vpack.c.b16 %v8916, %v8911
        %v8987 = vpack.c.b16 %v8917, %v8912
        %v8988 = vpack.c.b16 %v8923, %v8918
        %v8989 = vpack.c.b16 %v8924, %v8919
        %v8990 = vpack.c.b16 %v8925, %v8920
        %v8991 = vpack.c.b16 %v8926, %v8921
        %v8992 = vpack.c.b16 %v8927, %v8922
        %v8993 = vpack.c.b16 %v8928, %v8928
        %v8994 = vpack.c.b16 %v8929, %v8929
        %v8995 = vpack.c.b16 %v8930, %v8930
        %v8996 = vpack.c.b16 %v8931, %v8931
        %v8997 = vpack.c.b16 %v8932, %v8932
        %vm9050 = vcmask 523264
        %v9052 = vsel %vm9050, %v8937, 0
        %v9055 = vsel %vm9050, %v8942, 0
        %v9058 = vsel %vm9050, %v8947, 0
        %v9061 = vsel %vm9050, %v8952, 0
        %v9064 = vsel %vm9050, %v8957, 0
        %v9067 = vsel %vm9050, %v8962, 0
        %v9070 = vsel %vm9050, %v8967, 0
        %v9073 = vsel %vm9050, %v8972, 0
        %v9076 = vsel %vm9050, %v8977, 0
        %v9079 = vsel %vm9050, %v8982, 0
        %v9082 = vsel %vm9050, %v8987, 0
        %v9085 = vsel %vm9050, %v8992, 0
        %v9088 = vsel %vm9050, %v8997, 0
        %9090 = vmatprep.subr.bf16.mxu0 %v8650
        %9091 = vmatpush1.bf16.msra.mxu0 %v8649
        %9092 = vmatprep.subr.bf16.mxu0 %v8652
        %9093 = vmatpush1.bf16.msra.mxu0 %v8651
        %9094 = vmatprep.subr.bf16.mxu0 %v8654
        %9095 = vmatpush1.bf16.msra.mxu0 %v8653
        %9096 = vmatprep.subr.bf16.mxu0 %v8656
        %9097 = vmatpush1.bf16.msra.mxu0 %v8655
        %9098 = vmatprep.subr.bf16.mxu0 %v8658
        %9099 = vmatpush1.bf16.msra.mxu0 %v8657
        %9100 = vmatprep.subr.bf16.mxu0 %v8660
        %9101 = vmatpush1.bf16.msra.mxu0 %v8659
        %9102 = vmatprep.subr.bf16.mxu0 %v8662
        %9103 = vmatpush1.bf16.msra.mxu0 %v8661
        %9104 = vmatprep.subr.bf16.mxu0 %v8664
        %9105 = vmatpush1.bf16.msra.mxu0 %v8663
        %9106 = vmatprep.subr.bf16.mxu0 %v8666
        %9107 = vmatpush1.bf16.msra.mxu0 %v8665
        %9108 = vmatprep.subr.bf16.mxu0 %v8668
        %9109 = vmatpush1.bf16.msra.mxu0 %v8667
        %9110 = vmatprep.subr.bf16.mxu0 %v8670
        %9111 = vmatpush1.bf16.msra.mxu0 %v8669
        %9112 = vmatprep.subr.bf16.mxu0 %v8672
        %9113 = vmatpush1.bf16.msra.mxu0 %v8671
        %9114 = vmatprep.subr.bf16.mxu0 %v8674
        %9115 = vmatpush1.bf16.msra.mxu0 %v8673
        %9116 = vmatprep.subr.bf16.mxu0 %v8676
        %9117 = vmatpush1.bf16.msra.mxu0 %v8675
        %9118 = vmatprep.subr.bf16.mxu0 %v8678
        %9119 = vmatpush1.bf16.msra.mxu0 %v8677
        %9120 = vmatprep.subr.bf16.mxu0 %v8680
        %9121 = vmatpush1.bf16.msra.mxu0 %v8679
        %9122 = vmatprep.mubr.bf16.mxu0 %v8934
        %9123 = vmatmul.mubr.bf16.gmra.mrb[0].mxu0 %v8933
        %v9124 = vpop.f32.mrb[0].mxu0
        %v9125 = vadd.f32 %v8726, %v9124
        %v9126 = vpop.f32.mrb[0].mxu0
        %v9127 = vadd.f32 %v8730, %v9126
        %v9128 = vpop.f32.mrb[0].mxu0
        %v9129 = vadd.f32 %v8726, %v9128
        %v9130 = vpop.f32.mrb[0].mxu0
        %v9131 = vadd.f32 %v8730, %v9130
        %9132 = vmatprep.mubr.bf16.mxu0 %v8939
        %9133 = vmatmul.mubr.bf16.gmra.mrb[0].mxu0 %v8938
        %v9134 = vpop.f32.mrb[0].mxu0
        %v9135 = vadd.f32 %v8726, %v9134
        %v9136 = vpop.f32.mrb[0].mxu0
        %v9137 = vadd.f32 %v8730, %v9136
        %v9138 = vpop.f32.mrb[0].mxu0
        %v9139 = vadd.f32 %v8726, %v9138
        %v9140 = vpop.f32.mrb[0].mxu0
        %v9141 = vadd.f32 %v8730, %v9140
        %9142 = vmatprep.mubr.bf16.mxu0 %v8944
        %9143 = vmatmul.mubr.bf16.gmra.mrb[0].mxu0 %v8943
        %v9144 = vpop.f32.mrb[0].mxu0
        %v9145 = vadd.f32 %v8726, %v9144
        %v9146 = vpop.f32.mrb[0].mxu0
        %v9147 = vadd.f32 %v8730, %v9146
        %v9148 = vpop.f32.mrb[0].mxu0
        %v9149 = vadd.f32 %v8726, %v9148
        %v9150 = vpop.f32.mrb[0].mxu0
        %v9151 = vadd.f32 %v8730, %v9150
        %9152 = vmatprep.mubr.bf16.mxu0 %v8949
        %9153 = vmatmul.mubr.bf16.gmra.mrb[0].mxu0 %v8948
        %v9154 = vpop.f32.mrb[0].mxu0
        %v9155 = vadd.f32 %v8726, %v9154
        %v9156 = vpop.f32.mrb[0].mxu0
        %v9157 = vadd.f32 %v8730, %v9156
        %v9158 = vpop.f32.mrb[0].mxu0
        %v9159 = vadd.f32 %v8726, %v9158
        %v9160 = vpop.f32.mrb[0].mxu0
        %v9161 = vadd.f32 %v8730, %v9160
        %9162 = vmatprep.mubr.bf16.mxu0 %v8954
        %9163 = vmatmul.mubr.bf16.gmra.mrb[0].mxu0 %v8953
        %v9164 = vpop.f32.mrb[0].mxu0
        %v9165 = vadd.f32 %v8726, %v9164
        %v9166 = vpop.f32.mrb[0].mxu0
        %v9167 = vadd.f32 %v8730, %v9166
        %v9168 = vpop.f32.mrb[0].mxu0
        %v9169 = vadd.f32 %v8726, %v9168
        %v9170 = vpop.f32.mrb[0].mxu0
        %v9171 = vadd.f32 %v8730, %v9170
        %9172 = vmatprep.mubr.bf16.mxu0 %v8959
        %9173 = vmatmul.mubr.bf16.gmra.mrb[0].mxu0 %v8958
        %v9174 = vpop.f32.mrb[0].mxu0
        %v9175 = vadd.f32 %v8726, %v9174
        %v9176 = vpop.f32.mrb[0].mxu0
        %v9177 = vadd.f32 %v8730, %v9176
        %v9178 = vpop.f32.mrb[0].mxu0
        %v9179 = vadd.f32 %v8726, %v9178
        %v9180 = vpop.f32.mrb[0].mxu0
        %v9181 = vadd.f32 %v8730, %v9180
        %9182 = vmatprep.mubr.bf16.mxu0 %v8964
        %9183 = vmatmul.mubr.bf16.gmra.mrb[0].mxu0 %v8963
        %v9184 = vpop.f32.mrb[0].mxu0
        %v9185 = vadd.f32 %v8726, %v9184
        %v9186 = vpop.f32.mrb[0].mxu0
        %v9187 = vadd.f32 %v8730, %v9186
        %v9188 = vpop.f32.mrb[0].mxu0
        %v9189 = vadd.f32 %v8726, %v9188
        %v9190 = vpop.f32.mrb[0].mxu0
        %v9191 = vadd.f32 %v8730, %v9190
        %9192 = vmatprep.mubr.bf16.mxu0 %v8969
        %9193 = vmatmul.mubr.bf16.gmra.mrb[0].mxu0 %v8968
        %v9194 = vpop.f32.mrb[0].mxu0
        %v9195 = vadd.f32 %v8726, %v9194
        %v9196 = vpop.f32.mrb[0].mxu0
        %v9197 = vadd.f32 %v8730, %v9196
        %v9198 = vpop.f32.mrb[0].mxu0
        %v9199 = vadd.f32 %v8726, %v9198
        %v9200 = vpop.f32.mrb[0].mxu0
        %v9201 = vadd.f32 %v8730, %v9200
        %9202 = vmatprep.mubr.bf16.mxu0 %v8974
        %9203 = vmatmul.mubr.bf16.gmra.mrb[0].mxu0 %v8973
        %v9204 = vpop.f32.mrb[0].mxu0
        %v9205 = vadd.f32 %v8726, %v9204
        %v9206 = vpop.f32.mrb[0].mxu0
        %v9207 = vadd.f32 %v8730, %v9206
        %v9208 = vpop.f32.mrb[0].mxu0
        %v9209 = vadd.f32 %v8726, %v9208
        %v9210 = vpop.f32.mrb[0].mxu0
        %v9211 = vadd.f32 %v8730, %v9210
        %9212 = vmatprep.mubr.bf16.mxu0 %v8979
        %9213 = vmatmul.mubr.bf16.gmra.mrb[0].mxu0 %v8978
        %v9214 = vpop.f32.mrb[0].mxu0
        %v9215 = vadd.f32 %v8726, %v9214
        %v9216 = vpop.f32.mrb[0].mxu0
        %v9217 = vadd.f32 %v8730, %v9216
        %v9218 = vpop.f32.mrb[0].mxu0
        %v9219 = vadd.f32 %v8726, %v9218
        %v9220 = vpop.f32.mrb[0].mxu0
        %v9221 = vadd.f32 %v8730, %v9220
        %9222 = vmatprep.mubr.bf16.mxu0 %v8984
        %9223 = vmatmul.mubr.bf16.gmra.mrb[0].mxu0 %v8983
        %v9224 = vpop.f32.mrb[0].mxu0
        %v9225 = vadd.f32 %v8726, %v9224
        %v9226 = vpop.f32.mrb[0].mxu0
        %v9227 = vadd.f32 %v8730, %v9226
        %v9228 = vpop.f32.mrb[0].mxu0
        %v9229 = vadd.f32 %v8726, %v9228
        %v9230 = vpop.f32.mrb[0].mxu0
        %v9231 = vadd.f32 %v8730, %v9230
        %9232 = vmatprep.mubr.bf16.mxu0 %v8989
        %9233 = vmatmul.mubr.bf16.gmra.mrb[0].mxu0 %v8988
        %v9234 = vpop.f32.mrb[0].mxu0
        %v9235 = vadd.f32 %v8726, %v9234
        %v9236 = vpop.f32.mrb[0].mxu0
        %v9237 = vadd.f32 %v8730, %v9236
        %v9238 = vpop.f32.mrb[0].mxu0
        %v9239 = vadd.f32 %v8726, %v9238
        %v9240 = vpop.f32.mrb[0].mxu0
        %v9241 = vadd.f32 %v8730, %v9240
        %9242 = vmatprep.mubr.bf16.mxu0 %v8994
        %9243 = vmatmul.mubr.bf16.gmra.mrb[0].mxu0 %v8993
        %v9244 = vpop.f32.mrb[0].mxu0
        %v9245 = vadd.f32 %v8726, %v9244
        %v9246 = vpop.f32.mrb[0].mxu0
        %v9247 = vadd.f32 %v8730, %v9246
        %v9248 = vpop.f32.mrb[0].mxu0
        %v9249 = vpop.f32.mrb[0].mxu0
        %9250 = vdwg.mxu0
        %9251 = vmatprep.subr.bf16.mxu0 %v8682
        %9252 = vmatpush1.bf16.msra.mxu0 %v8681
        %9253 = vmatprep.subr.bf16.mxu0 %v8684
        %9254 = vmatpush1.bf16.msra.mxu0 %v8683
        %9255 = vmatprep.subr.bf16.mxu0 %v8686
        %9256 = vmatpush1.bf16.msra.mxu0 %v8685
        %9257 = vmatprep.subr.bf16.mxu0 %v8688
        %9258 = vmatpush1.bf16.msra.mxu0 %v8687
        %9259 = vmatprep.subr.bf16.mxu0 %v8690
        %9260 = vmatpush1.bf16.msra.mxu0 %v8689
        %9261 = vmatprep.subr.bf16.mxu0 %v8692
        %9262 = vmatpush1.bf16.msra.mxu0 %v8691
        %9263 = vmatprep.subr.bf16.mxu0 %v8694
        %9264 = vmatpush1.bf16.msra.mxu0 %v8693
        %9265 = vmatprep.subr.bf16.mxu0 %v8696
        %9266 = vmatpush1.bf16.msra.mxu0 %v8695
        %9267 = vmatprep.subr.bf16.mxu0 %v8698
        %9268 = vmatpush1.bf16.msra.mxu0 %v8697
        %9269 = vmatprep.subr.bf16.mxu0 %v8700
        %9270 = vmatpush1.bf16.msra.mxu0 %v8699
        %9271 = vmatprep.subr.bf16.mxu0 %v8702
        %9272 = vmatpush1.bf16.msra.mxu0 %v8701
        %9273 = vmatprep.subr.bf16.mxu0 %v8704
        %9274 = vmatpush1.bf16.msra.mxu0 %v8703
        %9275 = vmatprep.subr.bf16.mxu0 %v8706
        %9276 = vmatpush1.bf16.msra.mxu0 %v8705
        %9277 = vmatprep.subr.bf16.mxu0 %v8708
        %9278 = vmatpush1.bf16.msra.mxu0 %v8707
        %9279 = vmatprep.subr.bf16.mxu0 %v8710
        %9280 = vmatpush1.bf16.msra.mxu0 %v8709
        %9281 = vmatprep.subr.bf16.mxu0 %v8712
        %9282 = vmatpush1.bf16.msra.mxu0 %v8711
        %9283 = vmatprep.mubr.bf16.mxu0 %v8936
        %9284 = vmatmul.mubr.bf16.gmra.mrb[0].mxu0 %v8935
        %v9285 = vpop.f32.mrb[0].mxu0
        %v9286 = vadd.f32 %v9125, %v9285
        %v9287 = vpop.f32.mrb[0].mxu0
        %v9288 = vadd.f32 %v9127, %v9287
        %v9289 = vpop.f32.mrb[0].mxu0
        %v9290 = vadd.f32 %v9129, %v9289
        %v9291 = vpop.f32.mrb[0].mxu0
        %v9292 = vadd.f32 %v9131, %v9291
        %9293 = vmatprep.mubr.bf16.mxu0 %v8941
        %9294 = vmatmul.mubr.bf16.gmra.mrb[0].mxu0 %v8940
        %v9295 = vpop.f32.mrb[0].mxu0
        %v9296 = vadd.f32 %v9135, %v9295
        %v9297 = vpop.f32.mrb[0].mxu0
        %v9298 = vadd.f32 %v9137, %v9297
        %v9299 = vpop.f32.mrb[0].mxu0
        %v9300 = vadd.f32 %v9139, %v9299
        %v9301 = vpop.f32.mrb[0].mxu0
        %v9302 = vadd.f32 %v9141, %v9301
        %9303 = vmatprep.mubr.bf16.mxu0 %v8946
        %9304 = vmatmul.mubr.bf16.gmra.mrb[0].mxu0 %v8945
        %v9305 = vpop.f32.mrb[0].mxu0
        %v9306 = vadd.f32 %v9145, %v9305
        %v9307 = vpop.f32.mrb[0].mxu0
        %v9308 = vadd.f32 %v9147, %v9307
        %v9309 = vpop.f32.mrb[0].mxu0
        %v9310 = vadd.f32 %v9149, %v9309
        %v9311 = vpop.f32.mrb[0].mxu0
        %v9312 = vadd.f32 %v9151, %v9311
        %9313 = vmatprep.mubr.bf16.mxu0 %v8951
        %9314 = vmatmul.mubr.bf16.gmra.mrb[0].mxu0 %v8950
        %v9315 = vpop.f32.mrb[0].mxu0
        %v9316 = vadd.f32 %v9155, %v9315
        %v9317 = vpop.f32.mrb[0].mxu0
        %v9318 = vadd.f32 %v9157, %v9317
        %v9319 = vpop.f32.mrb[0].mxu0
        %v9320 = vadd.f32 %v9159, %v9319
        %v9321 = vpop.f32.mrb[0].mxu0
        %v9322 = vadd.f32 %v9161, %v9321
        %9323 = vmatprep.mubr.bf16.mxu0 %v8956
        %9324 = vmatmul.mubr.bf16.gmra.mrb[0].mxu0 %v8955
        %v9325 = vpop.f32.mrb[0].mxu0
        %v9326 = vadd.f32 %v9165, %v9325
        %v9327 = vpop.f32.mrb[0].mxu0
        %v9328 = vadd.f32 %v9167, %v9327
        %v9329 = vpop.f32.mrb[0].mxu0
        %v9330 = vadd.f32 %v9169, %v9329
        %v9331 = vpop.f32.mrb[0].mxu0
        %v9332 = vadd.f32 %v9171, %v9331
        %9333 = vmatprep.mubr.bf16.mxu0 %v8961
        %9334 = vmatmul.mubr.bf16.gmra.mrb[0].mxu0 %v8960
        %v9335 = vpop.f32.mrb[0].mxu0
        %v9336 = vadd.f32 %v9175, %v9335
        %v9337 = vpop.f32.mrb[0].mxu0
        %v9338 = vadd.f32 %v9177, %v9337
        %v9339 = vpop.f32.mrb[0].mxu0
        %v9340 = vadd.f32 %v9179, %v9339
        %v9341 = vpop.f32.mrb[0].mxu0
        %v9342 = vadd.f32 %v9181, %v9341
        %9343 = vmatprep.mubr.bf16.mxu0 %v8966
        %9344 = vmatmul.mubr.bf16.gmra.mrb[0].mxu0 %v8965
        %v9345 = vpop.f32.mrb[0].mxu0
        %v9346 = vadd.f32 %v9185, %v9345
        %v9347 = vpop.f32.mrb[0].mxu0
        %v9348 = vadd.f32 %v9187, %v9347
        %v9349 = vpop.f32.mrb[0].mxu0
        %v9350 = vadd.f32 %v9189, %v9349
        %v9351 = vpop.f32.mrb[0].mxu0
        %v9352 = vadd.f32 %v9191, %v9351
        %9353 = vmatprep.mubr.bf16.mxu0 %v8971
        %9354 = vmatmul.mubr.bf16.gmra.mrb[0].mxu0 %v8970
        %v9355 = vpop.f32.mrb[0].mxu0
        %v9356 = vadd.f32 %v9195, %v9355
        %v9357 = vpop.f32.mrb[0].mxu0
        %v9358 = vadd.f32 %v9197, %v9357
        %v9359 = vpop.f32.mrb[0].mxu0
        %v9360 = vadd.f32 %v9199, %v9359
        %v9361 = vpop.f32.mrb[0].mxu0
        %v9362 = vadd.f32 %v9201, %v9361
        %9363 = vmatprep.mubr.bf16.mxu0 %v8976
        %9364 = vmatmul.mubr.bf16.gmra.mrb[0].mxu0 %v8975
        %v9365 = vpop.f32.mrb[0].mxu0
        %v9366 = vadd.f32 %v9205, %v9365
        %v9367 = vpop.f32.mrb[0].mxu0
        %v9368 = vadd.f32 %v9207, %v9367
        %v9369 = vpop.f32.mrb[0].mxu0
        %v9370 = vadd.f32 %v9209, %v9369
        %v9371 = vpop.f32.mrb[0].mxu0
        %v9372 = vadd.f32 %v9211, %v9371
        %9373 = vmatprep.mubr.bf16.mxu0 %v8981
        %9374 = vmatmul.mubr.bf16.gmra.mrb[0].mxu0 %v8980
        %v9375 = vpop.f32.mrb[0].mxu0
        %v9376 = vadd.f32 %v9215, %v9375
        %v9377 = vpop.f32.mrb[0].mxu0
        %v9378 = vadd.f32 %v9217, %v9377
        %v9379 = vpop.f32.mrb[0].mxu0
        %v9380 = vadd.f32 %v9219, %v9379
        %v9381 = vpop.f32.mrb[0].mxu0
        %v9382 = vadd.f32 %v9221, %v9381
        %9383 = vmatprep.mubr.bf16.mxu0 %v8986
        %9384 = vmatmul.mubr.bf16.gmra.mrb[0].mxu0 %v8985
        %v9385 = vpop.f32.mrb[0].mxu0
        %v9386 = vadd.f32 %v9225, %v9385
        %v9387 = vpop.f32.mrb[0].mxu0
        %v9388 = vadd.f32 %v9227, %v9387
        %v9389 = vpop.f32.mrb[0].mxu0
        %v9390 = vadd.f32 %v9229, %v9389
        %v9391 = vpop.f32.mrb[0].mxu0
        %v9392 = vadd.f32 %v9231, %v9391
        %9393 = vmatprep.mubr.bf16.mxu0 %v8991
        %9394 = vmatmul.mubr.bf16.gmra.mrb[0].mxu0 %v8990
        %v9395 = vpop.f32.mrb[0].mxu0
        %v9396 = vadd.f32 %v9235, %v9395
        %v9397 = vpop.f32.mrb[0].mxu0
        %v9398 = vadd.f32 %v9237, %v9397
        %v9399 = vpop.f32.mrb[0].mxu0
        %v9400 = vadd.f32 %v9239, %v9399
        %v9401 = vpop.f32.mrb[0].mxu0
        %v9402 = vadd.f32 %v9241, %v9401
        %9403 = vmatprep.mubr.bf16.mxu0 %v8996
        %9404 = vmatmul.mubr.bf16.gmra.mrb[0].mxu0 %v8995
        %v9405 = vpop.f32.mrb[0].mxu0
        %v9406 = vadd.f32 %v9245, %v9405
        %v9407 = vpop.f32.mrb[0].mxu0
        %v9408 = vadd.f32 %v9247, %v9407
        %v9409 = vpop.f32.mrb[0].mxu0
        %v9410 = vpop.f32.mrb[0].mxu0
        %9411 = vdwg.mxu0
        %9412 = vmatprep.subr.bf16.mxu0 %v8714
        %9413 = vmatpush1.bf16.msra.mxu0 %v8713
        %9414 = vmatprep.subr.bf16.mxu0 %v8716
        %9415 = vmatpush1.bf16.msra.mxu0 %v8715
        %9416 = vmatprep.subr.bf16.mxu0 %v8718
        %9417 = vmatpush1.bf16.msra.mxu0 %v8717
        %9418 = vmatprep.subr.bf16.mxu0 %v8720
        %9419 = vmatpush1.bf16.msra.mxu0 %v8719
        %9420 = vmatprep.subr.bf16.mxu0 0
        %9421 = vmatpush1.bf16.msra.mxu0 0
        %9422 = vmatprep.subr.bf16.mxu0 0
        %9423 = vmatpush1.bf16.msra.mxu0 0
        %9424 = vmatprep.subr.bf16.mxu0 0
        %9425 = vmatpush1.bf16.msra.mxu0 0
        %9426 = vmatprep.subr.bf16.mxu0 0
        %9427 = vmatpush1.bf16.msra.mxu0 0
        %9428 = vmatprep.subr.bf16.mxu0 0
        %9429 = vmatpush1.bf16.msra.mxu0 0
        %9430 = vmatprep.subr.bf16.mxu0 0
        %9431 = vmatpush1.bf16.msra.mxu0 0
        %9432 = vmatprep.subr.bf16.mxu0 0
        %9433 = vmatpush1.bf16.msra.mxu0 0
        %9434 = vmatprep.subr.bf16.mxu0 0
        %9435 = vmatpush1.bf16.msra.mxu0 0
        %9436 = vmatprep.subr.bf16.mxu0 0
        %9437 = vmatpush1.bf16.msra.mxu0 0
        %9438 = vmatprep.subr.bf16.mxu0 0
        %9439 = vmatpush1.bf16.msra.mxu0 0
        %9440 = vmatprep.subr.bf16.mxu0 0
        %9441 = vmatpush1.bf16.msra.mxu0 0
        %9442 = vmatprep.subr.bf16.mxu0 0
        %9443 = vmatpush1.bf16.msra.mxu0 0
        %9444 = vmatprep.mubr.bf16.mxu0 0
        %9445 = vmatmul.mubr.bf16.gmra.mrb[0].mxu0 %v9052
        %v9446 = vpop.f32.mrb[0].mxu0
        %v9447 = vadd.f32 %v9286, %v9446
        %v9448 = vpop.f32.mrb[0].mxu0
        %v9449 = vadd.f32 %v9288, %v9448
        %v9450 = vpop.f32.mrb[0].mxu0
        %v9451 = vadd.f32 %v9290, %v9450
        %v9452 = vpop.f32.mrb[0].mxu0
        %v9453 = vadd.f32 %v9292, %v9452
        %9454 = vmatprep.mubr.bf16.mxu0 0
        %9455 = vmatmul.mubr.bf16.gmra.mrb[0].mxu0 %v9055
        %v9456 = vpop.f32.mrb[0].mxu0
        %v9457 = vadd.f32 %v9296, %v9456
        %v9458 = vpop.f32.mrb[0].mxu0
        %v9459 = vadd.f32 %v9298, %v9458
        %v9460 = vpop.f32.mrb[0].mxu0
        %v9461 = vadd.f32 %v9300, %v9460
        %v9462 = vpop.f32.mrb[0].mxu0
        %v9463 = vadd.f32 %v9302, %v9462
        %9464 = vmatprep.mubr.bf16.mxu0 0
        %9465 = vmatmul.mubr.bf16.gmra.mrb[0].mxu0 %v9058
        %v9466 = vpop.f32.mrb[0].mxu0
        %v9467 = vadd.f32 %v9306, %v9466
        %v9468 = vpop.f32.mrb[0].mxu0
        %v9469 = vadd.f32 %v9308, %v9468
        %v9470 = vpop.f32.mrb[0].mxu0
        %v9471 = vadd.f32 %v9310, %v9470
        %v9472 = vpop.f32.mrb[0].mxu0
        %v9473 = vadd.f32 %v9312, %v9472
        %9474 = vmatprep.mubr.bf16.mxu0 0
        %9475 = vmatmul.mubr.bf16.gmra.mrb[0].mxu0 %v9061
        %v9476 = vpop.f32.mrb[0].mxu0
        %v9477 = vadd.f32 %v9316, %v9476
        %v9478 = vpop.f32.mrb[0].mxu0
        %v9479 = vadd.f32 %v9318, %v9478
        %v9480 = vpop.f32.mrb[0].mxu0
        %v9481 = vadd.f32 %v9320, %v9480
        %v9482 = vpop.f32.mrb[0].mxu0
        %v9483 = vadd.f32 %v9322, %v9482
        %9484 = vmatprep.mubr.bf16.mxu0 0
        %9485 = vmatmul.mubr.bf16.gmra.mrb[0].mxu0 %v9064
        %v9486 = vpop.f32.mrb[0].mxu0
        %v9487 = vadd.f32 %v9326, %v9486
        %v9488 = vpop.f32.mrb[0].mxu0
        %v9489 = vadd.f32 %v9328, %v9488
        %v9490 = vpop.f32.mrb[0].mxu0
        %v9491 = vadd.f32 %v9330, %v9490
        %v9492 = vpop.f32.mrb[0].mxu0
        %v9493 = vadd.f32 %v9332, %v9492
        %9494 = vmatprep.mubr.bf16.mxu0 0
        %9495 = vmatmul.mubr.bf16.gmra.mrb[0].mxu0 %v9067
        %v9496 = vpop.f32.mrb[0].mxu0
        %v9497 = vadd.f32 %v9336, %v9496
        %v9498 = vpop.f32.mrb[0].mxu0
        %v9499 = vadd.f32 %v9338, %v9498
        %v9500 = vpop.f32.mrb[0].mxu0
        %v9501 = vadd.f32 %v9340, %v9500
        %v9502 = vpop.f32.mrb[0].mxu0
        %v9503 = vadd.f32 %v9342, %v9502
        %9504 = vmatprep.mubr.bf16.mxu0 0
        %9505 = vmatmul.mubr.bf16.gmra.mrb[0].mxu0 %v9070
        %v9506 = vpop.f32.mrb[0].mxu0
        %v9507 = vadd.f32 %v9346, %v9506
        %v9508 = vpop.f32.mrb[0].mxu0
        %v9509 = vadd.f32 %v9348, %v9508
        %v9510 = vpop.f32.mrb[0].mxu0
        %v9511 = vadd.f32 %v9350, %v9510
        %v9512 = vpop.f32.mrb[0].mxu0
        %v9513 = vadd.f32 %v9352, %v9512
        %9514 = vmatprep.mubr.bf16.mxu0 0
        %9515 = vmatmul.mubr.bf16.gmra.mrb[0].mxu0 %v9073
        %v9516 = vpop.f32.mrb[0].mxu0
        %v9517 = vadd.f32 %v9356, %v9516
        %v9518 = vpop.f32.mrb[0].mxu0
        %v9519 = vadd.f32 %v9358, %v9518
        %v9520 = vpop.f32.mrb[0].mxu0
        %v9521 = vadd.f32 %v9360, %v9520
        %v9522 = vpop.f32.mrb[0].mxu0
        %v9523 = vadd.f32 %v9362, %v9522
        %9524 = vmatprep.mubr.bf16.mxu0 0
        %9525 = vmatmul.mubr.bf16.gmra.mrb[0].mxu0 %v9076
        %v9526 = vpop.f32.mrb[0].mxu0
        %v9527 = vadd.f32 %v9366, %v9526
        %v9528 = vpop.f32.mrb[0].mxu0
        %v9529 = vadd.f32 %v9368, %v9528
        %v9530 = vpop.f32.mrb[0].mxu0
        %v9531 = vadd.f32 %v9370, %v9530
        %v9532 = vpop.f32.mrb[0].mxu0
        %v9533 = vadd.f32 %v9372, %v9532
        %9534 = vmatprep.mubr.bf16.mxu0 0
        %9535 = vmatmul.mubr.bf16.gmra.mrb[0].mxu0 %v9079
        %v9536 = vpop.f32.mrb[0].mxu0
        %v9537 = vadd.f32 %v9376, %v9536
        %v9538 = vpop.f32.mrb[0].mxu0
        %v9539 = vadd.f32 %v9378, %v9538
        %v9540 = vpop.f32.mrb[0].mxu0
        %v9541 = vadd.f32 %v9380, %v9540
        %v9542 = vpop.f32.mrb[0].mxu0
        %v9543 = vadd.f32 %v9382, %v9542
        %9544 = vmatprep.mubr.bf16.mxu0 0
        %9545 = vmatmul.mubr.bf16.gmra.mrb[0].mxu0 %v9082
        %v9546 = vpop.f32.mrb[0].mxu0
        %v9547 = vadd.f32 %v9386, %v9546
        %v9548 = vpop.f32.mrb[0].mxu0
        %v9549 = vadd.f32 %v9388, %v9548
        %v9550 = vpop.f32.mrb[0].mxu0
        %v9551 = vadd.f32 %v9390, %v9550
        %v9552 = vpop.f32.mrb[0].mxu0
        %v9553 = vadd.f32 %v9392, %v9552
        %9554 = vmatprep.mubr.bf16.mxu0 0
        %9555 = vmatmul.mubr.bf16.gmra.mrb[0].mxu0 %v9085
        %v9556 = vpop.f32.mrb[0].mxu0
        %v9557 = vadd.f32 %v9396, %v9556
        %v9558 = vpop.f32.mrb[0].mxu0
        %v9559 = vadd.f32 %v9398, %v9558
        %v9560 = vpop.f32.mrb[0].mxu0
        %v9561 = vadd.f32 %v9400, %v9560
        %v9562 = vpop.f32.mrb[0].mxu0
        %v9563 = vadd.f32 %v9402, %v9562
        %9564 = vmatprep.mubr.bf16.mxu0 0
        %9565 = vmatmul.mubr.bf16.gmra.mrb[0].mxu0 %v9088
        %v9566 = vpop.f32.mrb[0].mxu0
        %v9567 = vadd.f32 %v9406, %v9566
        %v9568 = vpop.f32.mrb[0].mxu0
        %v9569 = vadd.f32 %v9408, %v9568
        %v9570 = vpop.f32.mrb[0].mxu0
        %v9571 = vpop.f32.mrb[0].mxu0
        %9572 = vdwg.mxu0
        %v9573 = vtanh.pop %v9447
        %v9574 = vtanh.pop %v9449
        %v9575 = vtanh.pop %v9451
        %v9576 = vtanh.pop %v9453
        %v9577 = vtanh.pop %v9457
        %v9578 = vtanh.pop %v9459
        %v9579 = vtanh.pop %v9461
        %v9580 = vtanh.pop %v9463
        %v9581 = vtanh.pop %v9467
        %v9582 = vtanh.pop %v9469
        %v9583 = vtanh.pop %v9471
        %v9584 = vtanh.pop %v9473
        %v9585 = vtanh.pop %v9477
        %v9586 = vtanh.pop %v9479
        %v9587 = vtanh.pop %v9481
        %v9588 = vtanh.pop %v9483
        %v9589 = vtanh.pop %v9487
        %v9590 = vtanh.pop %v9489
        %v9591 = vtanh.pop %v9491
        %v9592 = vtanh.pop %v9493
        %v9593 = vtanh.pop %v9497
        %v9594 = vtanh.pop %v9499
        %v9595 = vtanh.pop %v9501
        %v9596 = vtanh.pop %v9503
        %v9597 = vtanh.pop %v9507
        %v9598 = vtanh.pop %v9509
        %v9599 = vtanh.pop %v9511
        %v9600 = vtanh.pop %v9513
        %v9601 = vtanh.pop %v9517
        %v9602 = vtanh.pop %v9519
        %v9603 = vtanh.pop %v9521
        %v9604 = vtanh.pop %v9523
        %v9605 = vtanh.pop %v9527
        %v9606 = vtanh.pop %v9529
        %v9607 = vtanh.pop %v9531
        %v9608 = vtanh.pop %v9533
        %v9609 = vtanh.pop %v9537
        %v9610 = vtanh.pop %v9539
        %v9611 = vtanh.pop %v9541
        %v9612 = vtanh.pop %v9543
        %v9613 = vtanh.pop %v9547
        %v9614 = vtanh.pop %v9549
        %v9615 = vtanh.pop %v9551
        %v9616 = vtanh.pop %v9553
        %v9617 = vtanh.pop %v9557
        %v9618 = vtanh.pop %v9559
        %v9619 = vtanh.pop %v9561
        %v9620 = vtanh.pop %v9563
        %v9621 = vtanh.pop %v9567
        %v9622 = vtanh.pop %v9569
        %9623 = vst [vmem:[%s560] sm:$0xff] %v9573
        %9624 = vst [vmem:[%s560 + $0x8] sm:$0xff] %v9574
        %9625 = vst [vmem:[%s560 + $0x10] sm:$0xff] %v9575
        %9626 = vst [vmem:[%s560 + $0x18] sm:$0xff] %v9576
        %9627 = vst [vmem:[%s560 + $0x20] sm:$0xff] %v9577
        %9628 = vst [vmem:[%s560 + $0x28] sm:$0xff] %v9578
        %9629 = vst [vmem:[%s560 + $0x30] sm:$0xff] %v9579
        %9630 = vst [vmem:[%s560 + $0x38] sm:$0xff] %v9580
        %9631 = vst [vmem:[%s560 + $0x40] sm:$0xff] %v9581
        %9632 = vst [vmem:[%s560 + $0x48] sm:$0xff] %v9582
        %9633 = vst [vmem:[%s560 + $0x50] sm:$0xff] %v9583
        %9634 = vst [vmem:[%s560 + $0x58] sm:$0xff] %v9584
        %9635 = vst [vmem:[%s560 + $0x60] sm:$0xff] %v9585
        %9636 = vst [vmem:[%s560 + $0x68] sm:$0xff] %v9586
        %9637 = vst [vmem:[%s560 + $0x70] sm:$0xff] %v9587
        %9638 = vst [vmem:[%s560 + $0x78] sm:$0xff] %v9588
        %9639 = vst [vmem:[%s560 + $0x80] sm:$0xff] %v9589
        %9640 = vst [vmem:[%s560 + $0x88] sm:$0xff] %v9590
        %9641 = vst [vmem:[%s560 + $0x90] sm:$0xff] %v9591
        %9642 = vst [vmem:[%s560 + $0x98] sm:$0xff] %v9592
        %9643 = vst [vmem:[%s560 + $0xa0] sm:$0xff] %v9593
        %9644 = vst [vmem:[%s560 + $0xa8] sm:$0xff] %v9594
        %9645 = vst [vmem:[%s560 + $0xb0] sm:$0xff] %v9595
        %9646 = vst [vmem:[%s560 + $0xb8] sm:$0xff] %v9596
        %9647 = vst [vmem:[%s560 + $0xc0] sm:$0xff] %v9597
        %9648 = vst [vmem:[%s560 + $0xc8] sm:$0xff] %v9598
        %9649 = vst [vmem:[%s560 + $0xd0] sm:$0xff] %v9599
        %9650 = vst [vmem:[%s560 + $0xd8] sm:$0xff] %v9600
        %9651 = vst [vmem:[%s560 + $0xe0] sm:$0xff] %v9601
        %9652 = vst [vmem:[%s560 + $0xe8] sm:$0xff] %v9602
        %9653 = vst [vmem:[%s560 + $0xf0] sm:$0xff] %v9603
        %9654 = vst [vmem:[%s560 + $0xf8] sm:$0xff] %v9604
        %9655 = vst [vmem:[%s560 + $0x100] sm:$0xff] %v9605
        %9656 = vst [vmem:[%s560 + $0x108] sm:$0xff] %v9606
        %9657 = vst [vmem:[%s560 + $0x110] sm:$0xff] %v9607
        %9658 = vst [vmem:[%s560 + $0x118] sm:$0xff] %v9608
        %9659 = vst [vmem:[%s560 + $0x120] sm:$0xff] %v9609
        %9660 = vst [vmem:[%s560 + $0x128] sm:$0xff] %v9610
        %9661 = vst [vmem:[%s560 + $0x130] sm:$0xff] %v9611
        %9662 = vst [vmem:[%s560 + $0x138] sm:$0xff] %v9612
        %9663 = vst [vmem:[%s560 + $0x140] sm:$0xff] %v9613
        %9664 = vst [vmem:[%s560 + $0x148] sm:$0xff] %v9614
        %9665 = vst [vmem:[%s560 + $0x150] sm:$0xff] %v9615
        %9666 = vst [vmem:[%s560 + $0x158] sm:$0xff] %v9616
        %9667 = vst [vmem:[%s560 + $0x160] sm:$0xff] %v9617
        %9668 = vst [vmem:[%s560 + $0x168] sm:$0xff] %v9618
        %9669 = vst [vmem:[%s560 + $0x170] sm:$0xff] %v9619
        %9670 = vst [vmem:[%s560 + $0x178] sm:$0xff] %v9620
        %9671 = vst [vmem:[%s560 + $0x180] sm:$0xf] %v9621
        %9672 = vst [vmem:[%s560 + $0x188] sm:$0xf] %v9622
        %p9673 = scmp.lt.s32.totalorder %s29, 1
        %s9674 = scalar_select %p9673, %s29, 1
        %s9675 = smul.addr %s9674, 50
        %s9676 = smul.addr %s9675, 8
        %s9677 = scalar_lea.vmem %s13, %s9676
        // Predicated region
        $region109: #{generator_forward.1} parent=71 // pred_check
          %p9678 = pneg %p325
        $region110: #{generator_forward.1} parent=71 // pred_check_branch
          %9680 = sbr.rel (%p9678) target = $region112
        $region111: #{generator_forward.1} parent=71 // pred_region
          _
        $region112: #{generator_forward.1} parent=71 // pred_fallthru
          _
      $region72: #{generator_forward.1} parent=5 // pred_fallthru
        _
      %p9681 = scmp.le.s32.totalorder 2, %s24
      // Predicated region
      $region113: #{generator_forward.1} parent=5 // pred_check
        %p9682 = pneg %p9681
      $region114: #{generator_forward.1} parent=5 // pred_check_branch
        %9684 = sbr.rel (%p9682) target = $region116
      $region115: #{generator_forward.1} parent=5 // pred_region
        %s9685 = ssub.s32 %s24, 2
        // Predicated region
        $region117: #{generator_forward.1} parent=115 // pred_check
          %p9686 = pneg %p331
        $region118: #{generator_forward.1} parent=115 // pred_check_branch
          %9688 = sbr.rel (%p9686) target = $region120
        $region119: #{generator_forward.1} parent=115 // pred_region
          %p9689 = scmp.lt.s32.totalorder %s30, 1
          %s9690 = scalar_select %p9689, %s30, 1
          %s9691 = smul.addr %s9690, 50
          %s9692 = smul.addr %s9691, 8
          %s9693 = scalar_lea.vmem %s13, %s9692
        $region120: #{generator_forward.1} parent=115 // pred_fallthru
          _
      $region116: #{generator_forward.1} parent=5 // pred_fallthru
        _
    $region6: #{generator_forward.1} parent=1 // loop_footer
      %s28 = sadd.s32 1, %s24
    $region7: #{generator_forward.1} parent=1 // loop_footer_branch
      %23 = sbr.rel target = $region3
    $region8: #{generator_forward.1} parent=1 // loop_exit
      _
    %9694 = vsyncpa [#allocation5], 1
    %s9695 = scalar_lea.sflag [#allocation5], 1
    %9696 = vsyncpa %s9695, 1
    %9697 = vsyncpa [#allocation7], 1
    %9698 = vsyncpa [#allocation10], 1
    %9699 = vsyncpa [#allocation13], 1
    %9700 = vsyncpa [#allocation16], 1

</llo_original>
